<compile_context>
chip_gen: v7x
topology: tpu7x:2x2x1
jax: 0.10.0
libtpu: 0.0.40
codegen_flags: <defaults>
</compile_context>

<pallas_src>
import functools

import jax
import jax.numpy as jnp
from jax.experimental import pallas as pl
from jax.experimental.pallas import tpu as pltpu


# ---------------------------------------------------------------------------
# Encoder "pool" head: 1x1 Conv2d(512 -> 8), NCHW-native, lane-dense output.
# ---------------------------------------------------------------------------
def pool_conv1x1_kernel(x_ref, w_ref, b_ref, o_ref):
    # x_ref: (512, HW)  one batch of the NCHW feature map, flattened spatially
    # w_ref: (8, 512)   1x1-conv weight (resident in VMEM across the grid)
    # b_ref: (8, 1)     conv bias (broadcast along lanes)
    # o_ref: (8, HW)    lane-dense output, already in NCHW / .view order
    acc = jnp.dot(w_ref[...], x_ref[...], preferred_element_type=jnp.float32)
    o_ref[...] = acc + b_ref[...]


def encoder_pool(feat, w, b):
    """feat: (B, 512, H, W) f32; w: (8, 512); b: (8,) -> (B, 8*H*W)."""
    B, C, H, W = feat.shape
    C_out = w.shape[0]
    HW = H * W

    x = feat.reshape(B, C, HW)                       # free: NCHW stays NCHW
    wv = jnp.asarray(w, jnp.float32)                 # (8, 512)
    bias = jnp.asarray(b, jnp.float32).reshape(C_out, 1)

    bytes_accessed = 4 * (B * C * HW + C_out * C + C_out + B * C_out * HW)
    out = pl.pallas_call(
        pool_conv1x1_kernel,
        out_shape=jax.ShapeDtypeStruct((B, C_out, HW), jnp.float32),
        grid=(B,),
        in_specs=[
            pl.BlockSpec((None, C, HW), lambda i: (i, 0, 0)),   # per-batch block
            pl.BlockSpec((C_out, C), lambda i: (0, 0)),         # weight resident
            pl.BlockSpec((C_out, 1), lambda i: (0, 0)),         # bias resident
        ],
        out_specs=pl.BlockSpec((None, C_out, HW), lambda i: (i, 0, 0)),
        compiler_params=pltpu.CompilerParams(
            dimension_semantics=("parallel",)),
        cost_estimate=pl.CostEstimate(
            flops=2 * B * C_out * C * HW,
            transcendentals=0,
            bytes_accessed=bytes_accessed),
    )(x, wv, bias)

    # (B, 8, H*W) -> (B, 8*H*W): identical element order to PyTorch's
    # `self.pool(feat).view(-1, 1800)` on an NCHW tensor (reshape is free).
    return out.reshape(B, C_out * HW)


# ---------------------------------------------------------------------------
# Classifier: Linear -> ReLU -> Linear (weights streamed in column tiles).
# ---------------------------------------------------------------------------
def linear_kernel(x_ref, w_ref, b_ref, o_ref, *, relu):
    # x_ref: (B, K)   activation rows, resident in VMEM across the grid
    # w_ref: (K, TN)  one column tile of the (in, out)-layout weight
    # b_ref: (1, TN)
    # o_ref: (B, TN)
    acc = jnp.dot(x_ref[...], w_ref[...], preferred_element_type=jnp.float32)
    acc = acc + b_ref[...]
    if relu:
        acc = jnp.maximum(acc, 0.0)
    o_ref[...] = acc


def linear(x, w, b, *, relu, tn=512):
    """x: (B, K); w: (K, N)  (= torch Linear weight transposed); b: (N,)."""
    B, K = x.shape
    N = w.shape[1]
    wv = jnp.asarray(w, jnp.float32)
    bias = jnp.asarray(b, jnp.float32).reshape(1, N)

    return pl.pallas_call(
        functools.partial(linear_kernel, relu=relu),
        out_shape=jax.ShapeDtypeStruct((B, N), jnp.float32),
        grid=(pl.cdiv(N, tn),),
        in_specs=[
            pl.BlockSpec((B, K), lambda j: (0, 0)),     # activations resident
            pl.BlockSpec((K, tn), lambda j: (0, j)),    # stream weight columns
            pl.BlockSpec((1, tn), lambda j: (0, j)),
        ],
        out_specs=pl.BlockSpec((B, tn), lambda j: (0, j)),
        compiler_params=pltpu.CompilerParams(
            dimension_semantics=("parallel",)),
    )(x, wv, bias)


# ---------------------------------------------------------------------------
# Full CNN forward (minus the external resnet backbone).
# ---------------------------------------------------------------------------
@functools.partial(jax.jit, static_argnames=("cls_dim",))
def cnn_forward(feat, pool_w, pool_b, fc1_w, fc1_b, fc2_w, fc2_b,
                cls_dim=(37, 10, 4)):
    x = encoder_pool(feat, pool_w, pool_b)              # (B, 1800)
    h = linear(x, fc1_w, fc1_b, relu=True)              # (B, 2048)
    y = linear(h, fc2_w, fc2_b, relu=False)             # (B, 1480)
    return y.reshape((-1,) + tuple(cls_dim))            # (B, 37, 10, 4)


if __name__ == "__main__":
    key = jax.random.PRNGKey(0)
    k_feat, k_pw, k_pb, k_w1, k_b1, k_w2, k_b2 = jax.random.split(key, 7)

    # Shapes fixed by the module: pool = Conv2d(512, 8, 1) and .view(-1, 1800)
    # requires 8 * H * W == 1800 -> canonical UFLD spatial size (9, 25).
    B, C_in, H, W = 2, 512, 9, 25
    C_out = 8
    cls_dim = (37, 10, 4)
    total_dim = 37 * 10 * 4          # 1480
    hidden = 2048

    feat = jax.random.normal(k_feat, (B, C_in, H, W), dtype=jnp.float32)
    pool_w = 0.01 * jax.random.normal(k_pw, (C_out, C_in), dtype=jnp.float32)
    pool_b = 0.01 * jax.random.normal(k_pb, (C_out,), dtype=jnp.float32)
    # Linear weights in (in, out) layout (= torch weight transposed).
    fc1_w = 0.01 * jax.random.normal(k_w1, (C_out * H * W, hidden), dtype=jnp.float32)
    fc1_b = 0.01 * jax.random.normal(k_b1, (hidden,), dtype=jnp.float32)
    fc2_w = 0.01 * jax.random.normal(k_w2, (hidden, total_dim), dtype=jnp.float32)
    fc2_b = 0.01 * jax.random.normal(k_b2, (total_dim,), dtype=jnp.float32)

    out = cnn_forward(feat, pool_w, pool_b, fc1_w, fc1_b, fc2_w, fc2_b,
                      cls_dim=cls_dim)
    out = jax.block_until_ready(out)
    assert out.shape == (B,) + cls_dim, out.shape

    # Pure-JAX reference of the same forward pass.
    ref_feat = (jnp.einsum("bchw,oc->bohw", feat, pool_w)
                + pool_b[None, :, None, None]).reshape(B, C_out * H * W)
    ref_h = jnp.maximum(ref_feat @ fc1_w + fc1_b, 0.0)
    ref = (ref_h @ fc2_w + fc2_b).reshape((B,) + cls_dim)

    # Check the encoder output ordering (NCHW .view(-1, 1800)) and the final logits.
    enc = jax.block_until_ready(encoder_pool(feat, pool_w, pool_b))
    assert jnp.allclose(enc, ref_feat, atol=1e-4, rtol=1e-4), (
        float(jnp.max(jnp.abs(enc - ref_feat))))
    assert jnp.allclose(out, ref, atol=2e-3, rtol=2e-3), (
        float(jnp.max(jnp.abs(out - ref))))

    print("KERNEL_OK")
</pallas_src>

<mosaic_0001>
module attributes {stable_mosaic.version = 11 : i64} {
  func.func @pool_conv1x1_kernel(%arg0: i32, %arg1: memref<1x512x225xf32, #tpu.memory_space<vmem>>, %arg2: memref<8x512xf32, #tpu.memory_space<vmem>>, %arg3: memref<8x1xf32, #tpu.memory_space<vmem>>, %arg4: memref<1x8x225xf32, #tpu.memory_space<vmem>>) attributes {dimension_semantics = [#tpu.dimension_semantics<parallel>], iteration_bounds = array<i64: 2>, scalar_prefetch = 0 : i64, scratch_operands = 0 : i64, tpu.core_type = #tpu.core_type<tc>, window_params = [{transform_indices = @transform_0, window_bounds = array<i64: 1, 512, 225>}, {pipeline_mode = #tpu.pipeline_mode<synchronous>, transform_indices = @transform_1, window_bounds = array<i64: 8, 512>}, {pipeline_mode = #tpu.pipeline_mode<synchronous>, transform_indices = @transform_2, window_bounds = array<i64: 8, 1>}, {transform_indices = @transform_3, window_bounds = array<i64: 1, 8, 225>}]} {
    %c0 = arith.constant 0 : index
    %c0_0 = arith.constant 0 : index
    %0 = vector.load %arg2[%c0, %c0_0] : memref<8x512xf32, #tpu.memory_space<vmem>>, vector<8x512xf32>
    %c0_1 = arith.constant 0 : index
    %c0_2 = arith.constant 0 : index
    %c0_3 = arith.constant 0 : index
    %1 = vector.load %arg1[%c0_1, %c0_2, %c0_3] : memref<1x512x225xf32, #tpu.memory_space<vmem>>, vector<1x512x225xf32>
    %2 = vector.shape_cast %1 : vector<1x512x225xf32> to vector<512x225xf32>
    %cst = arith.constant dense<0.000000e+00> : vector<8x225xf32>
    %3 = tpu.matmul %0, %2, %cst {dimension_numbers = #tpu.dot_dimension_numbers<[1], [0], [0], [1], [0, 0, 1, 1], [], []>} : vector<8x512xf32>, vector<512x225xf32>, vector<8x225xf32> -> vector<8x225xf32>
    %c0_4 = arith.constant 0 : index
    %c0_5 = arith.constant 0 : index
    %4 = vector.load %arg3[%c0_4, %c0_5] : memref<8x1xf32, #tpu.memory_space<vmem>>, vector<8x1xf32>
    %5 = vector.broadcast %4 : vector<8x1xf32> to vector<8x225xf32>
    %6 = arith.addf %3, %5 : vector<8x225xf32>
    %c0_6 = arith.constant 0 : index
    %c0_7 = arith.constant 0 : index
    %c0_8 = arith.constant 0 : index
    %7 = vector.load %arg4[%c0_6, %c0_7, %c0_8] : memref<1x8x225xf32, #tpu.memory_space<vmem>>, vector<1x8x225xf32>
    %8 = vector.shape_cast %7 : vector<1x8x225xf32> to vector<8x225xf32>
    %9 = vector.shape_cast %6 : vector<8x225xf32> to vector<1x8x225xf32>
    tpu.vector_store %arg4[%c0_6, %c0_7, %c0_8], %9 {strides = array<i32>} : memref<1x8x225xf32, #tpu.memory_space<vmem>>, vector<1x8x225xf32>,
    return
  }
  func.func @transform_0(%arg0: i32) -> (i32, i32, i32) {
    %c0_i32 = arith.constant 0 : i32
    %c0_i32_0 = arith.constant 0 : i32
    %c0_i32_1 = arith.constant 0 : i32
    return %arg0, %c0_i32, %c0_i32_0 : i32, i32, i32
  }
  func.func @transform_1(%arg0: i32) -> (i32, i32) {
    %c0_i32 = arith.constant 0 : i32
    %c0_i32_0 = arith.constant 0 : i32
    %c0_i32_1 = arith.constant 0 : i32
    return %c0_i32, %c0_i32_0 : i32, i32
  }
  func.func @transform_2(%arg0: i32) -> (i32, i32) {
    %c0_i32 = arith.constant 0 : i32
    %c0_i32_0 = arith.constant 0 : i32
    %c0_i32_1 = arith.constant 0 : i32
    return %c0_i32, %c0_i32_0 : i32, i32
  }
  func.func @transform_3(%arg0: i32) -> (i32, i32, i32) {
    %c0_i32 = arith.constant 0 : i32
    %c0_i32_0 = arith.constant 0 : i32
    %c0_i32_1 = arith.constant 0 : i32
    return %arg0, %c0_i32, %c0_i32_0 : i32, i32, i32
  }
}

module attributes {stable_mosaic.version = 11 : i64} {
  func.func @linear_kernel(%arg0: i32, %arg1: memref<2x1800xf32, #tpu.memory_space<vmem>>, %arg2: memref<1800x512xf32, #tpu.memory_space<vmem>>, %arg3: memref<1x512xf32, #tpu.memory_space<vmem>>, %arg4: memref<2x512xf32, #tpu.memory_space<vmem>>) attributes {dimension_semantics = [#tpu.dimension_semantics<parallel>], iteration_bounds = array<i64: 4>, scalar_prefetch = 0 : i64, scratch_operands = 0 : i64, tpu.core_type = #tpu.core_type<tc>, window_params = [{pipeline_mode = #tpu.pipeline_mode<synchronous>, transform_indices = @transform_0, window_bounds = array<i64: 2, 1800>}, {transform_indices = @transform_1, window_bounds = array<i64: 1800, 512>}, {transform_indices = @transform_2, window_bounds = array<i64: 1, 512>}, {transform_indices = @transform_3, window_bounds = array<i64: 2, 512>}]} {
    %c0 = arith.constant 0 : index
    %c0_0 = arith.constant 0 : index
    %0 = vector.load %arg1[%c0, %c0_0] : memref<2x1800xf32, #tpu.memory_space<vmem>>, vector<2x1800xf32>
    %c0_1 = arith.constant 0 : index
    %c0_2 = arith.constant 0 : index
    %1 = vector.load %arg2[%c0_1, %c0_2] : memref<1800x512xf32, #tpu.memory_space<vmem>>, vector<1800x512xf32>
    %cst = arith.constant dense<0.000000e+00> : vector<2x512xf32>
    %2 = tpu.matmul %0, %1, %cst {dimension_numbers = #tpu.dot_dimension_numbers<[1], [0], [0], [1], [0, 0, 1, 1], [], []>} : vector<2x1800xf32>, vector<1800x512xf32>, vector<2x512xf32> -> vector<2x512xf32>
    %c0_3 = arith.constant 0 : index
    %c0_4 = arith.constant 0 : index
    %3 = vector.load %arg3[%c0_3, %c0_4] : memref<1x512xf32, #tpu.memory_space<vmem>>, vector<1x512xf32>
    %4 = vector.broadcast %3 : vector<1x512xf32> to vector<2x512xf32>
    %5 = arith.addf %2, %4 : vector<2x512xf32>
    %cst_5 = arith.constant 0.000000e+00 : f32
    %6 = vector.broadcast %cst_5 : f32 to vector<2x512xf32>
    %7 = arith.maximumf %5, %6 : vector<2x512xf32>
    %c0_6 = arith.constant 0 : index
    %c0_7 = arith.constant 0 : index
    %8 = vector.load %arg4[%c0_6, %c0_7] : memref<2x512xf32, #tpu.memory_space<vmem>>, vector<2x512xf32>
    tpu.vector_store %arg4[%c0_6, %c0_7], %7 {strides = array<i32>} : memref<2x512xf32, #tpu.memory_space<vmem>>, vector<2x512xf32>,
    return
  }
  func.func @transform_0(%arg0: i32) -> (i32, i32) {
    %c0_i32 = arith.constant 0 : i32
    %c0_i32_0 = arith.constant 0 : i32
    %c0_i32_1 = arith.constant 0 : i32
    return %c0_i32, %c0_i32_0 : i32, i32
  }
  func.func @transform_1(%arg0: i32) -> (i32, i32) {
    %c0_i32 = arith.constant 0 : i32
    %c0_i32_0 = arith.constant 0 : i32
    return %c0_i32, %arg0 : i32, i32
  }
  func.func @transform_2(%arg0: i32) -> (i32, i32) {
    %c0_i32 = arith.constant 0 : i32
    %c0_i32_0 = arith.constant 0 : i32
    return %c0_i32, %arg0 : i32, i32
  }
  func.func @transform_3(%arg0: i32) -> (i32, i32) {
    %c0_i32 = arith.constant 0 : i32
    %c0_i32_0 = arith.constant 0 : i32
    return %c0_i32, %arg0 : i32, i32
  }
}

module attributes {stable_mosaic.version = 11 : i64} {
  func.func @linear_kernel(%arg0: i32, %arg1: memref<2x2048xf32, #tpu.memory_space<vmem>>, %arg2: memref<2048x512xf32, #tpu.memory_space<vmem>>, %arg3: memref<1x512xf32, #tpu.memory_space<vmem>>, %arg4: memref<2x512xf32, #tpu.memory_space<vmem>>) attributes {dimension_semantics = [#tpu.dimension_semantics<parallel>], iteration_bounds = array<i64: 3>, scalar_prefetch = 0 : i64, scratch_operands = 0 : i64, tpu.core_type = #tpu.core_type<tc>, window_params = [{pipeline_mode = #tpu.pipeline_mode<synchronous>, transform_indices = @transform_0, window_bounds = array<i64: 2, 2048>}, {transform_indices = @transform_1, window_bounds = array<i64: 2048, 512>}, {transform_indices = @transform_2, window_bounds = array<i64: 1, 512>}, {transform_indices = @transform_3, window_bounds = array<i64: 2, 512>}]} {
    %c0 = arith.constant 0 : index
    %c0_0 = arith.constant 0 : index
    %0 = vector.load %arg1[%c0, %c0_0] : memref<2x2048xf32, #tpu.memory_space<vmem>>, vector<2x2048xf32>
    %c0_1 = arith.constant 0 : index
    %c0_2 = arith.constant 0 : index
    %1 = vector.load %arg2[%c0_1, %c0_2] : memref<2048x512xf32, #tpu.memory_space<vmem>>, vector<2048x512xf32>
    %cst = arith.constant dense<0.000000e+00> : vector<2x512xf32>
    %2 = tpu.matmul %0, %1, %cst {dimension_numbers = #tpu.dot_dimension_numbers<[1], [0], [0], [1], [0, 0, 1, 1], [], []>} : vector<2x2048xf32>, vector<2048x512xf32>, vector<2x512xf32> -> vector<2x512xf32>
    %c0_3 = arith.constant 0 : index
    %c0_4 = arith.constant 0 : index
    %3 = vector.load %arg3[%c0_3, %c0_4] : memref<1x512xf32, #tpu.memory_space<vmem>>, vector<1x512xf32>
    %4 = vector.broadcast %3 : vector<1x512xf32> to vector<2x512xf32>
    %5 = arith.addf %2, %4 : vector<2x512xf32>
    %c0_5 = arith.constant 0 : index
    %c0_6 = arith.constant 0 : index
    %6 = vector.load %arg4[%c0_5, %c0_6] : memref<2x512xf32, #tpu.memory_space<vmem>>, vector<2x512xf32>
    tpu.vector_store %arg4[%c0_5, %c0_6], %5 {strides = array<i32>} : memref<2x512xf32, #tpu.memory_space<vmem>>, vector<2x512xf32>,
    return
  }
  func.func @transform_0(%arg0: i32) -> (i32, i32) {
    %c0_i32 = arith.constant 0 : i32
    %c0_i32_0 = arith.constant 0 : i32
    %c0_i32_1 = arith.constant 0 : i32
    return %c0_i32, %c0_i32_0 : i32, i32
  }
  func.func @transform_1(%arg0: i32) -> (i32, i32) {
    %c0_i32 = arith.constant 0 : i32
    %c0_i32_0 = arith.constant 0 : i32
    return %c0_i32, %arg0 : i32, i32
  }
  func.func @transform_2(%arg0: i32) -> (i32, i32) {
    %c0_i32 = arith.constant 0 : i32
    %c0_i32_0 = arith.constant 0 : i32
    return %c0_i32, %arg0 : i32, i32
  }
  func.func @transform_3(%arg0: i32) -> (i32, i32) {
    %c0_i32 = arith.constant 0 : i32
    %c0_i32_0 = arith.constant 0 : i32
    return %c0_i32, %arg0 : i32, i32
  }
}

</mosaic_0001>

<llo_original>
// kernel: cnn_forward.3
$region0: #{cnn_forward.3}
  #allocation0 [shape = 'u32[]', space=smem, size = 0x4, offset = 0x4, fixed_abs, tag = 'smem constant byte address 0x4 - core index']
  #allocation1 [shape = 'u32[144,128]{1,0:T(1,128)}', space=vmem, size = 0x12000, scoped, tag = 'internal scratch']
  %s0 = inlined_call_operand.vmem [shape: f32[2,512,225], index: 0, kind: input, shape index: {}]
  %s1 = inlined_call_operand.hbm [shape: f32[8,512], index: 1, kind: input, shape index: {}]
  %s2 = inlined_call_operand.vmem [shape: f32[8,1], index: 2, kind: input, shape index: {}]
  %s3 = inlined_call_operand.vmem [shape: f32[2,8,225], index: 3, kind: output, shape index: {}]
  %s4 = sld [smem:[#allocation0]]
  $region49: #{cnn_forward.3} parent=0
    _
  %s6 = ssub.s32 1, %s4
  %s7 = scalar_select 0, %s6, %s4
  $region1: #{cnn_forward.3} parent=0
    #allocation2 [shape = 'u8[16384]{0}', space=vmem, size = 0x4000, scoped, tag = 'input window, operand 1, single buffered']
    #allocation3 [shape = 's32[2]{0}', space=sflag, size = 0x8, scoped, tag = 'scoped memory for cnn_forward.3']
    %8 = vsyncpa [#allocation3], 0
    loop: start=0, step=1, limit=4
    $region2: #{cnn_forward.3} parent=1 // loop_pre_header
      _
    $region3: #{cnn_forward.3} parent=1 // loop_header
      %s10 = sphi 0, %s14
      %p11 = scmp.ge.s32.totalorder %s10, 4
      %s20 = sphi 0, %s22
      %s23 = sphi 0, %s20
      %s24 = sphi 0, %s23
      %s40 = sphi 0, %s24
      %s44 = sphi 0, %s44
      %s46 = sphi 0, %s44
      %s47 = sphi 0, %s46
      %s61 = sphi 0, %s47
      %s65 = sphi 0, %s65
      %s67 = sphi 0, %s65
      %s68 = sphi 0, %s67
      %s82 = sphi 0, %s68
      %s88 = sphi 0, %s90
      %s91 = sphi 0, %s88
      %s92 = sphi 0, %s91
      %s108 = sphi 0, %s92
    $region4: #{cnn_forward.3} parent=1 // loop_header_branch
      %13 = sbr.rel (%p11) target = $region8
    $region5: #{cnn_forward.3} parent=1 // loop_body
      %s15 = ssub.s32 %s10, 1
      %s16 = ssub.s32 %s10, 2
      %s17 = sadd.s32 %s10, 1
      %s18 = ssub.s32 %s10, %s17
      %p19 = scmp.eq.s32.totalorder %s18, 0
      %s21 = sadd.s32 %s20, 1
      %s22 = scalar_select %p19, %s20, %s21
      %p25 = pneg %p19
      %p26 = scmp.eq.s32.totalorder %s10, 1
      %p27 = por %p25, %p26
      %p28 = scmp.ne.s32.totalorder %s20, %s23
      %p29 = scmp.eq.s32.totalorder %s10, 0
      %p30 = por %p28, %p29
      %p31 = scmp.ne.s32.totalorder %s20, %s23
      %p32 = scmp.eq.s32.totalorder %s15, 1
      %p33 = por %p31, %p32
      %p34 = scmp.ne.s32.totalorder %s23, %s24
      %p35 = scmp.eq.s32.totalorder %s15, 0
      %p36 = por %p34, %p35
      %p37 = scmp.ne.s32.totalorder %s23, %s24
      %p38 = scmp.eq.s32.totalorder %s16, 1
      %p39 = por %p37, %p38
      %p41 = scmp.ne.s32.totalorder %s24, %s40
      %p42 = scmp.eq.s32.totalorder %s16, 0
      %p43 = por %p41, %p42
      %s45 = sadd.s32 %s44, 1
      %p48 = scmp.eq.s32.totalorder %s10, 1
      %p49 = scmp.ne.s32.totalorder %s44, %s46
      %p50 = scmp.eq.s32.totalorder %s10, 0
      %p51 = por %p49, %p50
      %p52 = scmp.ne.s32.totalorder %s44, %s46
      %p53 = scmp.eq.s32.totalorder %s15, 1
      %p54 = por %p52, %p53
      %p55 = scmp.ne.s32.totalorder %s46, %s47
      %p56 = scmp.eq.s32.totalorder %s15, 0
      %p57 = por %p55, %p56
      %p58 = scmp.ne.s32.totalorder %s46, %s47
      %p59 = scmp.eq.s32.totalorder %s16, 1
      %p60 = por %p58, %p59
      %p62 = scmp.ne.s32.totalorder %s47, %s61
      %p63 = scmp.eq.s32.totalorder %s16, 0
      %p64 = por %p62, %p63
      %s66 = sadd.s32 %s65, 1
      %p69 = scmp.eq.s32.totalorder %s10, 1
      %p70 = scmp.ne.s32.totalorder %s65, %s67
      %p71 = scmp.eq.s32.totalorder %s10, 0
      %p72 = por %p70, %p71
      %p73 = scmp.ne.s32.totalorder %s65, %s67
      %p74 = scmp.eq.s32.totalorder %s15, 1
      %p75 = por %p73, %p74
      %p76 = scmp.ne.s32.totalorder %s67, %s68
      %p77 = scmp.eq.s32.totalorder %s15, 0
      %p78 = por %p76, %p77
      %p79 = scmp.ne.s32.totalorder %s67, %s68
      %p80 = scmp.eq.s32.totalorder %s16, 1
      %p81 = por %p79, %p80
      %p83 = scmp.ne.s32.totalorder %s68, %s82
      %p84 = scmp.eq.s32.totalorder %s16, 0
      %p85 = por %p83, %p84
      %s86 = ssub.s32 %s10, %s17
      %p87 = scmp.eq.s32.totalorder %s86, 0
      %s89 = sadd.s32 %s88, 1
      %s90 = scalar_select %p87, %s88, %s89
      %p93 = pneg %p87
      %p94 = scmp.eq.s32.totalorder %s10, 1
      %p95 = por %p93, %p94
      %p96 = scmp.ne.s32.totalorder %s88, %s91
      %p97 = scmp.eq.s32.totalorder %s10, 0
      %p98 = por %p96, %p97
      %p99 = scmp.ne.s32.totalorder %s88, %s91
      %p100 = scmp.eq.s32.totalorder %s15, 1
      %p101 = por %p99, %p100
      %p102 = scmp.ne.s32.totalorder %s91, %s92
      %p103 = scmp.eq.s32.totalorder %s15, 0
      %p104 = por %p102, %p103
      %p105 = scmp.ne.s32.totalorder %s91, %s92
      %p106 = scmp.eq.s32.totalorder %s16, 1
      %p107 = por %p105, %p106
      %p109 = scmp.ne.s32.totalorder %s92, %s108
      %p110 = scmp.eq.s32.totalorder %s16, 0
      %p111 = por %p109, %p110
      %p112 = scmp.le.s32.totalorder 1, %s10
      %p113 = scmp.lt.s32.totalorder %s10, 3
      %p114 = pnand %p112, %p113
      %p115 = pneg %p114
      // Predicated region
      $region9: #{cnn_forward.3} parent=5 // pred_check
        _
      $region10: #{cnn_forward.3} parent=5 // pred_check_branch
        %117 = sbr.rel (%p114) target = $region12
      $region11: #{cnn_forward.3} parent=5 // pred_region
        %s118 = ssub.s32 %s10, 1
        // Predicated region
        $region13: #{cnn_forward.3} parent=11 // pred_check
          %p119 = pneg %p57
        $region14: #{cnn_forward.3} parent=11 // pred_check_branch
          %121 = sbr.rel (%p119) target = $region16
        $region15: #{cnn_forward.3} parent=11 // pred_region
          %s123 = ssub.s32 512, 512
          %124 = vsyncadd [#allocation3], %s123
          %s126 = sshll.u32 [#allocation2], 4
          %s127 = int_to_ptr.vmem [resolvable:$true] %s126
          %129 = dma.hbm_to_vmem [thread:$0]  %s1, 512, %s127, [#allocation3]
        $region16: #{cnn_forward.3} parent=11 // pred_fallthru
          _
        // Predicated region
        $region17: #{cnn_forward.3} parent=11 // pred_check
          %p130 = pneg %p78
        $region18: #{cnn_forward.3} parent=11 // pred_check_branch
          %132 = sbr.rel (%p130) target = $region20
        $region19: #{cnn_forward.3} parent=11 // pred_region
          _
        $region20: #{cnn_forward.3} parent=11 // pred_fallthru
          _
      $region12: #{cnn_forward.3} parent=5 // pred_fallthru
        _
      %p133 = scmp.lt.s32.totalorder %s10, 2
      // Predicated region
      $region21: #{cnn_forward.3} parent=5 // pred_check
        %p134 = pneg %p133
      $region22: #{cnn_forward.3} parent=5 // pred_check_branch
        %136 = sbr.rel (%p134) target = $region24
      $region23: #{cnn_forward.3} parent=5 // pred_region
        // Predicated region
        $region25: #{cnn_forward.3} parent=23 // pred_check
          %p137 = pneg %p30
        $region26: #{cnn_forward.3} parent=23 // pred_check_branch
          %139 = sbr.rel (%p137) target = $region28
        $region27: #{cnn_forward.3} parent=23 // pred_region
          %p140 = scmp.lt.s32.totalorder %s10, 1
          %s141 = scalar_select %p140, %s10, 1
          %s142 = smul.addr %s141, 128
          %s143 = smul.addr %s142, 8
          %s144 = scalar_lea.vmem %s0, %s143
        $region28: #{cnn_forward.3} parent=23 // pred_fallthru
          _
      $region24: #{cnn_forward.3} parent=5 // pred_fallthru
        _
      %p145 = scmp.le.s32.totalorder 1, %s10
      %p146 = scmp.lt.s32.totalorder %s10, 3
      %p147 = pnand %p145, %p146
      %p148 = pneg %p147
      // Predicated region
      $region29: #{cnn_forward.3} parent=5 // pred_check
        _
      $region30: #{cnn_forward.3} parent=5 // pred_check_branch
        %150 = sbr.rel (%p147) target = $region32
      $region31: #{cnn_forward.3} parent=5 // pred_region
        %s151 = ssub.s32 %s10, 1
        // Predicated region
        $region33: #{cnn_forward.3} parent=31 // pred_check
          %p152 = pneg %p57
        $region34: #{cnn_forward.3} parent=31 // pred_check_branch
          %154 = sbr.rel (%p152) target = $region36
        $region35: #{cnn_forward.3} parent=31 // pred_region
          %155 = dma.done [#allocation3], 512
        $region36: #{cnn_forward.3} parent=31 // pred_fallthru
          _
        %p156 = scmp.lt.s32.totalorder %s15, 1
        %s157 = scalar_select %p156, %s15, 1
        %s158 = smul.addr %s157, 128
        %s159 = smul.addr %s158, 8
        %s160 = scalar_lea.vmem %s0, %s159
        %p161 = pneg %p36
        %p162 = pneg %p33
        %p163 = pneg %p57
        %p164 = pneg %p54
        %p165 = pneg %p78
        %p166 = pneg %p75
        %p167 = pneg %p104
        %p168 = pneg %p101
        %p169 = scmp.lt.s32.totalorder %s15, 1
        %s170 = scalar_select %p169, %s15, 1
        %s171 = smul.addr %s170, 2
        %s172 = smul.addr %s171, 8
        %s173 = scalar_lea.vmem %s3, %s172
        %p174 = scmp.lt.s32.totalorder %s15, 1
        %s175 = scalar_select %p174, %s15, 1
        %s176 = smul.addr %s175, 128
        %s177 = smul.addr %s176, 8
        %s178 = scalar_lea.vmem %s0, %s177
        %p179 = scmp.lt.s32.totalorder %s15, 1
        %s180 = scalar_select %p179, %s15, 1
        %s181 = smul.addr %s180, 2
        %s182 = smul.addr %s181, 8
        %s183 = scalar_lea.vmem %s3, %s182
        %v184 = vld [vmem:[#allocation2] sm:$0xff]
        %v185 = vld [vmem:[#allocation2 + $0x8] sm:$0xff]
        %v186 = vld [vmem:[#allocation2 + $0x10] sm:$0xff]
        %v187 = vld [vmem:[#allocation2 + $0x18] sm:$0xff]
        %v188 = vld [vmem:[%s178] sm:$0xff]
        %v189 = vld [vmem:[%s178 + $0x8] sm:$0xff]
        %v190 = vld [vmem:[%s178 + $0x10] sm:$0xff]
        %v191 = vld [vmem:[%s178 + $0x18] sm:$0xff]
        %v192 = vld [vmem:[%s178 + $0x20] sm:$0xff]
        %v193 = vld [vmem:[%s178 + $0x28] sm:$0xff]
        %v194 = vld [vmem:[%s178 + $0x30] sm:$0xff]
        %v195 = vld [vmem:[%s178 + $0x38] sm:$0xff]
        %v196 = vld [vmem:[%s178 + $0x40] sm:$0xff]
        %v197 = vld [vmem:[%s178 + $0x48] sm:$0xff]
        %v198 = vld [vmem:[%s178 + $0x50] sm:$0xff]
        %v199 = vld [vmem:[%s178 + $0x58] sm:$0xff]
        %v200 = vld [vmem:[%s178 + $0x60] sm:$0xff]
        %v201 = vld [vmem:[%s178 + $0x68] sm:$0xff]
        %v202 = vld [vmem:[%s178 + $0x70] sm:$0xff]
        %v203 = vld [vmem:[%s178 + $0x78] sm:$0xff]
        %v204 = vld [vmem:[%s178 + $0x80] sm:$0xff]
        %v205 = vld [vmem:[%s178 + $0x88] sm:$0xff]
        %v206 = vld [vmem:[%s178 + $0x90] sm:$0xff]
        %v207 = vld [vmem:[%s178 + $0x98] sm:$0xff]
        %v208 = vld [vmem:[%s178 + $0xa0] sm:$0xff]
        %v209 = vld [vmem:[%s178 + $0xa8] sm:$0xff]
        %v210 = vld [vmem:[%s178 + $0xb0] sm:$0xff]
        %v211 = vld [vmem:[%s178 + $0xb8] sm:$0xff]
        %v212 = vld [vmem:[%s178 + $0xc0] sm:$0xff]
        %v213 = vld [vmem:[%s178 + $0xc8] sm:$0xff]
        %v214 = vld [vmem:[%s178 + $0xd0] sm:$0xff]
        %v215 = vld [vmem:[%s178 + $0xd8] sm:$0xff]
        %v216 = vld [vmem:[%s178 + $0xe0] sm:$0xff]
        %v217 = vld [vmem:[%s178 + $0xe8] sm:$0xff]
        %v218 = vld [vmem:[%s178 + $0xf0] sm:$0xff]
        %v219 = vld [vmem:[%s178 + $0xf8] sm:$0xff]
        %v220 = vld [vmem:[%s178 + $0x100] sm:$0xff]
        %v221 = vld [vmem:[%s178 + $0x108] sm:$0xff]
        %v222 = vld [vmem:[%s178 + $0x110] sm:$0xff]
        %v223 = vld [vmem:[%s178 + $0x118] sm:$0xff]
        %v224 = vld [vmem:[%s178 + $0x120] sm:$0xff]
        %v225 = vld [vmem:[%s178 + $0x128] sm:$0xff]
        %v226 = vld [vmem:[%s178 + $0x130] sm:$0xff]
        %v227 = vld [vmem:[%s178 + $0x138] sm:$0xff]
        %v228 = vld [vmem:[%s178 + $0x140] sm:$0xff]
        %v229 = vld [vmem:[%s178 + $0x148] sm:$0xff]
        %v230 = vld [vmem:[%s178 + $0x150] sm:$0xff]
        %v231 = vld [vmem:[%s178 + $0x158] sm:$0xff]
        %v232 = vld [vmem:[%s178 + $0x160] sm:$0xff]
        %v233 = vld [vmem:[%s178 + $0x168] sm:$0xff]
        %v234 = vld [vmem:[%s178 + $0x170] sm:$0xff]
        %v235 = vld [vmem:[%s178 + $0x178] sm:$0xff]
        %v236 = vld [vmem:[%s178 + $0x180] sm:$0xff]
        %v237 = vld [vmem:[%s178 + $0x188] sm:$0xff]
        %v238 = vld [vmem:[%s178 + $0x190] sm:$0xff]
        %v239 = vld [vmem:[%s178 + $0x198] sm:$0xff]
        %v240 = vld [vmem:[%s178 + $0x1a0] sm:$0xff]
        %v241 = vld [vmem:[%s178 + $0x1a8] sm:$0xff]
        %v242 = vld [vmem:[%s178 + $0x1b0] sm:$0xff]
        %v243 = vld [vmem:[%s178 + $0x1b8] sm:$0xff]
        %v244 = vld [vmem:[%s178 + $0x1c0] sm:$0xff]
        %v245 = vld [vmem:[%s178 + $0x1c8] sm:$0xff]
        %v246 = vld [vmem:[%s178 + $0x1d0] sm:$0xff]
        %v247 = vld [vmem:[%s178 + $0x1d8] sm:$0xff]
        %v248 = vld [vmem:[%s178 + $0x1e0] sm:$0xff]
        %v249 = vld [vmem:[%s178 + $0x1e8] sm:$0xff]
        %v250 = vld [vmem:[%s178 + $0x1f0] sm:$0xff]
        %v251 = vld [vmem:[%s178 + $0x1f8] sm:$0xff]
        %v252 = vld [vmem:[%s178 + $0x200] sm:$0xff]
        %v253 = vld [vmem:[%s178 + $0x208] sm:$0xff]
        %v254 = vld [vmem:[%s178 + $0x210] sm:$0xff]
        %v255 = vld [vmem:[%s178 + $0x218] sm:$0xff]
        %v256 = vld [vmem:[%s178 + $0x220] sm:$0xff]
        %v257 = vld [vmem:[%s178 + $0x228] sm:$0xff]
        %v258 = vld [vmem:[%s178 + $0x230] sm:$0xff]
        %v259 = vld [vmem:[%s178 + $0x238] sm:$0xff]
        %v260 = vld [vmem:[%s178 + $0x240] sm:$0xff]
        %v261 = vld [vmem:[%s178 + $0x248] sm:$0xff]
        %v262 = vld [vmem:[%s178 + $0x250] sm:$0xff]
        %v263 = vld [vmem:[%s178 + $0x258] sm:$0xff]
        %v264 = vld [vmem:[%s178 + $0x260] sm:$0xff]
        %v265 = vld [vmem:[%s178 + $0x268] sm:$0xff]
        %v266 = vld [vmem:[%s178 + $0x270] sm:$0xff]
        %v267 = vld [vmem:[%s178 + $0x278] sm:$0xff]
        %v268 = vld [vmem:[%s178 + $0x280] sm:$0xff]
        %v269 = vld [vmem:[%s178 + $0x288] sm:$0xff]
        %v270 = vld [vmem:[%s178 + $0x290] sm:$0xff]
        %v271 = vld [vmem:[%s178 + $0x298] sm:$0xff]
        %v272 = vld [vmem:[%s178 + $0x2a0] sm:$0xff]
        %v273 = vld [vmem:[%s178 + $0x2a8] sm:$0xff]
        %v274 = vld [vmem:[%s178 + $0x2b0] sm:$0xff]
        %v275 = vld [vmem:[%s178 + $0x2b8] sm:$0xff]
        %v276 = vld [vmem:[%s178 + $0x2c0] sm:$0xff]
        %v277 = vld [vmem:[%s178 + $0x2c8] sm:$0xff]
        %v278 = vld [vmem:[%s178 + $0x2d0] sm:$0xff]
        %v279 = vld [vmem:[%s178 + $0x2d8] sm:$0xff]
        %v280 = vld [vmem:[%s178 + $0x2e0] sm:$0xff]
        %v281 = vld [vmem:[%s178 + $0x2e8] sm:$0xff]
        %v282 = vld [vmem:[%s178 + $0x2f0] sm:$0xff]
        %v283 = vld [vmem:[%s178 + $0x2f8] sm:$0xff]
        %v284 = vld [vmem:[%s178 + $0x300] sm:$0xff]
        %v285 = vld [vmem:[%s178 + $0x308] sm:$0xff]
        %v286 = vld [vmem:[%s178 + $0x310] sm:$0xff]
        %v287 = vld [vmem:[%s178 + $0x318] sm:$0xff]
        %v288 = vld [vmem:[%s178 + $0x320] sm:$0xff]
        %v289 = vld [vmem:[%s178 + $0x328] sm:$0xff]
        %v290 = vld [vmem:[%s178 + $0x330] sm:$0xff]
        %v291 = vld [vmem:[%s178 + $0x338] sm:$0xff]
        %v292 = vld [vmem:[%s178 + $0x340] sm:$0xff]
        %v293 = vld [vmem:[%s178 + $0x348] sm:$0xff]
        %v294 = vld [vmem:[%s178 + $0x350] sm:$0xff]
        %v295 = vld [vmem:[%s178 + $0x358] sm:$0xff]
        %v296 = vld [vmem:[%s178 + $0x360] sm:$0xff]
        %v297 = vld [vmem:[%s178 + $0x368] sm:$0xff]
        %v298 = vld [vmem:[%s178 + $0x370] sm:$0xff]
        %v299 = vld [vmem:[%s178 + $0x378] sm:$0xff]
        %v300 = vld [vmem:[%s178 + $0x380] sm:$0xff]
        %v301 = vld [vmem:[%s178 + $0x388] sm:$0xff]
        %v302 = vld [vmem:[%s178 + $0x390] sm:$0xff]
        %v303 = vld [vmem:[%s178 + $0x398] sm:$0xff]
        %v304 = vld [vmem:[%s178 + $0x3a0] sm:$0xff]
        %v305 = vld [vmem:[%s178 + $0x3a8] sm:$0xff]
        %v306 = vld [vmem:[%s178 + $0x3b0] sm:$0xff]
        %v307 = vld [vmem:[%s178 + $0x3b8] sm:$0xff]
        %v308 = vld [vmem:[%s178 + $0x3c0] sm:$0xff]
        %v309 = vld [vmem:[%s178 + $0x3c8] sm:$0xff]
        %v310 = vld [vmem:[%s178 + $0x3d0] sm:$0xff]
        %v311 = vld [vmem:[%s178 + $0x3d8] sm:$0xff]
        %v312 = vld [vmem:[%s178 + $0x3e0] sm:$0xff]
        %v313 = vld [vmem:[%s178 + $0x3e8] sm:$0xff]
        %v314 = vld [vmem:[%s178 + $0x3f0] sm:$0xff]
        %v315 = vld [vmem:[%s178 + $0x3f8] sm:$0xff]
        %v316 = vld [vmem:[%s2] sm:$0xff]
        %318 = vset.pattern.permute.xlu0 0
        %319 = vperm.xlu0 %318, %v316
        %v320 = vpop.permute.xlu0 %319
        %322 = vmatprep.subr.mxu0 %v189
        %323 = vmatpush1.msra.mxu0 %v188
        %324 = vmatprep.subr.mxu0 %v191
        %325 = vmatpush1.msra.mxu0 %v190
        %326 = vmatprep.subr.mxu0 %v193
        %327 = vmatpush1.msra.mxu0 %v192
        %328 = vmatprep.subr.mxu0 %v195
        %329 = vmatpush1.msra.mxu0 %v194
        %330 = vmatprep.subr.mxu0 %v197
        %331 = vmatpush1.msra.mxu0 %v196
        %332 = vmatprep.subr.mxu0 %v199
        %333 = vmatpush1.msra.mxu0 %v198
        %334 = vmatprep.subr.mxu0 %v201
        %335 = vmatpush1.msra.mxu0 %v200
        %336 = vmatprep.subr.mxu0 %v203
        %337 = vmatpush1.msra.mxu0 %v202
        %338 = vmatprep.subr.mxu0 %v205
        %339 = vmatpush1.msra.mxu0 %v204
        %340 = vmatprep.subr.mxu0 %v207
        %341 = vmatpush1.msra.mxu0 %v206
        %342 = vmatprep.subr.mxu0 %v209
        %343 = vmatpush1.msra.mxu0 %v208
        %344 = vmatprep.subr.mxu0 %v211
        %345 = vmatpush1.msra.mxu0 %v210
        %346 = vmatprep.subr.mxu0 %v213
        %347 = vmatpush1.msra.mxu0 %v212
        %348 = vmatprep.subr.mxu0 %v215
        %349 = vmatpush1.msra.mxu0 %v214
        %350 = vmatprep.subr.mxu0 %v217
        %351 = vmatpush1.msra.mxu0 %v216
        %352 = vmatprep.subr.mxu0 %v219
        %353 = vmatpush1.msra.mxu0 %v218
        %354 = vmatprep.subr.mxu0 %v221
        %355 = vmatpush1.msra.mxu0 %v220
        %356 = vmatprep.subr.mxu0 %v223
        %357 = vmatpush1.msra.mxu0 %v222
        %358 = vmatprep.subr.mxu0 %v225
        %359 = vmatpush1.msra.mxu0 %v224
        %360 = vmatprep.subr.mxu0 %v227
        %361 = vmatpush1.msra.mxu0 %v226
        %362 = vmatprep.subr.mxu0 %v229
        %363 = vmatpush1.msra.mxu0 %v228
        %364 = vmatprep.subr.mxu0 %v231
        %365 = vmatpush1.msra.mxu0 %v230
        %366 = vmatprep.subr.mxu0 %v233
        %367 = vmatpush1.msra.mxu0 %v232
        %368 = vmatprep.subr.mxu0 %v235
        %369 = vmatpush1.msra.mxu0 %v234
        %370 = vmatprep.subr.mxu0 %v237
        %371 = vmatpush1.msra.mxu0 %v236
        %372 = vmatprep.subr.mxu0 %v239
        %373 = vmatpush1.msra.mxu0 %v238
        %374 = vmatprep.subr.mxu0 %v241
        %375 = vmatpush1.msra.mxu0 %v240
        %376 = vmatprep.subr.mxu0 %v243
        %377 = vmatpush1.msra.mxu0 %v242
        %378 = vmatprep.subr.mxu0 %v245
        %379 = vmatpush1.msra.mxu0 %v244
        %380 = vmatprep.subr.mxu0 %v247
        %381 = vmatpush1.msra.mxu0 %v246
        %382 = vmatprep.subr.mxu0 %v249
        %383 = vmatpush1.msra.mxu0 %v248
        %384 = vmatprep.subr.mxu0 %v251
        %385 = vmatpush1.msra.mxu0 %v250
        %386 = vmatprep.mubr.f32.mxu0 %v185
        %387 = vmatmul.mubr.f32.gmra.mrb[0].mxu0 %v184
        %v388 = vpop.f32.mrb[0].mxu0
        %v389 = vadd.f32 %v320, %v388
        %v390 = vpop.f32.mrb[0].mxu0
        %v391 = vadd.f32 %v320, %v390
        %392 = vdwg.mxu0
        %393 = vmatprep.subr.mxu0 %v253
        %394 = vmatpush1.msra.mxu0 %v252
        %395 = vmatprep.subr.mxu0 %v255
        %396 = vmatpush1.msra.mxu0 %v254
        %397 = vmatprep.subr.mxu0 %v257
        %398 = vmatpush1.msra.mxu0 %v256
        %399 = vmatprep.subr.mxu0 %v259
        %400 = vmatpush1.msra.mxu0 %v258
        %401 = vmatprep.subr.mxu0 %v261
        %402 = vmatpush1.msra.mxu0 %v260
        %403 = vmatprep.subr.mxu0 %v263
        %404 = vmatpush1.msra.mxu0 %v262
        %405 = vmatprep.subr.mxu0 %v265
        %406 = vmatpush1.msra.mxu0 %v264
        %407 = vmatprep.subr.mxu0 %v267
        %408 = vmatpush1.msra.mxu0 %v266
        %409 = vmatprep.subr.mxu0 %v269
        %410 = vmatpush1.msra.mxu0 %v268
        %411 = vmatprep.subr.mxu0 %v271
        %412 = vmatpush1.msra.mxu0 %v270
        %413 = vmatprep.subr.mxu0 %v273
        %414 = vmatpush1.msra.mxu0 %v272
        %415 = vmatprep.subr.mxu0 %v275
        %416 = vmatpush1.msra.mxu0 %v274
        %417 = vmatprep.subr.mxu0 %v277
        %418 = vmatpush1.msra.mxu0 %v276
        %419 = vmatprep.subr.mxu0 %v279
        %420 = vmatpush1.msra.mxu0 %v278
        %421 = vmatprep.subr.mxu0 %v281
        %422 = vmatpush1.msra.mxu0 %v280
        %423 = vmatprep.subr.mxu0 %v283
        %424 = vmatpush1.msra.mxu0 %v282
        %425 = vmatprep.subr.mxu0 %v285
        %426 = vmatpush1.msra.mxu0 %v284
        %427 = vmatprep.subr.mxu0 %v287
        %428 = vmatpush1.msra.mxu0 %v286
        %429 = vmatprep.subr.mxu0 %v289
        %430 = vmatpush1.msra.mxu0 %v288
        %431 = vmatprep.subr.mxu0 %v291
        %432 = vmatpush1.msra.mxu0 %v290
        %433 = vmatprep.subr.mxu0 %v293
        %434 = vmatpush1.msra.mxu0 %v292
        %435 = vmatprep.subr.mxu0 %v295
        %436 = vmatpush1.msra.mxu0 %v294
        %437 = vmatprep.subr.mxu0 %v297
        %438 = vmatpush1.msra.mxu0 %v296
        %439 = vmatprep.subr.mxu0 %v299
        %440 = vmatpush1.msra.mxu0 %v298
        %441 = vmatprep.subr.mxu0 %v301
        %442 = vmatpush1.msra.mxu0 %v300
        %443 = vmatprep.subr.mxu0 %v303
        %444 = vmatpush1.msra.mxu0 %v302
        %445 = vmatprep.subr.mxu0 %v305
        %446 = vmatpush1.msra.mxu0 %v304
        %447 = vmatprep.subr.mxu0 %v307
        %448 = vmatpush1.msra.mxu0 %v306
        %449 = vmatprep.subr.mxu0 %v309
        %450 = vmatpush1.msra.mxu0 %v308
        %451 = vmatprep.subr.mxu0 %v311
        %452 = vmatpush1.msra.mxu0 %v310
        %453 = vmatprep.subr.mxu0 %v313
        %454 = vmatpush1.msra.mxu0 %v312
        %455 = vmatprep.subr.mxu0 %v315
        %456 = vmatpush1.msra.mxu0 %v314
        %457 = vmatprep.mubr.f32.mxu0 %v187
        %458 = vmatmul.mubr.f32.gmra.mrb[0].mxu0 %v186
        %v459 = vpop.f32.mrb[0].mxu0
        %v460 = vadd.f32 %v389, %v459
        %v461 = vpop.f32.mrb[0].mxu0
        %v462 = vadd.f32 %v391, %v461
        %463 = vdwg.mxu0
        %464 = vst [vmem:[%s183] sm:$0xff] %v460
        %vm465 = vcmask 793600
        %466 = vst.msk [vmem:[%s183 + $0x8] sm:$0xff] %vm465, %v462
        %p467 = scmp.lt.s32.totalorder %s15, 1
        %s468 = scalar_select %p467, %s15, 1
        %s469 = smul.addr %s468, 2
        %s470 = smul.addr %s469, 8
        %s471 = scalar_lea.vmem %s3, %s470
        // Predicated region
        $region37: #{cnn_forward.3} parent=31 // pred_check
          %p472 = pneg %p101
        $region38: #{cnn_forward.3} parent=31 // pred_check_branch
          %474 = sbr.rel (%p472) target = $region40
        $region39: #{cnn_forward.3} parent=31 // pred_region
          _
        $region40: #{cnn_forward.3} parent=31 // pred_fallthru
          _
      $region32: #{cnn_forward.3} parent=5 // pred_fallthru
        _
      %p475 = scmp.le.s32.totalorder 2, %s10
      // Predicated region
      $region41: #{cnn_forward.3} parent=5 // pred_check
        %p476 = pneg %p475
      $region42: #{cnn_forward.3} parent=5 // pred_check_branch
        %478 = sbr.rel (%p476) target = $region44
      $region43: #{cnn_forward.3} parent=5 // pred_region
        %s479 = ssub.s32 %s10, 2
        // Predicated region
        $region45: #{cnn_forward.3} parent=43 // pred_check
          %p480 = pneg %p107
        $region46: #{cnn_forward.3} parent=43 // pred_check_branch
          %482 = sbr.rel (%p480) target = $region48
        $region47: #{cnn_forward.3} parent=43 // pred_region
          %p483 = scmp.lt.s32.totalorder %s16, 1
          %s484 = scalar_select %p483, %s16, 1
          %s485 = smul.addr %s484, 2
          %s486 = smul.addr %s485, 8
          %s487 = scalar_lea.vmem %s3, %s486
        $region48: #{cnn_forward.3} parent=43 // pred_fallthru
          _
      $region44: #{cnn_forward.3} parent=5 // pred_fallthru
        _
    $region6: #{cnn_forward.3} parent=1 // loop_footer
      %s14 = sadd.s32 1, %s10
    $region7: #{cnn_forward.3} parent=1 // loop_footer_branch
      %9 = sbr.rel target = $region3
    $region8: #{cnn_forward.3} parent=1 // loop_exit
      _
    %488 = vsyncpa [#allocation3], 1
    %s489 = scalar_lea.sflag [#allocation3], 1
    %490 = vsyncpa %s489, 1

// kernel: cnn_forward.4
$region0: #{cnn_forward.4}
  #allocation0 [shape = 'u32[]', space=smem, size = 0x4, offset = 0x4, fixed_abs, tag = 'smem constant byte address 0x4 - core index']
  #allocation1 [shape = 'u32[144,128]{1,0:T(1,128)}', space=vmem, size = 0x12000, scoped, tag = 'internal scratch']
  %s0 = inlined_call_operand.vmem [shape: f32[2,1800], index: 0, kind: input, shape index: {}]
  %s1 = inlined_call_operand.hbm [shape: f32[1800,2048], index: 1, kind: input, shape index: {}]
  %s2 = inlined_call_operand.hbm [shape: f32[1,2048], index: 2, kind: input, shape index: {}]
  %s3 = inlined_call_operand.vmem [shape: f32[2,2048], index: 3, kind: output, shape index: {}]
  %s4 = sld [smem:[#allocation0]]
  $region53: #{cnn_forward.4} parent=0
    _
  %s6 = ssub.s32 1, %s4
  %s7 = scalar_select 0, %s6, %s4
  $region1: #{cnn_forward.4} parent=0
    #allocation2 [shape = 'u8[7372800]{0}', space=vmem, size = 0x708000, scoped, tag = 'input window, operand 1']
    #allocation3 [shape = 's32[2]{0}', space=sflag, size = 0x8, scoped, tag = 'scoped memory for cnn_forward.4']
    #allocation4 [shape = 'u8[4096]{0}', space=vmem, size = 0x1000, scoped, tag = 'input window, operand 2']
    #allocation5 [shape = 's32[2]{0}', space=sflag, size = 0x8, scoped, tag = 'scoped memory for cnn_forward.4']
    %8 = vsyncpa [#allocation3], 0
    %s9 = scalar_lea.sflag [#allocation3], 1
    %10 = vsyncpa %s9, 0
    %11 = vsyncpa [#allocation5], 0
    %s12 = scalar_lea.sflag [#allocation5], 1
    %13 = vsyncpa %s12, 0
    loop: start=0, step=1, limit=6
    $region2: #{cnn_forward.4} parent=1 // loop_pre_header
      _
    $region3: #{cnn_forward.4} parent=1 // loop_header
      %s15 = sphi 0, %s19
      %p16 = scmp.ge.s32.totalorder %s15, 6
      %s23 = sphi 0, %s23
      %s25 = sphi 0, %s23
      %s26 = sphi 0, %s25
      %s40 = sphi 0, %s26
      %s46 = sphi 0, %s48
      %s49 = sphi 0, %s46
      %s50 = sphi 0, %s49
      %s66 = sphi 0, %s50
      %s72 = sphi 0, %s74
      %s75 = sphi 0, %s72
      %s76 = sphi 0, %s75
      %s92 = sphi 0, %s76
      %s98 = sphi 0, %s100
      %s101 = sphi 0, %s98
      %s102 = sphi 0, %s101
      %s118 = sphi 0, %s102
    $region4: #{cnn_forward.4} parent=1 // loop_header_branch
      %18 = sbr.rel (%p16) target = $region8
    $region5: #{cnn_forward.4} parent=1 // loop_body
      %s20 = ssub.s32 %s15, 1
      %s21 = ssub.s32 %s15, 2
      %s22 = sadd.s32 %s15, 1
      %s24 = sadd.s32 %s23, 1
      %p27 = scmp.eq.s32.totalorder %s15, 3
      %p28 = scmp.ne.s32.totalorder %s23, %s25
      %p29 = scmp.eq.s32.totalorder %s15, 0
      %p30 = por %p28, %p29
      %p31 = scmp.ne.s32.totalorder %s23, %s25
      %p32 = scmp.eq.s32.totalorder %s20, 3
      %p33 = por %p31, %p32
      %p34 = scmp.ne.s32.totalorder %s25, %s26
      %p35 = scmp.eq.s32.totalorder %s20, 0
      %p36 = por %p34, %p35
      %p37 = scmp.ne.s32.totalorder %s25, %s26
      %p38 = scmp.eq.s32.totalorder %s21, 3
      %p39 = por %p37, %p38
      %p41 = scmp.ne.s32.totalorder %s26, %s40
      %p42 = scmp.eq.s32.totalorder %s21, 0
      %p43 = por %p41, %p42
      %s44 = ssub.s32 %s15, %s22
      %p45 = scmp.eq.s32.totalorder %s44, 0
      %s47 = sadd.s32 %s46, 1
      %s48 = scalar_select %p45, %s46, %s47
      %p51 = pneg %p45
      %p52 = scmp.eq.s32.totalorder %s15, 3
      %p53 = por %p51, %p52
      %p54 = scmp.ne.s32.totalorder %s46, %s49
      %p55 = scmp.eq.s32.totalorder %s15, 0
      %p56 = por %p54, %p55
      %p57 = scmp.ne.s32.totalorder %s46, %s49
      %p58 = scmp.eq.s32.totalorder %s20, 3
      %p59 = por %p57, %p58
      %p60 = scmp.ne.s32.totalorder %s49, %s50
      %p61 = scmp.eq.s32.totalorder %s20, 0
      %p62 = por %p60, %p61
      %p63 = scmp.ne.s32.totalorder %s49, %s50
      %p64 = scmp.eq.s32.totalorder %s21, 3
      %p65 = por %p63, %p64
      %p67 = scmp.ne.s32.totalorder %s50, %s66
      %p68 = scmp.eq.s32.totalorder %s21, 0
      %p69 = por %p67, %p68
      %s70 = ssub.s32 %s15, %s22
      %p71 = scmp.eq.s32.totalorder %s70, 0
      %s73 = sadd.s32 %s72, 1
      %s74 = scalar_select %p71, %s72, %s73
      %p77 = pneg %p71
      %p78 = scmp.eq.s32.totalorder %s15, 3
      %p79 = por %p77, %p78
      %p80 = scmp.ne.s32.totalorder %s72, %s75
      %p81 = scmp.eq.s32.totalorder %s15, 0
      %p82 = por %p80, %p81
      %p83 = scmp.ne.s32.totalorder %s72, %s75
      %p84 = scmp.eq.s32.totalorder %s20, 3
      %p85 = por %p83, %p84
      %p86 = scmp.ne.s32.totalorder %s75, %s76
      %p87 = scmp.eq.s32.totalorder %s20, 0
      %p88 = por %p86, %p87
      %p89 = scmp.ne.s32.totalorder %s75, %s76
      %p90 = scmp.eq.s32.totalorder %s21, 3
      %p91 = por %p89, %p90
      %p93 = scmp.ne.s32.totalorder %s76, %s92
      %p94 = scmp.eq.s32.totalorder %s21, 0
      %p95 = por %p93, %p94
      %s96 = ssub.s32 %s15, %s22
      %p97 = scmp.eq.s32.totalorder %s96, 0
      %s99 = sadd.s32 %s98, 1
      %s100 = scalar_select %p97, %s98, %s99
      %p103 = pneg %p97
      %p104 = scmp.eq.s32.totalorder %s15, 3
      %p105 = por %p103, %p104
      %p106 = scmp.ne.s32.totalorder %s98, %s101
      %p107 = scmp.eq.s32.totalorder %s15, 0
      %p108 = por %p106, %p107
      %p109 = scmp.ne.s32.totalorder %s98, %s101
      %p110 = scmp.eq.s32.totalorder %s20, 3
      %p111 = por %p109, %p110
      %p112 = scmp.ne.s32.totalorder %s101, %s102
      %p113 = scmp.eq.s32.totalorder %s20, 0
      %p114 = por %p112, %p113
      %p115 = scmp.ne.s32.totalorder %s101, %s102
      %p116 = scmp.eq.s32.totalorder %s21, 3
      %p117 = por %p115, %p116
      %p119 = scmp.ne.s32.totalorder %s102, %s118
      %p120 = scmp.eq.s32.totalorder %s21, 0
      %p121 = por %p119, %p120
      %p122 = scmp.le.s32.totalorder 1, %s15
      %p123 = scmp.lt.s32.totalorder %s15, 5
      %p124 = pnand %p122, %p123
      %p125 = pneg %p124
      // Predicated region
      $region9: #{cnn_forward.4} parent=5 // pred_check
        _
      $region10: #{cnn_forward.4} parent=5 // pred_check_branch
        %127 = sbr.rel (%p124) target = $region12
      $region11: #{cnn_forward.4} parent=5 // pred_region
        %s128 = ssub.s32 %s15, 1
        // Predicated region
        $region13: #{cnn_forward.4} parent=11 // pred_check
          %p129 = pneg %p36
        $region14: #{cnn_forward.4} parent=11 // pred_check_branch
          %131 = sbr.rel (%p129) target = $region16
        $region15: #{cnn_forward.4} parent=11 // pred_region
          _
        $region16: #{cnn_forward.4} parent=11 // pred_fallthru
          _
      $region12: #{cnn_forward.4} parent=5 // pred_fallthru
        _
      %p132 = scmp.lt.s32.totalorder %s15, 4
      // Predicated region
      $region17: #{cnn_forward.4} parent=5 // pred_check
        %p133 = pneg %p132
      $region18: #{cnn_forward.4} parent=5 // pred_check_branch
        %135 = sbr.rel (%p133) target = $region20
      $region19: #{cnn_forward.4} parent=5 // pred_region
        // Predicated region
        $region21: #{cnn_forward.4} parent=19 // pred_check
          %p136 = pneg %p56
        $region22: #{cnn_forward.4} parent=19 // pred_check_branch
          %138 = sbr.rel (%p136) target = $region24
        $region23: #{cnn_forward.4} parent=19 // pred_region
          %s139 = sand.u32 %s46, 1
          %s140 = scalar_lea.sflag [#allocation3], %s139
          %s141 = sand.u32 %s46, 1
          %s142 = smul.addr %s141, 7200
          %s143 = scalar_lea.vmem [#allocation2], %s142
          %s144 = smul.u32 4, %s15
          %s146 = ssub.s32 115200, 115200
          %147 = vsyncadd %s140, %s146
          %s148 = smul.addr %s144, 128
          %s149 = scalar_lea.hbm %s1, %s148
          %s150 = sshll.u32 %s143, 4
          %s151 = int_to_ptr.vmem [resolvable:$true] %s150
          %156 = dma.hbm_to_vmem [thread:$0]  %s149, 115200, %s151, %s140, 2048, 512, 32
        $region24: #{cnn_forward.4} parent=19 // pred_fallthru
          _
        // Predicated region
        $region25: #{cnn_forward.4} parent=19 // pred_check
          %p157 = pneg %p82
        $region26: #{cnn_forward.4} parent=19 // pred_check_branch
          %159 = sbr.rel (%p157) target = $region28
        $region27: #{cnn_forward.4} parent=19 // pred_region
          %s160 = sand.u32 %s72, 1
          %s161 = scalar_lea.sflag [#allocation5], %s160
          %s162 = sand.u32 %s72, 1
          %s163 = smul.addr %s162, 4
          %s164 = scalar_lea.vmem [#allocation4], %s163
          %s165 = smul.u32 4, %s15
          %s167 = ssub.s32 64, 64
          %168 = vsyncadd %s161, %s167
          %s169 = smul.addr %s165, 16
          %s170 = scalar_lea.hbm %s2, %s169
          %s172 = sshll.u32 %s164, 4
          %s173 = int_to_ptr.vmem [resolvable:$true] %s172
          %175 = dma.hbm_to_vmem [thread:$0]  %s170, 64, %s173, %s161
        $region28: #{cnn_forward.4} parent=19 // pred_fallthru
          _
      $region20: #{cnn_forward.4} parent=5 // pred_fallthru
        _
      %p176 = scmp.le.s32.totalorder 1, %s15
      %p177 = scmp.lt.s32.totalorder %s15, 5
      %p178 = pnand %p176, %p177
      %p179 = pneg %p178
      // Predicated region
      $region29: #{cnn_forward.4} parent=5 // pred_check
        _
      $region30: #{cnn_forward.4} parent=5 // pred_check_branch
        %181 = sbr.rel (%p178) target = $region32
      $region31: #{cnn_forward.4} parent=5 // pred_region
        %s182 = ssub.s32 %s15, 1
        %s183 = sand.u32 %s49, 1
        %s184 = scalar_lea.sflag [#allocation3], %s183
        %s185 = sand.u32 %s49, 1
        %s186 = smul.addr %s185, 7200
        %s187 = scalar_lea.vmem [#allocation2], %s186
        // Predicated region
        $region33: #{cnn_forward.4} parent=31 // pred_check
          %p188 = pneg %p62
        $region34: #{cnn_forward.4} parent=31 // pred_check_branch
          %190 = sbr.rel (%p188) target = $region36
        $region35: #{cnn_forward.4} parent=31 // pred_region
          %191 = dma.done %s184, 115200
        $region36: #{cnn_forward.4} parent=31 // pred_fallthru
          _
        %s192 = sand.u32 %s75, 1
        %s193 = scalar_lea.sflag [#allocation5], %s192
        %s194 = sand.u32 %s75, 1
        %s195 = smul.addr %s194, 4
        %s196 = scalar_lea.vmem [#allocation4], %s195
        // Predicated region
        $region37: #{cnn_forward.4} parent=31 // pred_check
          %p197 = pneg %p88
        $region38: #{cnn_forward.4} parent=31 // pred_check_branch
          %199 = sbr.rel (%p197) target = $region40
        $region39: #{cnn_forward.4} parent=31 // pred_region
          %200 = dma.done %s193, 64
        $region40: #{cnn_forward.4} parent=31 // pred_fallthru
          _
        %p201 = pneg %p36
        %p202 = pneg %p33
        %s203 = sand.u32 %s49, 1
        %s204 = scalar_lea.sflag [#allocation3], %s203
        %s205 = sand.u32 %s49, 1
        %s206 = smul.addr %s205, 7200
        %s207 = scalar_lea.vmem [#allocation2], %s206
        %p208 = pneg %p62
        %p209 = pneg %p59
        %s210 = sand.u32 %s75, 1
        %s211 = scalar_lea.sflag [#allocation5], %s210
        %s212 = sand.u32 %s75, 1
        %s213 = smul.addr %s212, 4
        %s214 = scalar_lea.vmem [#allocation4], %s213
        %p215 = pneg %p88
        %p216 = pneg %p85
        %p217 = pneg %p114
        %p218 = pneg %p111
        %s219 = smul.u32 4, %s20
        %p220 = scmp.lt.s32.totalorder %s219, 15
        %s221 = scalar_select %p220, %s219, 15
        %s222 = smul.addr %s221, 2
        %s223 = scalar_lea.vmem %s3, %s222
        %s224 = smul.u32 4, %s20
        %s225 = smul.u32 4, %s20
        %s226 = smul.u32 4, %s20
        %p227 = scmp.lt.s32.totalorder %s226, 15
        %s228 = scalar_select %p227, %s226, 15
        %s229 = smul.addr %s228, 2
        %s230 = scalar_lea.vmem %s3, %s229
        %s231 = smul.u32 4, %s20
        %v232 = vld [vmem:[%s0] sm:$0xff]
        %v233 = vld [vmem:[%s0 + $0x8] sm:$0xff]
        %v234 = vld [vmem:[%s0 + $0x10] sm:$0xff]
        %v235 = vld [vmem:[%s0 + $0x18] sm:$0x3f]
        %v236 = vld [vmem:[%s187] sm:$0xff]
        %v237 = vld [vmem:[%s187 + $0x8] sm:$0xff]
        %v238 = vld [vmem:[%s187 + $0x10] sm:$0xff]
        %v239 = vld [vmem:[%s187 + $0x18] sm:$0xff]
        %v240 = vld [vmem:[%s187 + $0x20] sm:$0xff]
        %v241 = vld [vmem:[%s187 + $0x28] sm:$0xff]
        %v242 = vld [vmem:[%s187 + $0x30] sm:$0xff]
        %v243 = vld [vmem:[%s187 + $0x38] sm:$0xff]
        %v244 = vld [vmem:[%s187 + $0x40] sm:$0xff]
        %v245 = vld [vmem:[%s187 + $0x48] sm:$0xff]
        %v246 = vld [vmem:[%s187 + $0x50] sm:$0xff]
        %v247 = vld [vmem:[%s187 + $0x58] sm:$0xff]
        %v248 = vld [vmem:[%s187 + $0x60] sm:$0xff]
        %v249 = vld [vmem:[%s187 + $0x68] sm:$0xff]
        %v250 = vld [vmem:[%s187 + $0x70] sm:$0xff]
        %v251 = vld [vmem:[%s187 + $0x78] sm:$0xff]
        %v252 = vld [vmem:[%s187 + $0x80] sm:$0xff]
        %v253 = vld [vmem:[%s187 + $0x88] sm:$0xff]
        %v254 = vld [vmem:[%s187 + $0x90] sm:$0xff]
        %v255 = vld [vmem:[%s187 + $0x98] sm:$0xff]
        %v256 = vld [vmem:[%s187 + $0xa0] sm:$0xff]
        %v257 = vld [vmem:[%s187 + $0xa8] sm:$0xff]
        %v258 = vld [vmem:[%s187 + $0xb0] sm:$0xff]
        %v259 = vld [vmem:[%s187 + $0xb8] sm:$0xff]
        %v260 = vld [vmem:[%s187 + $0xc0] sm:$0xff]
        %v261 = vld [vmem:[%s187 + $0xc8] sm:$0xff]
        %v262 = vld [vmem:[%s187 + $0xd0] sm:$0xff]
        %v263 = vld [vmem:[%s187 + $0xd8] sm:$0xff]
        %v264 = vld [vmem:[%s187 + $0xe0] sm:$0xff]
        %v265 = vld [vmem:[%s187 + $0xe8] sm:$0xff]
        %v266 = vld [vmem:[%s187 + $0xf0] sm:$0xff]
        %v267 = vld [vmem:[%s187 + $0xf8] sm:$0xff]
        %v268 = vld [vmem:[%s187 + $0x100] sm:$0xff]
        %v269 = vld [vmem:[%s187 + $0x108] sm:$0xff]
        %v270 = vld [vmem:[%s187 + $0x110] sm:$0xff]
        %v271 = vld [vmem:[%s187 + $0x118] sm:$0xff]
        %v272 = vld [vmem:[%s187 + $0x120] sm:$0xff]
        %v273 = vld [vmem:[%s187 + $0x128] sm:$0xff]
        %v274 = vld [vmem:[%s187 + $0x130] sm:$0xff]
        %v275 = vld [vmem:[%s187 + $0x138] sm:$0xff]
        %v276 = vld [vmem:[%s187 + $0x140] sm:$0xff]
        %v277 = vld [vmem:[%s187 + $0x148] sm:$0xff]
        %v278 = vld [vmem:[%s187 + $0x150] sm:$0xff]
        %v279 = vld [vmem:[%s187 + $0x158] sm:$0xff]
        %v280 = vld [vmem:[%s187 + $0x160] sm:$0xff]
        %v281 = vld [vmem:[%s187 + $0x168] sm:$0xff]
        %v282 = vld [vmem:[%s187 + $0x170] sm:$0xff]
        %v283 = vld [vmem:[%s187 + $0x178] sm:$0xff]
        %v284 = vld [vmem:[%s187 + $0x180] sm:$0xff]
        %v285 = vld [vmem:[%s187 + $0x188] sm:$0xff]
        %v286 = vld [vmem:[%s187 + $0x190] sm:$0xff]
        %v287 = vld [vmem:[%s187 + $0x198] sm:$0xff]
        %v288 = vld [vmem:[%s187 + $0x1a0] sm:$0xff]
        %v289 = vld [vmem:[%s187 + $0x1a8] sm:$0xff]
        %v290 = vld [vmem:[%s187 + $0x1b0] sm:$0xff]
        %v291 = vld [vmem:[%s187 + $0x1b8] sm:$0xff]
        %v292 = vld [vmem:[%s187 + $0x1c0] sm:$0xff]
        %v293 = vld [vmem:[%s187 + $0x1c8] sm:$0xff]
        %v294 = vld [vmem:[%s187 + $0x1d0] sm:$0xff]
        %v295 = vld [vmem:[%s187 + $0x1d8] sm:$0xff]
        %v296 = vld [vmem:[%s187 + $0x1e0] sm:$0xff]
        %v297 = vld [vmem:[%s187 + $0x1e8] sm:$0xff]
        %v298 = vld [vmem:[%s187 + $0x1f0] sm:$0xff]
        %v299 = vld [vmem:[%s187 + $0x1f8] sm:$0xff]
        %v300 = vld [vmem:[%s187 + $0x200] sm:$0xff]
        %v301 = vld [vmem:[%s187 + $0x208] sm:$0xff]
        %v302 = vld [vmem:[%s187 + $0x210] sm:$0xff]
        %v303 = vld [vmem:[%s187 + $0x218] sm:$0xff]
        %v304 = vld [vmem:[%s187 + $0x220] sm:$0xff]
        %v305 = vld [vmem:[%s187 + $0x228] sm:$0xff]
        %v306 = vld [vmem:[%s187 + $0x230] sm:$0xff]
        %v307 = vld [vmem:[%s187 + $0x238] sm:$0xff]
        %v308 = vld [vmem:[%s187 + $0x240] sm:$0xff]
        %v309 = vld [vmem:[%s187 + $0x248] sm:$0xff]
        %v310 = vld [vmem:[%s187 + $0x250] sm:$0xff]
        %v311 = vld [vmem:[%s187 + $0x258] sm:$0xff]
        %v312 = vld [vmem:[%s187 + $0x260] sm:$0xff]
        %v313 = vld [vmem:[%s187 + $0x268] sm:$0xff]
        %v314 = vld [vmem:[%s187 + $0x270] sm:$0xff]
        %v315 = vld [vmem:[%s187 + $0x278] sm:$0xff]
        %v316 = vld [vmem:[%s187 + $0x280] sm:$0xff]
        %v317 = vld [vmem:[%s187 + $0x288] sm:$0xff]
        %v318 = vld [vmem:[%s187 + $0x290] sm:$0xff]
        %v319 = vld [vmem:[%s187 + $0x298] sm:$0xff]
        %v320 = vld [vmem:[%s187 + $0x2a0] sm:$0xff]
        %v321 = vld [vmem:[%s187 + $0x2a8] sm:$0xff]
        %v322 = vld [vmem:[%s187 + $0x2b0] sm:$0xff]
        %v323 = vld [vmem:[%s187 + $0x2b8] sm:$0xff]
        %v324 = vld [vmem:[%s187 + $0x2c0] sm:$0xff]
        %v325 = vld [vmem:[%s187 + $0x2c8] sm:$0xff]
        %v326 = vld [vmem:[%s187 + $0x2d0] sm:$0xff]
        %v327 = vld [vmem:[%s187 + $0x2d8] sm:$0xff]
        %v328 = vld [vmem:[%s187 + $0x2e0] sm:$0xff]
        %v329 = vld [vmem:[%s187 + $0x2e8] sm:$0xff]
        %v330 = vld [vmem:[%s187 + $0x2f0] sm:$0xff]
        %v331 = vld [vmem:[%s187 + $0x2f8] sm:$0xff]
        %v332 = vld [vmem:[%s187 + $0x300] sm:$0xff]
        %v333 = vld [vmem:[%s187 + $0x308] sm:$0xff]
        %v334 = vld [vmem:[%s187 + $0x310] sm:$0xff]
        %v335 = vld [vmem:[%s187 + $0x318] sm:$0xff]
        %v336 = vld [vmem:[%s187 + $0x320] sm:$0xff]
        %v337 = vld [vmem:[%s187 + $0x328] sm:$0xff]
        %v338 = vld [vmem:[%s187 + $0x330] sm:$0xff]
        %v339 = vld [vmem:[%s187 + $0x338] sm:$0xff]
        %v340 = vld [vmem:[%s187 + $0x340] sm:$0xff]
        %v341 = vld [vmem:[%s187 + $0x348] sm:$0xff]
        %v342 = vld [vmem:[%s187 + $0x350] sm:$0xff]
        %v343 = vld [vmem:[%s187 + $0x358] sm:$0xff]
        %v344 = vld [vmem:[%s187 + $0x360] sm:$0xff]
        %v345 = vld [vmem:[%s187 + $0x368] sm:$0xff]
        %v346 = vld [vmem:[%s187 + $0x370] sm:$0xff]
        %v347 = vld [vmem:[%s187 + $0x378] sm:$0xff]
        %v348 = vld [vmem:[%s187 + $0x380] sm:$0xff]
        %v349 = vld [vmem:[%s187 + $0x388] sm:$0xff]
        %v350 = vld [vmem:[%s187 + $0x390] sm:$0xff]
        %v351 = vld [vmem:[%s187 + $0x398] sm:$0xff]
        %v352 = vld [vmem:[%s187 + $0x3a0] sm:$0xff]
        %v353 = vld [vmem:[%s187 + $0x3a8] sm:$0xff]
        %v354 = vld [vmem:[%s187 + $0x3b0] sm:$0xff]
        %v355 = vld [vmem:[%s187 + $0x3b8] sm:$0xff]
        %v356 = vld [vmem:[%s187 + $0x3c0] sm:$0xff]
        %v357 = vld [vmem:[%s187 + $0x3c8] sm:$0xff]
        %v358 = vld [vmem:[%s187 + $0x3d0] sm:$0xff]
        %v359 = vld [vmem:[%s187 + $0x3d8] sm:$0xff]
        %v360 = vld [vmem:[%s187 + $0x3e0] sm:$0xff]
        %v361 = vld [vmem:[%s187 + $0x3e8] sm:$0xff]
        %v362 = vld [vmem:[%s187 + $0x3f0] sm:$0xff]
        %v363 = vld [vmem:[%s187 + $0x3f8] sm:$0xff]
        %v364 = vld [vmem:[%s187 + $0x400] sm:$0xff]
        %v365 = vld [vmem:[%s187 + $0x408] sm:$0xff]
        %v366 = vld [vmem:[%s187 + $0x410] sm:$0xff]
        %v367 = vld [vmem:[%s187 + $0x418] sm:$0xff]
        %v368 = vld [vmem:[%s187 + $0x420] sm:$0xff]
        %v369 = vld [vmem:[%s187 + $0x428] sm:$0xff]
        %v370 = vld [vmem:[%s187 + $0x430] sm:$0xff]
        %v371 = vld [vmem:[%s187 + $0x438] sm:$0xff]
        %v372 = vld [vmem:[%s187 + $0x440] sm:$0xff]
        %v373 = vld [vmem:[%s187 + $0x448] sm:$0xff]
        %v374 = vld [vmem:[%s187 + $0x450] sm:$0xff]
        %v375 = vld [vmem:[%s187 + $0x458] sm:$0xff]
        %v376 = vld [vmem:[%s187 + $0x460] sm:$0xff]
        %v377 = vld [vmem:[%s187 + $0x468] sm:$0xff]
        %v378 = vld [vmem:[%s187 + $0x470] sm:$0xff]
        %v379 = vld [vmem:[%s187 + $0x478] sm:$0xff]
        %v380 = vld [vmem:[%s187 + $0x480] sm:$0xff]
        %v381 = vld [vmem:[%s187 + $0x488] sm:$0xff]
        %v382 = vld [vmem:[%s187 + $0x490] sm:$0xff]
        %v383 = vld [vmem:[%s187 + $0x498] sm:$0xff]
        %v384 = vld [vmem:[%s187 + $0x4a0] sm:$0xff]
        %v385 = vld [vmem:[%s187 + $0x4a8] sm:$0xff]
        %v386 = vld [vmem:[%s187 + $0x4b0] sm:$0xff]
        %v387 = vld [vmem:[%s187 + $0x4b8] sm:$0xff]
        %v388 = vld [vmem:[%s187 + $0x4c0] sm:$0xff]
        %v389 = vld [vmem:[%s187 + $0x4c8] sm:$0xff]
        %v390 = vld [vmem:[%s187 + $0x4d0] sm:$0xff]
        %v391 = vld [vmem:[%s187 + $0x4d8] sm:$0xff]
        %v392 = vld [vmem:[%s187 + $0x4e0] sm:$0xff]
        %v393 = vld [vmem:[%s187 + $0x4e8] sm:$0xff]
        %v394 = vld [vmem:[%s187 + $0x4f0] sm:$0xff]
        %v395 = vld [vmem:[%s187 + $0x4f8] sm:$0xff]
        %v396 = vld [vmem:[%s187 + $0x500] sm:$0xff]
        %v397 = vld [vmem:[%s187 + $0x508] sm:$0xff]
        %v398 = vld [vmem:[%s187 + $0x510] sm:$0xff]
        %v399 = vld [vmem:[%s187 + $0x518] sm:$0xff]
        %v400 = vld [vmem:[%s187 + $0x520] sm:$0xff]
        %v401 = vld [vmem:[%s187 + $0x528] sm:$0xff]
        %v402 = vld [vmem:[%s187 + $0x530] sm:$0xff]
        %v403 = vld [vmem:[%s187 + $0x538] sm:$0xff]
        %v404 = vld [vmem:[%s187 + $0x540] sm:$0xff]
        %v405 = vld [vmem:[%s187 + $0x548] sm:$0xff]
        %v406 = vld [vmem:[%s187 + $0x550] sm:$0xff]
        %v407 = vld [vmem:[%s187 + $0x558] sm:$0xff]
        %v408 = vld [vmem:[%s187 + $0x560] sm:$0xff]
        %v409 = vld [vmem:[%s187 + $0x568] sm:$0xff]
        %v410 = vld [vmem:[%s187 + $0x570] sm:$0xff]
        %v411 = vld [vmem:[%s187 + $0x578] sm:$0xff]
        %v412 = vld [vmem:[%s187 + $0x580] sm:$0xff]
        %v413 = vld [vmem:[%s187 + $0x588] sm:$0xff]
        %v414 = vld [vmem:[%s187 + $0x590] sm:$0xff]
        %v415 = vld [vmem:[%s187 + $0x598] sm:$0xff]
        %v416 = vld [vmem:[%s187 + $0x5a0] sm:$0xff]
        %v417 = vld [vmem:[%s187 + $0x5a8] sm:$0xff]
        %v418 = vld [vmem:[%s187 + $0x5b0] sm:$0xff]
        %v419 = vld [vmem:[%s187 + $0x5b8] sm:$0xff]
        %v420 = vld [vmem:[%s187 + $0x5c0] sm:$0xff]
        %v421 = vld [vmem:[%s187 + $0x5c8] sm:$0xff]
        %v422 = vld [vmem:[%s187 + $0x5d0] sm:$0xff]
        %v423 = vld [vmem:[%s187 + $0x5d8] sm:$0xff]
        %v424 = vld [vmem:[%s187 + $0x5e0] sm:$0xff]
        %v425 = vld [vmem:[%s187 + $0x5e8] sm:$0xff]
        %v426 = vld [vmem:[%s187 + $0x5f0] sm:$0xff]
        %v427 = vld [vmem:[%s187 + $0x5f8] sm:$0xff]
        %v428 = vld [vmem:[%s187 + $0x600] sm:$0xff]
        %v429 = vld [vmem:[%s187 + $0x608] sm:$0xff]
        %v430 = vld [vmem:[%s187 + $0x610] sm:$0xff]
        %v431 = vld [vmem:[%s187 + $0x618] sm:$0xff]
        %v432 = vld [vmem:[%s187 + $0x620] sm:$0xff]
        %v433 = vld [vmem:[%s187 + $0x628] sm:$0xff]
        %v434 = vld [vmem:[%s187 + $0x630] sm:$0xff]
        %v435 = vld [vmem:[%s187 + $0x638] sm:$0xff]
        %v436 = vld [vmem:[%s187 + $0x640] sm:$0xff]
        %v437 = vld [vmem:[%s187 + $0x648] sm:$0xff]
        %v438 = vld [vmem:[%s187 + $0x650] sm:$0xff]
        %v439 = vld [vmem:[%s187 + $0x658] sm:$0xff]
        %v440 = vld [vmem:[%s187 + $0x660] sm:$0xff]
        %v441 = vld [vmem:[%s187 + $0x668] sm:$0xff]
        %v442 = vld [vmem:[%s187 + $0x670] sm:$0xff]
        %v443 = vld [vmem:[%s187 + $0x678] sm:$0xff]
        %v444 = vld [vmem:[%s187 + $0x680] sm:$0xff]
        %v445 = vld [vmem:[%s187 + $0x688] sm:$0xff]
        %v446 = vld [vmem:[%s187 + $0x690] sm:$0xff]
        %v447 = vld [vmem:[%s187 + $0x698] sm:$0xff]
        %v448 = vld [vmem:[%s187 + $0x6a0] sm:$0xff]
        %v449 = vld [vmem:[%s187 + $0x6a8] sm:$0xff]
        %v450 = vld [vmem:[%s187 + $0x6b0] sm:$0xff]
        %v451 = vld [vmem:[%s187 + $0x6b8] sm:$0xff]
        %v452 = vld [vmem:[%s187 + $0x6c0] sm:$0xff]
        %v453 = vld [vmem:[%s187 + $0x6c8] sm:$0xff]
        %v454 = vld [vmem:[%s187 + $0x6d0] sm:$0xff]
        %v455 = vld [vmem:[%s187 + $0x6d8] sm:$0xff]
        %v456 = vld [vmem:[%s187 + $0x6e0] sm:$0xff]
        %v457 = vld [vmem:[%s187 + $0x6e8] sm:$0xff]
        %v458 = vld [vmem:[%s187 + $0x6f0] sm:$0xff]
        %v459 = vld [vmem:[%s187 + $0x6f8] sm:$0xff]
        %v460 = vld [vmem:[%s187 + $0x700] sm:$0xff]
        %v461 = vld [vmem:[%s187 + $0x708] sm:$0xff]
        %v462 = vld [vmem:[%s187 + $0x710] sm:$0xff]
        %v463 = vld [vmem:[%s187 + $0x718] sm:$0xff]
        %v464 = vld [vmem:[%s187 + $0x720] sm:$0xff]
        %v465 = vld [vmem:[%s187 + $0x728] sm:$0xff]
        %v466 = vld [vmem:[%s187 + $0x730] sm:$0xff]
        %v467 = vld [vmem:[%s187 + $0x738] sm:$0xff]
        %v468 = vld [vmem:[%s187 + $0x740] sm:$0xff]
        %v469 = vld [vmem:[%s187 + $0x748] sm:$0xff]
        %v470 = vld [vmem:[%s187 + $0x750] sm:$0xff]
        %v471 = vld [vmem:[%s187 + $0x758] sm:$0xff]
        %v472 = vld [vmem:[%s187 + $0x760] sm:$0xff]
        %v473 = vld [vmem:[%s187 + $0x768] sm:$0xff]
        %v474 = vld [vmem:[%s187 + $0x770] sm:$0xff]
        %v475 = vld [vmem:[%s187 + $0x778] sm:$0xff]
        %v476 = vld [vmem:[%s187 + $0x780] sm:$0xff]
        %v477 = vld [vmem:[%s187 + $0x788] sm:$0xff]
        %v478 = vld [vmem:[%s187 + $0x790] sm:$0xff]
        %v479 = vld [vmem:[%s187 + $0x798] sm:$0xff]
        %v480 = vld [vmem:[%s187 + $0x7a0] sm:$0xff]
        %v481 = vld [vmem:[%s187 + $0x7a8] sm:$0xff]
        %v482 = vld [vmem:[%s187 + $0x7b0] sm:$0xff]
        %v483 = vld [vmem:[%s187 + $0x7b8] sm:$0xff]
        %v484 = vld [vmem:[%s187 + $0x7c0] sm:$0xff]
        %v485 = vld [vmem:[%s187 + $0x7c8] sm:$0xff]
        %v486 = vld [vmem:[%s187 + $0x7d0] sm:$0xff]
        %v487 = vld [vmem:[%s187 + $0x7d8] sm:$0xff]
        %v488 = vld [vmem:[%s187 + $0x7e0] sm:$0xff]
        %v489 = vld [vmem:[%s187 + $0x7e8] sm:$0xff]
        %v490 = vld [vmem:[%s187 + $0x7f0] sm:$0xff]
        %v491 = vld [vmem:[%s187 + $0x7f8] sm:$0xff]
        %v492 = vld [vmem:[%s187 + $0x800] sm:$0xff]
        %v493 = vld [vmem:[%s187 + $0x808] sm:$0xff]
        %v494 = vld [vmem:[%s187 + $0x810] sm:$0xff]
        %v495 = vld [vmem:[%s187 + $0x818] sm:$0xff]
        %v496 = vld [vmem:[%s187 + $0x820] sm:$0xff]
        %v497 = vld [vmem:[%s187 + $0x828] sm:$0xff]
        %v498 = vld [vmem:[%s187 + $0x830] sm:$0xff]
        %v499 = vld [vmem:[%s187 + $0x838] sm:$0xff]
        %v500 = vld [vmem:[%s187 + $0x840] sm:$0xff]
        %v501 = vld [vmem:[%s187 + $0x848] sm:$0xff]
        %v502 = vld [vmem:[%s187 + $0x850] sm:$0xff]
        %v503 = vld [vmem:[%s187 + $0x858] sm:$0xff]
        %v504 = vld [vmem:[%s187 + $0x860] sm:$0xff]
        %v505 = vld [vmem:[%s187 + $0x868] sm:$0xff]
        %v506 = vld [vmem:[%s187 + $0x870] sm:$0xff]
        %v507 = vld [vmem:[%s187 + $0x878] sm:$0xff]
        %v508 = vld [vmem:[%s187 + $0x880] sm:$0xff]
        %v509 = vld [vmem:[%s187 + $0x888] sm:$0xff]
        %v510 = vld [vmem:[%s187 + $0x890] sm:$0xff]
        %v511 = vld [vmem:[%s187 + $0x898] sm:$0xff]
        %v512 = vld [vmem:[%s187 + $0x8a0] sm:$0xff]
        %v513 = vld [vmem:[%s187 + $0x8a8] sm:$0xff]
        %v514 = vld [vmem:[%s187 + $0x8b0] sm:$0xff]
        %v515 = vld [vmem:[%s187 + $0x8b8] sm:$0xff]
        %v516 = vld [vmem:[%s187 + $0x8c0] sm:$0xff]
        %v517 = vld [vmem:[%s187 + $0x8c8] sm:$0xff]
        %v518 = vld [vmem:[%s187 + $0x8d0] sm:$0xff]
        %v519 = vld [vmem:[%s187 + $0x8d8] sm:$0xff]
        %v520 = vld [vmem:[%s187 + $0x8e0] sm:$0xff]
        %v521 = vld [vmem:[%s187 + $0x8e8] sm:$0xff]
        %v522 = vld [vmem:[%s187 + $0x8f0] sm:$0xff]
        %v523 = vld [vmem:[%s187 + $0x8f8] sm:$0xff]
        %v524 = vld [vmem:[%s187 + $0x900] sm:$0xff]
        %v525 = vld [vmem:[%s187 + $0x908] sm:$0xff]
        %v526 = vld [vmem:[%s187 + $0x910] sm:$0xff]
        %v527 = vld [vmem:[%s187 + $0x918] sm:$0xff]
        %v528 = vld [vmem:[%s187 + $0x920] sm:$0xff]
        %v529 = vld [vmem:[%s187 + $0x928] sm:$0xff]
        %v530 = vld [vmem:[%s187 + $0x930] sm:$0xff]
        %v531 = vld [vmem:[%s187 + $0x938] sm:$0xff]
        %v532 = vld [vmem:[%s187 + $0x940] sm:$0xff]
        %v533 = vld [vmem:[%s187 + $0x948] sm:$0xff]
        %v534 = vld [vmem:[%s187 + $0x950] sm:$0xff]
        %v535 = vld [vmem:[%s187 + $0x958] sm:$0xff]
        %v536 = vld [vmem:[%s187 + $0x960] sm:$0xff]
        %v537 = vld [vmem:[%s187 + $0x968] sm:$0xff]
        %v538 = vld [vmem:[%s187 + $0x970] sm:$0xff]
        %v539 = vld [vmem:[%s187 + $0x978] sm:$0xff]
        %v540 = vld [vmem:[%s187 + $0x980] sm:$0xff]
        %v541 = vld [vmem:[%s187 + $0x988] sm:$0xff]
        %v542 = vld [vmem:[%s187 + $0x990] sm:$0xff]
        %v543 = vld [vmem:[%s187 + $0x998] sm:$0xff]
        %v544 = vld [vmem:[%s187 + $0x9a0] sm:$0xff]
        %v545 = vld [vmem:[%s187 + $0x9a8] sm:$0xff]
        %v546 = vld [vmem:[%s187 + $0x9b0] sm:$0xff]
        %v547 = vld [vmem:[%s187 + $0x9b8] sm:$0xff]
        %v548 = vld [vmem:[%s187 + $0x9c0] sm:$0xff]
        %v549 = vld [vmem:[%s187 + $0x9c8] sm:$0xff]
        %v550 = vld [vmem:[%s187 + $0x9d0] sm:$0xff]
        %v551 = vld [vmem:[%s187 + $0x9d8] sm:$0xff]
        %v552 = vld [vmem:[%s187 + $0x9e0] sm:$0xff]
        %v553 = vld [vmem:[%s187 + $0x9e8] sm:$0xff]
        %v554 = vld [vmem:[%s187 + $0x9f0] sm:$0xff]
        %v555 = vld [vmem:[%s187 + $0x9f8] sm:$0xff]
        %v556 = vld [vmem:[%s187 + $0xa00] sm:$0xff]
        %v557 = vld [vmem:[%s187 + $0xa08] sm:$0xff]
        %v558 = vld [vmem:[%s187 + $0xa10] sm:$0xff]
        %v559 = vld [vmem:[%s187 + $0xa18] sm:$0xff]
        %v560 = vld [vmem:[%s187 + $0xa20] sm:$0xff]
        %v561 = vld [vmem:[%s187 + $0xa28] sm:$0xff]
        %v562 = vld [vmem:[%s187 + $0xa30] sm:$0xff]
        %v563 = vld [vmem:[%s187 + $0xa38] sm:$0xff]
        %v564 = vld [vmem:[%s187 + $0xa40] sm:$0xff]
        %v565 = vld [vmem:[%s187 + $0xa48] sm:$0xff]
        %v566 = vld [vmem:[%s187 + $0xa50] sm:$0xff]
        %v567 = vld [vmem:[%s187 + $0xa58] sm:$0xff]
        %v568 = vld [vmem:[%s187 + $0xa60] sm:$0xff]
        %v569 = vld [vmem:[%s187 + $0xa68] sm:$0xff]
        %v570 = vld [vmem:[%s187 + $0xa70] sm:$0xff]
        %v571 = vld [vmem:[%s187 + $0xa78] sm:$0xff]
        %v572 = vld [vmem:[%s187 + $0xa80] sm:$0xff]
        %v573 = vld [vmem:[%s187 + $0xa88] sm:$0xff]
        %v574 = vld [vmem:[%s187 + $0xa90] sm:$0xff]
        %v575 = vld [vmem:[%s187 + $0xa98] sm:$0xff]
        %v576 = vld [vmem:[%s187 + $0xaa0] sm:$0xff]
        %v577 = vld [vmem:[%s187 + $0xaa8] sm:$0xff]
        %v578 = vld [vmem:[%s187 + $0xab0] sm:$0xff]
        %v579 = vld [vmem:[%s187 + $0xab8] sm:$0xff]
        %v580 = vld [vmem:[%s187 + $0xac0] sm:$0xff]
        %v581 = vld [vmem:[%s187 + $0xac8] sm:$0xff]
        %v582 = vld [vmem:[%s187 + $0xad0] sm:$0xff]
        %v583 = vld [vmem:[%s187 + $0xad8] sm:$0xff]
        %v584 = vld [vmem:[%s187 + $0xae0] sm:$0xff]
        %v585 = vld [vmem:[%s187 + $0xae8] sm:$0xff]
        %v586 = vld [vmem:[%s187 + $0xaf0] sm:$0xff]
        %v587 = vld [vmem:[%s187 + $0xaf8] sm:$0xff]
        %v588 = vld [vmem:[%s187 + $0xb00] sm:$0xff]
        %v589 = vld [vmem:[%s187 + $0xb08] sm:$0xff]
        %v590 = vld [vmem:[%s187 + $0xb10] sm:$0xff]
        %v591 = vld [vmem:[%s187 + $0xb18] sm:$0xff]
        %v592 = vld [vmem:[%s187 + $0xb20] sm:$0xff]
        %v593 = vld [vmem:[%s187 + $0xb28] sm:$0xff]
        %v594 = vld [vmem:[%s187 + $0xb30] sm:$0xff]
        %v595 = vld [vmem:[%s187 + $0xb38] sm:$0xff]
        %v596 = vld [vmem:[%s187 + $0xb40] sm:$0xff]
        %v597 = vld [vmem:[%s187 + $0xb48] sm:$0xff]
        %v598 = vld [vmem:[%s187 + $0xb50] sm:$0xff]
        %v599 = vld [vmem:[%s187 + $0xb58] sm:$0xff]
        %v600 = vld [vmem:[%s187 + $0xb60] sm:$0xff]
        %v601 = vld [vmem:[%s187 + $0xb68] sm:$0xff]
        %v602 = vld [vmem:[%s187 + $0xb70] sm:$0xff]
        %v603 = vld [vmem:[%s187 + $0xb78] sm:$0xff]
        %v604 = vld [vmem:[%s187 + $0xb80] sm:$0xff]
        %v605 = vld [vmem:[%s187 + $0xb88] sm:$0xff]
        %v606 = vld [vmem:[%s187 + $0xb90] sm:$0xff]
        %v607 = vld [vmem:[%s187 + $0xb98] sm:$0xff]
        %v608 = vld [vmem:[%s187 + $0xba0] sm:$0xff]
        %v609 = vld [vmem:[%s187 + $0xba8] sm:$0xff]
        %v610 = vld [vmem:[%s187 + $0xbb0] sm:$0xff]
        %v611 = vld [vmem:[%s187 + $0xbb8] sm:$0xff]
        %v612 = vld [vmem:[%s187 + $0xbc0] sm:$0xff]
        %v613 = vld [vmem:[%s187 + $0xbc8] sm:$0xff]
        %v614 = vld [vmem:[%s187 + $0xbd0] sm:$0xff]
        %v615 = vld [vmem:[%s187 + $0xbd8] sm:$0xff]
        %v616 = vld [vmem:[%s187 + $0xbe0] sm:$0xff]
        %v617 = vld [vmem:[%s187 + $0xbe8] sm:$0xff]
        %v618 = vld [vmem:[%s187 + $0xbf0] sm:$0xff]
        %v619 = vld [vmem:[%s187 + $0xbf8] sm:$0xff]
        %v620 = vld [vmem:[%s187 + $0xc00] sm:$0xff]
        %v621 = vld [vmem:[%s187 + $0xc08] sm:$0xff]
        %v622 = vld [vmem:[%s187 + $0xc10] sm:$0xff]
        %v623 = vld [vmem:[%s187 + $0xc18] sm:$0xff]
        %v624 = vld [vmem:[%s187 + $0xc20] sm:$0xff]
        %v625 = vld [vmem:[%s187 + $0xc28] sm:$0xff]
        %v626 = vld [vmem:[%s187 + $0xc30] sm:$0xff]
        %v627 = vld [vmem:[%s187 + $0xc38] sm:$0xff]
        %v628 = vld [vmem:[%s187 + $0xc40] sm:$0xff]
        %v629 = vld [vmem:[%s187 + $0xc48] sm:$0xff]
        %v630 = vld [vmem:[%s187 + $0xc50] sm:$0xff]
        %v631 = vld [vmem:[%s187 + $0xc58] sm:$0xff]
        %v632 = vld [vmem:[%s187 + $0xc60] sm:$0xff]
        %v633 = vld [vmem:[%s187 + $0xc68] sm:$0xff]
        %v634 = vld [vmem:[%s187 + $0xc70] sm:$0xff]
        %v635 = vld [vmem:[%s187 + $0xc78] sm:$0xff]
        %v636 = vld [vmem:[%s187 + $0xc80] sm:$0xff]
        %v637 = vld [vmem:[%s187 + $0xc88] sm:$0xff]
        %v638 = vld [vmem:[%s187 + $0xc90] sm:$0xff]
        %v639 = vld [vmem:[%s187 + $0xc98] sm:$0xff]
        %v640 = vld [vmem:[%s187 + $0xca0] sm:$0xff]
        %v641 = vld [vmem:[%s187 + $0xca8] sm:$0xff]
        %v642 = vld [vmem:[%s187 + $0xcb0] sm:$0xff]
        %v643 = vld [vmem:[%s187 + $0xcb8] sm:$0xff]
        %v644 = vld [vmem:[%s187 + $0xcc0] sm:$0xff]
        %v645 = vld [vmem:[%s187 + $0xcc8] sm:$0xff]
        %v646 = vld [vmem:[%s187 + $0xcd0] sm:$0xff]
        %v647 = vld [vmem:[%s187 + $0xcd8] sm:$0xff]
        %v648 = vld [vmem:[%s187 + $0xce0] sm:$0xff]
        %v649 = vld [vmem:[%s187 + $0xce8] sm:$0xff]
        %v650 = vld [vmem:[%s187 + $0xcf0] sm:$0xff]
        %v651 = vld [vmem:[%s187 + $0xcf8] sm:$0xff]
        %v652 = vld [vmem:[%s187 + $0xd00] sm:$0xff]
        %v653 = vld [vmem:[%s187 + $0xd08] sm:$0xff]
        %v654 = vld [vmem:[%s187 + $0xd10] sm:$0xff]
        %v655 = vld [vmem:[%s187 + $0xd18] sm:$0xff]
        %v656 = vld [vmem:[%s187 + $0xd20] sm:$0xff]
        %v657 = vld [vmem:[%s187 + $0xd28] sm:$0xff]
        %v658 = vld [vmem:[%s187 + $0xd30] sm:$0xff]
        %v659 = vld [vmem:[%s187 + $0xd38] sm:$0xff]
        %v660 = vld [vmem:[%s187 + $0xd40] sm:$0xff]
        %v661 = vld [vmem:[%s187 + $0xd48] sm:$0xff]
        %v662 = vld [vmem:[%s187 + $0xd50] sm:$0xff]
        %v663 = vld [vmem:[%s187 + $0xd58] sm:$0xff]
        %v664 = vld [vmem:[%s187 + $0xd60] sm:$0xff]
        %v665 = vld [vmem:[%s187 + $0xd68] sm:$0xff]
        %v666 = vld [vmem:[%s187 + $0xd70] sm:$0xff]
        %v667 = vld [vmem:[%s187 + $0xd78] sm:$0xff]
        %v668 = vld [vmem:[%s187 + $0xd80] sm:$0xff]
        %v669 = vld [vmem:[%s187 + $0xd88] sm:$0xff]
        %v670 = vld [vmem:[%s187 + $0xd90] sm:$0xff]
        %v671 = vld [vmem:[%s187 + $0xd98] sm:$0xff]
        %v672 = vld [vmem:[%s187 + $0xda0] sm:$0xff]
        %v673 = vld [vmem:[%s187 + $0xda8] sm:$0xff]
        %v674 = vld [vmem:[%s187 + $0xdb0] sm:$0xff]
        %v675 = vld [vmem:[%s187 + $0xdb8] sm:$0xff]
        %v676 = vld [vmem:[%s187 + $0xdc0] sm:$0xff]
        %v677 = vld [vmem:[%s187 + $0xdc8] sm:$0xff]
        %v678 = vld [vmem:[%s187 + $0xdd0] sm:$0xff]
        %v679 = vld [vmem:[%s187 + $0xdd8] sm:$0xff]
        %v680 = vld [vmem:[%s187 + $0xde0] sm:$0xff]
        %v681 = vld [vmem:[%s187 + $0xde8] sm:$0xff]
        %v682 = vld [vmem:[%s187 + $0xdf0] sm:$0xff]
        %v683 = vld [vmem:[%s187 + $0xdf8] sm:$0xff]
        %v684 = vld [vmem:[%s187 + $0xe00] sm:$0xff]
        %v685 = vld [vmem:[%s187 + $0xe08] sm:$0xff]
        %v686 = vld [vmem:[%s187 + $0xe10] sm:$0xff]
        %v687 = vld [vmem:[%s187 + $0xe18] sm:$0xff]
        %v688 = vld [vmem:[%s187 + $0xe20] sm:$0xff]
        %v689 = vld [vmem:[%s187 + $0xe28] sm:$0xff]
        %v690 = vld [vmem:[%s187 + $0xe30] sm:$0xff]
        %v691 = vld [vmem:[%s187 + $0xe38] sm:$0xff]
        %v692 = vld [vmem:[%s187 + $0xe40] sm:$0xff]
        %v693 = vld [vmem:[%s187 + $0xe48] sm:$0xff]
        %v694 = vld [vmem:[%s187 + $0xe50] sm:$0xff]
        %v695 = vld [vmem:[%s187 + $0xe58] sm:$0xff]
        %v696 = vld [vmem:[%s187 + $0xe60] sm:$0xff]
        %v697 = vld [vmem:[%s187 + $0xe68] sm:$0xff]
        %v698 = vld [vmem:[%s187 + $0xe70] sm:$0xff]
        %v699 = vld [vmem:[%s187 + $0xe78] sm:$0xff]
        %v700 = vld [vmem:[%s187 + $0xe80] sm:$0xff]
        %v701 = vld [vmem:[%s187 + $0xe88] sm:$0xff]
        %v702 = vld [vmem:[%s187 + $0xe90] sm:$0xff]
        %v703 = vld [vmem:[%s187 + $0xe98] sm:$0xff]
        %v704 = vld [vmem:[%s187 + $0xea0] sm:$0xff]
        %v705 = vld [vmem:[%s187 + $0xea8] sm:$0xff]
        %v706 = vld [vmem:[%s187 + $0xeb0] sm:$0xff]
        %v707 = vld [vmem:[%s187 + $0xeb8] sm:$0xff]
        %v708 = vld [vmem:[%s187 + $0xec0] sm:$0xff]
        %v709 = vld [vmem:[%s187 + $0xec8] sm:$0xff]
        %v710 = vld [vmem:[%s187 + $0xed0] sm:$0xff]
        %v711 = vld [vmem:[%s187 + $0xed8] sm:$0xff]
        %v712 = vld [vmem:[%s187 + $0xee0] sm:$0xff]
        %v713 = vld [vmem:[%s187 + $0xee8] sm:$0xff]
        %v714 = vld [vmem:[%s187 + $0xef0] sm:$0xff]
        %v715 = vld [vmem:[%s187 + $0xef8] sm:$0xff]
        %v716 = vld [vmem:[%s187 + $0xf00] sm:$0xff]
        %v717 = vld [vmem:[%s187 + $0xf08] sm:$0xff]
        %v718 = vld [vmem:[%s187 + $0xf10] sm:$0xff]
        %v719 = vld [vmem:[%s187 + $0xf18] sm:$0xff]
        %v720 = vld [vmem:[%s187 + $0xf20] sm:$0xff]
        %v721 = vld [vmem:[%s187 + $0xf28] sm:$0xff]
        %v722 = vld [vmem:[%s187 + $0xf30] sm:$0xff]
        %v723 = vld [vmem:[%s187 + $0xf38] sm:$0xff]
        %v724 = vld [vmem:[%s187 + $0xf40] sm:$0xff]
        %v725 = vld [vmem:[%s187 + $0xf48] sm:$0xff]
        %v726 = vld [vmem:[%s187 + $0xf50] sm:$0xff]
        %v727 = vld [vmem:[%s187 + $0xf58] sm:$0xff]
        %v728 = vld [vmem:[%s187 + $0xf60] sm:$0xff]
        %v729 = vld [vmem:[%s187 + $0xf68] sm:$0xff]
        %v730 = vld [vmem:[%s187 + $0xf70] sm:$0xff]
        %v731 = vld [vmem:[%s187 + $0xf78] sm:$0xff]
        %v732 = vld [vmem:[%s187 + $0xf80] sm:$0xff]
        %v733 = vld [vmem:[%s187 + $0xf88] sm:$0xff]
        %v734 = vld [vmem:[%s187 + $0xf90] sm:$0xff]
        %v735 = vld [vmem:[%s187 + $0xf98] sm:$0xff]
        %v736 = vld [vmem:[%s187 + $0xfa0] sm:$0xff]
        %v737 = vld [vmem:[%s187 + $0xfa8] sm:$0xff]
        %v738 = vld [vmem:[%s187 + $0xfb0] sm:$0xff]
        %v739 = vld [vmem:[%s187 + $0xfb8] sm:$0xff]
        %v740 = vld [vmem:[%s187 + $0xfc0] sm:$0xff]
        %v741 = vld [vmem:[%s187 + $0xfc8] sm:$0xff]
        %v742 = vld [vmem:[%s187 + $0xfd0] sm:$0xff]
        %v743 = vld [vmem:[%s187 + $0xfd8] sm:$0xff]
        %v744 = vld [vmem:[%s187 + $0xfe0] sm:$0xff]
        %v745 = vld [vmem:[%s187 + $0xfe8] sm:$0xff]
        %v746 = vld [vmem:[%s187 + $0xff0] sm:$0xff]
        %v747 = vld [vmem:[%s187 + $0xff8] sm:$0xff]
        %v748 = vld [vmem:[%s187 + $0x1000] sm:$0xff]
        %v749 = vld [vmem:[%s187 + $0x1008] sm:$0xff]
        %v750 = vld [vmem:[%s187 + $0x1010] sm:$0xff]
        %v751 = vld [vmem:[%s187 + $0x1018] sm:$0xff]
        %v752 = vld [vmem:[%s187 + $0x1020] sm:$0xff]
        %v753 = vld [vmem:[%s187 + $0x1028] sm:$0xff]
        %v754 = vld [vmem:[%s187 + $0x1030] sm:$0xff]
        %v755 = vld [vmem:[%s187 + $0x1038] sm:$0xff]
        %v756 = vld [vmem:[%s187 + $0x1040] sm:$0xff]
        %v757 = vld [vmem:[%s187 + $0x1048] sm:$0xff]
        %v758 = vld [vmem:[%s187 + $0x1050] sm:$0xff]
        %v759 = vld [vmem:[%s187 + $0x1058] sm:$0xff]
        %v760 = vld [vmem:[%s187 + $0x1060] sm:$0xff]
        %v761 = vld [vmem:[%s187 + $0x1068] sm:$0xff]
        %v762 = vld [vmem:[%s187 + $0x1070] sm:$0xff]
        %v763 = vld [vmem:[%s187 + $0x1078] sm:$0xff]
        %v764 = vld [vmem:[%s187 + $0x1080] sm:$0xff]
        %v765 = vld [vmem:[%s187 + $0x1088] sm:$0xff]
        %v766 = vld [vmem:[%s187 + $0x1090] sm:$0xff]
        %v767 = vld [vmem:[%s187 + $0x1098] sm:$0xff]
        %v768 = vld [vmem:[%s187 + $0x10a0] sm:$0xff]
        %v769 = vld [vmem:[%s187 + $0x10a8] sm:$0xff]
        %v770 = vld [vmem:[%s187 + $0x10b0] sm:$0xff]
        %v771 = vld [vmem:[%s187 + $0x10b8] sm:$0xff]
        %v772 = vld [vmem:[%s187 + $0x10c0] sm:$0xff]
        %v773 = vld [vmem:[%s187 + $0x10c8] sm:$0xff]
        %v774 = vld [vmem:[%s187 + $0x10d0] sm:$0xff]
        %v775 = vld [vmem:[%s187 + $0x10d8] sm:$0xff]
        %v776 = vld [vmem:[%s187 + $0x10e0] sm:$0xff]
        %v777 = vld [vmem:[%s187 + $0x10e8] sm:$0xff]
        %v778 = vld [vmem:[%s187 + $0x10f0] sm:$0xff]
        %v779 = vld [vmem:[%s187 + $0x10f8] sm:$0xff]
        %v780 = vld [vmem:[%s187 + $0x1100] sm:$0xff]
        %v781 = vld [vmem:[%s187 + $0x1108] sm:$0xff]
        %v782 = vld [vmem:[%s187 + $0x1110] sm:$0xff]
        %v783 = vld [vmem:[%s187 + $0x1118] sm:$0xff]
        %v784 = vld [vmem:[%s187 + $0x1120] sm:$0xff]
        %v785 = vld [vmem:[%s187 + $0x1128] sm:$0xff]
        %v786 = vld [vmem:[%s187 + $0x1130] sm:$0xff]
        %v787 = vld [vmem:[%s187 + $0x1138] sm:$0xff]
        %v788 = vld [vmem:[%s187 + $0x1140] sm:$0xff]
        %v789 = vld [vmem:[%s187 + $0x1148] sm:$0xff]
        %v790 = vld [vmem:[%s187 + $0x1150] sm:$0xff]
        %v791 = vld [vmem:[%s187 + $0x1158] sm:$0xff]
        %v792 = vld [vmem:[%s187 + $0x1160] sm:$0xff]
        %v793 = vld [vmem:[%s187 + $0x1168] sm:$0xff]
        %v794 = vld [vmem:[%s187 + $0x1170] sm:$0xff]
        %v795 = vld [vmem:[%s187 + $0x1178] sm:$0xff]
        %v796 = vld [vmem:[%s187 + $0x1180] sm:$0xff]
        %v797 = vld [vmem:[%s187 + $0x1188] sm:$0xff]
        %v798 = vld [vmem:[%s187 + $0x1190] sm:$0xff]
        %v799 = vld [vmem:[%s187 + $0x1198] sm:$0xff]
        %v800 = vld [vmem:[%s187 + $0x11a0] sm:$0xff]
        %v801 = vld [vmem:[%s187 + $0x11a8] sm:$0xff]
        %v802 = vld [vmem:[%s187 + $0x11b0] sm:$0xff]
        %v803 = vld [vmem:[%s187 + $0x11b8] sm:$0xff]
        %v804 = vld [vmem:[%s187 + $0x11c0] sm:$0xff]
        %v805 = vld [vmem:[%s187 + $0x11c8] sm:$0xff]
        %v806 = vld [vmem:[%s187 + $0x11d0] sm:$0xff]
        %v807 = vld [vmem:[%s187 + $0x11d8] sm:$0xff]
        %v808 = vld [vmem:[%s187 + $0x11e0] sm:$0xff]
        %v809 = vld [vmem:[%s187 + $0x11e8] sm:$0xff]
        %v810 = vld [vmem:[%s187 + $0x11f0] sm:$0xff]
        %v811 = vld [vmem:[%s187 + $0x11f8] sm:$0xff]
        %v812 = vld [vmem:[%s187 + $0x1200] sm:$0xff]
        %v813 = vld [vmem:[%s187 + $0x1208] sm:$0xff]
        %v814 = vld [vmem:[%s187 + $0x1210] sm:$0xff]
        %v815 = vld [vmem:[%s187 + $0x1218] sm:$0xff]
        %v816 = vld [vmem:[%s187 + $0x1220] sm:$0xff]
        %v817 = vld [vmem:[%s187 + $0x1228] sm:$0xff]
        %v818 = vld [vmem:[%s187 + $0x1230] sm:$0xff]
        %v819 = vld [vmem:[%s187 + $0x1238] sm:$0xff]
        %v820 = vld [vmem:[%s187 + $0x1240] sm:$0xff]
        %v821 = vld [vmem:[%s187 + $0x1248] sm:$0xff]
        %v822 = vld [vmem:[%s187 + $0x1250] sm:$0xff]
        %v823 = vld [vmem:[%s187 + $0x1258] sm:$0xff]
        %v824 = vld [vmem:[%s187 + $0x1260] sm:$0xff]
        %v825 = vld [vmem:[%s187 + $0x1268] sm:$0xff]
        %v826 = vld [vmem:[%s187 + $0x1270] sm:$0xff]
        %v827 = vld [vmem:[%s187 + $0x1278] sm:$0xff]
        %v828 = vld [vmem:[%s187 + $0x1280] sm:$0xff]
        %v829 = vld [vmem:[%s187 + $0x1288] sm:$0xff]
        %v830 = vld [vmem:[%s187 + $0x1290] sm:$0xff]
        %v831 = vld [vmem:[%s187 + $0x1298] sm:$0xff]
        %v832 = vld [vmem:[%s187 + $0x12a0] sm:$0xff]
        %v833 = vld [vmem:[%s187 + $0x12a8] sm:$0xff]
        %v834 = vld [vmem:[%s187 + $0x12b0] sm:$0xff]
        %v835 = vld [vmem:[%s187 + $0x12b8] sm:$0xff]
        %v836 = vld [vmem:[%s187 + $0x12c0] sm:$0xff]
        %v837 = vld [vmem:[%s187 + $0x12c8] sm:$0xff]
        %v838 = vld [vmem:[%s187 + $0x12d0] sm:$0xff]
        %v839 = vld [vmem:[%s187 + $0x12d8] sm:$0xff]
        %v840 = vld [vmem:[%s187 + $0x12e0] sm:$0xff]
        %v841 = vld [vmem:[%s187 + $0x12e8] sm:$0xff]
        %v842 = vld [vmem:[%s187 + $0x12f0] sm:$0xff]
        %v843 = vld [vmem:[%s187 + $0x12f8] sm:$0xff]
        %v844 = vld [vmem:[%s187 + $0x1300] sm:$0xff]
        %v845 = vld [vmem:[%s187 + $0x1308] sm:$0xff]
        %v846 = vld [vmem:[%s187 + $0x1310] sm:$0xff]
        %v847 = vld [vmem:[%s187 + $0x1318] sm:$0xff]
        %v848 = vld [vmem:[%s187 + $0x1320] sm:$0xff]
        %v849 = vld [vmem:[%s187 + $0x1328] sm:$0xff]
        %v850 = vld [vmem:[%s187 + $0x1330] sm:$0xff]
        %v851 = vld [vmem:[%s187 + $0x1338] sm:$0xff]
        %v852 = vld [vmem:[%s187 + $0x1340] sm:$0xff]
        %v853 = vld [vmem:[%s187 + $0x1348] sm:$0xff]
        %v854 = vld [vmem:[%s187 + $0x1350] sm:$0xff]
        %v855 = vld [vmem:[%s187 + $0x1358] sm:$0xff]
        %v856 = vld [vmem:[%s187 + $0x1360] sm:$0xff]
        %v857 = vld [vmem:[%s187 + $0x1368] sm:$0xff]
        %v858 = vld [vmem:[%s187 + $0x1370] sm:$0xff]
        %v859 = vld [vmem:[%s187 + $0x1378] sm:$0xff]
        %v860 = vld [vmem:[%s187 + $0x1380] sm:$0xff]
        %v861 = vld [vmem:[%s187 + $0x1388] sm:$0xff]
        %v862 = vld [vmem:[%s187 + $0x1390] sm:$0xff]
        %v863 = vld [vmem:[%s187 + $0x1398] sm:$0xff]
        %v864 = vld [vmem:[%s187 + $0x13a0] sm:$0xff]
        %v865 = vld [vmem:[%s187 + $0x13a8] sm:$0xff]
        %v866 = vld [vmem:[%s187 + $0x13b0] sm:$0xff]
        %v867 = vld [vmem:[%s187 + $0x13b8] sm:$0xff]
        %v868 = vld [vmem:[%s187 + $0x13c0] sm:$0xff]
        %v869 = vld [vmem:[%s187 + $0x13c8] sm:$0xff]
        %v870 = vld [vmem:[%s187 + $0x13d0] sm:$0xff]
        %v871 = vld [vmem:[%s187 + $0x13d8] sm:$0xff]
        %v872 = vld [vmem:[%s187 + $0x13e0] sm:$0xff]
        %v873 = vld [vmem:[%s187 + $0x13e8] sm:$0xff]
        %v874 = vld [vmem:[%s187 + $0x13f0] sm:$0xff]
        %v875 = vld [vmem:[%s187 + $0x13f8] sm:$0xff]
        %v876 = vld [vmem:[%s187 + $0x1400] sm:$0xff]
        %v877 = vld [vmem:[%s187 + $0x1408] sm:$0xff]
        %v878 = vld [vmem:[%s187 + $0x1410] sm:$0xff]
        %v879 = vld [vmem:[%s187 + $0x1418] sm:$0xff]
        %v880 = vld [vmem:[%s187 + $0x1420] sm:$0xff]
        %v881 = vld [vmem:[%s187 + $0x1428] sm:$0xff]
        %v882 = vld [vmem:[%s187 + $0x1430] sm:$0xff]
        %v883 = vld [vmem:[%s187 + $0x1438] sm:$0xff]
        %v884 = vld [vmem:[%s187 + $0x1440] sm:$0xff]
        %v885 = vld [vmem:[%s187 + $0x1448] sm:$0xff]
        %v886 = vld [vmem:[%s187 + $0x1450] sm:$0xff]
        %v887 = vld [vmem:[%s187 + $0x1458] sm:$0xff]
        %v888 = vld [vmem:[%s187 + $0x1460] sm:$0xff]
        %v889 = vld [vmem:[%s187 + $0x1468] sm:$0xff]
        %v890 = vld [vmem:[%s187 + $0x1470] sm:$0xff]
        %v891 = vld [vmem:[%s187 + $0x1478] sm:$0xff]
        %v892 = vld [vmem:[%s187 + $0x1480] sm:$0xff]
        %v893 = vld [vmem:[%s187 + $0x1488] sm:$0xff]
        %v894 = vld [vmem:[%s187 + $0x1490] sm:$0xff]
        %v895 = vld [vmem:[%s187 + $0x1498] sm:$0xff]
        %v896 = vld [vmem:[%s187 + $0x14a0] sm:$0xff]
        %v897 = vld [vmem:[%s187 + $0x14a8] sm:$0xff]
        %v898 = vld [vmem:[%s187 + $0x14b0] sm:$0xff]
        %v899 = vld [vmem:[%s187 + $0x14b8] sm:$0xff]
        %v900 = vld [vmem:[%s187 + $0x14c0] sm:$0xff]
        %v901 = vld [vmem:[%s187 + $0x14c8] sm:$0xff]
        %v902 = vld [vmem:[%s187 + $0x14d0] sm:$0xff]
        %v903 = vld [vmem:[%s187 + $0x14d8] sm:$0xff]
        %v904 = vld [vmem:[%s187 + $0x14e0] sm:$0xff]
        %v905 = vld [vmem:[%s187 + $0x14e8] sm:$0xff]
        %v906 = vld [vmem:[%s187 + $0x14f0] sm:$0xff]
        %v907 = vld [vmem:[%s187 + $0x14f8] sm:$0xff]
        %v908 = vld [vmem:[%s187 + $0x1500] sm:$0xff]
        %v909 = vld [vmem:[%s187 + $0x1508] sm:$0xff]
        %v910 = vld [vmem:[%s187 + $0x1510] sm:$0xff]
        %v911 = vld [vmem:[%s187 + $0x1518] sm:$0xff]
        %v912 = vld [vmem:[%s187 + $0x1520] sm:$0xff]
        %v913 = vld [vmem:[%s187 + $0x1528] sm:$0xff]
        %v914 = vld [vmem:[%s187 + $0x1530] sm:$0xff]
        %v915 = vld [vmem:[%s187 + $0x1538] sm:$0xff]
        %v916 = vld [vmem:[%s187 + $0x1540] sm:$0xff]
        %v917 = vld [vmem:[%s187 + $0x1548] sm:$0xff]
        %v918 = vld [vmem:[%s187 + $0x1550] sm:$0xff]
        %v919 = vld [vmem:[%s187 + $0x1558] sm:$0xff]
        %v920 = vld [vmem:[%s187 + $0x1560] sm:$0xff]
        %v921 = vld [vmem:[%s187 + $0x1568] sm:$0xff]
        %v922 = vld [vmem:[%s187 + $0x1570] sm:$0xff]
        %v923 = vld [vmem:[%s187 + $0x1578] sm:$0xff]
        %v924 = vld [vmem:[%s187 + $0x1580] sm:$0xff]
        %v925 = vld [vmem:[%s187 + $0x1588] sm:$0xff]
        %v926 = vld [vmem:[%s187 + $0x1590] sm:$0xff]
        %v927 = vld [vmem:[%s187 + $0x1598] sm:$0xff]
        %v928 = vld [vmem:[%s187 + $0x15a0] sm:$0xff]
        %v929 = vld [vmem:[%s187 + $0x15a8] sm:$0xff]
        %v930 = vld [vmem:[%s187 + $0x15b0] sm:$0xff]
        %v931 = vld [vmem:[%s187 + $0x15b8] sm:$0xff]
        %v932 = vld [vmem:[%s187 + $0x15c0] sm:$0xff]
        %v933 = vld [vmem:[%s187 + $0x15c8] sm:$0xff]
        %v934 = vld [vmem:[%s187 + $0x15d0] sm:$0xff]
        %v935 = vld [vmem:[%s187 + $0x15d8] sm:$0xff]
        %v936 = vld [vmem:[%s187 + $0x15e0] sm:$0xff]
        %v937 = vld [vmem:[%s187 + $0x15e8] sm:$0xff]
        %v938 = vld [vmem:[%s187 + $0x15f0] sm:$0xff]
        %v939 = vld [vmem:[%s187 + $0x15f8] sm:$0xff]
        %v940 = vld [vmem:[%s187 + $0x1600] sm:$0xff]
        %v941 = vld [vmem:[%s187 + $0x1608] sm:$0xff]
        %v942 = vld [vmem:[%s187 + $0x1610] sm:$0xff]
        %v943 = vld [vmem:[%s187 + $0x1618] sm:$0xff]
        %v944 = vld [vmem:[%s187 + $0x1620] sm:$0xff]
        %v945 = vld [vmem:[%s187 + $0x1628] sm:$0xff]
        %v946 = vld [vmem:[%s187 + $0x1630] sm:$0xff]
        %v947 = vld [vmem:[%s187 + $0x1638] sm:$0xff]
        %v948 = vld [vmem:[%s187 + $0x1640] sm:$0xff]
        %v949 = vld [vmem:[%s187 + $0x1648] sm:$0xff]
        %v950 = vld [vmem:[%s187 + $0x1650] sm:$0xff]
        %v951 = vld [vmem:[%s187 + $0x1658] sm:$0xff]
        %v952 = vld [vmem:[%s187 + $0x1660] sm:$0xff]
        %v953 = vld [vmem:[%s187 + $0x1668] sm:$0xff]
        %v954 = vld [vmem:[%s187 + $0x1670] sm:$0xff]
        %v955 = vld [vmem:[%s187 + $0x1678] sm:$0xff]
        %v956 = vld [vmem:[%s187 + $0x1680] sm:$0xff]
        %v957 = vld [vmem:[%s187 + $0x1688] sm:$0xff]
        %v958 = vld [vmem:[%s187 + $0x1690] sm:$0xff]
        %v959 = vld [vmem:[%s187 + $0x1698] sm:$0xff]
        %v960 = vld [vmem:[%s187 + $0x16a0] sm:$0xff]
        %v961 = vld [vmem:[%s187 + $0x16a8] sm:$0xff]
        %v962 = vld [vmem:[%s187 + $0x16b0] sm:$0xff]
        %v963 = vld [vmem:[%s187 + $0x16b8] sm:$0xff]
        %v964 = vld [vmem:[%s187 + $0x16c0] sm:$0xff]
        %v965 = vld [vmem:[%s187 + $0x16c8] sm:$0xff]
        %v966 = vld [vmem:[%s187 + $0x16d0] sm:$0xff]
        %v967 = vld [vmem:[%s187 + $0x16d8] sm:$0xff]
        %v968 = vld [vmem:[%s187 + $0x16e0] sm:$0xff]
        %v969 = vld [vmem:[%s187 + $0x16e8] sm:$0xff]
        %v970 = vld [vmem:[%s187 + $0x16f0] sm:$0xff]
        %v971 = vld [vmem:[%s187 + $0x16f8] sm:$0xff]
        %v972 = vld [vmem:[%s187 + $0x1700] sm:$0xff]
        %v973 = vld [vmem:[%s187 + $0x1708] sm:$0xff]
        %v974 = vld [vmem:[%s187 + $0x1710] sm:$0xff]
        %v975 = vld [vmem:[%s187 + $0x1718] sm:$0xff]
        %v976 = vld [vmem:[%s187 + $0x1720] sm:$0xff]
        %v977 = vld [vmem:[%s187 + $0x1728] sm:$0xff]
        %v978 = vld [vmem:[%s187 + $0x1730] sm:$0xff]
        %v979 = vld [vmem:[%s187 + $0x1738] sm:$0xff]
        %v980 = vld [vmem:[%s187 + $0x1740] sm:$0xff]
        %v981 = vld [vmem:[%s187 + $0x1748] sm:$0xff]
        %v982 = vld [vmem:[%s187 + $0x1750] sm:$0xff]
        %v983 = vld [vmem:[%s187 + $0x1758] sm:$0xff]
        %v984 = vld [vmem:[%s187 + $0x1760] sm:$0xff]
        %v985 = vld [vmem:[%s187 + $0x1768] sm:$0xff]
        %v986 = vld [vmem:[%s187 + $0x1770] sm:$0xff]
        %v987 = vld [vmem:[%s187 + $0x1778] sm:$0xff]
        %v988 = vld [vmem:[%s187 + $0x1780] sm:$0xff]
        %v989 = vld [vmem:[%s187 + $0x1788] sm:$0xff]
        %v990 = vld [vmem:[%s187 + $0x1790] sm:$0xff]
        %v991 = vld [vmem:[%s187 + $0x1798] sm:$0xff]
        %v992 = vld [vmem:[%s187 + $0x17a0] sm:$0xff]
        %v993 = vld [vmem:[%s187 + $0x17a8] sm:$0xff]
        %v994 = vld [vmem:[%s187 + $0x17b0] sm:$0xff]
        %v995 = vld [vmem:[%s187 + $0x17b8] sm:$0xff]
        %v996 = vld [vmem:[%s187 + $0x17c0] sm:$0xff]
        %v997 = vld [vmem:[%s187 + $0x17c8] sm:$0xff]
        %v998 = vld [vmem:[%s187 + $0x17d0] sm:$0xff]
        %v999 = vld [vmem:[%s187 + $0x17d8] sm:$0xff]
        %v1000 = vld [vmem:[%s187 + $0x17e0] sm:$0xff]
        %v1001 = vld [vmem:[%s187 + $0x17e8] sm:$0xff]
        %v1002 = vld [vmem:[%s187 + $0x17f0] sm:$0xff]
        %v1003 = vld [vmem:[%s187 + $0x17f8] sm:$0xff]
        %v1004 = vld [vmem:[%s187 + $0x1800] sm:$0xff]
        %v1005 = vld [vmem:[%s187 + $0x1808] sm:$0xff]
        %v1006 = vld [vmem:[%s187 + $0x1810] sm:$0xff]
        %v1007 = vld [vmem:[%s187 + $0x1818] sm:$0xff]
        %v1008 = vld [vmem:[%s187 + $0x1820] sm:$0xff]
        %v1009 = vld [vmem:[%s187 + $0x1828] sm:$0xff]
        %v1010 = vld [vmem:[%s187 + $0x1830] sm:$0xff]
        %v1011 = vld [vmem:[%s187 + $0x1838] sm:$0xff]
        %v1012 = vld [vmem:[%s187 + $0x1840] sm:$0xff]
        %v1013 = vld [vmem:[%s187 + $0x1848] sm:$0xff]
        %v1014 = vld [vmem:[%s187 + $0x1850] sm:$0xff]
        %v1015 = vld [vmem:[%s187 + $0x1858] sm:$0xff]
        %v1016 = vld [vmem:[%s187 + $0x1860] sm:$0xff]
        %v1017 = vld [vmem:[%s187 + $0x1868] sm:$0xff]
        %v1018 = vld [vmem:[%s187 + $0x1870] sm:$0xff]
        %v1019 = vld [vmem:[%s187 + $0x1878] sm:$0xff]
        %v1020 = vld [vmem:[%s187 + $0x1880] sm:$0xff]
        %v1021 = vld [vmem:[%s187 + $0x1888] sm:$0xff]
        %v1022 = vld [vmem:[%s187 + $0x1890] sm:$0xff]
        %v1023 = vld [vmem:[%s187 + $0x1898] sm:$0xff]
        %v1024 = vld [vmem:[%s187 + $0x18a0] sm:$0xff]
        %v1025 = vld [vmem:[%s187 + $0x18a8] sm:$0xff]
        %v1026 = vld [vmem:[%s187 + $0x18b0] sm:$0xff]
        %v1027 = vld [vmem:[%s187 + $0x18b8] sm:$0xff]
        %v1028 = vld [vmem:[%s187 + $0x18c0] sm:$0xff]
        %v1029 = vld [vmem:[%s187 + $0x18c8] sm:$0xff]
        %v1030 = vld [vmem:[%s187 + $0x18d0] sm:$0xff]
        %v1031 = vld [vmem:[%s187 + $0x18d8] sm:$0xff]
        %v1032 = vld [vmem:[%s187 + $0x18e0] sm:$0xff]
        %v1033 = vld [vmem:[%s187 + $0x18e8] sm:$0xff]
        %v1034 = vld [vmem:[%s187 + $0x18f0] sm:$0xff]
        %v1035 = vld [vmem:[%s187 + $0x18f8] sm:$0xff]
        %v1036 = vld [vmem:[%s187 + $0x1900] sm:$0xff]
        %v1037 = vld [vmem:[%s187 + $0x1908] sm:$0xff]
        %v1038 = vld [vmem:[%s187 + $0x1910] sm:$0xff]
        %v1039 = vld [vmem:[%s187 + $0x1918] sm:$0xff]
        %v1040 = vld [vmem:[%s187 + $0x1920] sm:$0xff]
        %v1041 = vld [vmem:[%s187 + $0x1928] sm:$0xff]
        %v1042 = vld [vmem:[%s187 + $0x1930] sm:$0xff]
        %v1043 = vld [vmem:[%s187 + $0x1938] sm:$0xff]
        %v1044 = vld [vmem:[%s187 + $0x1940] sm:$0xff]
        %v1045 = vld [vmem:[%s187 + $0x1948] sm:$0xff]
        %v1046 = vld [vmem:[%s187 + $0x1950] sm:$0xff]
        %v1047 = vld [vmem:[%s187 + $0x1958] sm:$0xff]
        %v1048 = vld [vmem:[%s187 + $0x1960] sm:$0xff]
        %v1049 = vld [vmem:[%s187 + $0x1968] sm:$0xff]
        %v1050 = vld [vmem:[%s187 + $0x1970] sm:$0xff]
        %v1051 = vld [vmem:[%s187 + $0x1978] sm:$0xff]
        %v1052 = vld [vmem:[%s187 + $0x1980] sm:$0xff]
        %v1053 = vld [vmem:[%s187 + $0x1988] sm:$0xff]
        %v1054 = vld [vmem:[%s187 + $0x1990] sm:$0xff]
        %v1055 = vld [vmem:[%s187 + $0x1998] sm:$0xff]
        %v1056 = vld [vmem:[%s187 + $0x19a0] sm:$0xff]
        %v1057 = vld [vmem:[%s187 + $0x19a8] sm:$0xff]
        %v1058 = vld [vmem:[%s187 + $0x19b0] sm:$0xff]
        %v1059 = vld [vmem:[%s187 + $0x19b8] sm:$0xff]
        %v1060 = vld [vmem:[%s187 + $0x19c0] sm:$0xff]
        %v1061 = vld [vmem:[%s187 + $0x19c8] sm:$0xff]
        %v1062 = vld [vmem:[%s187 + $0x19d0] sm:$0xff]
        %v1063 = vld [vmem:[%s187 + $0x19d8] sm:$0xff]
        %v1064 = vld [vmem:[%s187 + $0x19e0] sm:$0xff]
        %v1065 = vld [vmem:[%s187 + $0x19e8] sm:$0xff]
        %v1066 = vld [vmem:[%s187 + $0x19f0] sm:$0xff]
        %v1067 = vld [vmem:[%s187 + $0x19f8] sm:$0xff]
        %v1068 = vld [vmem:[%s187 + $0x1a00] sm:$0xff]
        %v1069 = vld [vmem:[%s187 + $0x1a08] sm:$0xff]
        %v1070 = vld [vmem:[%s187 + $0x1a10] sm:$0xff]
        %v1071 = vld [vmem:[%s187 + $0x1a18] sm:$0xff]
        %v1072 = vld [vmem:[%s187 + $0x1a20] sm:$0xff]
        %v1073 = vld [vmem:[%s187 + $0x1a28] sm:$0xff]
        %v1074 = vld [vmem:[%s187 + $0x1a30] sm:$0xff]
        %v1075 = vld [vmem:[%s187 + $0x1a38] sm:$0xff]
        %v1076 = vld [vmem:[%s187 + $0x1a40] sm:$0xff]
        %v1077 = vld [vmem:[%s187 + $0x1a48] sm:$0xff]
        %v1078 = vld [vmem:[%s187 + $0x1a50] sm:$0xff]
        %v1079 = vld [vmem:[%s187 + $0x1a58] sm:$0xff]
        %v1080 = vld [vmem:[%s187 + $0x1a60] sm:$0xff]
        %v1081 = vld [vmem:[%s187 + $0x1a68] sm:$0xff]
        %v1082 = vld [vmem:[%s187 + $0x1a70] sm:$0xff]
        %v1083 = vld [vmem:[%s187 + $0x1a78] sm:$0xff]
        %v1084 = vld [vmem:[%s187 + $0x1a80] sm:$0xff]
        %v1085 = vld [vmem:[%s187 + $0x1a88] sm:$0xff]
        %v1086 = vld [vmem:[%s187 + $0x1a90] sm:$0xff]
        %v1087 = vld [vmem:[%s187 + $0x1a98] sm:$0xff]
        %v1088 = vld [vmem:[%s187 + $0x1aa0] sm:$0xff]
        %v1089 = vld [vmem:[%s187 + $0x1aa8] sm:$0xff]
        %v1090 = vld [vmem:[%s187 + $0x1ab0] sm:$0xff]
        %v1091 = vld [vmem:[%s187 + $0x1ab8] sm:$0xff]
        %v1092 = vld [vmem:[%s187 + $0x1ac0] sm:$0xff]
        %v1093 = vld [vmem:[%s187 + $0x1ac8] sm:$0xff]
        %v1094 = vld [vmem:[%s187 + $0x1ad0] sm:$0xff]
        %v1095 = vld [vmem:[%s187 + $0x1ad8] sm:$0xff]
        %v1096 = vld [vmem:[%s187 + $0x1ae0] sm:$0xff]
        %v1097 = vld [vmem:[%s187 + $0x1ae8] sm:$0xff]
        %v1098 = vld [vmem:[%s187 + $0x1af0] sm:$0xff]
        %v1099 = vld [vmem:[%s187 + $0x1af8] sm:$0xff]
        %v1100 = vld [vmem:[%s187 + $0x1b00] sm:$0xff]
        %v1101 = vld [vmem:[%s187 + $0x1b08] sm:$0xff]
        %v1102 = vld [vmem:[%s187 + $0x1b10] sm:$0xff]
        %v1103 = vld [vmem:[%s187 + $0x1b18] sm:$0xff]
        %v1104 = vld [vmem:[%s187 + $0x1b20] sm:$0xff]
        %v1105 = vld [vmem:[%s187 + $0x1b28] sm:$0xff]
        %v1106 = vld [vmem:[%s187 + $0x1b30] sm:$0xff]
        %v1107 = vld [vmem:[%s187 + $0x1b38] sm:$0xff]
        %v1108 = vld [vmem:[%s187 + $0x1b40] sm:$0xff]
        %v1109 = vld [vmem:[%s187 + $0x1b48] sm:$0xff]
        %v1110 = vld [vmem:[%s187 + $0x1b50] sm:$0xff]
        %v1111 = vld [vmem:[%s187 + $0x1b58] sm:$0xff]
        %v1112 = vld [vmem:[%s187 + $0x1b60] sm:$0xff]
        %v1113 = vld [vmem:[%s187 + $0x1b68] sm:$0xff]
        %v1114 = vld [vmem:[%s187 + $0x1b70] sm:$0xff]
        %v1115 = vld [vmem:[%s187 + $0x1b78] sm:$0xff]
        %v1116 = vld [vmem:[%s187 + $0x1b80] sm:$0xff]
        %v1117 = vld [vmem:[%s187 + $0x1b88] sm:$0xff]
        %v1118 = vld [vmem:[%s187 + $0x1b90] sm:$0xff]
        %v1119 = vld [vmem:[%s187 + $0x1b98] sm:$0xff]
        %v1120 = vld [vmem:[%s187 + $0x1ba0] sm:$0xff]
        %v1121 = vld [vmem:[%s187 + $0x1ba8] sm:$0xff]
        %v1122 = vld [vmem:[%s187 + $0x1bb0] sm:$0xff]
        %v1123 = vld [vmem:[%s187 + $0x1bb8] sm:$0xff]
        %v1124 = vld [vmem:[%s187 + $0x1bc0] sm:$0xff]
        %v1125 = vld [vmem:[%s187 + $0x1bc8] sm:$0xff]
        %v1126 = vld [vmem:[%s187 + $0x1bd0] sm:$0xff]
        %v1127 = vld [vmem:[%s187 + $0x1bd8] sm:$0xff]
        %v1128 = vld [vmem:[%s187 + $0x1be0] sm:$0xff]
        %v1129 = vld [vmem:[%s187 + $0x1be8] sm:$0xff]
        %v1130 = vld [vmem:[%s187 + $0x1bf0] sm:$0xff]
        %v1131 = vld [vmem:[%s187 + $0x1bf8] sm:$0xff]
        %v1132 = vld [vmem:[%s187 + $0x1c00] sm:$0xff]
        %v1133 = vld [vmem:[%s187 + $0x1c08] sm:$0xff]
        %v1134 = vld [vmem:[%s187 + $0x1c10] sm:$0xff]
        %v1135 = vld [vmem:[%s187 + $0x1c18] sm:$0xff]
        %v1136 = vld [vmem:[%s196] sm:$0xf]
        %v1138 = vlaneseq
        %v1139 = vshrl.u32 %v1138, 7
        %v1140 = vsub.s32 0, %v1139
        %v1141 = vrot.slane %v1136, %v1140
        %v1142 = vlaneseq
        %v1143 = vshrl.u32 %v1142, 7
        %v1144 = vsub.s32 1, %v1143
        %v1145 = vrot.slane %v1136, %v1144
        %v1146 = vlaneseq
        %v1147 = vshrl.u32 %v1146, 7
        %v1148 = vsub.s32 2, %v1147
        %v1149 = vrot.slane %v1136, %v1148
        %v1150 = vlaneseq
        %v1151 = vshrl.u32 %v1150, 7
        %v1152 = vsub.s32 3, %v1151
        %v1153 = vrot.slane %v1136, %v1152
        %v1162 = vcombine.high %v232, %v232
        %v1164 = vunpack.c.l.s4 1983009808
        %v1165 = vunpack.c.0.s8 %v1164
        %v1166 = vlaneseq
        %v1167 = vshrl.u32 %v1166, 7
        %v1168 = vsub.s32 %v1165, %v1167
        %v1169 = vrot.slane %v232, %v1168
        %v1171 = vunpack.c.l.s4 1983009808
        %v1172 = vunpack.c.0.s8 %v1171
        %v1173 = vlaneseq
        %v1174 = vshrl.u32 %v1173, 7
        %v1175 = vsub.s32 %v1172, %v1174
        %v1176 = vrot.slane %v1162, %v1175
        %v1177 = vcombine.high %v1169, %v1169
        %v1178 = vcombine.high %v1176, %v1176
        %v1179 = vcombine.high %v233, %v233
        %v1181 = vunpack.c.l.s4 1983009808
        %v1182 = vunpack.c.0.s8 %v1181
        %v1183 = vlaneseq
        %v1184 = vshrl.u32 %v1183, 7
        %v1185 = vsub.s32 %v1182, %v1184
        %v1186 = vrot.slane %v233, %v1185
        %v1188 = vunpack.c.l.s4 1983009808
        %v1189 = vunpack.c.0.s8 %v1188
        %v1190 = vlaneseq
        %v1191 = vshrl.u32 %v1190, 7
        %v1192 = vsub.s32 %v1189, %v1191
        %v1193 = vrot.slane %v1179, %v1192
        %v1194 = vcombine.high %v1186, %v1186
        %v1195 = vcombine.high %v1193, %v1193
        %v1196 = vcombine.high %v234, %v234
        %v1198 = vunpack.c.l.s4 1983009808
        %v1199 = vunpack.c.0.s8 %v1198
        %v1200 = vlaneseq
        %v1201 = vshrl.u32 %v1200, 7
        %v1202 = vsub.s32 %v1199, %v1201
        %v1203 = vrot.slane %v234, %v1202
        %v1205 = vunpack.c.l.s4 1983009808
        %v1206 = vunpack.c.0.s8 %v1205
        %v1207 = vlaneseq
        %v1208 = vshrl.u32 %v1207, 7
        %v1209 = vsub.s32 %v1206, %v1208
        %v1210 = vrot.slane %v1196, %v1209
        %v1211 = vcombine.high %v1203, %v1203
        %v1212 = vcombine.high %v1210, %v1210
        %v1213 = vcombine.high %v235, %v235
        %v1215 = vunpack.c.l.s4 1983009808
        %v1216 = vunpack.c.0.s8 %v1215
        %v1217 = vlaneseq
        %v1218 = vshrl.u32 %v1217, 7
        %v1219 = vsub.s32 %v1216, %v1218
        %v1220 = vrot.slane %v235, %v1219
        %v1222 = vunpack.c.l.s4 1983009808
        %v1223 = vunpack.c.0.s8 %v1222
        %v1224 = vlaneseq
        %v1225 = vshrl.u32 %v1224, 7
        %v1226 = vsub.s32 %v1223, %v1225
        %v1227 = vrot.slane %v1213, %v1226
        %v1228 = vcombine.high %v1220, %v1220
        %vm1243 = vcmask 64512
        %v1244 = vsel %vm1243, %v1227, 0
        %1246 = vmatprep.subr.mxu0 %v237
        %1247 = vmatpush1.msra.mxu0 %v236
        %1248 = vmatprep.subr.mxu0 %v241
        %1249 = vmatpush1.msra.mxu0 %v240
        %1250 = vmatprep.subr.mxu0 %v245
        %1251 = vmatpush1.msra.mxu0 %v244
        %1252 = vmatprep.subr.mxu0 %v249
        %1253 = vmatpush1.msra.mxu0 %v248
        %1254 = vmatprep.subr.mxu0 %v253
        %1255 = vmatpush1.msra.mxu0 %v252
        %1256 = vmatprep.subr.mxu0 %v257
        %1257 = vmatpush1.msra.mxu0 %v256
        %1258 = vmatprep.subr.mxu0 %v261
        %1259 = vmatpush1.msra.mxu0 %v260
        %1260 = vmatprep.subr.mxu0 %v265
        %1261 = vmatpush1.msra.mxu0 %v264
        %1262 = vmatprep.subr.mxu0 %v269
        %1263 = vmatpush1.msra.mxu0 %v268
        %1264 = vmatprep.subr.mxu0 %v273
        %1265 = vmatpush1.msra.mxu0 %v272
        %1266 = vmatprep.subr.mxu0 %v277
        %1267 = vmatpush1.msra.mxu0 %v276
        %1268 = vmatprep.subr.mxu0 %v281
        %1269 = vmatpush1.msra.mxu0 %v280
        %1270 = vmatprep.subr.mxu0 %v285
        %1271 = vmatpush1.msra.mxu0 %v284
        %1272 = vmatprep.subr.mxu0 %v289
        %1273 = vmatpush1.msra.mxu0 %v288
        %1274 = vmatprep.subr.mxu0 %v293
        %1275 = vmatpush1.msra.mxu0 %v292
        %1276 = vmatprep.subr.mxu0 %v297
        %1277 = vmatpush1.msra.mxu0 %v296
        %1278 = vmatprep.subr.mxu0 %v301
        %1279 = vmatpush1.msra.mxu0 %v300
        %1280 = vmatprep.subr.mxu0 %v305
        %1281 = vmatpush1.msra.mxu0 %v304
        %1282 = vmatprep.subr.mxu0 %v309
        %1283 = vmatpush1.msra.mxu0 %v308
        %1284 = vmatprep.subr.mxu0 %v313
        %1285 = vmatpush1.msra.mxu0 %v312
        %1286 = vmatprep.subr.mxu0 %v317
        %1287 = vmatpush1.msra.mxu0 %v316
        %1288 = vmatprep.subr.mxu0 %v321
        %1289 = vmatpush1.msra.mxu0 %v320
        %1290 = vmatprep.subr.mxu0 %v325
        %1291 = vmatpush1.msra.mxu0 %v324
        %1292 = vmatprep.subr.mxu0 %v329
        %1293 = vmatpush1.msra.mxu0 %v328
        %1294 = vmatprep.subr.mxu0 %v333
        %1295 = vmatpush1.msra.mxu0 %v332
        %1296 = vmatprep.subr.mxu0 %v337
        %1297 = vmatpush1.msra.mxu0 %v336
        %1298 = vmatprep.subr.mxu0 %v341
        %1299 = vmatpush1.msra.mxu0 %v340
        %1300 = vmatprep.subr.mxu0 %v345
        %1301 = vmatpush1.msra.mxu0 %v344
        %1302 = vmatprep.subr.mxu0 %v349
        %1303 = vmatpush1.msra.mxu0 %v348
        %1304 = vmatprep.subr.mxu0 %v353
        %1305 = vmatpush1.msra.mxu0 %v352
        %1306 = vmatprep.subr.mxu0 %v357
        %1307 = vmatpush1.msra.mxu0 %v356
        %1308 = vmatprep.subr.mxu0 %v361
        %1309 = vmatpush1.msra.mxu0 %v360
        %1310 = vmatprep.mubr.f32.mxu0 %v1177
        %1311 = vmatmul.mubr.f32.gmra.mrb[0].mxu0 %v1169
        %v1312 = vpop.f32.mrb[0].mxu0
        %v1313 = vadd.f32 %v1141, %v1312
        %v1314 = vpop.f32.mrb[0].mxu0
        %v1315 = vadd.f32 %v1145, %v1314
        %1316 = vdwg.mxu0
        %1317 = vmatprep.subr.mxu0 %v365
        %1318 = vmatpush1.msra.mxu0 %v364
        %1319 = vmatprep.subr.mxu0 %v369
        %1320 = vmatpush1.msra.mxu0 %v368
        %1321 = vmatprep.subr.mxu0 %v373
        %1322 = vmatpush1.msra.mxu0 %v372
        %1323 = vmatprep.subr.mxu0 %v377
        %1324 = vmatpush1.msra.mxu0 %v376
        %1325 = vmatprep.subr.mxu0 %v381
        %1326 = vmatpush1.msra.mxu0 %v380
        %1327 = vmatprep.subr.mxu0 %v385
        %1328 = vmatpush1.msra.mxu0 %v384
        %1329 = vmatprep.subr.mxu0 %v389
        %1330 = vmatpush1.msra.mxu0 %v388
        %1331 = vmatprep.subr.mxu0 %v393
        %1332 = vmatpush1.msra.mxu0 %v392
        %1333 = vmatprep.subr.mxu0 %v397
        %1334 = vmatpush1.msra.mxu0 %v396
        %1335 = vmatprep.subr.mxu0 %v401
        %1336 = vmatpush1.msra.mxu0 %v400
        %1337 = vmatprep.subr.mxu0 %v405
        %1338 = vmatpush1.msra.mxu0 %v404
        %1339 = vmatprep.subr.mxu0 %v409
        %1340 = vmatpush1.msra.mxu0 %v408
        %1341 = vmatprep.subr.mxu0 %v413
        %1342 = vmatpush1.msra.mxu0 %v412
        %1343 = vmatprep.subr.mxu0 %v417
        %1344 = vmatpush1.msra.mxu0 %v416
        %1345 = vmatprep.subr.mxu0 %v421
        %1346 = vmatpush1.msra.mxu0 %v420
        %1347 = vmatprep.subr.mxu0 %v425
        %1348 = vmatpush1.msra.mxu0 %v424
        %1349 = vmatprep.subr.mxu0 %v429
        %1350 = vmatpush1.msra.mxu0 %v428
        %1351 = vmatprep.subr.mxu0 %v433
        %1352 = vmatpush1.msra.mxu0 %v432
        %1353 = vmatprep.subr.mxu0 %v437
        %1354 = vmatpush1.msra.mxu0 %v436
        %1355 = vmatprep.subr.mxu0 %v441
        %1356 = vmatpush1.msra.mxu0 %v440
        %1357 = vmatprep.subr.mxu0 %v445
        %1358 = vmatpush1.msra.mxu0 %v444
        %1359 = vmatprep.subr.mxu0 %v449
        %1360 = vmatpush1.msra.mxu0 %v448
        %1361 = vmatprep.subr.mxu0 %v453
        %1362 = vmatpush1.msra.mxu0 %v452
        %1363 = vmatprep.subr.mxu0 %v457
        %1364 = vmatpush1.msra.mxu0 %v456
        %1365 = vmatprep.subr.mxu0 %v461
        %1366 = vmatpush1.msra.mxu0 %v460
        %1367 = vmatprep.subr.mxu0 %v465
        %1368 = vmatpush1.msra.mxu0 %v464
        %1369 = vmatprep.subr.mxu0 %v469
        %1370 = vmatpush1.msra.mxu0 %v468
        %1371 = vmatprep.subr.mxu0 %v473
        %1372 = vmatpush1.msra.mxu0 %v472
        %1373 = vmatprep.subr.mxu0 %v477
        %1374 = vmatpush1.msra.mxu0 %v476
        %1375 = vmatprep.subr.mxu0 %v481
        %1376 = vmatpush1.msra.mxu0 %v480
        %1377 = vmatprep.subr.mxu0 %v485
        %1378 = vmatpush1.msra.mxu0 %v484
        %1379 = vmatprep.subr.mxu0 %v489
        %1380 = vmatpush1.msra.mxu0 %v488
        %1381 = vmatprep.mubr.f32.mxu0 %v1178
        %1382 = vmatmul.mubr.f32.gmra.mrb[0].mxu0 %v1176
        %v1383 = vpop.f32.mrb[0].mxu0
        %v1384 = vadd.f32 %v1313, %v1383
        %v1385 = vpop.f32.mrb[0].mxu0
        %v1386 = vadd.f32 %v1315, %v1385
        %1387 = vdwg.mxu0
        %1388 = vmatprep.subr.mxu0 %v493
        %1389 = vmatpush1.msra.mxu0 %v492
        %1390 = vmatprep.subr.mxu0 %v497
        %1391 = vmatpush1.msra.mxu0 %v496
        %1392 = vmatprep.subr.mxu0 %v501
        %1393 = vmatpush1.msra.mxu0 %v500
        %1394 = vmatprep.subr.mxu0 %v505
        %1395 = vmatpush1.msra.mxu0 %v504
        %1396 = vmatprep.subr.mxu0 %v509
        %1397 = vmatpush1.msra.mxu0 %v508
        %1398 = vmatprep.subr.mxu0 %v513
        %1399 = vmatpush1.msra.mxu0 %v512
        %1400 = vmatprep.subr.mxu0 %v517
        %1401 = vmatpush1.msra.mxu0 %v516
        %1402 = vmatprep.subr.mxu0 %v521
        %1403 = vmatpush1.msra.mxu0 %v520
        %1404 = vmatprep.subr.mxu0 %v525
        %1405 = vmatpush1.msra.mxu0 %v524
        %1406 = vmatprep.subr.mxu0 %v529
        %1407 = vmatpush1.msra.mxu0 %v528
        %1408 = vmatprep.subr.mxu0 %v533
        %1409 = vmatpush1.msra.mxu0 %v532
        %1410 = vmatprep.subr.mxu0 %v537
        %1411 = vmatpush1.msra.mxu0 %v536
        %1412 = vmatprep.subr.mxu0 %v541
        %1413 = vmatpush1.msra.mxu0 %v540
        %1414 = vmatprep.subr.mxu0 %v545
        %1415 = vmatpush1.msra.mxu0 %v544
        %1416 = vmatprep.subr.mxu0 %v549
        %1417 = vmatpush1.msra.mxu0 %v548
        %1418 = vmatprep.subr.mxu0 %v553
        %1419 = vmatpush1.msra.mxu0 %v552
        %1420 = vmatprep.subr.mxu0 %v557
        %1421 = vmatpush1.msra.mxu0 %v556
        %1422 = vmatprep.subr.mxu0 %v561
        %1423 = vmatpush1.msra.mxu0 %v560
        %1424 = vmatprep.subr.mxu0 %v565
        %1425 = vmatpush1.msra.mxu0 %v564
        %1426 = vmatprep.subr.mxu0 %v569
        %1427 = vmatpush1.msra.mxu0 %v568
        %1428 = vmatprep.subr.mxu0 %v573
        %1429 = vmatpush1.msra.mxu0 %v572
        %1430 = vmatprep.subr.mxu0 %v577
        %1431 = vmatpush1.msra.mxu0 %v576
        %1432 = vmatprep.subr.mxu0 %v581
        %1433 = vmatpush1.msra.mxu0 %v580
        %1434 = vmatprep.subr.mxu0 %v585
        %1435 = vmatpush1.msra.mxu0 %v584
        %1436 = vmatprep.subr.mxu0 %v589
        %1437 = vmatpush1.msra.mxu0 %v588
        %1438 = vmatprep.subr.mxu0 %v593
        %1439 = vmatpush1.msra.mxu0 %v592
        %1440 = vmatprep.subr.mxu0 %v597
        %1441 = vmatpush1.msra.mxu0 %v596
        %1442 = vmatprep.subr.mxu0 %v601
        %1443 = vmatpush1.msra.mxu0 %v600
        %1444 = vmatprep.subr.mxu0 %v605
        %1445 = vmatpush1.msra.mxu0 %v604
        %1446 = vmatprep.subr.mxu0 %v609
        %1447 = vmatpush1.msra.mxu0 %v608
        %1448 = vmatprep.subr.mxu0 %v613
        %1449 = vmatpush1.msra.mxu0 %v612
        %1450 = vmatprep.subr.mxu0 %v617
        %1451 = vmatpush1.msra.mxu0 %v616
        %1452 = vmatprep.mubr.f32.mxu0 %v1194
        %1453 = vmatmul.mubr.f32.gmra.mrb[0].mxu0 %v1186
        %v1454 = vpop.f32.mrb[0].mxu0
        %v1455 = vadd.f32 %v1384, %v1454
        %v1456 = vpop.f32.mrb[0].mxu0
        %v1457 = vadd.f32 %v1386, %v1456
        %1458 = vdwg.mxu0
        %1459 = vmatprep.subr.mxu0 %v621
        %1460 = vmatpush1.msra.mxu0 %v620
        %1461 = vmatprep.subr.mxu0 %v625
        %1462 = vmatpush1.msra.mxu0 %v624
        %1463 = vmatprep.subr.mxu0 %v629
        %1464 = vmatpush1.msra.mxu0 %v628
        %1465 = vmatprep.subr.mxu0 %v633
        %1466 = vmatpush1.msra.mxu0 %v632
        %1467 = vmatprep.subr.mxu0 %v637
        %1468 = vmatpush1.msra.mxu0 %v636
        %1469 = vmatprep.subr.mxu0 %v641
        %1470 = vmatpush1.msra.mxu0 %v640
        %1471 = vmatprep.subr.mxu0 %v645
        %1472 = vmatpush1.msra.mxu0 %v644
        %1473 = vmatprep.subr.mxu0 %v649
        %1474 = vmatpush1.msra.mxu0 %v648
        %1475 = vmatprep.subr.mxu0 %v653
        %1476 = vmatpush1.msra.mxu0 %v652
        %1477 = vmatprep.subr.mxu0 %v657
        %1478 = vmatpush1.msra.mxu0 %v656
        %1479 = vmatprep.subr.mxu0 %v661
        %1480 = vmatpush1.msra.mxu0 %v660
        %1481 = vmatprep.subr.mxu0 %v665
        %1482 = vmatpush1.msra.mxu0 %v664
        %1483 = vmatprep.subr.mxu0 %v669
        %1484 = vmatpush1.msra.mxu0 %v668
        %1485 = vmatprep.subr.mxu0 %v673
        %1486 = vmatpush1.msra.mxu0 %v672
        %1487 = vmatprep.subr.mxu0 %v677
        %1488 = vmatpush1.msra.mxu0 %v676
        %1489 = vmatprep.subr.mxu0 %v681
        %1490 = vmatpush1.msra.mxu0 %v680
        %1491 = vmatprep.subr.mxu0 %v685
        %1492 = vmatpush1.msra.mxu0 %v684
        %1493 = vmatprep.subr.mxu0 %v689
        %1494 = vmatpush1.msra.mxu0 %v688
        %1495 = vmatprep.subr.mxu0 %v693
        %1496 = vmatpush1.msra.mxu0 %v692
        %1497 = vmatprep.subr.mxu0 %v697
        %1498 = vmatpush1.msra.mxu0 %v696
        %1499 = vmatprep.subr.mxu0 %v701
        %1500 = vmatpush1.msra.mxu0 %v700
        %1501 = vmatprep.subr.mxu0 %v705
        %1502 = vmatpush1.msra.mxu0 %v704
        %1503 = vmatprep.subr.mxu0 %v709
        %1504 = vmatpush1.msra.mxu0 %v708
        %1505 = vmatprep.subr.mxu0 %v713
        %1506 = vmatpush1.msra.mxu0 %v712
        %1507 = vmatprep.subr.mxu0 %v717
        %1508 = vmatpush1.msra.mxu0 %v716
        %1509 = vmatprep.subr.mxu0 %v721
        %1510 = vmatpush1.msra.mxu0 %v720
        %1511 = vmatprep.subr.mxu0 %v725
        %1512 = vmatpush1.msra.mxu0 %v724
        %1513 = vmatprep.subr.mxu0 %v729
        %1514 = vmatpush1.msra.mxu0 %v728
        %1515 = vmatprep.subr.mxu0 %v733
        %1516 = vmatpush1.msra.mxu0 %v732
        %1517 = vmatprep.subr.mxu0 %v737
        %1518 = vmatpush1.msra.mxu0 %v736
        %1519 = vmatprep.subr.mxu0 %v741
        %1520 = vmatpush1.msra.mxu0 %v740
        %1521 = vmatprep.subr.mxu0 %v745
        %1522 = vmatpush1.msra.mxu0 %v744
        %1523 = vmatprep.mubr.f32.mxu0 %v1195
        %1524 = vmatmul.mubr.f32.gmra.mrb[0].mxu0 %v1193
        %v1525 = vpop.f32.mrb[0].mxu0
        %v1526 = vadd.f32 %v1455, %v1525
        %v1527 = vpop.f32.mrb[0].mxu0
        %v1528 = vadd.f32 %v1457, %v1527
        %1529 = vdwg.mxu0
        %1530 = vmatprep.subr.mxu0 %v749
        %1531 = vmatpush1.msra.mxu0 %v748
        %1532 = vmatprep.subr.mxu0 %v753
        %1533 = vmatpush1.msra.mxu0 %v752
        %1534 = vmatprep.subr.mxu0 %v757
        %1535 = vmatpush1.msra.mxu0 %v756
        %1536 = vmatprep.subr.mxu0 %v761
        %1537 = vmatpush1.msra.mxu0 %v760
        %1538 = vmatprep.subr.mxu0 %v765
        %1539 = vmatpush1.msra.mxu0 %v764
        %1540 = vmatprep.subr.mxu0 %v769
        %1541 = vmatpush1.msra.mxu0 %v768
        %1542 = vmatprep.subr.mxu0 %v773
        %1543 = vmatpush1.msra.mxu0 %v772
        %1544 = vmatprep.subr.mxu0 %v777
        %1545 = vmatpush1.msra.mxu0 %v776
        %1546 = vmatprep.subr.mxu0 %v781
        %1547 = vmatpush1.msra.mxu0 %v780
        %1548 = vmatprep.subr.mxu0 %v785
        %1549 = vmatpush1.msra.mxu0 %v784
        %1550 = vmatprep.subr.mxu0 %v789
        %1551 = vmatpush1.msra.mxu0 %v788
        %1552 = vmatprep.subr.mxu0 %v793
        %1553 = vmatpush1.msra.mxu0 %v792
        %1554 = vmatprep.subr.mxu0 %v797
        %1555 = vmatpush1.msra.mxu0 %v796
        %1556 = vmatprep.subr.mxu0 %v801
        %1557 = vmatpush1.msra.mxu0 %v800
        %1558 = vmatprep.subr.mxu0 %v805
        %1559 = vmatpush1.msra.mxu0 %v804
        %1560 = vmatprep.subr.mxu0 %v809
        %1561 = vmatpush1.msra.mxu0 %v808
        %1562 = vmatprep.subr.mxu0 %v813
        %1563 = vmatpush1.msra.mxu0 %v812
        %1564 = vmatprep.subr.mxu0 %v817
        %1565 = vmatpush1.msra.mxu0 %v816
        %1566 = vmatprep.subr.mxu0 %v821
        %1567 = vmatpush1.msra.mxu0 %v820
        %1568 = vmatprep.subr.mxu0 %v825
        %1569 = vmatpush1.msra.mxu0 %v824
        %1570 = vmatprep.subr.mxu0 %v829
        %1571 = vmatpush1.msra.mxu0 %v828
        %1572 = vmatprep.subr.mxu0 %v833
        %1573 = vmatpush1.msra.mxu0 %v832
        %1574 = vmatprep.subr.mxu0 %v837
        %1575 = vmatpush1.msra.mxu0 %v836
        %1576 = vmatprep.subr.mxu0 %v841
        %1577 = vmatpush1.msra.mxu0 %v840
        %1578 = vmatprep.subr.mxu0 %v845
        %1579 = vmatpush1.msra.mxu0 %v844
        %1580 = vmatprep.subr.mxu0 %v849
        %1581 = vmatpush1.msra.mxu0 %v848
        %1582 = vmatprep.subr.mxu0 %v853
        %1583 = vmatpush1.msra.mxu0 %v852
        %1584 = vmatprep.subr.mxu0 %v857
        %1585 = vmatpush1.msra.mxu0 %v856
        %1586 = vmatprep.subr.mxu0 %v861
        %1587 = vmatpush1.msra.mxu0 %v860
        %1588 = vmatprep.subr.mxu0 %v865
        %1589 = vmatpush1.msra.mxu0 %v864
        %1590 = vmatprep.subr.mxu0 %v869
        %1591 = vmatpush1.msra.mxu0 %v868
        %1592 = vmatprep.subr.mxu0 %v873
        %1593 = vmatpush1.msra.mxu0 %v872
        %1594 = vmatprep.mubr.f32.mxu0 %v1211
        %1595 = vmatmul.mubr.f32.gmra.mrb[0].mxu0 %v1203
        %v1596 = vpop.f32.mrb[0].mxu0
        %v1597 = vadd.f32 %v1526, %v1596
        %v1598 = vpop.f32.mrb[0].mxu0
        %v1599 = vadd.f32 %v1528, %v1598
        %1600 = vdwg.mxu0
        %1601 = vmatprep.subr.mxu0 %v877
        %1602 = vmatpush1.msra.mxu0 %v876
        %1603 = vmatprep.subr.mxu0 %v881
        %1604 = vmatpush1.msra.mxu0 %v880
        %1605 = vmatprep.subr.mxu0 %v885
        %1606 = vmatpush1.msra.mxu0 %v884
        %1607 = vmatprep.subr.mxu0 %v889
        %1608 = vmatpush1.msra.mxu0 %v888
        %1609 = vmatprep.subr.mxu0 %v893
        %1610 = vmatpush1.msra.mxu0 %v892
        %1611 = vmatprep.subr.mxu0 %v897
        %1612 = vmatpush1.msra.mxu0 %v896
        %1613 = vmatprep.subr.mxu0 %v901
        %1614 = vmatpush1.msra.mxu0 %v900
        %1615 = vmatprep.subr.mxu0 %v905
        %1616 = vmatpush1.msra.mxu0 %v904
        %1617 = vmatprep.subr.mxu0 %v909
        %1618 = vmatpush1.msra.mxu0 %v908
        %1619 = vmatprep.subr.mxu0 %v913
        %1620 = vmatpush1.msra.mxu0 %v912
        %1621 = vmatprep.subr.mxu0 %v917
        %1622 = vmatpush1.msra.mxu0 %v916
        %1623 = vmatprep.subr.mxu0 %v921
        %1624 = vmatpush1.msra.mxu0 %v920
        %1625 = vmatprep.subr.mxu0 %v925
        %1626 = vmatpush1.msra.mxu0 %v924
        %1627 = vmatprep.subr.mxu0 %v929
        %1628 = vmatpush1.msra.mxu0 %v928
        %1629 = vmatprep.subr.mxu0 %v933
        %1630 = vmatpush1.msra.mxu0 %v932
        %1631 = vmatprep.subr.mxu0 %v937
        %1632 = vmatpush1.msra.mxu0 %v936
        %1633 = vmatprep.subr.mxu0 %v941
        %1634 = vmatpush1.msra.mxu0 %v940
        %1635 = vmatprep.subr.mxu0 %v945
        %1636 = vmatpush1.msra.mxu0 %v944
        %1637 = vmatprep.subr.mxu0 %v949
        %1638 = vmatpush1.msra.mxu0 %v948
        %1639 = vmatprep.subr.mxu0 %v953
        %1640 = vmatpush1.msra.mxu0 %v952
        %1641 = vmatprep.subr.mxu0 %v957
        %1642 = vmatpush1.msra.mxu0 %v956
        %1643 = vmatprep.subr.mxu0 %v961
        %1644 = vmatpush1.msra.mxu0 %v960
        %1645 = vmatprep.subr.mxu0 %v965
        %1646 = vmatpush1.msra.mxu0 %v964
        %1647 = vmatprep.subr.mxu0 %v969
        %1648 = vmatpush1.msra.mxu0 %v968
        %1649 = vmatprep.subr.mxu0 %v973
        %1650 = vmatpush1.msra.mxu0 %v972
        %1651 = vmatprep.subr.mxu0 %v977
        %1652 = vmatpush1.msra.mxu0 %v976
        %1653 = vmatprep.subr.mxu0 %v981
        %1654 = vmatpush1.msra.mxu0 %v980
        %1655 = vmatprep.subr.mxu0 %v985
        %1656 = vmatpush1.msra.mxu0 %v984
        %1657 = vmatprep.subr.mxu0 %v989
        %1658 = vmatpush1.msra.mxu0 %v988
        %1659 = vmatprep.subr.mxu0 %v993
        %1660 = vmatpush1.msra.mxu0 %v992
        %1661 = vmatprep.subr.mxu0 %v997
        %1662 = vmatpush1.msra.mxu0 %v996
        %1663 = vmatprep.subr.mxu0 %v1001
        %1664 = vmatpush1.msra.mxu0 %v1000
        %1665 = vmatprep.mubr.f32.mxu0 %v1212
        %1666 = vmatmul.mubr.f32.gmra.mrb[0].mxu0 %v1210
        %v1667 = vpop.f32.mrb[0].mxu0
        %v1668 = vadd.f32 %v1597, %v1667
        %v1669 = vpop.f32.mrb[0].mxu0
        %v1670 = vadd.f32 %v1599, %v1669
        %1671 = vdwg.mxu0
        %1672 = vmatprep.subr.mxu0 %v1005
        %1673 = vmatpush1.msra.mxu0 %v1004
        %1674 = vmatprep.subr.mxu0 %v1009
        %1675 = vmatpush1.msra.mxu0 %v1008
        %1676 = vmatprep.subr.mxu0 %v1013
        %1677 = vmatpush1.msra.mxu0 %v1012
        %1678 = vmatprep.subr.mxu0 %v1017
        %1679 = vmatpush1.msra.mxu0 %v1016
        %1680 = vmatprep.subr.mxu0 %v1021
        %1681 = vmatpush1.msra.mxu0 %v1020
        %1682 = vmatprep.subr.mxu0 %v1025
        %1683 = vmatpush1.msra.mxu0 %v1024
        %1684 = vmatprep.subr.mxu0 %v1029
        %1685 = vmatpush1.msra.mxu0 %v1028
        %1686 = vmatprep.subr.mxu0 %v1033
        %1687 = vmatpush1.msra.mxu0 %v1032
        %1688 = vmatprep.subr.mxu0 %v1037
        %1689 = vmatpush1.msra.mxu0 %v1036
        %1690 = vmatprep.subr.mxu0 %v1041
        %1691 = vmatpush1.msra.mxu0 %v1040
        %1692 = vmatprep.subr.mxu0 %v1045
        %1693 = vmatpush1.msra.mxu0 %v1044
        %1694 = vmatprep.subr.mxu0 %v1049
        %1695 = vmatpush1.msra.mxu0 %v1048
        %1696 = vmatprep.subr.mxu0 %v1053
        %1697 = vmatpush1.msra.mxu0 %v1052
        %1698 = vmatprep.subr.mxu0 %v1057
        %1699 = vmatpush1.msra.mxu0 %v1056
        %1700 = vmatprep.subr.mxu0 %v1061
        %1701 = vmatpush1.msra.mxu0 %v1060
        %1702 = vmatprep.subr.mxu0 %v1065
        %1703 = vmatpush1.msra.mxu0 %v1064
        %1704 = vmatprep.subr.mxu0 %v1069
        %1705 = vmatpush1.msra.mxu0 %v1068
        %1706 = vmatprep.subr.mxu0 %v1073
        %1707 = vmatpush1.msra.mxu0 %v1072
        %1708 = vmatprep.subr.mxu0 %v1077
        %1709 = vmatpush1.msra.mxu0 %v1076
        %1710 = vmatprep.subr.mxu0 %v1081
        %1711 = vmatpush1.msra.mxu0 %v1080
        %1712 = vmatprep.subr.mxu0 %v1085
        %1713 = vmatpush1.msra.mxu0 %v1084
        %1714 = vmatprep.subr.mxu0 %v1089
        %1715 = vmatpush1.msra.mxu0 %v1088
        %1716 = vmatprep.subr.mxu0 %v1093
        %1717 = vmatpush1.msra.mxu0 %v1092
        %1718 = vmatprep.subr.mxu0 %v1097
        %1719 = vmatpush1.msra.mxu0 %v1096
        %1720 = vmatprep.subr.mxu0 %v1101
        %1721 = vmatpush1.msra.mxu0 %v1100
        %1722 = vmatprep.subr.mxu0 %v1105
        %1723 = vmatpush1.msra.mxu0 %v1104
        %1724 = vmatprep.subr.mxu0 %v1109
        %1725 = vmatpush1.msra.mxu0 %v1108
        %1726 = vmatprep.subr.mxu0 %v1113
        %1727 = vmatpush1.msra.mxu0 %v1112
        %1728 = vmatprep.subr.mxu0 %v1117
        %1729 = vmatpush1.msra.mxu0 %v1116
        %1730 = vmatprep.subr.mxu0 %v1121
        %1731 = vmatpush1.msra.mxu0 %v1120
        %1732 = vmatprep.subr.mxu0 %v1125
        %1733 = vmatpush1.msra.mxu0 %v1124
        %1734 = vmatprep.subr.mxu0 %v1129
        %1735 = vmatpush1.msra.mxu0 %v1128
        %1736 = vmatprep.mubr.f32.mxu0 %v1228
        %1737 = vmatmul.mubr.f32.gmra.mrb[0].mxu0 %v1220
        %v1738 = vpop.f32.mrb[0].mxu0
        %v1739 = vadd.f32 %v1668, %v1738
        %v1740 = vpop.f32.mrb[0].mxu0
        %v1741 = vadd.f32 %v1670, %v1740
        %1742 = vdwg.mxu0
        %1743 = vmatprep.subr.mxu0 %v1133
        %1744 = vmatpush1.msra.mxu0 %v1132
        %1745 = vmatprep.subr.mxu0 0.0
        %1746 = vmatpush1.msra.mxu0 0.0
        %1747 = vmatprep.subr.mxu0 0.0
        %1748 = vmatpush1.msra.mxu0 0.0
        %1749 = vmatprep.subr.mxu0 0.0
        %1750 = vmatpush1.msra.mxu0 0.0
        %1751 = vmatprep.subr.mxu0 0.0
        %1752 = vmatpush1.msra.mxu0 0.0
        %1753 = vmatprep.subr.mxu0 0.0
        %1754 = vmatpush1.msra.mxu0 0.0
        %1755 = vmatprep.subr.mxu0 0.0
        %1756 = vmatpush1.msra.mxu0 0.0
        %1757 = vmatprep.subr.mxu0 0.0
        %1758 = vmatpush1.msra.mxu0 0.0
        %1759 = vmatprep.subr.mxu0 0.0
        %1760 = vmatpush1.msra.mxu0 0.0
        %1761 = vmatprep.subr.mxu0 0.0
        %1762 = vmatpush1.msra.mxu0 0.0
        %1763 = vmatprep.subr.mxu0 0.0
        %1764 = vmatpush1.msra.mxu0 0.0
        %1765 = vmatprep.subr.mxu0 0.0
        %1766 = vmatpush1.msra.mxu0 0.0
        %1767 = vmatprep.subr.mxu0 0.0
        %1768 = vmatpush1.msra.mxu0 0.0
        %1769 = vmatprep.subr.mxu0 0.0
        %1770 = vmatpush1.msra.mxu0 0.0
        %1771 = vmatprep.subr.mxu0 0.0
        %1772 = vmatpush1.msra.mxu0 0.0
        %1773 = vmatprep.subr.mxu0 0.0
        %1774 = vmatpush1.msra.mxu0 0.0
        %1775 = vmatprep.subr.mxu0 0.0
        %1776 = vmatpush1.msra.mxu0 0.0
        %1777 = vmatprep.subr.mxu0 0.0
        %1778 = vmatpush1.msra.mxu0 0.0
        %1779 = vmatprep.subr.mxu0 0.0
        %1780 = vmatpush1.msra.mxu0 0.0
        %1781 = vmatprep.subr.mxu0 0.0
        %1782 = vmatpush1.msra.mxu0 0.0
        %1783 = vmatprep.subr.mxu0 0.0
        %1784 = vmatpush1.msra.mxu0 0.0
        %1785 = vmatprep.subr.mxu0 0.0
        %1786 = vmatpush1.msra.mxu0 0.0
        %1787 = vmatprep.subr.mxu0 0.0
        %1788 = vmatpush1.msra.mxu0 0.0
        %1789 = vmatprep.subr.mxu0 0.0
        %1790 = vmatpush1.msra.mxu0 0.0
        %1791 = vmatprep.subr.mxu0 0.0
        %1792 = vmatpush1.msra.mxu0 0.0
        %1793 = vmatprep.subr.mxu0 0.0
        %1794 = vmatpush1.msra.mxu0 0.0
        %1795 = vmatprep.subr.mxu0 0.0
        %1796 = vmatpush1.msra.mxu0 0.0
        %1797 = vmatprep.subr.mxu0 0.0
        %1798 = vmatpush1.msra.mxu0 0.0
        %1799 = vmatprep.subr.mxu0 0.0
        %1800 = vmatpush1.msra.mxu0 0.0
        %1801 = vmatprep.subr.mxu0 0.0
        %1802 = vmatpush1.msra.mxu0 0.0
        %1803 = vmatprep.subr.mxu0 0.0
        %1804 = vmatpush1.msra.mxu0 0.0
        %1805 = vmatprep.subr.mxu0 0.0
        %1806 = vmatpush1.msra.mxu0 0.0
        %1807 = vmatprep.mubr.f32.mxu0 0.0
        %1808 = vmatmul.mubr.f32.gmra.mrb[0].mxu0 %v1244
        %v1809 = vpop.f32.mrb[0].mxu0
        %v1810 = vadd.f32 %v1739, %v1809
        %v1811 = vpop.f32.mrb[0].mxu0
        %v1812 = vadd.f32 %v1741, %v1811
        %1813 = vdwg.mxu0
        %1814 = vmatprep.subr.mxu0 %v239
        %1815 = vmatpush1.msra.mxu0 %v238
        %1816 = vmatprep.subr.mxu0 %v243
        %1817 = vmatpush1.msra.mxu0 %v242
        %1818 = vmatprep.subr.mxu0 %v247
        %1819 = vmatpush1.msra.mxu0 %v246
        %1820 = vmatprep.subr.mxu0 %v251
        %1821 = vmatpush1.msra.mxu0 %v250
        %1822 = vmatprep.subr.mxu0 %v255
        %1823 = vmatpush1.msra.mxu0 %v254
        %1824 = vmatprep.subr.mxu0 %v259
        %1825 = vmatpush1.msra.mxu0 %v258
        %1826 = vmatprep.subr.mxu0 %v263
        %1827 = vmatpush1.msra.mxu0 %v262
        %1828 = vmatprep.subr.mxu0 %v267
        %1829 = vmatpush1.msra.mxu0 %v266
        %1830 = vmatprep.subr.mxu0 %v271
        %1831 = vmatpush1.msra.mxu0 %v270
        %1832 = vmatprep.subr.mxu0 %v275
        %1833 = vmatpush1.msra.mxu0 %v274
        %1834 = vmatprep.subr.mxu0 %v279
        %1835 = vmatpush1.msra.mxu0 %v278
        %1836 = vmatprep.subr.mxu0 %v283
        %1837 = vmatpush1.msra.mxu0 %v282
        %1838 = vmatprep.subr.mxu0 %v287
        %1839 = vmatpush1.msra.mxu0 %v286
        %1840 = vmatprep.subr.mxu0 %v291
        %1841 = vmatpush1.msra.mxu0 %v290
        %1842 = vmatprep.subr.mxu0 %v295
        %1843 = vmatpush1.msra.mxu0 %v294
        %1844 = vmatprep.subr.mxu0 %v299
        %1845 = vmatpush1.msra.mxu0 %v298
        %1846 = vmatprep.subr.mxu0 %v303
        %1847 = vmatpush1.msra.mxu0 %v302
        %1848 = vmatprep.subr.mxu0 %v307
        %1849 = vmatpush1.msra.mxu0 %v306
        %1850 = vmatprep.subr.mxu0 %v311
        %1851 = vmatpush1.msra.mxu0 %v310
        %1852 = vmatprep.subr.mxu0 %v315
        %1853 = vmatpush1.msra.mxu0 %v314
        %1854 = vmatprep.subr.mxu0 %v319
        %1855 = vmatpush1.msra.mxu0 %v318
        %1856 = vmatprep.subr.mxu0 %v323
        %1857 = vmatpush1.msra.mxu0 %v322
        %1858 = vmatprep.subr.mxu0 %v327
        %1859 = vmatpush1.msra.mxu0 %v326
        %1860 = vmatprep.subr.mxu0 %v331
        %1861 = vmatpush1.msra.mxu0 %v330
        %1862 = vmatprep.subr.mxu0 %v335
        %1863 = vmatpush1.msra.mxu0 %v334
        %1864 = vmatprep.subr.mxu0 %v339
        %1865 = vmatpush1.msra.mxu0 %v338
        %1866 = vmatprep.subr.mxu0 %v343
        %1867 = vmatpush1.msra.mxu0 %v342
        %1868 = vmatprep.subr.mxu0 %v347
        %1869 = vmatpush1.msra.mxu0 %v346
        %1870 = vmatprep.subr.mxu0 %v351
        %1871 = vmatpush1.msra.mxu0 %v350
        %1872 = vmatprep.subr.mxu0 %v355
        %1873 = vmatpush1.msra.mxu0 %v354
        %1874 = vmatprep.subr.mxu0 %v359
        %1875 = vmatpush1.msra.mxu0 %v358
        %1876 = vmatprep.subr.mxu0 %v363
        %1877 = vmatpush1.msra.mxu0 %v362
        %1878 = vmatprep.mubr.f32.mxu0 %v1177
        %1879 = vmatmul.mubr.f32.gmra.mrb[0].mxu0 %v1169
        %v1880 = vpop.f32.mrb[0].mxu0
        %v1881 = vadd.f32 %v1149, %v1880
        %v1882 = vpop.f32.mrb[0].mxu0
        %v1883 = vadd.f32 %v1153, %v1882
        %1884 = vdwg.mxu0
        %1885 = vmatprep.subr.mxu0 %v367
        %1886 = vmatpush1.msra.mxu0 %v366
        %1887 = vmatprep.subr.mxu0 %v371
        %1888 = vmatpush1.msra.mxu0 %v370
        %1889 = vmatprep.subr.mxu0 %v375
        %1890 = vmatpush1.msra.mxu0 %v374
        %1891 = vmatprep.subr.mxu0 %v379
        %1892 = vmatpush1.msra.mxu0 %v378
        %1893 = vmatprep.subr.mxu0 %v383
        %1894 = vmatpush1.msra.mxu0 %v382
        %1895 = vmatprep.subr.mxu0 %v387
        %1896 = vmatpush1.msra.mxu0 %v386
        %1897 = vmatprep.subr.mxu0 %v391
        %1898 = vmatpush1.msra.mxu0 %v390
        %1899 = vmatprep.subr.mxu0 %v395
        %1900 = vmatpush1.msra.mxu0 %v394
        %1901 = vmatprep.subr.mxu0 %v399
        %1902 = vmatpush1.msra.mxu0 %v398
        %1903 = vmatprep.subr.mxu0 %v403
        %1904 = vmatpush1.msra.mxu0 %v402
        %1905 = vmatprep.subr.mxu0 %v407
        %1906 = vmatpush1.msra.mxu0 %v406
        %1907 = vmatprep.subr.mxu0 %v411
        %1908 = vmatpush1.msra.mxu0 %v410
        %1909 = vmatprep.subr.mxu0 %v415
        %1910 = vmatpush1.msra.mxu0 %v414
        %1911 = vmatprep.subr.mxu0 %v419
        %1912 = vmatpush1.msra.mxu0 %v418
        %1913 = vmatprep.subr.mxu0 %v423
        %1914 = vmatpush1.msra.mxu0 %v422
        %1915 = vmatprep.subr.mxu0 %v427
        %1916 = vmatpush1.msra.mxu0 %v426
        %1917 = vmatprep.subr.mxu0 %v431
        %1918 = vmatpush1.msra.mxu0 %v430
        %1919 = vmatprep.subr.mxu0 %v435
        %1920 = vmatpush1.msra.mxu0 %v434
        %1921 = vmatprep.subr.mxu0 %v439
        %1922 = vmatpush1.msra.mxu0 %v438
        %1923 = vmatprep.subr.mxu0 %v443
        %1924 = vmatpush1.msra.mxu0 %v442
        %1925 = vmatprep.subr.mxu0 %v447
        %1926 = vmatpush1.msra.mxu0 %v446
        %1927 = vmatprep.subr.mxu0 %v451
        %1928 = vmatpush1.msra.mxu0 %v450
        %1929 = vmatprep.subr.mxu0 %v455
        %1930 = vmatpush1.msra.mxu0 %v454
        %1931 = vmatprep.subr.mxu0 %v459
        %1932 = vmatpush1.msra.mxu0 %v458
        %1933 = vmatprep.subr.mxu0 %v463
        %1934 = vmatpush1.msra.mxu0 %v462
        %1935 = vmatprep.subr.mxu0 %v467
        %1936 = vmatpush1.msra.mxu0 %v466
        %1937 = vmatprep.subr.mxu0 %v471
        %1938 = vmatpush1.msra.mxu0 %v470
        %1939 = vmatprep.subr.mxu0 %v475
        %1940 = vmatpush1.msra.mxu0 %v474
        %1941 = vmatprep.subr.mxu0 %v479
        %1942 = vmatpush1.msra.mxu0 %v478
        %1943 = vmatprep.subr.mxu0 %v483
        %1944 = vmatpush1.msra.mxu0 %v482
        %1945 = vmatprep.subr.mxu0 %v487
        %1946 = vmatpush1.msra.mxu0 %v486
        %1947 = vmatprep.subr.mxu0 %v491
        %1948 = vmatpush1.msra.mxu0 %v490
        %1949 = vmatprep.mubr.f32.mxu0 %v1178
        %1950 = vmatmul.mubr.f32.gmra.mrb[0].mxu0 %v1176
        %v1951 = vpop.f32.mrb[0].mxu0
        %v1952 = vadd.f32 %v1881, %v1951
        %v1953 = vpop.f32.mrb[0].mxu0
        %v1954 = vadd.f32 %v1883, %v1953
        %1955 = vdwg.mxu0
        %1956 = vmatprep.subr.mxu0 %v495
        %1957 = vmatpush1.msra.mxu0 %v494
        %1958 = vmatprep.subr.mxu0 %v499
        %1959 = vmatpush1.msra.mxu0 %v498
        %1960 = vmatprep.subr.mxu0 %v503
        %1961 = vmatpush1.msra.mxu0 %v502
        %1962 = vmatprep.subr.mxu0 %v507
        %1963 = vmatpush1.msra.mxu0 %v506
        %1964 = vmatprep.subr.mxu0 %v511
        %1965 = vmatpush1.msra.mxu0 %v510
        %1966 = vmatprep.subr.mxu0 %v515
        %1967 = vmatpush1.msra.mxu0 %v514
        %1968 = vmatprep.subr.mxu0 %v519
        %1969 = vmatpush1.msra.mxu0 %v518
        %1970 = vmatprep.subr.mxu0 %v523
        %1971 = vmatpush1.msra.mxu0 %v522
        %1972 = vmatprep.subr.mxu0 %v527
        %1973 = vmatpush1.msra.mxu0 %v526
        %1974 = vmatprep.subr.mxu0 %v531
        %1975 = vmatpush1.msra.mxu0 %v530
        %1976 = vmatprep.subr.mxu0 %v535
        %1977 = vmatpush1.msra.mxu0 %v534
        %1978 = vmatprep.subr.mxu0 %v539
        %1979 = vmatpush1.msra.mxu0 %v538
        %1980 = vmatprep.subr.mxu0 %v543
        %1981 = vmatpush1.msra.mxu0 %v542
        %1982 = vmatprep.subr.mxu0 %v547
        %1983 = vmatpush1.msra.mxu0 %v546
        %1984 = vmatprep.subr.mxu0 %v551
        %1985 = vmatpush1.msra.mxu0 %v550
        %1986 = vmatprep.subr.mxu0 %v555
        %1987 = vmatpush1.msra.mxu0 %v554
        %1988 = vmatprep.subr.mxu0 %v559
        %1989 = vmatpush1.msra.mxu0 %v558
        %1990 = vmatprep.subr.mxu0 %v563
        %1991 = vmatpush1.msra.mxu0 %v562
        %1992 = vmatprep.subr.mxu0 %v567
        %1993 = vmatpush1.msra.mxu0 %v566
        %1994 = vmatprep.subr.mxu0 %v571
        %1995 = vmatpush1.msra.mxu0 %v570
        %1996 = vmatprep.subr.mxu0 %v575
        %1997 = vmatpush1.msra.mxu0 %v574
        %1998 = vmatprep.subr.mxu0 %v579
        %1999 = vmatpush1.msra.mxu0 %v578
        %2000 = vmatprep.subr.mxu0 %v583
        %2001 = vmatpush1.msra.mxu0 %v582
        %2002 = vmatprep.subr.mxu0 %v587
        %2003 = vmatpush1.msra.mxu0 %v586
        %2004 = vmatprep.subr.mxu0 %v591
        %2005 = vmatpush1.msra.mxu0 %v590
        %2006 = vmatprep.subr.mxu0 %v595
        %2007 = vmatpush1.msra.mxu0 %v594
        %2008 = vmatprep.subr.mxu0 %v599
        %2009 = vmatpush1.msra.mxu0 %v598
        %2010 = vmatprep.subr.mxu0 %v603
        %2011 = vmatpush1.msra.mxu0 %v602
        %2012 = vmatprep.subr.mxu0 %v607
        %2013 = vmatpush1.msra.mxu0 %v606
        %2014 = vmatprep.subr.mxu0 %v611
        %2015 = vmatpush1.msra.mxu0 %v610
        %2016 = vmatprep.subr.mxu0 %v615
        %2017 = vmatpush1.msra.mxu0 %v614
        %2018 = vmatprep.subr.mxu0 %v619
        %2019 = vmatpush1.msra.mxu0 %v618
        %2020 = vmatprep.mubr.f32.mxu0 %v1194
        %2021 = vmatmul.mubr.f32.gmra.mrb[0].mxu0 %v1186
        %v2022 = vpop.f32.mrb[0].mxu0
        %v2023 = vadd.f32 %v1952, %v2022
        %v2024 = vpop.f32.mrb[0].mxu0
        %v2025 = vadd.f32 %v1954, %v2024
        %2026 = vdwg.mxu0
        %2027 = vmatprep.subr.mxu0 %v623
        %2028 = vmatpush1.msra.mxu0 %v622
        %2029 = vmatprep.subr.mxu0 %v627
        %2030 = vmatpush1.msra.mxu0 %v626
        %2031 = vmatprep.subr.mxu0 %v631
        %2032 = vmatpush1.msra.mxu0 %v630
        %2033 = vmatprep.subr.mxu0 %v635
        %2034 = vmatpush1.msra.mxu0 %v634
        %2035 = vmatprep.subr.mxu0 %v639
        %2036 = vmatpush1.msra.mxu0 %v638
        %2037 = vmatprep.subr.mxu0 %v643
        %2038 = vmatpush1.msra.mxu0 %v642
        %2039 = vmatprep.subr.mxu0 %v647
        %2040 = vmatpush1.msra.mxu0 %v646
        %2041 = vmatprep.subr.mxu0 %v651
        %2042 = vmatpush1.msra.mxu0 %v650
        %2043 = vmatprep.subr.mxu0 %v655
        %2044 = vmatpush1.msra.mxu0 %v654
        %2045 = vmatprep.subr.mxu0 %v659
        %2046 = vmatpush1.msra.mxu0 %v658
        %2047 = vmatprep.subr.mxu0 %v663
        %2048 = vmatpush1.msra.mxu0 %v662
        %2049 = vmatprep.subr.mxu0 %v667
        %2050 = vmatpush1.msra.mxu0 %v666
        %2051 = vmatprep.subr.mxu0 %v671
        %2052 = vmatpush1.msra.mxu0 %v670
        %2053 = vmatprep.subr.mxu0 %v675
        %2054 = vmatpush1.msra.mxu0 %v674
        %2055 = vmatprep.subr.mxu0 %v679
        %2056 = vmatpush1.msra.mxu0 %v678
        %2057 = vmatprep.subr.mxu0 %v683
        %2058 = vmatpush1.msra.mxu0 %v682
        %2059 = vmatprep.subr.mxu0 %v687
        %2060 = vmatpush1.msra.mxu0 %v686
        %2061 = vmatprep.subr.mxu0 %v691
        %2062 = vmatpush1.msra.mxu0 %v690
        %2063 = vmatprep.subr.mxu0 %v695
        %2064 = vmatpush1.msra.mxu0 %v694
        %2065 = vmatprep.subr.mxu0 %v699
        %2066 = vmatpush1.msra.mxu0 %v698
        %2067 = vmatprep.subr.mxu0 %v703
        %2068 = vmatpush1.msra.mxu0 %v702
        %2069 = vmatprep.subr.mxu0 %v707
        %2070 = vmatpush1.msra.mxu0 %v706
        %2071 = vmatprep.subr.mxu0 %v711
        %2072 = vmatpush1.msra.mxu0 %v710
        %2073 = vmatprep.subr.mxu0 %v715
        %2074 = vmatpush1.msra.mxu0 %v714
        %2075 = vmatprep.subr.mxu0 %v719
        %2076 = vmatpush1.msra.mxu0 %v718
        %2077 = vmatprep.subr.mxu0 %v723
        %2078 = vmatpush1.msra.mxu0 %v722
        %2079 = vmatprep.subr.mxu0 %v727
        %2080 = vmatpush1.msra.mxu0 %v726
        %2081 = vmatprep.subr.mxu0 %v731
        %2082 = vmatpush1.msra.mxu0 %v730
        %2083 = vmatprep.subr.mxu0 %v735
        %2084 = vmatpush1.msra.mxu0 %v734
        %2085 = vmatprep.subr.mxu0 %v739
        %2086 = vmatpush1.msra.mxu0 %v738
        %2087 = vmatprep.subr.mxu0 %v743
        %2088 = vmatpush1.msra.mxu0 %v742
        %2089 = vmatprep.subr.mxu0 %v747
        %2090 = vmatpush1.msra.mxu0 %v746
        %2091 = vmatprep.mubr.f32.mxu0 %v1195
        %2092 = vmatmul.mubr.f32.gmra.mrb[0].mxu0 %v1193
        %v2093 = vpop.f32.mrb[0].mxu0
        %v2094 = vadd.f32 %v2023, %v2093
        %v2095 = vpop.f32.mrb[0].mxu0
        %v2096 = vadd.f32 %v2025, %v2095
        %2097 = vdwg.mxu0
        %2098 = vmatprep.subr.mxu0 %v751
        %2099 = vmatpush1.msra.mxu0 %v750
        %2100 = vmatprep.subr.mxu0 %v755
        %2101 = vmatpush1.msra.mxu0 %v754
        %2102 = vmatprep.subr.mxu0 %v759
        %2103 = vmatpush1.msra.mxu0 %v758
        %2104 = vmatprep.subr.mxu0 %v763
        %2105 = vmatpush1.msra.mxu0 %v762
        %2106 = vmatprep.subr.mxu0 %v767
        %2107 = vmatpush1.msra.mxu0 %v766
        %2108 = vmatprep.subr.mxu0 %v771
        %2109 = vmatpush1.msra.mxu0 %v770
        %2110 = vmatprep.subr.mxu0 %v775
        %2111 = vmatpush1.msra.mxu0 %v774
        %2112 = vmatprep.subr.mxu0 %v779
        %2113 = vmatpush1.msra.mxu0 %v778
        %2114 = vmatprep.subr.mxu0 %v783
        %2115 = vmatpush1.msra.mxu0 %v782
        %2116 = vmatprep.subr.mxu0 %v787
        %2117 = vmatpush1.msra.mxu0 %v786
        %2118 = vmatprep.subr.mxu0 %v791
        %2119 = vmatpush1.msra.mxu0 %v790
        %2120 = vmatprep.subr.mxu0 %v795
        %2121 = vmatpush1.msra.mxu0 %v794
        %2122 = vmatprep.subr.mxu0 %v799
        %2123 = vmatpush1.msra.mxu0 %v798
        %2124 = vmatprep.subr.mxu0 %v803
        %2125 = vmatpush1.msra.mxu0 %v802
        %2126 = vmatprep.subr.mxu0 %v807
        %2127 = vmatpush1.msra.mxu0 %v806
        %2128 = vmatprep.subr.mxu0 %v811
        %2129 = vmatpush1.msra.mxu0 %v810
        %2130 = vmatprep.subr.mxu0 %v815
        %2131 = vmatpush1.msra.mxu0 %v814
        %2132 = vmatprep.subr.mxu0 %v819
        %2133 = vmatpush1.msra.mxu0 %v818
        %2134 = vmatprep.subr.mxu0 %v823
        %2135 = vmatpush1.msra.mxu0 %v822
        %2136 = vmatprep.subr.mxu0 %v827
        %2137 = vmatpush1.msra.mxu0 %v826
        %2138 = vmatprep.subr.mxu0 %v831
        %2139 = vmatpush1.msra.mxu0 %v830
        %2140 = vmatprep.subr.mxu0 %v835
        %2141 = vmatpush1.msra.mxu0 %v834
        %2142 = vmatprep.subr.mxu0 %v839
        %2143 = vmatpush1.msra.mxu0 %v838
        %2144 = vmatprep.subr.mxu0 %v843
        %2145 = vmatpush1.msra.mxu0 %v842
        %2146 = vmatprep.subr.mxu0 %v847
        %2147 = vmatpush1.msra.mxu0 %v846
        %2148 = vmatprep.subr.mxu0 %v851
        %2149 = vmatpush1.msra.mxu0 %v850
        %2150 = vmatprep.subr.mxu0 %v855
        %2151 = vmatpush1.msra.mxu0 %v854
        %2152 = vmatprep.subr.mxu0 %v859
        %2153 = vmatpush1.msra.mxu0 %v858
        %2154 = vmatprep.subr.mxu0 %v863
        %2155 = vmatpush1.msra.mxu0 %v862
        %2156 = vmatprep.subr.mxu0 %v867
        %2157 = vmatpush1.msra.mxu0 %v866
        %2158 = vmatprep.subr.mxu0 %v871
        %2159 = vmatpush1.msra.mxu0 %v870
        %2160 = vmatprep.subr.mxu0 %v875
        %2161 = vmatpush1.msra.mxu0 %v874
        %2162 = vmatprep.mubr.f32.mxu0 %v1211
        %2163 = vmatmul.mubr.f32.gmra.mrb[0].mxu0 %v1203
        %v2164 = vpop.f32.mrb[0].mxu0
        %v2165 = vadd.f32 %v2094, %v2164
        %v2166 = vpop.f32.mrb[0].mxu0
        %v2167 = vadd.f32 %v2096, %v2166
        %2168 = vdwg.mxu0
        %2169 = vmatprep.subr.mxu0 %v879
        %2170 = vmatpush1.msra.mxu0 %v878
        %2171 = vmatprep.subr.mxu0 %v883
        %2172 = vmatpush1.msra.mxu0 %v882
        %2173 = vmatprep.subr.mxu0 %v887
        %2174 = vmatpush1.msra.mxu0 %v886
        %2175 = vmatprep.subr.mxu0 %v891
        %2176 = vmatpush1.msra.mxu0 %v890
        %2177 = vmatprep.subr.mxu0 %v895
        %2178 = vmatpush1.msra.mxu0 %v894
        %2179 = vmatprep.subr.mxu0 %v899
        %2180 = vmatpush1.msra.mxu0 %v898
        %2181 = vmatprep.subr.mxu0 %v903
        %2182 = vmatpush1.msra.mxu0 %v902
        %2183 = vmatprep.subr.mxu0 %v907
        %2184 = vmatpush1.msra.mxu0 %v906
        %2185 = vmatprep.subr.mxu0 %v911
        %2186 = vmatpush1.msra.mxu0 %v910
        %2187 = vmatprep.subr.mxu0 %v915
        %2188 = vmatpush1.msra.mxu0 %v914
        %2189 = vmatprep.subr.mxu0 %v919
        %2190 = vmatpush1.msra.mxu0 %v918
        %2191 = vmatprep.subr.mxu0 %v923
        %2192 = vmatpush1.msra.mxu0 %v922
        %2193 = vmatprep.subr.mxu0 %v927
        %2194 = vmatpush1.msra.mxu0 %v926
        %2195 = vmatprep.subr.mxu0 %v931
        %2196 = vmatpush1.msra.mxu0 %v930
        %2197 = vmatprep.subr.mxu0 %v935
        %2198 = vmatpush1.msra.mxu0 %v934
        %2199 = vmatprep.subr.mxu0 %v939
        %2200 = vmatpush1.msra.mxu0 %v938
        %2201 = vmatprep.subr.mxu0 %v943
        %2202 = vmatpush1.msra.mxu0 %v942
        %2203 = vmatprep.subr.mxu0 %v947
        %2204 = vmatpush1.msra.mxu0 %v946
        %2205 = vmatprep.subr.mxu0 %v951
        %2206 = vmatpush1.msra.mxu0 %v950
        %2207 = vmatprep.subr.mxu0 %v955
        %2208 = vmatpush1.msra.mxu0 %v954
        %2209 = vmatprep.subr.mxu0 %v959
        %2210 = vmatpush1.msra.mxu0 %v958
        %2211 = vmatprep.subr.mxu0 %v963
        %2212 = vmatpush1.msra.mxu0 %v962
        %2213 = vmatprep.subr.mxu0 %v967
        %2214 = vmatpush1.msra.mxu0 %v966
        %2215 = vmatprep.subr.mxu0 %v971
        %2216 = vmatpush1.msra.mxu0 %v970
        %2217 = vmatprep.subr.mxu0 %v975
        %2218 = vmatpush1.msra.mxu0 %v974
        %2219 = vmatprep.subr.mxu0 %v979
        %2220 = vmatpush1.msra.mxu0 %v978
        %2221 = vmatprep.subr.mxu0 %v983
        %2222 = vmatpush1.msra.mxu0 %v982
        %2223 = vmatprep.subr.mxu0 %v987
        %2224 = vmatpush1.msra.mxu0 %v986
        %2225 = vmatprep.subr.mxu0 %v991
        %2226 = vmatpush1.msra.mxu0 %v990
        %2227 = vmatprep.subr.mxu0 %v995
        %2228 = vmatpush1.msra.mxu0 %v994
        %2229 = vmatprep.subr.mxu0 %v999
        %2230 = vmatpush1.msra.mxu0 %v998
        %2231 = vmatprep.subr.mxu0 %v1003
        %2232 = vmatpush1.msra.mxu0 %v1002
        %2233 = vmatprep.mubr.f32.mxu0 %v1212
        %2234 = vmatmul.mubr.f32.gmra.mrb[0].mxu0 %v1210
        %v2235 = vpop.f32.mrb[0].mxu0
        %v2236 = vadd.f32 %v2165, %v2235
        %v2237 = vpop.f32.mrb[0].mxu0
        %v2238 = vadd.f32 %v2167, %v2237
        %2239 = vdwg.mxu0
        %2240 = vmatprep.subr.mxu0 %v1007
        %2241 = vmatpush1.msra.mxu0 %v1006
        %2242 = vmatprep.subr.mxu0 %v1011
        %2243 = vmatpush1.msra.mxu0 %v1010
        %2244 = vmatprep.subr.mxu0 %v1015
        %2245 = vmatpush1.msra.mxu0 %v1014
        %2246 = vmatprep.subr.mxu0 %v1019
        %2247 = vmatpush1.msra.mxu0 %v1018
        %2248 = vmatprep.subr.mxu0 %v1023
        %2249 = vmatpush1.msra.mxu0 %v1022
        %2250 = vmatprep.subr.mxu0 %v1027
        %2251 = vmatpush1.msra.mxu0 %v1026
        %2252 = vmatprep.subr.mxu0 %v1031
        %2253 = vmatpush1.msra.mxu0 %v1030
        %2254 = vmatprep.subr.mxu0 %v1035
        %2255 = vmatpush1.msra.mxu0 %v1034
        %2256 = vmatprep.subr.mxu0 %v1039
        %2257 = vmatpush1.msra.mxu0 %v1038
        %2258 = vmatprep.subr.mxu0 %v1043
        %2259 = vmatpush1.msra.mxu0 %v1042
        %2260 = vmatprep.subr.mxu0 %v1047
        %2261 = vmatpush1.msra.mxu0 %v1046
        %2262 = vmatprep.subr.mxu0 %v1051
        %2263 = vmatpush1.msra.mxu0 %v1050
        %2264 = vmatprep.subr.mxu0 %v1055
        %2265 = vmatpush1.msra.mxu0 %v1054
        %2266 = vmatprep.subr.mxu0 %v1059
        %2267 = vmatpush1.msra.mxu0 %v1058
        %2268 = vmatprep.subr.mxu0 %v1063
        %2269 = vmatpush1.msra.mxu0 %v1062
        %2270 = vmatprep.subr.mxu0 %v1067
        %2271 = vmatpush1.msra.mxu0 %v1066
        %2272 = vmatprep.subr.mxu0 %v1071
        %2273 = vmatpush1.msra.mxu0 %v1070
        %2274 = vmatprep.subr.mxu0 %v1075
        %2275 = vmatpush1.msra.mxu0 %v1074
        %2276 = vmatprep.subr.mxu0 %v1079
        %2277 = vmatpush1.msra.mxu0 %v1078
        %2278 = vmatprep.subr.mxu0 %v1083
        %2279 = vmatpush1.msra.mxu0 %v1082
        %2280 = vmatprep.subr.mxu0 %v1087
        %2281 = vmatpush1.msra.mxu0 %v1086
        %2282 = vmatprep.subr.mxu0 %v1091
        %2283 = vmatpush1.msra.mxu0 %v1090
        %2284 = vmatprep.subr.mxu0 %v1095
        %2285 = vmatpush1.msra.mxu0 %v1094
        %2286 = vmatprep.subr.mxu0 %v1099
        %2287 = vmatpush1.msra.mxu0 %v1098
        %2288 = vmatprep.subr.mxu0 %v1103
        %2289 = vmatpush1.msra.mxu0 %v1102
        %2290 = vmatprep.subr.mxu0 %v1107
        %2291 = vmatpush1.msra.mxu0 %v1106
        %2292 = vmatprep.subr.mxu0 %v1111
        %2293 = vmatpush1.msra.mxu0 %v1110
        %2294 = vmatprep.subr.mxu0 %v1115
        %2295 = vmatpush1.msra.mxu0 %v1114
        %2296 = vmatprep.subr.mxu0 %v1119
        %2297 = vmatpush1.msra.mxu0 %v1118
        %2298 = vmatprep.subr.mxu0 %v1123
        %2299 = vmatpush1.msra.mxu0 %v1122
        %2300 = vmatprep.subr.mxu0 %v1127
        %2301 = vmatpush1.msra.mxu0 %v1126
        %2302 = vmatprep.subr.mxu0 %v1131
        %2303 = vmatpush1.msra.mxu0 %v1130
        %2304 = vmatprep.mubr.f32.mxu0 %v1228
        %2305 = vmatmul.mubr.f32.gmra.mrb[0].mxu0 %v1220
        %v2306 = vpop.f32.mrb[0].mxu0
        %v2307 = vadd.f32 %v2236, %v2306
        %v2308 = vpop.f32.mrb[0].mxu0
        %v2309 = vadd.f32 %v2238, %v2308
        %2310 = vdwg.mxu0
        %2311 = vmatprep.subr.mxu0 %v1135
        %2312 = vmatpush1.msra.mxu0 %v1134
        %2313 = vmatprep.subr.mxu0 0.0
        %2314 = vmatpush1.msra.mxu0 0.0
        %2315 = vmatprep.subr.mxu0 0.0
        %2316 = vmatpush1.msra.mxu0 0.0
        %2317 = vmatprep.subr.mxu0 0.0
        %2318 = vmatpush1.msra.mxu0 0.0
        %2319 = vmatprep.subr.mxu0 0.0
        %2320 = vmatpush1.msra.mxu0 0.0
        %2321 = vmatprep.subr.mxu0 0.0
        %2322 = vmatpush1.msra.mxu0 0.0
        %2323 = vmatprep.subr.mxu0 0.0
        %2324 = vmatpush1.msra.mxu0 0.0
        %2325 = vmatprep.subr.mxu0 0.0
        %2326 = vmatpush1.msra.mxu0 0.0
        %2327 = vmatprep.subr.mxu0 0.0
        %2328 = vmatpush1.msra.mxu0 0.0
        %2329 = vmatprep.subr.mxu0 0.0
        %2330 = vmatpush1.msra.mxu0 0.0
        %2331 = vmatprep.subr.mxu0 0.0
        %2332 = vmatpush1.msra.mxu0 0.0
        %2333 = vmatprep.subr.mxu0 0.0
        %2334 = vmatpush1.msra.mxu0 0.0
        %2335 = vmatprep.subr.mxu0 0.0
        %2336 = vmatpush1.msra.mxu0 0.0
        %2337 = vmatprep.subr.mxu0 0.0
        %2338 = vmatpush1.msra.mxu0 0.0
        %2339 = vmatprep.subr.mxu0 0.0
        %2340 = vmatpush1.msra.mxu0 0.0
        %2341 = vmatprep.subr.mxu0 0.0
        %2342 = vmatpush1.msra.mxu0 0.0
        %2343 = vmatprep.subr.mxu0 0.0
        %2344 = vmatpush1.msra.mxu0 0.0
        %2345 = vmatprep.subr.mxu0 0.0
        %2346 = vmatpush1.msra.mxu0 0.0
        %2347 = vmatprep.subr.mxu0 0.0
        %2348 = vmatpush1.msra.mxu0 0.0
        %2349 = vmatprep.subr.mxu0 0.0
        %2350 = vmatpush1.msra.mxu0 0.0
        %2351 = vmatprep.subr.mxu0 0.0
        %2352 = vmatpush1.msra.mxu0 0.0
        %2353 = vmatprep.subr.mxu0 0.0
        %2354 = vmatpush1.msra.mxu0 0.0
        %2355 = vmatprep.subr.mxu0 0.0
        %2356 = vmatpush1.msra.mxu0 0.0
        %2357 = vmatprep.subr.mxu0 0.0
        %2358 = vmatpush1.msra.mxu0 0.0
        %2359 = vmatprep.subr.mxu0 0.0
        %2360 = vmatpush1.msra.mxu0 0.0
        %2361 = vmatprep.subr.mxu0 0.0
        %2362 = vmatpush1.msra.mxu0 0.0
        %2363 = vmatprep.subr.mxu0 0.0
        %2364 = vmatpush1.msra.mxu0 0.0
        %2365 = vmatprep.subr.mxu0 0.0
        %2366 = vmatpush1.msra.mxu0 0.0
        %2367 = vmatprep.subr.mxu0 0.0
        %2368 = vmatpush1.msra.mxu0 0.0
        %2369 = vmatprep.subr.mxu0 0.0
        %2370 = vmatpush1.msra.mxu0 0.0
        %2371 = vmatprep.subr.mxu0 0.0
        %2372 = vmatpush1.msra.mxu0 0.0
        %2373 = vmatprep.subr.mxu0 0.0
        %2374 = vmatpush1.msra.mxu0 0.0
        %2375 = vmatprep.mubr.f32.mxu0 0.0
        %2376 = vmatmul.mubr.f32.gmra.mrb[0].mxu0 %v1244
        %v2377 = vpop.f32.mrb[0].mxu0
        %v2378 = vadd.f32 %v2307, %v2377
        %v2379 = vpop.f32.mrb[0].mxu0
        %v2380 = vadd.f32 %v2309, %v2379
        %2381 = vdwg.mxu0
        %v2382 = vmax.f32 %v1810, 0.0
        %v2383 = vmax.f32 %v1812, 0.0
        %v2384 = vmax.f32 %v2378, 0.0
        %v2385 = vmax.f32 %v2380, 0.0
        %v2390 = vcombine.low %v2382, %v2383
        %v2391 = vcombine.low %v2384, %v2385
        %v2393 = vunpack.c.l.s4 1983009808
        %v2394 = vunpack.c.0.s8 %v2393
        %v2395 = vlaneseq
        %v2396 = vshrl.u32 %v2395, 7
        %v2397 = vsub.s32 %v2394, %v2396
        %v2398 = vrot.slane %v2390, %v2397
        %v2400 = vunpack.c.l.s4 1983009808
        %v2401 = vunpack.c.0.s8 %v2400
        %v2402 = vlaneseq
        %v2403 = vshrl.u32 %v2402, 7
        %v2404 = vsub.s32 %v2401, %v2403
        %v2405 = vrot.slane %v2391, %v2404
        %v2406 = vcombine.low %v2398, %v2405
        %2408 = vst [vmem:[%s230] sm:$0xff] %v2406
        %s2409 = smul.u32 4, %s20
        %p2410 = scmp.lt.s32.totalorder %s2409, 15
        %s2411 = scalar_select %p2410, %s2409, 15
        %s2412 = smul.addr %s2411, 2
        %s2413 = scalar_lea.vmem %s3, %s2412
        // Predicated region
        $region41: #{cnn_forward.4} parent=31 // pred_check
          %p2414 = pneg %p111
        $region42: #{cnn_forward.4} parent=31 // pred_check_branch
          %2416 = sbr.rel (%p2414) target = $region44
        $region43: #{cnn_forward.4} parent=31 // pred_region
          %s2417 = smul.u32 4, %s20
        $region44: #{cnn_forward.4} parent=31 // pred_fallthru
          _
      $region32: #{cnn_forward.4} parent=5 // pred_fallthru
        _
      %p2418 = scmp.le.s32.totalorder 2, %s15
      // Predicated region
      $region45: #{cnn_forward.4} parent=5 // pred_check
        %p2419 = pneg %p2418
      $region46: #{cnn_forward.4} parent=5 // pred_check_branch
        %2421 = sbr.rel (%p2419) target = $region48
      $region47: #{cnn_forward.4} parent=5 // pred_region
        %s2422 = ssub.s32 %s15, 2
        // Predicated region
        $region49: #{cnn_forward.4} parent=47 // pred_check
          %p2423 = pneg %p117
        $region50: #{cnn_forward.4} parent=47 // pred_check_branch
          %2425 = sbr.rel (%p2423) target = $region52
        $region51: #{cnn_forward.4} parent=47 // pred_region
          %s2426 = smul.u32 4, %s21
          %p2427 = scmp.lt.s32.totalorder %s2426, 15
          %s2428 = scalar_select %p2427, %s2426, 15
          %s2429 = smul.addr %s2428, 2
          %s2430 = scalar_lea.vmem %s3, %s2429
        $region52: #{cnn_forward.4} parent=47 // pred_fallthru
          _
      $region48: #{cnn_forward.4} parent=5 // pred_fallthru
        _
    $region6: #{cnn_forward.4} parent=1 // loop_footer
      %s19 = sadd.s32 1, %s15
    $region7: #{cnn_forward.4} parent=1 // loop_footer_branch
      %14 = sbr.rel target = $region3
    $region8: #{cnn_forward.4} parent=1 // loop_exit
      _
    %2431 = vsyncpa [#allocation3], 1
    %s2432 = scalar_lea.sflag [#allocation3], 1
    %2433 = vsyncpa %s2432, 1
    %2434 = vsyncpa [#allocation5], 1
    %s2435 = scalar_lea.sflag [#allocation5], 1
    %2436 = vsyncpa %s2435, 1

// kernel: cnn_forward.5
$region0: #{cnn_forward.5}
  #allocation0 [shape = 'u32[]', space=smem, size = 0x4, offset = 0x4, fixed_abs, tag = 'smem constant byte address 0x4 - core index']
  #allocation1 [shape = 'u32[144,128]{1,0:T(1,128)}', space=vmem, size = 0x12000, scoped, tag = 'internal scratch']
  %s0 = inlined_call_operand.vmem [shape: f32[2,2048], index: 0, kind: input, shape index: {}]
  %s1 = inlined_call_operand.vmem [shape: f32[2048,1480], index: 1, kind: input, shape index: {}]
  %s2 = inlined_call_operand.vmem [shape: f32[1,1480], index: 2, kind: input, shape index: {}]
  %s3 = inlined_call_operand.vmem [shape: f32[2,1480], index: 3, kind: output, shape index: {}]
  %s4 = sld [smem:[#allocation0]]
  $region68: #{cnn_forward.5} parent=0
    _
  %s6 = ssub.s32 1, %s4
  %s7 = scalar_select 0, %s6, %s4
  $region1: #{cnn_forward.5} parent=0
    #allocation2 [shape = 'u8[8388608]{0}', space=vmem, size = 0x800000, scoped, tag = 'input window, operand 1']
    loop: start=0, step=1, limit=5
    $region2: #{cnn_forward.5} parent=1 // loop_pre_header
      _
    $region3: #{cnn_forward.5} parent=1 // loop_header
      %s9 = sphi 0, %s13
      %p10 = scmp.ge.s32.totalorder %s9, 5
      %s17 = sphi 0, %s17
      %s19 = sphi 0, %s17
      %s20 = sphi 0, %s19
      %s34 = sphi 0, %s20
      %s40 = sphi 0, %s42
      %s43 = sphi 0, %s40
      %s44 = sphi 0, %s43
      %s60 = sphi 0, %s44
      %s66 = sphi 0, %s68
      %s69 = sphi 0, %s66
      %s70 = sphi 0, %s69
      %s86 = sphi 0, %s70
      %s92 = sphi 0, %s94
      %s95 = sphi 0, %s92
      %s96 = sphi 0, %s95
      %s112 = sphi 0, %s96
    $region4: #{cnn_forward.5} parent=1 // loop_header_branch
      %12 = sbr.rel (%p10) target = $region8
    $region5: #{cnn_forward.5} parent=1 // loop_body
      %s14 = ssub.s32 %s9, 1
      %s15 = ssub.s32 %s9, 2
      %s16 = sadd.s32 %s9, 1
      %s18 = sadd.s32 %s17, 1
      %p21 = scmp.eq.s32.totalorder %s9, 2
      %p22 = scmp.ne.s32.totalorder %s17, %s19
      %p23 = scmp.eq.s32.totalorder %s9, 0
      %p24 = por %p22, %p23
      %p25 = scmp.ne.s32.totalorder %s17, %s19
      %p26 = scmp.eq.s32.totalorder %s14, 2
      %p27 = por %p25, %p26
      %p28 = scmp.ne.s32.totalorder %s19, %s20
      %p29 = scmp.eq.s32.totalorder %s14, 0
      %p30 = por %p28, %p29
      %p31 = scmp.ne.s32.totalorder %s19, %s20
      %p32 = scmp.eq.s32.totalorder %s15, 2
      %p33 = por %p31, %p32
      %p35 = scmp.ne.s32.totalorder %s20, %s34
      %p36 = scmp.eq.s32.totalorder %s15, 0
      %p37 = por %p35, %p36
      %s38 = ssub.s32 %s9, %s16
      %p39 = scmp.eq.s32.totalorder %s38, 0
      %s41 = sadd.s32 %s40, 1
      %s42 = scalar_select %p39, %s40, %s41
      %p45 = pneg %p39
      %p46 = scmp.eq.s32.totalorder %s9, 2
      %p47 = por %p45, %p46
      %p48 = scmp.ne.s32.totalorder %s40, %s43
      %p49 = scmp.eq.s32.totalorder %s9, 0
      %p50 = por %p48, %p49
      %p51 = scmp.ne.s32.totalorder %s40, %s43
      %p52 = scmp.eq.s32.totalorder %s14, 2
      %p53 = por %p51, %p52
      %p54 = scmp.ne.s32.totalorder %s43, %s44
      %p55 = scmp.eq.s32.totalorder %s14, 0
      %p56 = por %p54, %p55
      %p57 = scmp.ne.s32.totalorder %s43, %s44
      %p58 = scmp.eq.s32.totalorder %s15, 2
      %p59 = por %p57, %p58
      %p61 = scmp.ne.s32.totalorder %s44, %s60
      %p62 = scmp.eq.s32.totalorder %s15, 0
      %p63 = por %p61, %p62
      %s64 = ssub.s32 %s9, %s16
      %p65 = scmp.eq.s32.totalorder %s64, 0
      %s67 = sadd.s32 %s66, 1
      %s68 = scalar_select %p65, %s66, %s67
      %p71 = pneg %p65
      %p72 = scmp.eq.s32.totalorder %s9, 2
      %p73 = por %p71, %p72
      %p74 = scmp.ne.s32.totalorder %s66, %s69
      %p75 = scmp.eq.s32.totalorder %s9, 0
      %p76 = por %p74, %p75
      %p77 = scmp.ne.s32.totalorder %s66, %s69
      %p78 = scmp.eq.s32.totalorder %s14, 2
      %p79 = por %p77, %p78
      %p80 = scmp.ne.s32.totalorder %s69, %s70
      %p81 = scmp.eq.s32.totalorder %s14, 0
      %p82 = por %p80, %p81
      %p83 = scmp.ne.s32.totalorder %s69, %s70
      %p84 = scmp.eq.s32.totalorder %s15, 2
      %p85 = por %p83, %p84
      %p87 = scmp.ne.s32.totalorder %s70, %s86
      %p88 = scmp.eq.s32.totalorder %s15, 0
      %p89 = por %p87, %p88
      %s90 = ssub.s32 %s9, %s16
      %p91 = scmp.eq.s32.totalorder %s90, 0
      %s93 = sadd.s32 %s92, 1
      %s94 = scalar_select %p91, %s92, %s93
      %p97 = pneg %p91
      %p98 = scmp.eq.s32.totalorder %s9, 2
      %p99 = por %p97, %p98
      %p100 = scmp.ne.s32.totalorder %s92, %s95
      %p101 = scmp.eq.s32.totalorder %s9, 0
      %p102 = por %p100, %p101
      %p103 = scmp.ne.s32.totalorder %s92, %s95
      %p104 = scmp.eq.s32.totalorder %s14, 2
      %p105 = por %p103, %p104
      %p106 = scmp.ne.s32.totalorder %s95, %s96
      %p107 = scmp.eq.s32.totalorder %s14, 0
      %p108 = por %p106, %p107
      %p109 = scmp.ne.s32.totalorder %s95, %s96
      %p110 = scmp.eq.s32.totalorder %s15, 2
      %p111 = por %p109, %p110
      %p113 = scmp.ne.s32.totalorder %s96, %s112
      %p114 = scmp.eq.s32.totalorder %s15, 0
      %p115 = por %p113, %p114
      %p116 = scmp.le.s32.totalorder 1, %s9
      %p117 = scmp.lt.s32.totalorder %s9, 4
      %p118 = pnand %p116, %p117
      %p119 = pneg %p118
      // Predicated region
      $region9: #{cnn_forward.5} parent=5 // pred_check
        _
      $region10: #{cnn_forward.5} parent=5 // pred_check_branch
        %121 = sbr.rel (%p118) target = $region12
      $region11: #{cnn_forward.5} parent=5 // pred_region
        %s122 = ssub.s32 %s9, 1
        // Predicated region
        $region13: #{cnn_forward.5} parent=11 // pred_check
          %p123 = pneg %p30
        $region14: #{cnn_forward.5} parent=11 // pred_check_branch
          %125 = sbr.rel (%p123) target = $region16
        $region15: #{cnn_forward.5} parent=11 // pred_region
          _
        $region16: #{cnn_forward.5} parent=11 // pred_fallthru
          _
      $region12: #{cnn_forward.5} parent=5 // pred_fallthru
        _
      %p126 = scmp.lt.s32.totalorder %s9, 3
      // Predicated region
      $region17: #{cnn_forward.5} parent=5 // pred_check
        %p127 = pneg %p126
      $region18: #{cnn_forward.5} parent=5 // pred_check_branch
        %129 = sbr.rel (%p127) target = $region20
      $region19: #{cnn_forward.5} parent=5 // pred_region
        // Predicated region
        $region21: #{cnn_forward.5} parent=19 // pred_check
          %p130 = pneg %p50
        $region22: #{cnn_forward.5} parent=19 // pred_check_branch
          %132 = sbr.rel (%p130) target = $region24
        $region23: #{cnn_forward.5} parent=19 // pred_region
          %s133 = sand.u32 %s40, 1
          %s134 = sand.u32 %s40, 1
          %s135 = smul.addr %s134, 8192
          %s136 = scalar_lea.vmem [#allocation2], %s135
          %s137 = smul.u32 4, %s9
          %s138 = smul.addr %s137, 8
          %s139 = scalar_lea.vmem %s1, %s138
          // Predicated region
          $region25: #{cnn_forward.5} parent=23 // pred_check
            _
          $region26: #{cnn_forward.5} parent=23 // pred_check_branch
            %141 = sbr.rel (0) target = $region28
          $region27: #{cnn_forward.5} parent=23 // pred_region
            // Predicated region
            $region29: #{cnn_forward.5} parent=27 // pred_check
              _
            $region30: #{cnn_forward.5} parent=27 // pred_check_branch
              %143 = sbr.rel (0) target = $region32
            $region31: #{cnn_forward.5} parent=27 // pred_region
              loop: start=0, step=1, limit=1
              $region33: #{cnn_forward.5} parent=31 // loop_pre_header
                _
              $region34: #{cnn_forward.5} parent=31 // loop_header
                %s145 = sphi 0, %s149
                %p146 = scmp.ge.s32.totalorder %s145, 1
                %s150 = sphi %s139, %s139
                %s151 = sphi %s136, %s136
              $region35: #{cnn_forward.5} parent=31 // loop_header_branch
                %148 = sbr.rel (%p146) target = $region39
              $region36: #{cnn_forward.5} parent=31 // loop_body
                %v152 = vld [vmem:[%s150] sm:$0xff]
                %153 = vst [vmem:[%s151] sm:$0xff] %v152
                %v154 = vld [vmem:[%s150 + $0x8] sm:$0xff]
                %155 = vst [vmem:[%s151 + $0x8] sm:$0xff] %v154
                %v156 = vld [vmem:[%s150 + $0x10] sm:$0xff]
                %157 = vst [vmem:[%s151 + $0x10] sm:$0xff] %v156
                %v158 = vld [vmem:[%s150 + $0x18] sm:$0xff]
                %159 = vst [vmem:[%s151 + $0x18] sm:$0xff] %v158
                %v160 = vld [vmem:[%s150 + $0x60] sm:$0xff]
                %161 = vst [vmem:[%s151 + $0x20] sm:$0xff] %v160
                %v162 = vld [vmem:[%s150 + $0x68] sm:$0xff]
                %163 = vst [vmem:[%s151 + $0x28] sm:$0xff] %v162
                %v164 = vld [vmem:[%s150 + $0x70] sm:$0xff]
                %165 = vst [vmem:[%s151 + $0x30] sm:$0xff] %v164
                %v166 = vld [vmem:[%s150 + $0x78] sm:$0xff]
                %167 = vst [vmem:[%s151 + $0x38] sm:$0xff] %v166
                %v168 = vld [vmem:[%s150 + $0xc0] sm:$0xff]
                %169 = vst [vmem:[%s151 + $0x40] sm:$0xff] %v168
                %v170 = vld [vmem:[%s150 + $0xc8] sm:$0xff]
                %171 = vst [vmem:[%s151 + $0x48] sm:$0xff] %v170
                %v172 = vld [vmem:[%s150 + $0xd0] sm:$0xff]
                %173 = vst [vmem:[%s151 + $0x50] sm:$0xff] %v172
                %v174 = vld [vmem:[%s150 + $0xd8] sm:$0xff]
                %175 = vst [vmem:[%s151 + $0x58] sm:$0xff] %v174
                %v176 = vld [vmem:[%s150 + $0x120] sm:$0xff]
                %177 = vst [vmem:[%s151 + $0x60] sm:$0xff] %v176
                %v178 = vld [vmem:[%s150 + $0x128] sm:$0xff]
                %179 = vst [vmem:[%s151 + $0x68] sm:$0xff] %v178
                %v180 = vld [vmem:[%s150 + $0x130] sm:$0xff]
                %181 = vst [vmem:[%s151 + $0x70] sm:$0xff] %v180
                %v182 = vld [vmem:[%s150 + $0x138] sm:$0xff]
                %183 = vst [vmem:[%s151 + $0x78] sm:$0xff] %v182
                %v184 = vld [vmem:[%s150 + $0x180] sm:$0xff]
                %185 = vst [vmem:[%s151 + $0x80] sm:$0xff] %v184
                %v186 = vld [vmem:[%s150 + $0x188] sm:$0xff]
                %187 = vst [vmem:[%s151 + $0x88] sm:$0xff] %v186
                %v188 = vld [vmem:[%s150 + $0x190] sm:$0xff]
                %189 = vst [vmem:[%s151 + $0x90] sm:$0xff] %v188
                %v190 = vld [vmem:[%s150 + $0x198] sm:$0xff]
                %191 = vst [vmem:[%s151 + $0x98] sm:$0xff] %v190
                %v192 = vld [vmem:[%s150 + $0x1e0] sm:$0xff]
                %193 = vst [vmem:[%s151 + $0xa0] sm:$0xff] %v192
                %v194 = vld [vmem:[%s150 + $0x1e8] sm:$0xff]
                %195 = vst [vmem:[%s151 + $0xa8] sm:$0xff] %v194
                %v196 = vld [vmem:[%s150 + $0x1f0] sm:$0xff]
                %197 = vst [vmem:[%s151 + $0xb0] sm:$0xff] %v196
                %v198 = vld [vmem:[%s150 + $0x1f8] sm:$0xff]
                %199 = vst [vmem:[%s151 + $0xb8] sm:$0xff] %v198
                %v200 = vld [vmem:[%s150 + $0x240] sm:$0xff]
                %201 = vst [vmem:[%s151 + $0xc0] sm:$0xff] %v200
                %v202 = vld [vmem:[%s150 + $0x248] sm:$0xff]
                %203 = vst [vmem:[%s151 + $0xc8] sm:$0xff] %v202
                %v204 = vld [vmem:[%s150 + $0x250] sm:$0xff]
                %205 = vst [vmem:[%s151 + $0xd0] sm:$0xff] %v204
                %v206 = vld [vmem:[%s150 + $0x258] sm:$0xff]
                %207 = vst [vmem:[%s151 + $0xd8] sm:$0xff] %v206
                %v208 = vld [vmem:[%s150 + $0x2a0] sm:$0xff]
                %209 = vst [vmem:[%s151 + $0xe0] sm:$0xff] %v208
                %v210 = vld [vmem:[%s150 + $0x2a8] sm:$0xff]
                %211 = vst [vmem:[%s151 + $0xe8] sm:$0xff] %v210
                %v212 = vld [vmem:[%s150 + $0x2b0] sm:$0xff]
                %213 = vst [vmem:[%s151 + $0xf0] sm:$0xff] %v212
                %v214 = vld [vmem:[%s150 + $0x2b8] sm:$0xff]
                %215 = vst [vmem:[%s151 + $0xf8] sm:$0xff] %v214
                %v216 = vld [vmem:[%s150 + $0x300] sm:$0xff]
                %217 = vst [vmem:[%s151 + $0x100] sm:$0xff] %v216
                %v218 = vld [vmem:[%s150 + $0x308] sm:$0xff]
                %219 = vst [vmem:[%s151 + $0x108] sm:$0xff] %v218
                %v220 = vld [vmem:[%s150 + $0x310] sm:$0xff]
                %221 = vst [vmem:[%s151 + $0x110] sm:$0xff] %v220
                %v222 = vld [vmem:[%s150 + $0x318] sm:$0xff]
                %223 = vst [vmem:[%s151 + $0x118] sm:$0xff] %v222
                %v224 = vld [vmem:[%s150 + $0x360] sm:$0xff]
                %225 = vst [vmem:[%s151 + $0x120] sm:$0xff] %v224
                %v226 = vld [vmem:[%s150 + $0x368] sm:$0xff]
                %227 = vst [vmem:[%s151 + $0x128] sm:$0xff] %v226
                %v228 = vld [vmem:[%s150 + $0x370] sm:$0xff]
                %229 = vst [vmem:[%s151 + $0x130] sm:$0xff] %v228
                %v230 = vld [vmem:[%s150 + $0x378] sm:$0xff]
                %231 = vst [vmem:[%s151 + $0x138] sm:$0xff] %v230
                %v232 = vld [vmem:[%s150 + $0x3c0] sm:$0xff]
                %233 = vst [vmem:[%s151 + $0x140] sm:$0xff] %v232
                %v234 = vld [vmem:[%s150 + $0x3c8] sm:$0xff]
                %235 = vst [vmem:[%s151 + $0x148] sm:$0xff] %v234
                %v236 = vld [vmem:[%s150 + $0x3d0] sm:$0xff]
                %237 = vst [vmem:[%s151 + $0x150] sm:$0xff] %v236
                %v238 = vld [vmem:[%s150 + $0x3d8] sm:$0xff]
                %239 = vst [vmem:[%s151 + $0x158] sm:$0xff] %v238
                %v240 = vld [vmem:[%s150 + $0x420] sm:$0xff]
                %241 = vst [vmem:[%s151 + $0x160] sm:$0xff] %v240
                %v242 = vld [vmem:[%s150 + $0x428] sm:$0xff]
                %243 = vst [vmem:[%s151 + $0x168] sm:$0xff] %v242
                %v244 = vld [vmem:[%s150 + $0x430] sm:$0xff]
                %245 = vst [vmem:[%s151 + $0x170] sm:$0xff] %v244
                %v246 = vld [vmem:[%s150 + $0x438] sm:$0xff]
                %247 = vst [vmem:[%s151 + $0x178] sm:$0xff] %v246
                %v248 = vld [vmem:[%s150 + $0x480] sm:$0xff]
                %249 = vst [vmem:[%s151 + $0x180] sm:$0xff] %v248
                %v250 = vld [vmem:[%s150 + $0x488] sm:$0xff]
                %251 = vst [vmem:[%s151 + $0x188] sm:$0xff] %v250
                %v252 = vld [vmem:[%s150 + $0x490] sm:$0xff]
                %253 = vst [vmem:[%s151 + $0x190] sm:$0xff] %v252
                %v254 = vld [vmem:[%s150 + $0x498] sm:$0xff]
                %255 = vst [vmem:[%s151 + $0x198] sm:$0xff] %v254
                %v256 = vld [vmem:[%s150 + $0x4e0] sm:$0xff]
                %257 = vst [vmem:[%s151 + $0x1a0] sm:$0xff] %v256
                %v258 = vld [vmem:[%s150 + $0x4e8] sm:$0xff]
                %259 = vst [vmem:[%s151 + $0x1a8] sm:$0xff] %v258
                %v260 = vld [vmem:[%s150 + $0x4f0] sm:$0xff]
                %261 = vst [vmem:[%s151 + $0x1b0] sm:$0xff] %v260
                %v262 = vld [vmem:[%s150 + $0x4f8] sm:$0xff]
                %263 = vst [vmem:[%s151 + $0x1b8] sm:$0xff] %v262
                %v264 = vld [vmem:[%s150 + $0x540] sm:$0xff]
                %265 = vst [vmem:[%s151 + $0x1c0] sm:$0xff] %v264
                %v266 = vld [vmem:[%s150 + $0x548] sm:$0xff]
                %267 = vst [vmem:[%s151 + $0x1c8] sm:$0xff] %v266
                %v268 = vld [vmem:[%s150 + $0x550] sm:$0xff]
                %269 = vst [vmem:[%s151 + $0x1d0] sm:$0xff] %v268
                %v270 = vld [vmem:[%s150 + $0x558] sm:$0xff]
                %271 = vst [vmem:[%s151 + $0x1d8] sm:$0xff] %v270
                %v272 = vld [vmem:[%s150 + $0x5a0] sm:$0xff]
                %273 = vst [vmem:[%s151 + $0x1e0] sm:$0xff] %v272
                %v274 = vld [vmem:[%s150 + $0x5a8] sm:$0xff]
                %275 = vst [vmem:[%s151 + $0x1e8] sm:$0xff] %v274
                %v276 = vld [vmem:[%s150 + $0x5b0] sm:$0xff]
                %277 = vst [vmem:[%s151 + $0x1f0] sm:$0xff] %v276
                %v278 = vld [vmem:[%s150 + $0x5b8] sm:$0xff]
                %279 = vst [vmem:[%s151 + $0x1f8] sm:$0xff] %v278
                %v280 = vld [vmem:[%s150 + $0x600] sm:$0xff]
                %281 = vst [vmem:[%s151 + $0x200] sm:$0xff] %v280
                %v282 = vld [vmem:[%s150 + $0x608] sm:$0xff]
                %283 = vst [vmem:[%s151 + $0x208] sm:$0xff] %v282
                %v284 = vld [vmem:[%s150 + $0x610] sm:$0xff]
                %285 = vst [vmem:[%s151 + $0x210] sm:$0xff] %v284
                %v286 = vld [vmem:[%s150 + $0x618] sm:$0xff]
                %287 = vst [vmem:[%s151 + $0x218] sm:$0xff] %v286
                %v288 = vld [vmem:[%s150 + $0x660] sm:$0xff]
                %289 = vst [vmem:[%s151 + $0x220] sm:$0xff] %v288
                %v290 = vld [vmem:[%s150 + $0x668] sm:$0xff]
                %291 = vst [vmem:[%s151 + $0x228] sm:$0xff] %v290
                %v292 = vld [vmem:[%s150 + $0x670] sm:$0xff]
                %293 = vst [vmem:[%s151 + $0x230] sm:$0xff] %v292
                %v294 = vld [vmem:[%s150 + $0x678] sm:$0xff]
                %295 = vst [vmem:[%s151 + $0x238] sm:$0xff] %v294
                %v296 = vld [vmem:[%s150 + $0x6c0] sm:$0xff]
                %297 = vst [vmem:[%s151 + $0x240] sm:$0xff] %v296
                %v298 = vld [vmem:[%s150 + $0x6c8] sm:$0xff]
                %299 = vst [vmem:[%s151 + $0x248] sm:$0xff] %v298
                %v300 = vld [vmem:[%s150 + $0x6d0] sm:$0xff]
                %301 = vst [vmem:[%s151 + $0x250] sm:$0xff] %v300
                %v302 = vld [vmem:[%s150 + $0x6d8] sm:$0xff]
                %303 = vst [vmem:[%s151 + $0x258] sm:$0xff] %v302
                %v304 = vld [vmem:[%s150 + $0x720] sm:$0xff]
                %305 = vst [vmem:[%s151 + $0x260] sm:$0xff] %v304
                %v306 = vld [vmem:[%s150 + $0x728] sm:$0xff]
                %307 = vst [vmem:[%s151 + $0x268] sm:$0xff] %v306
                %v308 = vld [vmem:[%s150 + $0x730] sm:$0xff]
                %309 = vst [vmem:[%s151 + $0x270] sm:$0xff] %v308
                %v310 = vld [vmem:[%s150 + $0x738] sm:$0xff]
                %311 = vst [vmem:[%s151 + $0x278] sm:$0xff] %v310
                %v312 = vld [vmem:[%s150 + $0x780] sm:$0xff]
                %313 = vst [vmem:[%s151 + $0x280] sm:$0xff] %v312
                %v314 = vld [vmem:[%s150 + $0x788] sm:$0xff]
                %315 = vst [vmem:[%s151 + $0x288] sm:$0xff] %v314
                %v316 = vld [vmem:[%s150 + $0x790] sm:$0xff]
                %317 = vst [vmem:[%s151 + $0x290] sm:$0xff] %v316
                %v318 = vld [vmem:[%s150 + $0x798] sm:$0xff]
                %319 = vst [vmem:[%s151 + $0x298] sm:$0xff] %v318
                %v320 = vld [vmem:[%s150 + $0x7e0] sm:$0xff]
                %321 = vst [vmem:[%s151 + $0x2a0] sm:$0xff] %v320
                %v322 = vld [vmem:[%s150 + $0x7e8] sm:$0xff]
                %323 = vst [vmem:[%s151 + $0x2a8] sm:$0xff] %v322
                %v324 = vld [vmem:[%s150 + $0x7f0] sm:$0xff]
                %325 = vst [vmem:[%s151 + $0x2b0] sm:$0xff] %v324
                %v326 = vld [vmem:[%s150 + $0x7f8] sm:$0xff]
                %327 = vst [vmem:[%s151 + $0x2b8] sm:$0xff] %v326
                %v328 = vld [vmem:[%s150 + $0x840] sm:$0xff]
                %329 = vst [vmem:[%s151 + $0x2c0] sm:$0xff] %v328
                %v330 = vld [vmem:[%s150 + $0x848] sm:$0xff]
                %331 = vst [vmem:[%s151 + $0x2c8] sm:$0xff] %v330
                %v332 = vld [vmem:[%s150 + $0x850] sm:$0xff]
                %333 = vst [vmem:[%s151 + $0x2d0] sm:$0xff] %v332
                %v334 = vld [vmem:[%s150 + $0x858] sm:$0xff]
                %335 = vst [vmem:[%s151 + $0x2d8] sm:$0xff] %v334
                %v336 = vld [vmem:[%s150 + $0x8a0] sm:$0xff]
                %337 = vst [vmem:[%s151 + $0x2e0] sm:$0xff] %v336
                %v338 = vld [vmem:[%s150 + $0x8a8] sm:$0xff]
                %339 = vst [vmem:[%s151 + $0x2e8] sm:$0xff] %v338
                %v340 = vld [vmem:[%s150 + $0x8b0] sm:$0xff]
                %341 = vst [vmem:[%s151 + $0x2f0] sm:$0xff] %v340
                %v342 = vld [vmem:[%s150 + $0x8b8] sm:$0xff]
                %343 = vst [vmem:[%s151 + $0x2f8] sm:$0xff] %v342
                %v344 = vld [vmem:[%s150 + $0x900] sm:$0xff]
                %345 = vst [vmem:[%s151 + $0x300] sm:$0xff] %v344
                %v346 = vld [vmem:[%s150 + $0x908] sm:$0xff]
                %347 = vst [vmem:[%s151 + $0x308] sm:$0xff] %v346
                %v348 = vld [vmem:[%s150 + $0x910] sm:$0xff]
                %349 = vst [vmem:[%s151 + $0x310] sm:$0xff] %v348
                %v350 = vld [vmem:[%s150 + $0x918] sm:$0xff]
                %351 = vst [vmem:[%s151 + $0x318] sm:$0xff] %v350
                %v352 = vld [vmem:[%s150 + $0x960] sm:$0xff]
                %353 = vst [vmem:[%s151 + $0x320] sm:$0xff] %v352
                %v354 = vld [vmem:[%s150 + $0x968] sm:$0xff]
                %355 = vst [vmem:[%s151 + $0x328] sm:$0xff] %v354
                %v356 = vld [vmem:[%s150 + $0x970] sm:$0xff]
                %357 = vst [vmem:[%s151 + $0x330] sm:$0xff] %v356
                %v358 = vld [vmem:[%s150 + $0x978] sm:$0xff]
                %359 = vst [vmem:[%s151 + $0x338] sm:$0xff] %v358
                %v360 = vld [vmem:[%s150 + $0x9c0] sm:$0xff]
                %361 = vst [vmem:[%s151 + $0x340] sm:$0xff] %v360
                %v362 = vld [vmem:[%s150 + $0x9c8] sm:$0xff]
                %363 = vst [vmem:[%s151 + $0x348] sm:$0xff] %v362
                %v364 = vld [vmem:[%s150 + $0x9d0] sm:$0xff]
                %365 = vst [vmem:[%s151 + $0x350] sm:$0xff] %v364
                %v366 = vld [vmem:[%s150 + $0x9d8] sm:$0xff]
                %367 = vst [vmem:[%s151 + $0x358] sm:$0xff] %v366
                %v368 = vld [vmem:[%s150 + $0xa20] sm:$0xff]
                %369 = vst [vmem:[%s151 + $0x360] sm:$0xff] %v368
                %v370 = vld [vmem:[%s150 + $0xa28] sm:$0xff]
                %371 = vst [vmem:[%s151 + $0x368] sm:$0xff] %v370
                %v372 = vld [vmem:[%s150 + $0xa30] sm:$0xff]
                %373 = vst [vmem:[%s151 + $0x370] sm:$0xff] %v372
                %v374 = vld [vmem:[%s150 + $0xa38] sm:$0xff]
                %375 = vst [vmem:[%s151 + $0x378] sm:$0xff] %v374
                %v376 = vld [vmem:[%s150 + $0xa80] sm:$0xff]
                %377 = vst [vmem:[%s151 + $0x380] sm:$0xff] %v376
                %v378 = vld [vmem:[%s150 + $0xa88] sm:$0xff]
                %379 = vst [vmem:[%s151 + $0x388] sm:$0xff] %v378
                %v380 = vld [vmem:[%s150 + $0xa90] sm:$0xff]
                %381 = vst [vmem:[%s151 + $0x390] sm:$0xff] %v380
                %v382 = vld [vmem:[%s150 + $0xa98] sm:$0xff]
                %383 = vst [vmem:[%s151 + $0x398] sm:$0xff] %v382
                %v384 = vld [vmem:[%s150 + $0xae0] sm:$0xff]
                %385 = vst [vmem:[%s151 + $0x3a0] sm:$0xff] %v384
                %v386 = vld [vmem:[%s150 + $0xae8] sm:$0xff]
                %387 = vst [vmem:[%s151 + $0x3a8] sm:$0xff] %v386
                %v388 = vld [vmem:[%s150 + $0xaf0] sm:$0xff]
                %389 = vst [vmem:[%s151 + $0x3b0] sm:$0xff] %v388
                %v390 = vld [vmem:[%s150 + $0xaf8] sm:$0xff]
                %391 = vst [vmem:[%s151 + $0x3b8] sm:$0xff] %v390
                %v392 = vld [vmem:[%s150 + $0xb40] sm:$0xff]
                %393 = vst [vmem:[%s151 + $0x3c0] sm:$0xff] %v392
                %v394 = vld [vmem:[%s150 + $0xb48] sm:$0xff]
                %395 = vst [vmem:[%s151 + $0x3c8] sm:$0xff] %v394
                %v396 = vld [vmem:[%s150 + $0xb50] sm:$0xff]
                %397 = vst [vmem:[%s151 + $0x3d0] sm:$0xff] %v396
                %v398 = vld [vmem:[%s150 + $0xb58] sm:$0xff]
                %399 = vst [vmem:[%s151 + $0x3d8] sm:$0xff] %v398
                %v400 = vld [vmem:[%s150 + $0xba0] sm:$0xff]
                %401 = vst [vmem:[%s151 + $0x3e0] sm:$0xff] %v400
                %v402 = vld [vmem:[%s150 + $0xba8] sm:$0xff]
                %403 = vst [vmem:[%s151 + $0x3e8] sm:$0xff] %v402
                %v404 = vld [vmem:[%s150 + $0xbb0] sm:$0xff]
                %405 = vst [vmem:[%s151 + $0x3f0] sm:$0xff] %v404
                %v406 = vld [vmem:[%s150 + $0xbb8] sm:$0xff]
                %407 = vst [vmem:[%s151 + $0x3f8] sm:$0xff] %v406
                %v408 = vld [vmem:[%s150 + $0xc00] sm:$0xff]
                %409 = vst [vmem:[%s151 + $0x400] sm:$0xff] %v408
                %v410 = vld [vmem:[%s150 + $0xc08] sm:$0xff]
                %411 = vst [vmem:[%s151 + $0x408] sm:$0xff] %v410
                %v412 = vld [vmem:[%s150 + $0xc10] sm:$0xff]
                %413 = vst [vmem:[%s151 + $0x410] sm:$0xff] %v412
                %v414 = vld [vmem:[%s150 + $0xc18] sm:$0xff]
                %415 = vst [vmem:[%s151 + $0x418] sm:$0xff] %v414
                %v416 = vld [vmem:[%s150 + $0xc60] sm:$0xff]
                %417 = vst [vmem:[%s151 + $0x420] sm:$0xff] %v416
                %v418 = vld [vmem:[%s150 + $0xc68] sm:$0xff]
                %419 = vst [vmem:[%s151 + $0x428] sm:$0xff] %v418
                %v420 = vld [vmem:[%s150 + $0xc70] sm:$0xff]
                %421 = vst [vmem:[%s151 + $0x430] sm:$0xff] %v420
                %v422 = vld [vmem:[%s150 + $0xc78] sm:$0xff]
                %423 = vst [vmem:[%s151 + $0x438] sm:$0xff] %v422
                %v424 = vld [vmem:[%s150 + $0xcc0] sm:$0xff]
                %425 = vst [vmem:[%s151 + $0x440] sm:$0xff] %v424
                %v426 = vld [vmem:[%s150 + $0xcc8] sm:$0xff]
                %427 = vst [vmem:[%s151 + $0x448] sm:$0xff] %v426
                %v428 = vld [vmem:[%s150 + $0xcd0] sm:$0xff]
                %429 = vst [vmem:[%s151 + $0x450] sm:$0xff] %v428
                %v430 = vld [vmem:[%s150 + $0xcd8] sm:$0xff]
                %431 = vst [vmem:[%s151 + $0x458] sm:$0xff] %v430
                %v432 = vld [vmem:[%s150 + $0xd20] sm:$0xff]
                %433 = vst [vmem:[%s151 + $0x460] sm:$0xff] %v432
                %v434 = vld [vmem:[%s150 + $0xd28] sm:$0xff]
                %435 = vst [vmem:[%s151 + $0x468] sm:$0xff] %v434
                %v436 = vld [vmem:[%s150 + $0xd30] sm:$0xff]
                %437 = vst [vmem:[%s151 + $0x470] sm:$0xff] %v436
                %v438 = vld [vmem:[%s150 + $0xd38] sm:$0xff]
                %439 = vst [vmem:[%s151 + $0x478] sm:$0xff] %v438
                %v440 = vld [vmem:[%s150 + $0xd80] sm:$0xff]
                %441 = vst [vmem:[%s151 + $0x480] sm:$0xff] %v440
                %v442 = vld [vmem:[%s150 + $0xd88] sm:$0xff]
                %443 = vst [vmem:[%s151 + $0x488] sm:$0xff] %v442
                %v444 = vld [vmem:[%s150 + $0xd90] sm:$0xff]
                %445 = vst [vmem:[%s151 + $0x490] sm:$0xff] %v444
                %v446 = vld [vmem:[%s150 + $0xd98] sm:$0xff]
                %447 = vst [vmem:[%s151 + $0x498] sm:$0xff] %v446
                %v448 = vld [vmem:[%s150 + $0xde0] sm:$0xff]
                %449 = vst [vmem:[%s151 + $0x4a0] sm:$0xff] %v448
                %v450 = vld [vmem:[%s150 + $0xde8] sm:$0xff]
                %451 = vst [vmem:[%s151 + $0x4a8] sm:$0xff] %v450
                %v452 = vld [vmem:[%s150 + $0xdf0] sm:$0xff]
                %453 = vst [vmem:[%s151 + $0x4b0] sm:$0xff] %v452
                %v454 = vld [vmem:[%s150 + $0xdf8] sm:$0xff]
                %455 = vst [vmem:[%s151 + $0x4b8] sm:$0xff] %v454
                %v456 = vld [vmem:[%s150 + $0xe40] sm:$0xff]
                %457 = vst [vmem:[%s151 + $0x4c0] sm:$0xff] %v456
                %v458 = vld [vmem:[%s150 + $0xe48] sm:$0xff]
                %459 = vst [vmem:[%s151 + $0x4c8] sm:$0xff] %v458
                %v460 = vld [vmem:[%s150 + $0xe50] sm:$0xff]
                %461 = vst [vmem:[%s151 + $0x4d0] sm:$0xff] %v460
                %v462 = vld [vmem:[%s150 + $0xe58] sm:$0xff]
                %463 = vst [vmem:[%s151 + $0x4d8] sm:$0xff] %v462
                %v464 = vld [vmem:[%s150 + $0xea0] sm:$0xff]
                %465 = vst [vmem:[%s151 + $0x4e0] sm:$0xff] %v464
                %v466 = vld [vmem:[%s150 + $0xea8] sm:$0xff]
                %467 = vst [vmem:[%s151 + $0x4e8] sm:$0xff] %v466
                %v468 = vld [vmem:[%s150 + $0xeb0] sm:$0xff]
                %469 = vst [vmem:[%s151 + $0x4f0] sm:$0xff] %v468
                %v470 = vld [vmem:[%s150 + $0xeb8] sm:$0xff]
                %471 = vst [vmem:[%s151 + $0x4f8] sm:$0xff] %v470
                %v472 = vld [vmem:[%s150 + $0xf00] sm:$0xff]
                %473 = vst [vmem:[%s151 + $0x500] sm:$0xff] %v472
                %v474 = vld [vmem:[%s150 + $0xf08] sm:$0xff]
                %475 = vst [vmem:[%s151 + $0x508] sm:$0xff] %v474
                %v476 = vld [vmem:[%s150 + $0xf10] sm:$0xff]
                %477 = vst [vmem:[%s151 + $0x510] sm:$0xff] %v476
                %v478 = vld [vmem:[%s150 + $0xf18] sm:$0xff]
                %479 = vst [vmem:[%s151 + $0x518] sm:$0xff] %v478
                %v480 = vld [vmem:[%s150 + $0xf60] sm:$0xff]
                %481 = vst [vmem:[%s151 + $0x520] sm:$0xff] %v480
                %v482 = vld [vmem:[%s150 + $0xf68] sm:$0xff]
                %483 = vst [vmem:[%s151 + $0x528] sm:$0xff] %v482
                %v484 = vld [vmem:[%s150 + $0xf70] sm:$0xff]
                %485 = vst [vmem:[%s151 + $0x530] sm:$0xff] %v484
                %v486 = vld [vmem:[%s150 + $0xf78] sm:$0xff]
                %487 = vst [vmem:[%s151 + $0x538] sm:$0xff] %v486
                %v488 = vld [vmem:[%s150 + $0xfc0] sm:$0xff]
                %489 = vst [vmem:[%s151 + $0x540] sm:$0xff] %v488
                %v490 = vld [vmem:[%s150 + $0xfc8] sm:$0xff]
                %491 = vst [vmem:[%s151 + $0x548] sm:$0xff] %v490
                %v492 = vld [vmem:[%s150 + $0xfd0] sm:$0xff]
                %493 = vst [vmem:[%s151 + $0x550] sm:$0xff] %v492
                %v494 = vld [vmem:[%s150 + $0xfd8] sm:$0xff]
                %495 = vst [vmem:[%s151 + $0x558] sm:$0xff] %v494
                %v496 = vld [vmem:[%s150 + $0x1020] sm:$0xff]
                %497 = vst [vmem:[%s151 + $0x560] sm:$0xff] %v496
                %v498 = vld [vmem:[%s150 + $0x1028] sm:$0xff]
                %499 = vst [vmem:[%s151 + $0x568] sm:$0xff] %v498
                %v500 = vld [vmem:[%s150 + $0x1030] sm:$0xff]
                %501 = vst [vmem:[%s151 + $0x570] sm:$0xff] %v500
                %v502 = vld [vmem:[%s150 + $0x1038] sm:$0xff]
                %503 = vst [vmem:[%s151 + $0x578] sm:$0xff] %v502
                %v504 = vld [vmem:[%s150 + $0x1080] sm:$0xff]
                %505 = vst [vmem:[%s151 + $0x580] sm:$0xff] %v504
                %v506 = vld [vmem:[%s150 + $0x1088] sm:$0xff]
                %507 = vst [vmem:[%s151 + $0x588] sm:$0xff] %v506
                %v508 = vld [vmem:[%s150 + $0x1090] sm:$0xff]
                %509 = vst [vmem:[%s151 + $0x590] sm:$0xff] %v508
                %v510 = vld [vmem:[%s150 + $0x1098] sm:$0xff]
                %511 = vst [vmem:[%s151 + $0x598] sm:$0xff] %v510
                %v512 = vld [vmem:[%s150 + $0x10e0] sm:$0xff]
                %513 = vst [vmem:[%s151 + $0x5a0] sm:$0xff] %v512
                %v514 = vld [vmem:[%s150 + $0x10e8] sm:$0xff]
                %515 = vst [vmem:[%s151 + $0x5a8] sm:$0xff] %v514
                %v516 = vld [vmem:[%s150 + $0x10f0] sm:$0xff]
                %517 = vst [vmem:[%s151 + $0x5b0] sm:$0xff] %v516
                %v518 = vld [vmem:[%s150 + $0x10f8] sm:$0xff]
                %519 = vst [vmem:[%s151 + $0x5b8] sm:$0xff] %v518
                %v520 = vld [vmem:[%s150 + $0x1140] sm:$0xff]
                %521 = vst [vmem:[%s151 + $0x5c0] sm:$0xff] %v520
                %v522 = vld [vmem:[%s150 + $0x1148] sm:$0xff]
                %523 = vst [vmem:[%s151 + $0x5c8] sm:$0xff] %v522
                %v524 = vld [vmem:[%s150 + $0x1150] sm:$0xff]
                %525 = vst [vmem:[%s151 + $0x5d0] sm:$0xff] %v524
                %v526 = vld [vmem:[%s150 + $0x1158] sm:$0xff]
                %527 = vst [vmem:[%s151 + $0x5d8] sm:$0xff] %v526
                %v528 = vld [vmem:[%s150 + $0x11a0] sm:$0xff]
                %529 = vst [vmem:[%s151 + $0x5e0] sm:$0xff] %v528
                %v530 = vld [vmem:[%s150 + $0x11a8] sm:$0xff]
                %531 = vst [vmem:[%s151 + $0x5e8] sm:$0xff] %v530
                %v532 = vld [vmem:[%s150 + $0x11b0] sm:$0xff]
                %533 = vst [vmem:[%s151 + $0x5f0] sm:$0xff] %v532
                %v534 = vld [vmem:[%s150 + $0x11b8] sm:$0xff]
                %535 = vst [vmem:[%s151 + $0x5f8] sm:$0xff] %v534
                %v536 = vld [vmem:[%s150 + $0x1200] sm:$0xff]
                %537 = vst [vmem:[%s151 + $0x600] sm:$0xff] %v536
                %v538 = vld [vmem:[%s150 + $0x1208] sm:$0xff]
                %539 = vst [vmem:[%s151 + $0x608] sm:$0xff] %v538
                %v540 = vld [vmem:[%s150 + $0x1210] sm:$0xff]
                %541 = vst [vmem:[%s151 + $0x610] sm:$0xff] %v540
                %v542 = vld [vmem:[%s150 + $0x1218] sm:$0xff]
                %543 = vst [vmem:[%s151 + $0x618] sm:$0xff] %v542
                %v544 = vld [vmem:[%s150 + $0x1260] sm:$0xff]
                %545 = vst [vmem:[%s151 + $0x620] sm:$0xff] %v544
                %v546 = vld [vmem:[%s150 + $0x1268] sm:$0xff]
                %547 = vst [vmem:[%s151 + $0x628] sm:$0xff] %v546
                %v548 = vld [vmem:[%s150 + $0x1270] sm:$0xff]
                %549 = vst [vmem:[%s151 + $0x630] sm:$0xff] %v548
                %v550 = vld [vmem:[%s150 + $0x1278] sm:$0xff]
                %551 = vst [vmem:[%s151 + $0x638] sm:$0xff] %v550
                %v552 = vld [vmem:[%s150 + $0x12c0] sm:$0xff]
                %553 = vst [vmem:[%s151 + $0x640] sm:$0xff] %v552
                %v554 = vld [vmem:[%s150 + $0x12c8] sm:$0xff]
                %555 = vst [vmem:[%s151 + $0x648] sm:$0xff] %v554
                %v556 = vld [vmem:[%s150 + $0x12d0] sm:$0xff]
                %557 = vst [vmem:[%s151 + $0x650] sm:$0xff] %v556
                %v558 = vld [vmem:[%s150 + $0x12d8] sm:$0xff]
                %559 = vst [vmem:[%s151 + $0x658] sm:$0xff] %v558
                %v560 = vld [vmem:[%s150 + $0x1320] sm:$0xff]
                %561 = vst [vmem:[%s151 + $0x660] sm:$0xff] %v560
                %v562 = vld [vmem:[%s150 + $0x1328] sm:$0xff]
                %563 = vst [vmem:[%s151 + $0x668] sm:$0xff] %v562
                %v564 = vld [vmem:[%s150 + $0x1330] sm:$0xff]
                %565 = vst [vmem:[%s151 + $0x670] sm:$0xff] %v564
                %v566 = vld [vmem:[%s150 + $0x1338] sm:$0xff]
                %567 = vst [vmem:[%s151 + $0x678] sm:$0xff] %v566
                %v568 = vld [vmem:[%s150 + $0x1380] sm:$0xff]
                %569 = vst [vmem:[%s151 + $0x680] sm:$0xff] %v568
                %v570 = vld [vmem:[%s150 + $0x1388] sm:$0xff]
                %571 = vst [vmem:[%s151 + $0x688] sm:$0xff] %v570
                %v572 = vld [vmem:[%s150 + $0x1390] sm:$0xff]
                %573 = vst [vmem:[%s151 + $0x690] sm:$0xff] %v572
                %v574 = vld [vmem:[%s150 + $0x1398] sm:$0xff]
                %575 = vst [vmem:[%s151 + $0x698] sm:$0xff] %v574
                %v576 = vld [vmem:[%s150 + $0x13e0] sm:$0xff]
                %577 = vst [vmem:[%s151 + $0x6a0] sm:$0xff] %v576
                %v578 = vld [vmem:[%s150 + $0x13e8] sm:$0xff]
                %579 = vst [vmem:[%s151 + $0x6a8] sm:$0xff] %v578
                %v580 = vld [vmem:[%s150 + $0x13f0] sm:$0xff]
                %581 = vst [vmem:[%s151 + $0x6b0] sm:$0xff] %v580
                %v582 = vld [vmem:[%s150 + $0x13f8] sm:$0xff]
                %583 = vst [vmem:[%s151 + $0x6b8] sm:$0xff] %v582
                %v584 = vld [vmem:[%s150 + $0x1440] sm:$0xff]
                %585 = vst [vmem:[%s151 + $0x6c0] sm:$0xff] %v584
                %v586 = vld [vmem:[%s150 + $0x1448] sm:$0xff]
                %587 = vst [vmem:[%s151 + $0x6c8] sm:$0xff] %v586
                %v588 = vld [vmem:[%s150 + $0x1450] sm:$0xff]
                %589 = vst [vmem:[%s151 + $0x6d0] sm:$0xff] %v588
                %v590 = vld [vmem:[%s150 + $0x1458] sm:$0xff]
                %591 = vst [vmem:[%s151 + $0x6d8] sm:$0xff] %v590
                %v592 = vld [vmem:[%s150 + $0x14a0] sm:$0xff]
                %593 = vst [vmem:[%s151 + $0x6e0] sm:$0xff] %v592
                %v594 = vld [vmem:[%s150 + $0x14a8] sm:$0xff]
                %595 = vst [vmem:[%s151 + $0x6e8] sm:$0xff] %v594
                %v596 = vld [vmem:[%s150 + $0x14b0] sm:$0xff]
                %597 = vst [vmem:[%s151 + $0x6f0] sm:$0xff] %v596
                %v598 = vld [vmem:[%s150 + $0x14b8] sm:$0xff]
                %599 = vst [vmem:[%s151 + $0x6f8] sm:$0xff] %v598
                %v600 = vld [vmem:[%s150 + $0x1500] sm:$0xff]
                %601 = vst [vmem:[%s151 + $0x700] sm:$0xff] %v600
                %v602 = vld [vmem:[%s150 + $0x1508] sm:$0xff]
                %603 = vst [vmem:[%s151 + $0x708] sm:$0xff] %v602
                %v604 = vld [vmem:[%s150 + $0x1510] sm:$0xff]
                %605 = vst [vmem:[%s151 + $0x710] sm:$0xff] %v604
                %v606 = vld [vmem:[%s150 + $0x1518] sm:$0xff]
                %607 = vst [vmem:[%s151 + $0x718] sm:$0xff] %v606
                %v608 = vld [vmem:[%s150 + $0x1560] sm:$0xff]
                %609 = vst [vmem:[%s151 + $0x720] sm:$0xff] %v608
                %v610 = vld [vmem:[%s150 + $0x1568] sm:$0xff]
                %611 = vst [vmem:[%s151 + $0x728] sm:$0xff] %v610
                %v612 = vld [vmem:[%s150 + $0x1570] sm:$0xff]
                %613 = vst [vmem:[%s151 + $0x730] sm:$0xff] %v612
                %v614 = vld [vmem:[%s150 + $0x1578] sm:$0xff]
                %615 = vst [vmem:[%s151 + $0x738] sm:$0xff] %v614
                %v616 = vld [vmem:[%s150 + $0x15c0] sm:$0xff]
                %617 = vst [vmem:[%s151 + $0x740] sm:$0xff] %v616
                %v618 = vld [vmem:[%s150 + $0x15c8] sm:$0xff]
                %619 = vst [vmem:[%s151 + $0x748] sm:$0xff] %v618
                %v620 = vld [vmem:[%s150 + $0x15d0] sm:$0xff]
                %621 = vst [vmem:[%s151 + $0x750] sm:$0xff] %v620
                %v622 = vld [vmem:[%s150 + $0x15d8] sm:$0xff]
                %623 = vst [vmem:[%s151 + $0x758] sm:$0xff] %v622
                %v624 = vld [vmem:[%s150 + $0x1620] sm:$0xff]
                %625 = vst [vmem:[%s151 + $0x760] sm:$0xff] %v624
                %v626 = vld [vmem:[%s150 + $0x1628] sm:$0xff]
                %627 = vst [vmem:[%s151 + $0x768] sm:$0xff] %v626
                %v628 = vld [vmem:[%s150 + $0x1630] sm:$0xff]
                %629 = vst [vmem:[%s151 + $0x770] sm:$0xff] %v628
                %v630 = vld [vmem:[%s150 + $0x1638] sm:$0xff]
                %631 = vst [vmem:[%s151 + $0x778] sm:$0xff] %v630
                %v632 = vld [vmem:[%s150 + $0x1680] sm:$0xff]
                %633 = vst [vmem:[%s151 + $0x780] sm:$0xff] %v632
                %v634 = vld [vmem:[%s150 + $0x1688] sm:$0xff]
                %635 = vst [vmem:[%s151 + $0x788] sm:$0xff] %v634
                %v636 = vld [vmem:[%s150 + $0x1690] sm:$0xff]
                %637 = vst [vmem:[%s151 + $0x790] sm:$0xff] %v636
                %v638 = vld [vmem:[%s150 + $0x1698] sm:$0xff]
                %639 = vst [vmem:[%s151 + $0x798] sm:$0xff] %v638
                %v640 = vld [vmem:[%s150 + $0x16e0] sm:$0xff]
                %641 = vst [vmem:[%s151 + $0x7a0] sm:$0xff] %v640
                %v642 = vld [vmem:[%s150 + $0x16e8] sm:$0xff]
                %643 = vst [vmem:[%s151 + $0x7a8] sm:$0xff] %v642
                %v644 = vld [vmem:[%s150 + $0x16f0] sm:$0xff]
                %645 = vst [vmem:[%s151 + $0x7b0] sm:$0xff] %v644
                %v646 = vld [vmem:[%s150 + $0x16f8] sm:$0xff]
                %647 = vst [vmem:[%s151 + $0x7b8] sm:$0xff] %v646
                %v648 = vld [vmem:[%s150 + $0x1740] sm:$0xff]
                %649 = vst [vmem:[%s151 + $0x7c0] sm:$0xff] %v648
                %v650 = vld [vmem:[%s150 + $0x1748] sm:$0xff]
                %651 = vst [vmem:[%s151 + $0x7c8] sm:$0xff] %v650
                %v652 = vld [vmem:[%s150 + $0x1750] sm:$0xff]
                %653 = vst [vmem:[%s151 + $0x7d0] sm:$0xff] %v652
                %v654 = vld [vmem:[%s150 + $0x1758] sm:$0xff]
                %655 = vst [vmem:[%s151 + $0x7d8] sm:$0xff] %v654
                %v656 = vld [vmem:[%s150 + $0x17a0] sm:$0xff]
                %657 = vst [vmem:[%s151 + $0x7e0] sm:$0xff] %v656
                %v658 = vld [vmem:[%s150 + $0x17a8] sm:$0xff]
                %659 = vst [vmem:[%s151 + $0x7e8] sm:$0xff] %v658
                %v660 = vld [vmem:[%s150 + $0x17b0] sm:$0xff]
                %661 = vst [vmem:[%s151 + $0x7f0] sm:$0xff] %v660
                %v662 = vld [vmem:[%s150 + $0x17b8] sm:$0xff]
                %663 = vst [vmem:[%s151 + $0x7f8] sm:$0xff] %v662
                %v664 = vld [vmem:[%s150 + $0x1800] sm:$0xff]
                %665 = vst [vmem:[%s151 + $0x800] sm:$0xff] %v664
                %v666 = vld [vmem:[%s150 + $0x1808] sm:$0xff]
                %667 = vst [vmem:[%s151 + $0x808] sm:$0xff] %v666
                %v668 = vld [vmem:[%s150 + $0x1810] sm:$0xff]
                %669 = vst [vmem:[%s151 + $0x810] sm:$0xff] %v668
                %v670 = vld [vmem:[%s150 + $0x1818] sm:$0xff]
                %671 = vst [vmem:[%s151 + $0x818] sm:$0xff] %v670
                %v672 = vld [vmem:[%s150 + $0x1860] sm:$0xff]
                %673 = vst [vmem:[%s151 + $0x820] sm:$0xff] %v672
                %v674 = vld [vmem:[%s150 + $0x1868] sm:$0xff]
                %675 = vst [vmem:[%s151 + $0x828] sm:$0xff] %v674
                %v676 = vld [vmem:[%s150 + $0x1870] sm:$0xff]
                %677 = vst [vmem:[%s151 + $0x830] sm:$0xff] %v676
                %v678 = vld [vmem:[%s150 + $0x1878] sm:$0xff]
                %679 = vst [vmem:[%s151 + $0x838] sm:$0xff] %v678
                %v680 = vld [vmem:[%s150 + $0x18c0] sm:$0xff]
                %681 = vst [vmem:[%s151 + $0x840] sm:$0xff] %v680
                %v682 = vld [vmem:[%s150 + $0x18c8] sm:$0xff]
                %683 = vst [vmem:[%s151 + $0x848] sm:$0xff] %v682
                %v684 = vld [vmem:[%s150 + $0x18d0] sm:$0xff]
                %685 = vst [vmem:[%s151 + $0x850] sm:$0xff] %v684
                %v686 = vld [vmem:[%s150 + $0x18d8] sm:$0xff]
                %687 = vst [vmem:[%s151 + $0x858] sm:$0xff] %v686
                %v688 = vld [vmem:[%s150 + $0x1920] sm:$0xff]
                %689 = vst [vmem:[%s151 + $0x860] sm:$0xff] %v688
                %v690 = vld [vmem:[%s150 + $0x1928] sm:$0xff]
                %691 = vst [vmem:[%s151 + $0x868] sm:$0xff] %v690
                %v692 = vld [vmem:[%s150 + $0x1930] sm:$0xff]
                %693 = vst [vmem:[%s151 + $0x870] sm:$0xff] %v692
                %v694 = vld [vmem:[%s150 + $0x1938] sm:$0xff]
                %695 = vst [vmem:[%s151 + $0x878] sm:$0xff] %v694
                %v696 = vld [vmem:[%s150 + $0x1980] sm:$0xff]
                %697 = vst [vmem:[%s151 + $0x880] sm:$0xff] %v696
                %v698 = vld [vmem:[%s150 + $0x1988] sm:$0xff]
                %699 = vst [vmem:[%s151 + $0x888] sm:$0xff] %v698
                %v700 = vld [vmem:[%s150 + $0x1990] sm:$0xff]
                %701 = vst [vmem:[%s151 + $0x890] sm:$0xff] %v700
                %v702 = vld [vmem:[%s150 + $0x1998] sm:$0xff]
                %703 = vst [vmem:[%s151 + $0x898] sm:$0xff] %v702
                %v704 = vld [vmem:[%s150 + $0x19e0] sm:$0xff]
                %705 = vst [vmem:[%s151 + $0x8a0] sm:$0xff] %v704
                %v706 = vld [vmem:[%s150 + $0x19e8] sm:$0xff]
                %707 = vst [vmem:[%s151 + $0x8a8] sm:$0xff] %v706
                %v708 = vld [vmem:[%s150 + $0x19f0] sm:$0xff]
                %709 = vst [vmem:[%s151 + $0x8b0] sm:$0xff] %v708
                %v710 = vld [vmem:[%s150 + $0x19f8] sm:$0xff]
                %711 = vst [vmem:[%s151 + $0x8b8] sm:$0xff] %v710
                %v712 = vld [vmem:[%s150 + $0x1a40] sm:$0xff]
                %713 = vst [vmem:[%s151 + $0x8c0] sm:$0xff] %v712
                %v714 = vld [vmem:[%s150 + $0x1a48] sm:$0xff]
                %715 = vst [vmem:[%s151 + $0x8c8] sm:$0xff] %v714
                %v716 = vld [vmem:[%s150 + $0x1a50] sm:$0xff]
                %717 = vst [vmem:[%s151 + $0x8d0] sm:$0xff] %v716
                %v718 = vld [vmem:[%s150 + $0x1a58] sm:$0xff]
                %719 = vst [vmem:[%s151 + $0x8d8] sm:$0xff] %v718
                %v720 = vld [vmem:[%s150 + $0x1aa0] sm:$0xff]
                %721 = vst [vmem:[%s151 + $0x8e0] sm:$0xff] %v720
                %v722 = vld [vmem:[%s150 + $0x1aa8] sm:$0xff]
                %723 = vst [vmem:[%s151 + $0x8e8] sm:$0xff] %v722
                %v724 = vld [vmem:[%s150 + $0x1ab0] sm:$0xff]
                %725 = vst [vmem:[%s151 + $0x8f0] sm:$0xff] %v724
                %v726 = vld [vmem:[%s150 + $0x1ab8] sm:$0xff]
                %727 = vst [vmem:[%s151 + $0x8f8] sm:$0xff] %v726
                %v728 = vld [vmem:[%s150 + $0x1b00] sm:$0xff]
                %729 = vst [vmem:[%s151 + $0x900] sm:$0xff] %v728
                %v730 = vld [vmem:[%s150 + $0x1b08] sm:$0xff]
                %731 = vst [vmem:[%s151 + $0x908] sm:$0xff] %v730
                %v732 = vld [vmem:[%s150 + $0x1b10] sm:$0xff]
                %733 = vst [vmem:[%s151 + $0x910] sm:$0xff] %v732
                %v734 = vld [vmem:[%s150 + $0x1b18] sm:$0xff]
                %735 = vst [vmem:[%s151 + $0x918] sm:$0xff] %v734
                %v736 = vld [vmem:[%s150 + $0x1b60] sm:$0xff]
                %737 = vst [vmem:[%s151 + $0x920] sm:$0xff] %v736
                %v738 = vld [vmem:[%s150 + $0x1b68] sm:$0xff]
                %739 = vst [vmem:[%s151 + $0x928] sm:$0xff] %v738
                %v740 = vld [vmem:[%s150 + $0x1b70] sm:$0xff]
                %741 = vst [vmem:[%s151 + $0x930] sm:$0xff] %v740
                %v742 = vld [vmem:[%s150 + $0x1b78] sm:$0xff]
                %743 = vst [vmem:[%s151 + $0x938] sm:$0xff] %v742
                %v744 = vld [vmem:[%s150 + $0x1bc0] sm:$0xff]
                %745 = vst [vmem:[%s151 + $0x940] sm:$0xff] %v744
                %v746 = vld [vmem:[%s150 + $0x1bc8] sm:$0xff]
                %747 = vst [vmem:[%s151 + $0x948] sm:$0xff] %v746
                %v748 = vld [vmem:[%s150 + $0x1bd0] sm:$0xff]
                %749 = vst [vmem:[%s151 + $0x950] sm:$0xff] %v748
                %v750 = vld [vmem:[%s150 + $0x1bd8] sm:$0xff]
                %751 = vst [vmem:[%s151 + $0x958] sm:$0xff] %v750
                %v752 = vld [vmem:[%s150 + $0x1c20] sm:$0xff]
                %753 = vst [vmem:[%s151 + $0x960] sm:$0xff] %v752
                %v754 = vld [vmem:[%s150 + $0x1c28] sm:$0xff]
                %755 = vst [vmem:[%s151 + $0x968] sm:$0xff] %v754
                %v756 = vld [vmem:[%s150 + $0x1c30] sm:$0xff]
                %757 = vst [vmem:[%s151 + $0x970] sm:$0xff] %v756
                %v758 = vld [vmem:[%s150 + $0x1c38] sm:$0xff]
                %759 = vst [vmem:[%s151 + $0x978] sm:$0xff] %v758
                %v760 = vld [vmem:[%s150 + $0x1c80] sm:$0xff]
                %761 = vst [vmem:[%s151 + $0x980] sm:$0xff] %v760
                %v762 = vld [vmem:[%s150 + $0x1c88] sm:$0xff]
                %763 = vst [vmem:[%s151 + $0x988] sm:$0xff] %v762
                %v764 = vld [vmem:[%s150 + $0x1c90] sm:$0xff]
                %765 = vst [vmem:[%s151 + $0x990] sm:$0xff] %v764
                %v766 = vld [vmem:[%s150 + $0x1c98] sm:$0xff]
                %767 = vst [vmem:[%s151 + $0x998] sm:$0xff] %v766
                %v768 = vld [vmem:[%s150 + $0x1ce0] sm:$0xff]
                %769 = vst [vmem:[%s151 + $0x9a0] sm:$0xff] %v768
                %v770 = vld [vmem:[%s150 + $0x1ce8] sm:$0xff]
                %771 = vst [vmem:[%s151 + $0x9a8] sm:$0xff] %v770
                %v772 = vld [vmem:[%s150 + $0x1cf0] sm:$0xff]
                %773 = vst [vmem:[%s151 + $0x9b0] sm:$0xff] %v772
                %v774 = vld [vmem:[%s150 + $0x1cf8] sm:$0xff]
                %775 = vst [vmem:[%s151 + $0x9b8] sm:$0xff] %v774
                %v776 = vld [vmem:[%s150 + $0x1d40] sm:$0xff]
                %777 = vst [vmem:[%s151 + $0x9c0] sm:$0xff] %v776
                %v778 = vld [vmem:[%s150 + $0x1d48] sm:$0xff]
                %779 = vst [vmem:[%s151 + $0x9c8] sm:$0xff] %v778
                %v780 = vld [vmem:[%s150 + $0x1d50] sm:$0xff]
                %781 = vst [vmem:[%s151 + $0x9d0] sm:$0xff] %v780
                %v782 = vld [vmem:[%s150 + $0x1d58] sm:$0xff]
                %783 = vst [vmem:[%s151 + $0x9d8] sm:$0xff] %v782
                %v784 = vld [vmem:[%s150 + $0x1da0] sm:$0xff]
                %785 = vst [vmem:[%s151 + $0x9e0] sm:$0xff] %v784
                %v786 = vld [vmem:[%s150 + $0x1da8] sm:$0xff]
                %787 = vst [vmem:[%s151 + $0x9e8] sm:$0xff] %v786
                %v788 = vld [vmem:[%s150 + $0x1db0] sm:$0xff]
                %789 = vst [vmem:[%s151 + $0x9f0] sm:$0xff] %v788
                %v790 = vld [vmem:[%s150 + $0x1db8] sm:$0xff]
                %791 = vst [vmem:[%s151 + $0x9f8] sm:$0xff] %v790
                %v792 = vld [vmem:[%s150 + $0x1e00] sm:$0xff]
                %793 = vst [vmem:[%s151 + $0xa00] sm:$0xff] %v792
                %v794 = vld [vmem:[%s150 + $0x1e08] sm:$0xff]
                %795 = vst [vmem:[%s151 + $0xa08] sm:$0xff] %v794
                %v796 = vld [vmem:[%s150 + $0x1e10] sm:$0xff]
                %797 = vst [vmem:[%s151 + $0xa10] sm:$0xff] %v796
                %v798 = vld [vmem:[%s150 + $0x1e18] sm:$0xff]
                %799 = vst [vmem:[%s151 + $0xa18] sm:$0xff] %v798
                %v800 = vld [vmem:[%s150 + $0x1e60] sm:$0xff]
                %801 = vst [vmem:[%s151 + $0xa20] sm:$0xff] %v800
                %v802 = vld [vmem:[%s150 + $0x1e68] sm:$0xff]
                %803 = vst [vmem:[%s151 + $0xa28] sm:$0xff] %v802
                %v804 = vld [vmem:[%s150 + $0x1e70] sm:$0xff]
                %805 = vst [vmem:[%s151 + $0xa30] sm:$0xff] %v804
                %v806 = vld [vmem:[%s150 + $0x1e78] sm:$0xff]
                %807 = vst [vmem:[%s151 + $0xa38] sm:$0xff] %v806
                %v808 = vld [vmem:[%s150 + $0x1ec0] sm:$0xff]
                %809 = vst [vmem:[%s151 + $0xa40] sm:$0xff] %v808
                %v810 = vld [vmem:[%s150 + $0x1ec8] sm:$0xff]
                %811 = vst [vmem:[%s151 + $0xa48] sm:$0xff] %v810
                %v812 = vld [vmem:[%s150 + $0x1ed0] sm:$0xff]
                %813 = vst [vmem:[%s151 + $0xa50] sm:$0xff] %v812
                %v814 = vld [vmem:[%s150 + $0x1ed8] sm:$0xff]
                %815 = vst [vmem:[%s151 + $0xa58] sm:$0xff] %v814
                %v816 = vld [vmem:[%s150 + $0x1f20] sm:$0xff]
                %817 = vst [vmem:[%s151 + $0xa60] sm:$0xff] %v816
                %v818 = vld [vmem:[%s150 + $0x1f28] sm:$0xff]
                %819 = vst [vmem:[%s151 + $0xa68] sm:$0xff] %v818
                %v820 = vld [vmem:[%s150 + $0x1f30] sm:$0xff]
                %821 = vst [vmem:[%s151 + $0xa70] sm:$0xff] %v820
                %v822 = vld [vmem:[%s150 + $0x1f38] sm:$0xff]
                %823 = vst [vmem:[%s151 + $0xa78] sm:$0xff] %v822
                %v824 = vld [vmem:[%s150 + $0x1f80] sm:$0xff]
                %825 = vst [vmem:[%s151 + $0xa80] sm:$0xff] %v824
                %v826 = vld [vmem:[%s150 + $0x1f88] sm:$0xff]
                %827 = vst [vmem:[%s151 + $0xa88] sm:$0xff] %v826
                %v828 = vld [vmem:[%s150 + $0x1f90] sm:$0xff]
                %829 = vst [vmem:[%s151 + $0xa90] sm:$0xff] %v828
                %v830 = vld [vmem:[%s150 + $0x1f98] sm:$0xff]
                %831 = vst [vmem:[%s151 + $0xa98] sm:$0xff] %v830
                %v832 = vld [vmem:[%s150 + $0x1fe0] sm:$0xff]
                %833 = vst [vmem:[%s151 + $0xaa0] sm:$0xff] %v832
                %v834 = vld [vmem:[%s150 + $0x1fe8] sm:$0xff]
                %835 = vst [vmem:[%s151 + $0xaa8] sm:$0xff] %v834
                %v836 = vld [vmem:[%s150 + $0x1ff0] sm:$0xff]
                %837 = vst [vmem:[%s151 + $0xab0] sm:$0xff] %v836
                %v838 = vld [vmem:[%s150 + $0x1ff8] sm:$0xff]
                %839 = vst [vmem:[%s151 + $0xab8] sm:$0xff] %v838
                %v840 = vld [vmem:[%s150 + $0x2040] sm:$0xff]
                %841 = vst [vmem:[%s151 + $0xac0] sm:$0xff] %v840
                %v842 = vld [vmem:[%s150 + $0x2048] sm:$0xff]
                %843 = vst [vmem:[%s151 + $0xac8] sm:$0xff] %v842
                %v844 = vld [vmem:[%s150 + $0x2050] sm:$0xff]
                %845 = vst [vmem:[%s151 + $0xad0] sm:$0xff] %v844
                %v846 = vld [vmem:[%s150 + $0x2058] sm:$0xff]
                %847 = vst [vmem:[%s151 + $0xad8] sm:$0xff] %v846
                %v848 = vld [vmem:[%s150 + $0x20a0] sm:$0xff]
                %849 = vst [vmem:[%s151 + $0xae0] sm:$0xff] %v848
                %v850 = vld [vmem:[%s150 + $0x20a8] sm:$0xff]
                %851 = vst [vmem:[%s151 + $0xae8] sm:$0xff] %v850
                %v852 = vld [vmem:[%s150 + $0x20b0] sm:$0xff]
                %853 = vst [vmem:[%s151 + $0xaf0] sm:$0xff] %v852
                %v854 = vld [vmem:[%s150 + $0x20b8] sm:$0xff]
                %855 = vst [vmem:[%s151 + $0xaf8] sm:$0xff] %v854
                %v856 = vld [vmem:[%s150 + $0x2100] sm:$0xff]
                %857 = vst [vmem:[%s151 + $0xb00] sm:$0xff] %v856
                %v858 = vld [vmem:[%s150 + $0x2108] sm:$0xff]
                %859 = vst [vmem:[%s151 + $0xb08] sm:$0xff] %v858
                %v860 = vld [vmem:[%s150 + $0x2110] sm:$0xff]
                %861 = vst [vmem:[%s151 + $0xb10] sm:$0xff] %v860
                %v862 = vld [vmem:[%s150 + $0x2118] sm:$0xff]
                %863 = vst [vmem:[%s151 + $0xb18] sm:$0xff] %v862
                %v864 = vld [vmem:[%s150 + $0x2160] sm:$0xff]
                %865 = vst [vmem:[%s151 + $0xb20] sm:$0xff] %v864
                %v866 = vld [vmem:[%s150 + $0x2168] sm:$0xff]
                %867 = vst [vmem:[%s151 + $0xb28] sm:$0xff] %v866
                %v868 = vld [vmem:[%s150 + $0x2170] sm:$0xff]
                %869 = vst [vmem:[%s151 + $0xb30] sm:$0xff] %v868
                %v870 = vld [vmem:[%s150 + $0x2178] sm:$0xff]
                %871 = vst [vmem:[%s151 + $0xb38] sm:$0xff] %v870
                %v872 = vld [vmem:[%s150 + $0x21c0] sm:$0xff]
                %873 = vst [vmem:[%s151 + $0xb40] sm:$0xff] %v872
                %v874 = vld [vmem:[%s150 + $0x21c8] sm:$0xff]
                %875 = vst [vmem:[%s151 + $0xb48] sm:$0xff] %v874
                %v876 = vld [vmem:[%s150 + $0x21d0] sm:$0xff]
                %877 = vst [vmem:[%s151 + $0xb50] sm:$0xff] %v876
                %v878 = vld [vmem:[%s150 + $0x21d8] sm:$0xff]
                %879 = vst [vmem:[%s151 + $0xb58] sm:$0xff] %v878
                %v880 = vld [vmem:[%s150 + $0x2220] sm:$0xff]
                %881 = vst [vmem:[%s151 + $0xb60] sm:$0xff] %v880
                %v882 = vld [vmem:[%s150 + $0x2228] sm:$0xff]
                %883 = vst [vmem:[%s151 + $0xb68] sm:$0xff] %v882
                %v884 = vld [vmem:[%s150 + $0x2230] sm:$0xff]
                %885 = vst [vmem:[%s151 + $0xb70] sm:$0xff] %v884
                %v886 = vld [vmem:[%s150 + $0x2238] sm:$0xff]
                %887 = vst [vmem:[%s151 + $0xb78] sm:$0xff] %v886
                %v888 = vld [vmem:[%s150 + $0x2280] sm:$0xff]
                %889 = vst [vmem:[%s151 + $0xb80] sm:$0xff] %v888
                %v890 = vld [vmem:[%s150 + $0x2288] sm:$0xff]
                %891 = vst [vmem:[%s151 + $0xb88] sm:$0xff] %v890
                %v892 = vld [vmem:[%s150 + $0x2290] sm:$0xff]
                %893 = vst [vmem:[%s151 + $0xb90] sm:$0xff] %v892
                %v894 = vld [vmem:[%s150 + $0x2298] sm:$0xff]
                %895 = vst [vmem:[%s151 + $0xb98] sm:$0xff] %v894
                %v896 = vld [vmem:[%s150 + $0x22e0] sm:$0xff]
                %897 = vst [vmem:[%s151 + $0xba0] sm:$0xff] %v896
                %v898 = vld [vmem:[%s150 + $0x22e8] sm:$0xff]
                %899 = vst [vmem:[%s151 + $0xba8] sm:$0xff] %v898
                %v900 = vld [vmem:[%s150 + $0x22f0] sm:$0xff]
                %901 = vst [vmem:[%s151 + $0xbb0] sm:$0xff] %v900
                %v902 = vld [vmem:[%s150 + $0x22f8] sm:$0xff]
                %903 = vst [vmem:[%s151 + $0xbb8] sm:$0xff] %v902
                %v904 = vld [vmem:[%s150 + $0x2340] sm:$0xff]
                %905 = vst [vmem:[%s151 + $0xbc0] sm:$0xff] %v904
                %v906 = vld [vmem:[%s150 + $0x2348] sm:$0xff]
                %907 = vst [vmem:[%s151 + $0xbc8] sm:$0xff] %v906
                %v908 = vld [vmem:[%s150 + $0x2350] sm:$0xff]
                %909 = vst [vmem:[%s151 + $0xbd0] sm:$0xff] %v908
                %v910 = vld [vmem:[%s150 + $0x2358] sm:$0xff]
                %911 = vst [vmem:[%s151 + $0xbd8] sm:$0xff] %v910
                %v912 = vld [vmem:[%s150 + $0x23a0] sm:$0xff]
                %913 = vst [vmem:[%s151 + $0xbe0] sm:$0xff] %v912
                %v914 = vld [vmem:[%s150 + $0x23a8] sm:$0xff]
                %915 = vst [vmem:[%s151 + $0xbe8] sm:$0xff] %v914
                %v916 = vld [vmem:[%s150 + $0x23b0] sm:$0xff]
                %917 = vst [vmem:[%s151 + $0xbf0] sm:$0xff] %v916
                %v918 = vld [vmem:[%s150 + $0x23b8] sm:$0xff]
                %919 = vst [vmem:[%s151 + $0xbf8] sm:$0xff] %v918
                %v920 = vld [vmem:[%s150 + $0x2400] sm:$0xff]
                %921 = vst [vmem:[%s151 + $0xc00] sm:$0xff] %v920
                %v922 = vld [vmem:[%s150 + $0x2408] sm:$0xff]
                %923 = vst [vmem:[%s151 + $0xc08] sm:$0xff] %v922
                %v924 = vld [vmem:[%s150 + $0x2410] sm:$0xff]
                %925 = vst [vmem:[%s151 + $0xc10] sm:$0xff] %v924
                %v926 = vld [vmem:[%s150 + $0x2418] sm:$0xff]
                %927 = vst [vmem:[%s151 + $0xc18] sm:$0xff] %v926
                %v928 = vld [vmem:[%s150 + $0x2460] sm:$0xff]
                %929 = vst [vmem:[%s151 + $0xc20] sm:$0xff] %v928
                %v930 = vld [vmem:[%s150 + $0x2468] sm:$0xff]
                %931 = vst [vmem:[%s151 + $0xc28] sm:$0xff] %v930
                %v932 = vld [vmem:[%s150 + $0x2470] sm:$0xff]
                %933 = vst [vmem:[%s151 + $0xc30] sm:$0xff] %v932
                %v934 = vld [vmem:[%s150 + $0x2478] sm:$0xff]
                %935 = vst [vmem:[%s151 + $0xc38] sm:$0xff] %v934
                %v936 = vld [vmem:[%s150 + $0x24c0] sm:$0xff]
                %937 = vst [vmem:[%s151 + $0xc40] sm:$0xff] %v936
                %v938 = vld [vmem:[%s150 + $0x24c8] sm:$0xff]
                %939 = vst [vmem:[%s151 + $0xc48] sm:$0xff] %v938
                %v940 = vld [vmem:[%s150 + $0x24d0] sm:$0xff]
                %941 = vst [vmem:[%s151 + $0xc50] sm:$0xff] %v940
                %v942 = vld [vmem:[%s150 + $0x24d8] sm:$0xff]
                %943 = vst [vmem:[%s151 + $0xc58] sm:$0xff] %v942
                %v944 = vld [vmem:[%s150 + $0x2520] sm:$0xff]
                %945 = vst [vmem:[%s151 + $0xc60] sm:$0xff] %v944
                %v946 = vld [vmem:[%s150 + $0x2528] sm:$0xff]
                %947 = vst [vmem:[%s151 + $0xc68] sm:$0xff] %v946
                %v948 = vld [vmem:[%s150 + $0x2530] sm:$0xff]
                %949 = vst [vmem:[%s151 + $0xc70] sm:$0xff] %v948
                %v950 = vld [vmem:[%s150 + $0x2538] sm:$0xff]
                %951 = vst [vmem:[%s151 + $0xc78] sm:$0xff] %v950
                %v952 = vld [vmem:[%s150 + $0x2580] sm:$0xff]
                %953 = vst [vmem:[%s151 + $0xc80] sm:$0xff] %v952
                %v954 = vld [vmem:[%s150 + $0x2588] sm:$0xff]
                %955 = vst [vmem:[%s151 + $0xc88] sm:$0xff] %v954
                %v956 = vld [vmem:[%s150 + $0x2590] sm:$0xff]
                %957 = vst [vmem:[%s151 + $0xc90] sm:$0xff] %v956
                %v958 = vld [vmem:[%s150 + $0x2598] sm:$0xff]
                %959 = vst [vmem:[%s151 + $0xc98] sm:$0xff] %v958
                %v960 = vld [vmem:[%s150 + $0x25e0] sm:$0xff]
                %961 = vst [vmem:[%s151 + $0xca0] sm:$0xff] %v960
                %v962 = vld [vmem:[%s150 + $0x25e8] sm:$0xff]
                %963 = vst [vmem:[%s151 + $0xca8] sm:$0xff] %v962
                %v964 = vld [vmem:[%s150 + $0x25f0] sm:$0xff]
                %965 = vst [vmem:[%s151 + $0xcb0] sm:$0xff] %v964
                %v966 = vld [vmem:[%s150 + $0x25f8] sm:$0xff]
                %967 = vst [vmem:[%s151 + $0xcb8] sm:$0xff] %v966
                %v968 = vld [vmem:[%s150 + $0x2640] sm:$0xff]
                %969 = vst [vmem:[%s151 + $0xcc0] sm:$0xff] %v968
                %v970 = vld [vmem:[%s150 + $0x2648] sm:$0xff]
                %971 = vst [vmem:[%s151 + $0xcc8] sm:$0xff] %v970
                %v972 = vld [vmem:[%s150 + $0x2650] sm:$0xff]
                %973 = vst [vmem:[%s151 + $0xcd0] sm:$0xff] %v972
                %v974 = vld [vmem:[%s150 + $0x2658] sm:$0xff]
                %975 = vst [vmem:[%s151 + $0xcd8] sm:$0xff] %v974
                %v976 = vld [vmem:[%s150 + $0x26a0] sm:$0xff]
                %977 = vst [vmem:[%s151 + $0xce0] sm:$0xff] %v976
                %v978 = vld [vmem:[%s150 + $0x26a8] sm:$0xff]
                %979 = vst [vmem:[%s151 + $0xce8] sm:$0xff] %v978
                %v980 = vld [vmem:[%s150 + $0x26b0] sm:$0xff]
                %981 = vst [vmem:[%s151 + $0xcf0] sm:$0xff] %v980
                %v982 = vld [vmem:[%s150 + $0x26b8] sm:$0xff]
                %983 = vst [vmem:[%s151 + $0xcf8] sm:$0xff] %v982
                %v984 = vld [vmem:[%s150 + $0x2700] sm:$0xff]
                %985 = vst [vmem:[%s151 + $0xd00] sm:$0xff] %v984
                %v986 = vld [vmem:[%s150 + $0x2708] sm:$0xff]
                %987 = vst [vmem:[%s151 + $0xd08] sm:$0xff] %v986
                %v988 = vld [vmem:[%s150 + $0x2710] sm:$0xff]
                %989 = vst [vmem:[%s151 + $0xd10] sm:$0xff] %v988
                %v990 = vld [vmem:[%s150 + $0x2718] sm:$0xff]
                %991 = vst [vmem:[%s151 + $0xd18] sm:$0xff] %v990
                %v992 = vld [vmem:[%s150 + $0x2760] sm:$0xff]
                %993 = vst [vmem:[%s151 + $0xd20] sm:$0xff] %v992
                %v994 = vld [vmem:[%s150 + $0x2768] sm:$0xff]
                %995 = vst [vmem:[%s151 + $0xd28] sm:$0xff] %v994
                %v996 = vld [vmem:[%s150 + $0x2770] sm:$0xff]
                %997 = vst [vmem:[%s151 + $0xd30] sm:$0xff] %v996
                %v998 = vld [vmem:[%s150 + $0x2778] sm:$0xff]
                %999 = vst [vmem:[%s151 + $0xd38] sm:$0xff] %v998
                %v1000 = vld [vmem:[%s150 + $0x27c0] sm:$0xff]
                %1001 = vst [vmem:[%s151 + $0xd40] sm:$0xff] %v1000
                %v1002 = vld [vmem:[%s150 + $0x27c8] sm:$0xff]
                %1003 = vst [vmem:[%s151 + $0xd48] sm:$0xff] %v1002
                %v1004 = vld [vmem:[%s150 + $0x27d0] sm:$0xff]
                %1005 = vst [vmem:[%s151 + $0xd50] sm:$0xff] %v1004
                %v1006 = vld [vmem:[%s150 + $0x27d8] sm:$0xff]
                %1007 = vst [vmem:[%s151 + $0xd58] sm:$0xff] %v1006
                %v1008 = vld [vmem:[%s150 + $0x2820] sm:$0xff]
                %1009 = vst [vmem:[%s151 + $0xd60] sm:$0xff] %v1008
                %v1010 = vld [vmem:[%s150 + $0x2828] sm:$0xff]
                %1011 = vst [vmem:[%s151 + $0xd68] sm:$0xff] %v1010
                %v1012 = vld [vmem:[%s150 + $0x2830] sm:$0xff]
                %1013 = vst [vmem:[%s151 + $0xd70] sm:$0xff] %v1012
                %v1014 = vld [vmem:[%s150 + $0x2838] sm:$0xff]
                %1015 = vst [vmem:[%s151 + $0xd78] sm:$0xff] %v1014
                %v1016 = vld [vmem:[%s150 + $0x2880] sm:$0xff]
                %1017 = vst [vmem:[%s151 + $0xd80] sm:$0xff] %v1016
                %v1018 = vld [vmem:[%s150 + $0x2888] sm:$0xff]
                %1019 = vst [vmem:[%s151 + $0xd88] sm:$0xff] %v1018
                %v1020 = vld [vmem:[%s150 + $0x2890] sm:$0xff]
                %1021 = vst [vmem:[%s151 + $0xd90] sm:$0xff] %v1020
                %v1022 = vld [vmem:[%s150 + $0x2898] sm:$0xff]
                %1023 = vst [vmem:[%s151 + $0xd98] sm:$0xff] %v1022
                %v1024 = vld [vmem:[%s150 + $0x28e0] sm:$0xff]
                %1025 = vst [vmem:[%s151 + $0xda0] sm:$0xff] %v1024
                %v1026 = vld [vmem:[%s150 + $0x28e8] sm:$0xff]
                %1027 = vst [vmem:[%s151 + $0xda8] sm:$0xff] %v1026
                %v1028 = vld [vmem:[%s150 + $0x28f0] sm:$0xff]
                %1029 = vst [vmem:[%s151 + $0xdb0] sm:$0xff] %v1028
                %v1030 = vld [vmem:[%s150 + $0x28f8] sm:$0xff]
                %1031 = vst [vmem:[%s151 + $0xdb8] sm:$0xff] %v1030
                %v1032 = vld [vmem:[%s150 + $0x2940] sm:$0xff]
                %1033 = vst [vmem:[%s151 + $0xdc0] sm:$0xff] %v1032
                %v1034 = vld [vmem:[%s150 + $0x2948] sm:$0xff]
                %1035 = vst [vmem:[%s151 + $0xdc8] sm:$0xff] %v1034
                %v1036 = vld [vmem:[%s150 + $0x2950] sm:$0xff]
                %1037 = vst [vmem:[%s151 + $0xdd0] sm:$0xff] %v1036
                %v1038 = vld [vmem:[%s150 + $0x2958] sm:$0xff]
                %1039 = vst [vmem:[%s151 + $0xdd8] sm:$0xff] %v1038
                %v1040 = vld [vmem:[%s150 + $0x29a0] sm:$0xff]
                %1041 = vst [vmem:[%s151 + $0xde0] sm:$0xff] %v1040
                %v1042 = vld [vmem:[%s150 + $0x29a8] sm:$0xff]
                %1043 = vst [vmem:[%s151 + $0xde8] sm:$0xff] %v1042
                %v1044 = vld [vmem:[%s150 + $0x29b0] sm:$0xff]
                %1045 = vst [vmem:[%s151 + $0xdf0] sm:$0xff] %v1044
                %v1046 = vld [vmem:[%s150 + $0x29b8] sm:$0xff]
                %1047 = vst [vmem:[%s151 + $0xdf8] sm:$0xff] %v1046
                %v1048 = vld [vmem:[%s150 + $0x2a00] sm:$0xff]
                %1049 = vst [vmem:[%s151 + $0xe00] sm:$0xff] %v1048
                %v1050 = vld [vmem:[%s150 + $0x2a08] sm:$0xff]
                %1051 = vst [vmem:[%s151 + $0xe08] sm:$0xff] %v1050
                %v1052 = vld [vmem:[%s150 + $0x2a10] sm:$0xff]
                %1053 = vst [vmem:[%s151 + $0xe10] sm:$0xff] %v1052
                %v1054 = vld [vmem:[%s150 + $0x2a18] sm:$0xff]
                %1055 = vst [vmem:[%s151 + $0xe18] sm:$0xff] %v1054
                %v1056 = vld [vmem:[%s150 + $0x2a60] sm:$0xff]
                %1057 = vst [vmem:[%s151 + $0xe20] sm:$0xff] %v1056
                %v1058 = vld [vmem:[%s150 + $0x2a68] sm:$0xff]
                %1059 = vst [vmem:[%s151 + $0xe28] sm:$0xff] %v1058
                %v1060 = vld [vmem:[%s150 + $0x2a70] sm:$0xff]
                %1061 = vst [vmem:[%s151 + $0xe30] sm:$0xff] %v1060
                %v1062 = vld [vmem:[%s150 + $0x2a78] sm:$0xff]
                %1063 = vst [vmem:[%s151 + $0xe38] sm:$0xff] %v1062
                %v1064 = vld [vmem:[%s150 + $0x2ac0] sm:$0xff]
                %1065 = vst [vmem:[%s151 + $0xe40] sm:$0xff] %v1064
                %v1066 = vld [vmem:[%s150 + $0x2ac8] sm:$0xff]
                %1067 = vst [vmem:[%s151 + $0xe48] sm:$0xff] %v1066
                %v1068 = vld [vmem:[%s150 + $0x2ad0] sm:$0xff]
                %1069 = vst [vmem:[%s151 + $0xe50] sm:$0xff] %v1068
                %v1070 = vld [vmem:[%s150 + $0x2ad8] sm:$0xff]
                %1071 = vst [vmem:[%s151 + $0xe58] sm:$0xff] %v1070
                %v1072 = vld [vmem:[%s150 + $0x2b20] sm:$0xff]
                %1073 = vst [vmem:[%s151 + $0xe60] sm:$0xff] %v1072
                %v1074 = vld [vmem:[%s150 + $0x2b28] sm:$0xff]
                %1075 = vst [vmem:[%s151 + $0xe68] sm:$0xff] %v1074
                %v1076 = vld [vmem:[%s150 + $0x2b30] sm:$0xff]
                %1077 = vst [vmem:[%s151 + $0xe70] sm:$0xff] %v1076
                %v1078 = vld [vmem:[%s150 + $0x2b38] sm:$0xff]
                %1079 = vst [vmem:[%s151 + $0xe78] sm:$0xff] %v1078
                %v1080 = vld [vmem:[%s150 + $0x2b80] sm:$0xff]
                %1081 = vst [vmem:[%s151 + $0xe80] sm:$0xff] %v1080
                %v1082 = vld [vmem:[%s150 + $0x2b88] sm:$0xff]
                %1083 = vst [vmem:[%s151 + $0xe88] sm:$0xff] %v1082
                %v1084 = vld [vmem:[%s150 + $0x2b90] sm:$0xff]
                %1085 = vst [vmem:[%s151 + $0xe90] sm:$0xff] %v1084
                %v1086 = vld [vmem:[%s150 + $0x2b98] sm:$0xff]
                %1087 = vst [vmem:[%s151 + $0xe98] sm:$0xff] %v1086
                %v1088 = vld [vmem:[%s150 + $0x2be0] sm:$0xff]
                %1089 = vst [vmem:[%s151 + $0xea0] sm:$0xff] %v1088
                %v1090 = vld [vmem:[%s150 + $0x2be8] sm:$0xff]
                %1091 = vst [vmem:[%s151 + $0xea8] sm:$0xff] %v1090
                %v1092 = vld [vmem:[%s150 + $0x2bf0] sm:$0xff]
                %1093 = vst [vmem:[%s151 + $0xeb0] sm:$0xff] %v1092
                %v1094 = vld [vmem:[%s150 + $0x2bf8] sm:$0xff]
                %1095 = vst [vmem:[%s151 + $0xeb8] sm:$0xff] %v1094
                %v1096 = vld [vmem:[%s150 + $0x2c40] sm:$0xff]
                %1097 = vst [vmem:[%s151 + $0xec0] sm:$0xff] %v1096
                %v1098 = vld [vmem:[%s150 + $0x2c48] sm:$0xff]
                %1099 = vst [vmem:[%s151 + $0xec8] sm:$0xff] %v1098
                %v1100 = vld [vmem:[%s150 + $0x2c50] sm:$0xff]
                %1101 = vst [vmem:[%s151 + $0xed0] sm:$0xff] %v1100
                %v1102 = vld [vmem:[%s150 + $0x2c58] sm:$0xff]
                %1103 = vst [vmem:[%s151 + $0xed8] sm:$0xff] %v1102
                %v1104 = vld [vmem:[%s150 + $0x2ca0] sm:$0xff]
                %1105 = vst [vmem:[%s151 + $0xee0] sm:$0xff] %v1104
                %v1106 = vld [vmem:[%s150 + $0x2ca8] sm:$0xff]
                %1107 = vst [vmem:[%s151 + $0xee8] sm:$0xff] %v1106
                %v1108 = vld [vmem:[%s150 + $0x2cb0] sm:$0xff]
                %1109 = vst [vmem:[%s151 + $0xef0] sm:$0xff] %v1108
                %v1110 = vld [vmem:[%s150 + $0x2cb8] sm:$0xff]
                %1111 = vst [vmem:[%s151 + $0xef8] sm:$0xff] %v1110
                %v1112 = vld [vmem:[%s150 + $0x2d00] sm:$0xff]
                %1113 = vst [vmem:[%s151 + $0xf00] sm:$0xff] %v1112
                %v1114 = vld [vmem:[%s150 + $0x2d08] sm:$0xff]
                %1115 = vst [vmem:[%s151 + $0xf08] sm:$0xff] %v1114
                %v1116 = vld [vmem:[%s150 + $0x2d10] sm:$0xff]
                %1117 = vst [vmem:[%s151 + $0xf10] sm:$0xff] %v1116
                %v1118 = vld [vmem:[%s150 + $0x2d18] sm:$0xff]
                %1119 = vst [vmem:[%s151 + $0xf18] sm:$0xff] %v1118
                %v1120 = vld [vmem:[%s150 + $0x2d60] sm:$0xff]
                %1121 = vst [vmem:[%s151 + $0xf20] sm:$0xff] %v1120
                %v1122 = vld [vmem:[%s150 + $0x2d68] sm:$0xff]
                %1123 = vst [vmem:[%s151 + $0xf28] sm:$0xff] %v1122
                %v1124 = vld [vmem:[%s150 + $0x2d70] sm:$0xff]
                %1125 = vst [vmem:[%s151 + $0xf30] sm:$0xff] %v1124
                %v1126 = vld [vmem:[%s150 + $0x2d78] sm:$0xff]
                %1127 = vst [vmem:[%s151 + $0xf38] sm:$0xff] %v1126
                %v1128 = vld [vmem:[%s150 + $0x2dc0] sm:$0xff]
                %1129 = vst [vmem:[%s151 + $0xf40] sm:$0xff] %v1128
                %v1130 = vld [vmem:[%s150 + $0x2dc8] sm:$0xff]
                %1131 = vst [vmem:[%s151 + $0xf48] sm:$0xff] %v1130
                %v1132 = vld [vmem:[%s150 + $0x2dd0] sm:$0xff]
                %1133 = vst [vmem:[%s151 + $0xf50] sm:$0xff] %v1132
                %v1134 = vld [vmem:[%s150 + $0x2dd8] sm:$0xff]
                %1135 = vst [vmem:[%s151 + $0xf58] sm:$0xff] %v1134
                %v1136 = vld [vmem:[%s150 + $0x2e20] sm:$0xff]
                %1137 = vst [vmem:[%s151 + $0xf60] sm:$0xff] %v1136
                %v1138 = vld [vmem:[%s150 + $0x2e28] sm:$0xff]
                %1139 = vst [vmem:[%s151 + $0xf68] sm:$0xff] %v1138
                %v1140 = vld [vmem:[%s150 + $0x2e30] sm:$0xff]
                %1141 = vst [vmem:[%s151 + $0xf70] sm:$0xff] %v1140
                %v1142 = vld [vmem:[%s150 + $0x2e38] sm:$0xff]
                %1143 = vst [vmem:[%s151 + $0xf78] sm:$0xff] %v1142
                %v1144 = vld [vmem:[%s150 + $0x2e80] sm:$0xff]
                %1145 = vst [vmem:[%s151 + $0xf80] sm:$0xff] %v1144
                %v1146 = vld [vmem:[%s150 + $0x2e88] sm:$0xff]
                %1147 = vst [vmem:[%s151 + $0xf88] sm:$0xff] %v1146
                %v1148 = vld [vmem:[%s150 + $0x2e90] sm:$0xff]
                %1149 = vst [vmem:[%s151 + $0xf90] sm:$0xff] %v1148
                %v1150 = vld [vmem:[%s150 + $0x2e98] sm:$0xff]
                %1151 = vst [vmem:[%s151 + $0xf98] sm:$0xff] %v1150
                %v1152 = vld [vmem:[%s150 + $0x2ee0] sm:$0xff]
                %1153 = vst [vmem:[%s151 + $0xfa0] sm:$0xff] %v1152
                %v1154 = vld [vmem:[%s150 + $0x2ee8] sm:$0xff]
                %1155 = vst [vmem:[%s151 + $0xfa8] sm:$0xff] %v1154
                %v1156 = vld [vmem:[%s150 + $0x2ef0] sm:$0xff]
                %1157 = vst [vmem:[%s151 + $0xfb0] sm:$0xff] %v1156
                %v1158 = vld [vmem:[%s150 + $0x2ef8] sm:$0xff]
                %1159 = vst [vmem:[%s151 + $0xfb8] sm:$0xff] %v1158
                %v1160 = vld [vmem:[%s150 + $0x2f40] sm:$0xff]
                %1161 = vst [vmem:[%s151 + $0xfc0] sm:$0xff] %v1160
                %v1162 = vld [vmem:[%s150 + $0x2f48] sm:$0xff]
                %1163 = vst [vmem:[%s151 + $0xfc8] sm:$0xff] %v1162
                %v1164 = vld [vmem:[%s150 + $0x2f50] sm:$0xff]
                %1165 = vst [vmem:[%s151 + $0xfd0] sm:$0xff] %v1164
                %v1166 = vld [vmem:[%s150 + $0x2f58] sm:$0xff]
                %1167 = vst [vmem:[%s151 + $0xfd8] sm:$0xff] %v1166
                %v1168 = vld [vmem:[%s150 + $0x2fa0] sm:$0xff]
                %1169 = vst [vmem:[%s151 + $0xfe0] sm:$0xff] %v1168
                %v1170 = vld [vmem:[%s150 + $0x2fa8] sm:$0xff]
                %1171 = vst [vmem:[%s151 + $0xfe8] sm:$0xff] %v1170
                %v1172 = vld [vmem:[%s150 + $0x2fb0] sm:$0xff]
                %1173 = vst [vmem:[%s151 + $0xff0] sm:$0xff] %v1172
                %v1174 = vld [vmem:[%s150 + $0x2fb8] sm:$0xff]
                %1175 = vst [vmem:[%s151 + $0xff8] sm:$0xff] %v1174
                %v1176 = vld [vmem:[%s150 + $0x3000] sm:$0xff]
                %1177 = vst [vmem:[%s151 + $0x1000] sm:$0xff] %v1176
                %v1178 = vld [vmem:[%s150 + $0x3008] sm:$0xff]
                %1179 = vst [vmem:[%s151 + $0x1008] sm:$0xff] %v1178
                %v1180 = vld [vmem:[%s150 + $0x3010] sm:$0xff]
                %1181 = vst [vmem:[%s151 + $0x1010] sm:$0xff] %v1180
                %v1182 = vld [vmem:[%s150 + $0x3018] sm:$0xff]
                %1183 = vst [vmem:[%s151 + $0x1018] sm:$0xff] %v1182
                %v1184 = vld [vmem:[%s150 + $0x3060] sm:$0xff]
                %1185 = vst [vmem:[%s151 + $0x1020] sm:$0xff] %v1184
                %v1186 = vld [vmem:[%s150 + $0x3068] sm:$0xff]
                %1187 = vst [vmem:[%s151 + $0x1028] sm:$0xff] %v1186
                %v1188 = vld [vmem:[%s150 + $0x3070] sm:$0xff]
                %1189 = vst [vmem:[%s151 + $0x1030] sm:$0xff] %v1188
                %v1190 = vld [vmem:[%s150 + $0x3078] sm:$0xff]
                %1191 = vst [vmem:[%s151 + $0x1038] sm:$0xff] %v1190
                %v1192 = vld [vmem:[%s150 + $0x30c0] sm:$0xff]
                %1193 = vst [vmem:[%s151 + $0x1040] sm:$0xff] %v1192
                %v1194 = vld [vmem:[%s150 + $0x30c8] sm:$0xff]
                %1195 = vst [vmem:[%s151 + $0x1048] sm:$0xff] %v1194
                %v1196 = vld [vmem:[%s150 + $0x30d0] sm:$0xff]
                %1197 = vst [vmem:[%s151 + $0x1050] sm:$0xff] %v1196
                %v1198 = vld [vmem:[%s150 + $0x30d8] sm:$0xff]
                %1199 = vst [vmem:[%s151 + $0x1058] sm:$0xff] %v1198
                %v1200 = vld [vmem:[%s150 + $0x3120] sm:$0xff]
                %1201 = vst [vmem:[%s151 + $0x1060] sm:$0xff] %v1200
                %v1202 = vld [vmem:[%s150 + $0x3128] sm:$0xff]
                %1203 = vst [vmem:[%s151 + $0x1068] sm:$0xff] %v1202
                %v1204 = vld [vmem:[%s150 + $0x3130] sm:$0xff]
                %1205 = vst [vmem:[%s151 + $0x1070] sm:$0xff] %v1204
                %v1206 = vld [vmem:[%s150 + $0x3138] sm:$0xff]
                %1207 = vst [vmem:[%s151 + $0x1078] sm:$0xff] %v1206
                %v1208 = vld [vmem:[%s150 + $0x3180] sm:$0xff]
                %1209 = vst [vmem:[%s151 + $0x1080] sm:$0xff] %v1208
                %v1210 = vld [vmem:[%s150 + $0x3188] sm:$0xff]
                %1211 = vst [vmem:[%s151 + $0x1088] sm:$0xff] %v1210
                %v1212 = vld [vmem:[%s150 + $0x3190] sm:$0xff]
                %1213 = vst [vmem:[%s151 + $0x1090] sm:$0xff] %v1212
                %v1214 = vld [vmem:[%s150 + $0x3198] sm:$0xff]
                %1215 = vst [vmem:[%s151 + $0x1098] sm:$0xff] %v1214
                %v1216 = vld [vmem:[%s150 + $0x31e0] sm:$0xff]
                %1217 = vst [vmem:[%s151 + $0x10a0] sm:$0xff] %v1216
                %v1218 = vld [vmem:[%s150 + $0x31e8] sm:$0xff]
                %1219 = vst [vmem:[%s151 + $0x10a8] sm:$0xff] %v1218
                %v1220 = vld [vmem:[%s150 + $0x31f0] sm:$0xff]
                %1221 = vst [vmem:[%s151 + $0x10b0] sm:$0xff] %v1220
                %v1222 = vld [vmem:[%s150 + $0x31f8] sm:$0xff]
                %1223 = vst [vmem:[%s151 + $0x10b8] sm:$0xff] %v1222
                %v1224 = vld [vmem:[%s150 + $0x3240] sm:$0xff]
                %1225 = vst [vmem:[%s151 + $0x10c0] sm:$0xff] %v1224
                %v1226 = vld [vmem:[%s150 + $0x3248] sm:$0xff]
                %1227 = vst [vmem:[%s151 + $0x10c8] sm:$0xff] %v1226
                %v1228 = vld [vmem:[%s150 + $0x3250] sm:$0xff]
                %1229 = vst [vmem:[%s151 + $0x10d0] sm:$0xff] %v1228
                %v1230 = vld [vmem:[%s150 + $0x3258] sm:$0xff]
                %1231 = vst [vmem:[%s151 + $0x10d8] sm:$0xff] %v1230
                %v1232 = vld [vmem:[%s150 + $0x32a0] sm:$0xff]
                %1233 = vst [vmem:[%s151 + $0x10e0] sm:$0xff] %v1232
                %v1234 = vld [vmem:[%s150 + $0x32a8] sm:$0xff]
                %1235 = vst [vmem:[%s151 + $0x10e8] sm:$0xff] %v1234
                %v1236 = vld [vmem:[%s150 + $0x32b0] sm:$0xff]
                %1237 = vst [vmem:[%s151 + $0x10f0] sm:$0xff] %v1236
                %v1238 = vld [vmem:[%s150 + $0x32b8] sm:$0xff]
                %1239 = vst [vmem:[%s151 + $0x10f8] sm:$0xff] %v1238
                %v1240 = vld [vmem:[%s150 + $0x3300] sm:$0xff]
                %1241 = vst [vmem:[%s151 + $0x1100] sm:$0xff] %v1240
                %v1242 = vld [vmem:[%s150 + $0x3308] sm:$0xff]
                %1243 = vst [vmem:[%s151 + $0x1108] sm:$0xff] %v1242
                %v1244 = vld [vmem:[%s150 + $0x3310] sm:$0xff]
                %1245 = vst [vmem:[%s151 + $0x1110] sm:$0xff] %v1244
                %v1246 = vld [vmem:[%s150 + $0x3318] sm:$0xff]
                %1247 = vst [vmem:[%s151 + $0x1118] sm:$0xff] %v1246
                %v1248 = vld [vmem:[%s150 + $0x3360] sm:$0xff]
                %1249 = vst [vmem:[%s151 + $0x1120] sm:$0xff] %v1248
                %v1250 = vld [vmem:[%s150 + $0x3368] sm:$0xff]
                %1251 = vst [vmem:[%s151 + $0x1128] sm:$0xff] %v1250
                %v1252 = vld [vmem:[%s150 + $0x3370] sm:$0xff]
                %1253 = vst [vmem:[%s151 + $0x1130] sm:$0xff] %v1252
                %v1254 = vld [vmem:[%s150 + $0x3378] sm:$0xff]
                %1255 = vst [vmem:[%s151 + $0x1138] sm:$0xff] %v1254
                %v1256 = vld [vmem:[%s150 + $0x33c0] sm:$0xff]
                %1257 = vst [vmem:[%s151 + $0x1140] sm:$0xff] %v1256
                %v1258 = vld [vmem:[%s150 + $0x33c8] sm:$0xff]
                %1259 = vst [vmem:[%s151 + $0x1148] sm:$0xff] %v1258
                %v1260 = vld [vmem:[%s150 + $0x33d0] sm:$0xff]
                %1261 = vst [vmem:[%s151 + $0x1150] sm:$0xff] %v1260
                %v1262 = vld [vmem:[%s150 + $0x33d8] sm:$0xff]
                %1263 = vst [vmem:[%s151 + $0x1158] sm:$0xff] %v1262
                %v1264 = vld [vmem:[%s150 + $0x3420] sm:$0xff]
                %1265 = vst [vmem:[%s151 + $0x1160] sm:$0xff] %v1264
                %v1266 = vld [vmem:[%s150 + $0x3428] sm:$0xff]
                %1267 = vst [vmem:[%s151 + $0x1168] sm:$0xff] %v1266
                %v1268 = vld [vmem:[%s150 + $0x3430] sm:$0xff]
                %1269 = vst [vmem:[%s151 + $0x1170] sm:$0xff] %v1268
                %v1270 = vld [vmem:[%s150 + $0x3438] sm:$0xff]
                %1271 = vst [vmem:[%s151 + $0x1178] sm:$0xff] %v1270
                %v1272 = vld [vmem:[%s150 + $0x3480] sm:$0xff]
                %1273 = vst [vmem:[%s151 + $0x1180] sm:$0xff] %v1272
                %v1274 = vld [vmem:[%s150 + $0x3488] sm:$0xff]
                %1275 = vst [vmem:[%s151 + $0x1188] sm:$0xff] %v1274
                %v1276 = vld [vmem:[%s150 + $0x3490] sm:$0xff]
                %1277 = vst [vmem:[%s151 + $0x1190] sm:$0xff] %v1276
                %v1278 = vld [vmem:[%s150 + $0x3498] sm:$0xff]
                %1279 = vst [vmem:[%s151 + $0x1198] sm:$0xff] %v1278
                %v1280 = vld [vmem:[%s150 + $0x34e0] sm:$0xff]
                %1281 = vst [vmem:[%s151 + $0x11a0] sm:$0xff] %v1280
                %v1282 = vld [vmem:[%s150 + $0x34e8] sm:$0xff]
                %1283 = vst [vmem:[%s151 + $0x11a8] sm:$0xff] %v1282
                %v1284 = vld [vmem:[%s150 + $0x34f0] sm:$0xff]
                %1285 = vst [vmem:[%s151 + $0x11b0] sm:$0xff] %v1284
                %v1286 = vld [vmem:[%s150 + $0x34f8] sm:$0xff]
                %1287 = vst [vmem:[%s151 + $0x11b8] sm:$0xff] %v1286
                %v1288 = vld [vmem:[%s150 + $0x3540] sm:$0xff]
                %1289 = vst [vmem:[%s151 + $0x11c0] sm:$0xff] %v1288
                %v1290 = vld [vmem:[%s150 + $0x3548] sm:$0xff]
                %1291 = vst [vmem:[%s151 + $0x11c8] sm:$0xff] %v1290
                %v1292 = vld [vmem:[%s150 + $0x3550] sm:$0xff]
                %1293 = vst [vmem:[%s151 + $0x11d0] sm:$0xff] %v1292
                %v1294 = vld [vmem:[%s150 + $0x3558] sm:$0xff]
                %1295 = vst [vmem:[%s151 + $0x11d8] sm:$0xff] %v1294
                %v1296 = vld [vmem:[%s150 + $0x35a0] sm:$0xff]
                %1297 = vst [vmem:[%s151 + $0x11e0] sm:$0xff] %v1296
                %v1298 = vld [vmem:[%s150 + $0x35a8] sm:$0xff]
                %1299 = vst [vmem:[%s151 + $0x11e8] sm:$0xff] %v1298
                %v1300 = vld [vmem:[%s150 + $0x35b0] sm:$0xff]
                %1301 = vst [vmem:[%s151 + $0x11f0] sm:$0xff] %v1300
                %v1302 = vld [vmem:[%s150 + $0x35b8] sm:$0xff]
                %1303 = vst [vmem:[%s151 + $0x11f8] sm:$0xff] %v1302
                %v1304 = vld [vmem:[%s150 + $0x3600] sm:$0xff]
                %1305 = vst [vmem:[%s151 + $0x1200] sm:$0xff] %v1304
                %v1306 = vld [vmem:[%s150 + $0x3608] sm:$0xff]
                %1307 = vst [vmem:[%s151 + $0x1208] sm:$0xff] %v1306
                %v1308 = vld [vmem:[%s150 + $0x3610] sm:$0xff]
                %1309 = vst [vmem:[%s151 + $0x1210] sm:$0xff] %v1308
                %v1310 = vld [vmem:[%s150 + $0x3618] sm:$0xff]
                %1311 = vst [vmem:[%s151 + $0x1218] sm:$0xff] %v1310
                %v1312 = vld [vmem:[%s150 + $0x3660] sm:$0xff]
                %1313 = vst [vmem:[%s151 + $0x1220] sm:$0xff] %v1312
                %v1314 = vld [vmem:[%s150 + $0x3668] sm:$0xff]
                %1315 = vst [vmem:[%s151 + $0x1228] sm:$0xff] %v1314
                %v1316 = vld [vmem:[%s150 + $0x3670] sm:$0xff]
                %1317 = vst [vmem:[%s151 + $0x1230] sm:$0xff] %v1316
                %v1318 = vld [vmem:[%s150 + $0x3678] sm:$0xff]
                %1319 = vst [vmem:[%s151 + $0x1238] sm:$0xff] %v1318
                %v1320 = vld [vmem:[%s150 + $0x36c0] sm:$0xff]
                %1321 = vst [vmem:[%s151 + $0x1240] sm:$0xff] %v1320
                %v1322 = vld [vmem:[%s150 + $0x36c8] sm:$0xff]
                %1323 = vst [vmem:[%s151 + $0x1248] sm:$0xff] %v1322
                %v1324 = vld [vmem:[%s150 + $0x36d0] sm:$0xff]
                %1325 = vst [vmem:[%s151 + $0x1250] sm:$0xff] %v1324
                %v1326 = vld [vmem:[%s150 + $0x36d8] sm:$0xff]
                %1327 = vst [vmem:[%s151 + $0x1258] sm:$0xff] %v1326
                %v1328 = vld [vmem:[%s150 + $0x3720] sm:$0xff]
                %1329 = vst [vmem:[%s151 + $0x1260] sm:$0xff] %v1328
                %v1330 = vld [vmem:[%s150 + $0x3728] sm:$0xff]
                %1331 = vst [vmem:[%s151 + $0x1268] sm:$0xff] %v1330
                %v1332 = vld [vmem:[%s150 + $0x3730] sm:$0xff]
                %1333 = vst [vmem:[%s151 + $0x1270] sm:$0xff] %v1332
                %v1334 = vld [vmem:[%s150 + $0x3738] sm:$0xff]
                %1335 = vst [vmem:[%s151 + $0x1278] sm:$0xff] %v1334
                %v1336 = vld [vmem:[%s150 + $0x3780] sm:$0xff]
                %1337 = vst [vmem:[%s151 + $0x1280] sm:$0xff] %v1336
                %v1338 = vld [vmem:[%s150 + $0x3788] sm:$0xff]
                %1339 = vst [vmem:[%s151 + $0x1288] sm:$0xff] %v1338
                %v1340 = vld [vmem:[%s150 + $0x3790] sm:$0xff]
                %1341 = vst [vmem:[%s151 + $0x1290] sm:$0xff] %v1340
                %v1342 = vld [vmem:[%s150 + $0x3798] sm:$0xff]
                %1343 = vst [vmem:[%s151 + $0x1298] sm:$0xff] %v1342
                %v1344 = vld [vmem:[%s150 + $0x37e0] sm:$0xff]
                %1345 = vst [vmem:[%s151 + $0x12a0] sm:$0xff] %v1344
                %v1346 = vld [vmem:[%s150 + $0x37e8] sm:$0xff]
                %1347 = vst [vmem:[%s151 + $0x12a8] sm:$0xff] %v1346
                %v1348 = vld [vmem:[%s150 + $0x37f0] sm:$0xff]
                %1349 = vst [vmem:[%s151 + $0x12b0] sm:$0xff] %v1348
                %v1350 = vld [vmem:[%s150 + $0x37f8] sm:$0xff]
                %1351 = vst [vmem:[%s151 + $0x12b8] sm:$0xff] %v1350
                %v1352 = vld [vmem:[%s150 + $0x3840] sm:$0xff]
                %1353 = vst [vmem:[%s151 + $0x12c0] sm:$0xff] %v1352
                %v1354 = vld [vmem:[%s150 + $0x3848] sm:$0xff]
                %1355 = vst [vmem:[%s151 + $0x12c8] sm:$0xff] %v1354
                %v1356 = vld [vmem:[%s150 + $0x3850] sm:$0xff]
                %1357 = vst [vmem:[%s151 + $0x12d0] sm:$0xff] %v1356
                %v1358 = vld [vmem:[%s150 + $0x3858] sm:$0xff]
                %1359 = vst [vmem:[%s151 + $0x12d8] sm:$0xff] %v1358
                %v1360 = vld [vmem:[%s150 + $0x38a0] sm:$0xff]
                %1361 = vst [vmem:[%s151 + $0x12e0] sm:$0xff] %v1360
                %v1362 = vld [vmem:[%s150 + $0x38a8] sm:$0xff]
                %1363 = vst [vmem:[%s151 + $0x12e8] sm:$0xff] %v1362
                %v1364 = vld [vmem:[%s150 + $0x38b0] sm:$0xff]
                %1365 = vst [vmem:[%s151 + $0x12f0] sm:$0xff] %v1364
                %v1366 = vld [vmem:[%s150 + $0x38b8] sm:$0xff]
                %1367 = vst [vmem:[%s151 + $0x12f8] sm:$0xff] %v1366
                %v1368 = vld [vmem:[%s150 + $0x3900] sm:$0xff]
                %1369 = vst [vmem:[%s151 + $0x1300] sm:$0xff] %v1368
                %v1370 = vld [vmem:[%s150 + $0x3908] sm:$0xff]
                %1371 = vst [vmem:[%s151 + $0x1308] sm:$0xff] %v1370
                %v1372 = vld [vmem:[%s150 + $0x3910] sm:$0xff]
                %1373 = vst [vmem:[%s151 + $0x1310] sm:$0xff] %v1372
                %v1374 = vld [vmem:[%s150 + $0x3918] sm:$0xff]
                %1375 = vst [vmem:[%s151 + $0x1318] sm:$0xff] %v1374
                %v1376 = vld [vmem:[%s150 + $0x3960] sm:$0xff]
                %1377 = vst [vmem:[%s151 + $0x1320] sm:$0xff] %v1376
                %v1378 = vld [vmem:[%s150 + $0x3968] sm:$0xff]
                %1379 = vst [vmem:[%s151 + $0x1328] sm:$0xff] %v1378
                %v1380 = vld [vmem:[%s150 + $0x3970] sm:$0xff]
                %1381 = vst [vmem:[%s151 + $0x1330] sm:$0xff] %v1380
                %v1382 = vld [vmem:[%s150 + $0x3978] sm:$0xff]
                %1383 = vst [vmem:[%s151 + $0x1338] sm:$0xff] %v1382
                %v1384 = vld [vmem:[%s150 + $0x39c0] sm:$0xff]
                %1385 = vst [vmem:[%s151 + $0x1340] sm:$0xff] %v1384
                %v1386 = vld [vmem:[%s150 + $0x39c8] sm:$0xff]
                %1387 = vst [vmem:[%s151 + $0x1348] sm:$0xff] %v1386
                %v1388 = vld [vmem:[%s150 + $0x39d0] sm:$0xff]
                %1389 = vst [vmem:[%s151 + $0x1350] sm:$0xff] %v1388
                %v1390 = vld [vmem:[%s150 + $0x39d8] sm:$0xff]
                %1391 = vst [vmem:[%s151 + $0x1358] sm:$0xff] %v1390
                %v1392 = vld [vmem:[%s150 + $0x3a20] sm:$0xff]
                %1393 = vst [vmem:[%s151 + $0x1360] sm:$0xff] %v1392
                %v1394 = vld [vmem:[%s150 + $0x3a28] sm:$0xff]
                %1395 = vst [vmem:[%s151 + $0x1368] sm:$0xff] %v1394
                %v1396 = vld [vmem:[%s150 + $0x3a30] sm:$0xff]
                %1397 = vst [vmem:[%s151 + $0x1370] sm:$0xff] %v1396
                %v1398 = vld [vmem:[%s150 + $0x3a38] sm:$0xff]
                %1399 = vst [vmem:[%s151 + $0x1378] sm:$0xff] %v1398
                %v1400 = vld [vmem:[%s150 + $0x3a80] sm:$0xff]
                %1401 = vst [vmem:[%s151 + $0x1380] sm:$0xff] %v1400
                %v1402 = vld [vmem:[%s150 + $0x3a88] sm:$0xff]
                %1403 = vst [vmem:[%s151 + $0x1388] sm:$0xff] %v1402
                %v1404 = vld [vmem:[%s150 + $0x3a90] sm:$0xff]
                %1405 = vst [vmem:[%s151 + $0x1390] sm:$0xff] %v1404
                %v1406 = vld [vmem:[%s150 + $0x3a98] sm:$0xff]
                %1407 = vst [vmem:[%s151 + $0x1398] sm:$0xff] %v1406
                %v1408 = vld [vmem:[%s150 + $0x3ae0] sm:$0xff]
                %1409 = vst [vmem:[%s151 + $0x13a0] sm:$0xff] %v1408
                %v1410 = vld [vmem:[%s150 + $0x3ae8] sm:$0xff]
                %1411 = vst [vmem:[%s151 + $0x13a8] sm:$0xff] %v1410
                %v1412 = vld [vmem:[%s150 + $0x3af0] sm:$0xff]
                %1413 = vst [vmem:[%s151 + $0x13b0] sm:$0xff] %v1412
                %v1414 = vld [vmem:[%s150 + $0x3af8] sm:$0xff]
                %1415 = vst [vmem:[%s151 + $0x13b8] sm:$0xff] %v1414
                %v1416 = vld [vmem:[%s150 + $0x3b40] sm:$0xff]
                %1417 = vst [vmem:[%s151 + $0x13c0] sm:$0xff] %v1416
                %v1418 = vld [vmem:[%s150 + $0x3b48] sm:$0xff]
                %1419 = vst [vmem:[%s151 + $0x13c8] sm:$0xff] %v1418
                %v1420 = vld [vmem:[%s150 + $0x3b50] sm:$0xff]
                %1421 = vst [vmem:[%s151 + $0x13d0] sm:$0xff] %v1420
                %v1422 = vld [vmem:[%s150 + $0x3b58] sm:$0xff]
                %1423 = vst [vmem:[%s151 + $0x13d8] sm:$0xff] %v1422
                %v1424 = vld [vmem:[%s150 + $0x3ba0] sm:$0xff]
                %1425 = vst [vmem:[%s151 + $0x13e0] sm:$0xff] %v1424
                %v1426 = vld [vmem:[%s150 + $0x3ba8] sm:$0xff]
                %1427 = vst [vmem:[%s151 + $0x13e8] sm:$0xff] %v1426
                %v1428 = vld [vmem:[%s150 + $0x3bb0] sm:$0xff]
                %1429 = vst [vmem:[%s151 + $0x13f0] sm:$0xff] %v1428
                %v1430 = vld [vmem:[%s150 + $0x3bb8] sm:$0xff]
                %1431 = vst [vmem:[%s151 + $0x13f8] sm:$0xff] %v1430
                %v1432 = vld [vmem:[%s150 + $0x3c00] sm:$0xff]
                %1433 = vst [vmem:[%s151 + $0x1400] sm:$0xff] %v1432
                %v1434 = vld [vmem:[%s150 + $0x3c08] sm:$0xff]
                %1435 = vst [vmem:[%s151 + $0x1408] sm:$0xff] %v1434
                %v1436 = vld [vmem:[%s150 + $0x3c10] sm:$0xff]
                %1437 = vst [vmem:[%s151 + $0x1410] sm:$0xff] %v1436
                %v1438 = vld [vmem:[%s150 + $0x3c18] sm:$0xff]
                %1439 = vst [vmem:[%s151 + $0x1418] sm:$0xff] %v1438
                %v1440 = vld [vmem:[%s150 + $0x3c60] sm:$0xff]
                %1441 = vst [vmem:[%s151 + $0x1420] sm:$0xff] %v1440
                %v1442 = vld [vmem:[%s150 + $0x3c68] sm:$0xff]
                %1443 = vst [vmem:[%s151 + $0x1428] sm:$0xff] %v1442
                %v1444 = vld [vmem:[%s150 + $0x3c70] sm:$0xff]
                %1445 = vst [vmem:[%s151 + $0x1430] sm:$0xff] %v1444
                %v1446 = vld [vmem:[%s150 + $0x3c78] sm:$0xff]
                %1447 = vst [vmem:[%s151 + $0x1438] sm:$0xff] %v1446
                %v1448 = vld [vmem:[%s150 + $0x3cc0] sm:$0xff]
                %1449 = vst [vmem:[%s151 + $0x1440] sm:$0xff] %v1448
                %v1450 = vld [vmem:[%s150 + $0x3cc8] sm:$0xff]
                %1451 = vst [vmem:[%s151 + $0x1448] sm:$0xff] %v1450
                %v1452 = vld [vmem:[%s150 + $0x3cd0] sm:$0xff]
                %1453 = vst [vmem:[%s151 + $0x1450] sm:$0xff] %v1452
                %v1454 = vld [vmem:[%s150 + $0x3cd8] sm:$0xff]
                %1455 = vst [vmem:[%s151 + $0x1458] sm:$0xff] %v1454
                %v1456 = vld [vmem:[%s150 + $0x3d20] sm:$0xff]
                %1457 = vst [vmem:[%s151 + $0x1460] sm:$0xff] %v1456
                %v1458 = vld [vmem:[%s150 + $0x3d28] sm:$0xff]
                %1459 = vst [vmem:[%s151 + $0x1468] sm:$0xff] %v1458
                %v1460 = vld [vmem:[%s150 + $0x3d30] sm:$0xff]
                %1461 = vst [vmem:[%s151 + $0x1470] sm:$0xff] %v1460
                %v1462 = vld [vmem:[%s150 + $0x3d38] sm:$0xff]
                %1463 = vst [vmem:[%s151 + $0x1478] sm:$0xff] %v1462
                %v1464 = vld [vmem:[%s150 + $0x3d80] sm:$0xff]
                %1465 = vst [vmem:[%s151 + $0x1480] sm:$0xff] %v1464
                %v1466 = vld [vmem:[%s150 + $0x3d88] sm:$0xff]
                %1467 = vst [vmem:[%s151 + $0x1488] sm:$0xff] %v1466
                %v1468 = vld [vmem:[%s150 + $0x3d90] sm:$0xff]
                %1469 = vst [vmem:[%s151 + $0x1490] sm:$0xff] %v1468
                %v1470 = vld [vmem:[%s150 + $0x3d98] sm:$0xff]
                %1471 = vst [vmem:[%s151 + $0x1498] sm:$0xff] %v1470
                %v1472 = vld [vmem:[%s150 + $0x3de0] sm:$0xff]
                %1473 = vst [vmem:[%s151 + $0x14a0] sm:$0xff] %v1472
                %v1474 = vld [vmem:[%s150 + $0x3de8] sm:$0xff]
                %1475 = vst [vmem:[%s151 + $0x14a8] sm:$0xff] %v1474
                %v1476 = vld [vmem:[%s150 + $0x3df0] sm:$0xff]
                %1477 = vst [vmem:[%s151 + $0x14b0] sm:$0xff] %v1476
                %v1478 = vld [vmem:[%s150 + $0x3df8] sm:$0xff]
                %1479 = vst [vmem:[%s151 + $0x14b8] sm:$0xff] %v1478
                %v1480 = vld [vmem:[%s150 + $0x3e40] sm:$0xff]
                %1481 = vst [vmem:[%s151 + $0x14c0] sm:$0xff] %v1480
                %v1482 = vld [vmem:[%s150 + $0x3e48] sm:$0xff]
                %1483 = vst [vmem:[%s151 + $0x14c8] sm:$0xff] %v1482
                %v1484 = vld [vmem:[%s150 + $0x3e50] sm:$0xff]
                %1485 = vst [vmem:[%s151 + $0x14d0] sm:$0xff] %v1484
                %v1486 = vld [vmem:[%s150 + $0x3e58] sm:$0xff]
                %1487 = vst [vmem:[%s151 + $0x14d8] sm:$0xff] %v1486
                %v1488 = vld [vmem:[%s150 + $0x3ea0] sm:$0xff]
                %1489 = vst [vmem:[%s151 + $0x14e0] sm:$0xff] %v1488
                %v1490 = vld [vmem:[%s150 + $0x3ea8] sm:$0xff]
                %1491 = vst [vmem:[%s151 + $0x14e8] sm:$0xff] %v1490
                %v1492 = vld [vmem:[%s150 + $0x3eb0] sm:$0xff]
                %1493 = vst [vmem:[%s151 + $0x14f0] sm:$0xff] %v1492
                %v1494 = vld [vmem:[%s150 + $0x3eb8] sm:$0xff]
                %1495 = vst [vmem:[%s151 + $0x14f8] sm:$0xff] %v1494
                %v1496 = vld [vmem:[%s150 + $0x3f00] sm:$0xff]
                %1497 = vst [vmem:[%s151 + $0x1500] sm:$0xff] %v1496
                %v1498 = vld [vmem:[%s150 + $0x3f08] sm:$0xff]
                %1499 = vst [vmem:[%s151 + $0x1508] sm:$0xff] %v1498
                %v1500 = vld [vmem:[%s150 + $0x3f10] sm:$0xff]
                %1501 = vst [vmem:[%s151 + $0x1510] sm:$0xff] %v1500
                %v1502 = vld [vmem:[%s150 + $0x3f18] sm:$0xff]
                %1503 = vst [vmem:[%s151 + $0x1518] sm:$0xff] %v1502
                %v1504 = vld [vmem:[%s150 + $0x3f60] sm:$0xff]
                %1505 = vst [vmem:[%s151 + $0x1520] sm:$0xff] %v1504
                %v1506 = vld [vmem:[%s150 + $0x3f68] sm:$0xff]
                %1507 = vst [vmem:[%s151 + $0x1528] sm:$0xff] %v1506
                %v1508 = vld [vmem:[%s150 + $0x3f70] sm:$0xff]
                %1509 = vst [vmem:[%s151 + $0x1530] sm:$0xff] %v1508
                %v1510 = vld [vmem:[%s150 + $0x3f78] sm:$0xff]
                %1511 = vst [vmem:[%s151 + $0x1538] sm:$0xff] %v1510
                %v1512 = vld [vmem:[%s150 + $0x3fc0] sm:$0xff]
                %1513 = vst [vmem:[%s151 + $0x1540] sm:$0xff] %v1512
                %v1514 = vld [vmem:[%s150 + $0x3fc8] sm:$0xff]
                %1515 = vst [vmem:[%s151 + $0x1548] sm:$0xff] %v1514
                %v1516 = vld [vmem:[%s150 + $0x3fd0] sm:$0xff]
                %1517 = vst [vmem:[%s151 + $0x1550] sm:$0xff] %v1516
                %v1518 = vld [vmem:[%s150 + $0x3fd8] sm:$0xff]
                %1519 = vst [vmem:[%s151 + $0x1558] sm:$0xff] %v1518
                %v1520 = vld [vmem:[%s150 + $0x4020] sm:$0xff]
                %1521 = vst [vmem:[%s151 + $0x1560] sm:$0xff] %v1520
                %v1522 = vld [vmem:[%s150 + $0x4028] sm:$0xff]
                %1523 = vst [vmem:[%s151 + $0x1568] sm:$0xff] %v1522
                %v1524 = vld [vmem:[%s150 + $0x4030] sm:$0xff]
                %1525 = vst [vmem:[%s151 + $0x1570] sm:$0xff] %v1524
                %v1526 = vld [vmem:[%s150 + $0x4038] sm:$0xff]
                %1527 = vst [vmem:[%s151 + $0x1578] sm:$0xff] %v1526
                %v1528 = vld [vmem:[%s150 + $0x4080] sm:$0xff]
                %1529 = vst [vmem:[%s151 + $0x1580] sm:$0xff] %v1528
                %v1530 = vld [vmem:[%s150 + $0x4088] sm:$0xff]
                %1531 = vst [vmem:[%s151 + $0x1588] sm:$0xff] %v1530
                %v1532 = vld [vmem:[%s150 + $0x4090] sm:$0xff]
                %1533 = vst [vmem:[%s151 + $0x1590] sm:$0xff] %v1532
                %v1534 = vld [vmem:[%s150 + $0x4098] sm:$0xff]
                %1535 = vst [vmem:[%s151 + $0x1598] sm:$0xff] %v1534
                %v1536 = vld [vmem:[%s150 + $0x40e0] sm:$0xff]
                %1537 = vst [vmem:[%s151 + $0x15a0] sm:$0xff] %v1536
                %v1538 = vld [vmem:[%s150 + $0x40e8] sm:$0xff]
                %1539 = vst [vmem:[%s151 + $0x15a8] sm:$0xff] %v1538
                %v1540 = vld [vmem:[%s150 + $0x40f0] sm:$0xff]
                %1541 = vst [vmem:[%s151 + $0x15b0] sm:$0xff] %v1540
                %v1542 = vld [vmem:[%s150 + $0x40f8] sm:$0xff]
                %1543 = vst [vmem:[%s151 + $0x15b8] sm:$0xff] %v1542
                %v1544 = vld [vmem:[%s150 + $0x4140] sm:$0xff]
                %1545 = vst [vmem:[%s151 + $0x15c0] sm:$0xff] %v1544
                %v1546 = vld [vmem:[%s150 + $0x4148] sm:$0xff]
                %1547 = vst [vmem:[%s151 + $0x15c8] sm:$0xff] %v1546
                %v1548 = vld [vmem:[%s150 + $0x4150] sm:$0xff]
                %1549 = vst [vmem:[%s151 + $0x15d0] sm:$0xff] %v1548
                %v1550 = vld [vmem:[%s150 + $0x4158] sm:$0xff]
                %1551 = vst [vmem:[%s151 + $0x15d8] sm:$0xff] %v1550
                %v1552 = vld [vmem:[%s150 + $0x41a0] sm:$0xff]
                %1553 = vst [vmem:[%s151 + $0x15e0] sm:$0xff] %v1552
                %v1554 = vld [vmem:[%s150 + $0x41a8] sm:$0xff]
                %1555 = vst [vmem:[%s151 + $0x15e8] sm:$0xff] %v1554
                %v1556 = vld [vmem:[%s150 + $0x41b0] sm:$0xff]
                %1557 = vst [vmem:[%s151 + $0x15f0] sm:$0xff] %v1556
                %v1558 = vld [vmem:[%s150 + $0x41b8] sm:$0xff]
                %1559 = vst [vmem:[%s151 + $0x15f8] sm:$0xff] %v1558
                %v1560 = vld [vmem:[%s150 + $0x4200] sm:$0xff]
                %1561 = vst [vmem:[%s151 + $0x1600] sm:$0xff] %v1560
                %v1562 = vld [vmem:[%s150 + $0x4208] sm:$0xff]
                %1563 = vst [vmem:[%s151 + $0x1608] sm:$0xff] %v1562
                %v1564 = vld [vmem:[%s150 + $0x4210] sm:$0xff]
                %1565 = vst [vmem:[%s151 + $0x1610] sm:$0xff] %v1564
                %v1566 = vld [vmem:[%s150 + $0x4218] sm:$0xff]
                %1567 = vst [vmem:[%s151 + $0x1618] sm:$0xff] %v1566
                %v1568 = vld [vmem:[%s150 + $0x4260] sm:$0xff]
                %1569 = vst [vmem:[%s151 + $0x1620] sm:$0xff] %v1568
                %v1570 = vld [vmem:[%s150 + $0x4268] sm:$0xff]
                %1571 = vst [vmem:[%s151 + $0x1628] sm:$0xff] %v1570
                %v1572 = vld [vmem:[%s150 + $0x4270] sm:$0xff]
                %1573 = vst [vmem:[%s151 + $0x1630] sm:$0xff] %v1572
                %v1574 = vld [vmem:[%s150 + $0x4278] sm:$0xff]
                %1575 = vst [vmem:[%s151 + $0x1638] sm:$0xff] %v1574
                %v1576 = vld [vmem:[%s150 + $0x42c0] sm:$0xff]
                %1577 = vst [vmem:[%s151 + $0x1640] sm:$0xff] %v1576
                %v1578 = vld [vmem:[%s150 + $0x42c8] sm:$0xff]
                %1579 = vst [vmem:[%s151 + $0x1648] sm:$0xff] %v1578
                %v1580 = vld [vmem:[%s150 + $0x42d0] sm:$0xff]
                %1581 = vst [vmem:[%s151 + $0x1650] sm:$0xff] %v1580
                %v1582 = vld [vmem:[%s150 + $0x42d8] sm:$0xff]
                %1583 = vst [vmem:[%s151 + $0x1658] sm:$0xff] %v1582
                %v1584 = vld [vmem:[%s150 + $0x4320] sm:$0xff]
                %1585 = vst [vmem:[%s151 + $0x1660] sm:$0xff] %v1584
                %v1586 = vld [vmem:[%s150 + $0x4328] sm:$0xff]
                %1587 = vst [vmem:[%s151 + $0x1668] sm:$0xff] %v1586
                %v1588 = vld [vmem:[%s150 + $0x4330] sm:$0xff]
                %1589 = vst [vmem:[%s151 + $0x1670] sm:$0xff] %v1588
                %v1590 = vld [vmem:[%s150 + $0x4338] sm:$0xff]
                %1591 = vst [vmem:[%s151 + $0x1678] sm:$0xff] %v1590
                %v1592 = vld [vmem:[%s150 + $0x4380] sm:$0xff]
                %1593 = vst [vmem:[%s151 + $0x1680] sm:$0xff] %v1592
                %v1594 = vld [vmem:[%s150 + $0x4388] sm:$0xff]
                %1595 = vst [vmem:[%s151 + $0x1688] sm:$0xff] %v1594
                %v1596 = vld [vmem:[%s150 + $0x4390] sm:$0xff]
                %1597 = vst [vmem:[%s151 + $0x1690] sm:$0xff] %v1596
                %v1598 = vld [vmem:[%s150 + $0x4398] sm:$0xff]
                %1599 = vst [vmem:[%s151 + $0x1698] sm:$0xff] %v1598
                %v1600 = vld [vmem:[%s150 + $0x43e0] sm:$0xff]
                %1601 = vst [vmem:[%s151 + $0x16a0] sm:$0xff] %v1600
                %v1602 = vld [vmem:[%s150 + $0x43e8] sm:$0xff]
                %1603 = vst [vmem:[%s151 + $0x16a8] sm:$0xff] %v1602
                %v1604 = vld [vmem:[%s150 + $0x43f0] sm:$0xff]
                %1605 = vst [vmem:[%s151 + $0x16b0] sm:$0xff] %v1604
                %v1606 = vld [vmem:[%s150 + $0x43f8] sm:$0xff]
                %1607 = vst [vmem:[%s151 + $0x16b8] sm:$0xff] %v1606
                %v1608 = vld [vmem:[%s150 + $0x4440] sm:$0xff]
                %1609 = vst [vmem:[%s151 + $0x16c0] sm:$0xff] %v1608
                %v1610 = vld [vmem:[%s150 + $0x4448] sm:$0xff]
                %1611 = vst [vmem:[%s151 + $0x16c8] sm:$0xff] %v1610
                %v1612 = vld [vmem:[%s150 + $0x4450] sm:$0xff]
                %1613 = vst [vmem:[%s151 + $0x16d0] sm:$0xff] %v1612
                %v1614 = vld [vmem:[%s150 + $0x4458] sm:$0xff]
                %1615 = vst [vmem:[%s151 + $0x16d8] sm:$0xff] %v1614
                %v1616 = vld [vmem:[%s150 + $0x44a0] sm:$0xff]
                %1617 = vst [vmem:[%s151 + $0x16e0] sm:$0xff] %v1616
                %v1618 = vld [vmem:[%s150 + $0x44a8] sm:$0xff]
                %1619 = vst [vmem:[%s151 + $0x16e8] sm:$0xff] %v1618
                %v1620 = vld [vmem:[%s150 + $0x44b0] sm:$0xff]
                %1621 = vst [vmem:[%s151 + $0x16f0] sm:$0xff] %v1620
                %v1622 = vld [vmem:[%s150 + $0x44b8] sm:$0xff]
                %1623 = vst [vmem:[%s151 + $0x16f8] sm:$0xff] %v1622
                %v1624 = vld [vmem:[%s150 + $0x4500] sm:$0xff]
                %1625 = vst [vmem:[%s151 + $0x1700] sm:$0xff] %v1624
                %v1626 = vld [vmem:[%s150 + $0x4508] sm:$0xff]
                %1627 = vst [vmem:[%s151 + $0x1708] sm:$0xff] %v1626
                %v1628 = vld [vmem:[%s150 + $0x4510] sm:$0xff]
                %1629 = vst [vmem:[%s151 + $0x1710] sm:$0xff] %v1628
                %v1630 = vld [vmem:[%s150 + $0x4518] sm:$0xff]
                %1631 = vst [vmem:[%s151 + $0x1718] sm:$0xff] %v1630
                %v1632 = vld [vmem:[%s150 + $0x4560] sm:$0xff]
                %1633 = vst [vmem:[%s151 + $0x1720] sm:$0xff] %v1632
                %v1634 = vld [vmem:[%s150 + $0x4568] sm:$0xff]
                %1635 = vst [vmem:[%s151 + $0x1728] sm:$0xff] %v1634
                %v1636 = vld [vmem:[%s150 + $0x4570] sm:$0xff]
                %1637 = vst [vmem:[%s151 + $0x1730] sm:$0xff] %v1636
                %v1638 = vld [vmem:[%s150 + $0x4578] sm:$0xff]
                %1639 = vst [vmem:[%s151 + $0x1738] sm:$0xff] %v1638
                %v1640 = vld [vmem:[%s150 + $0x45c0] sm:$0xff]
                %1641 = vst [vmem:[%s151 + $0x1740] sm:$0xff] %v1640
                %v1642 = vld [vmem:[%s150 + $0x45c8] sm:$0xff]
                %1643 = vst [vmem:[%s151 + $0x1748] sm:$0xff] %v1642
                %v1644 = vld [vmem:[%s150 + $0x45d0] sm:$0xff]
                %1645 = vst [vmem:[%s151 + $0x1750] sm:$0xff] %v1644
                %v1646 = vld [vmem:[%s150 + $0x45d8] sm:$0xff]
                %1647 = vst [vmem:[%s151 + $0x1758] sm:$0xff] %v1646
                %v1648 = vld [vmem:[%s150 + $0x4620] sm:$0xff]
                %1649 = vst [vmem:[%s151 + $0x1760] sm:$0xff] %v1648
                %v1650 = vld [vmem:[%s150 + $0x4628] sm:$0xff]
                %1651 = vst [vmem:[%s151 + $0x1768] sm:$0xff] %v1650
                %v1652 = vld [vmem:[%s150 + $0x4630] sm:$0xff]
                %1653 = vst [vmem:[%s151 + $0x1770] sm:$0xff] %v1652
                %v1654 = vld [vmem:[%s150 + $0x4638] sm:$0xff]
                %1655 = vst [vmem:[%s151 + $0x1778] sm:$0xff] %v1654
                %v1656 = vld [vmem:[%s150 + $0x4680] sm:$0xff]
                %1657 = vst [vmem:[%s151 + $0x1780] sm:$0xff] %v1656
                %v1658 = vld [vmem:[%s150 + $0x4688] sm:$0xff]
                %1659 = vst [vmem:[%s151 + $0x1788] sm:$0xff] %v1658
                %v1660 = vld [vmem:[%s150 + $0x4690] sm:$0xff]
                %1661 = vst [vmem:[%s151 + $0x1790] sm:$0xff] %v1660
                %v1662 = vld [vmem:[%s150 + $0x4698] sm:$0xff]
                %1663 = vst [vmem:[%s151 + $0x1798] sm:$0xff] %v1662
                %v1664 = vld [vmem:[%s150 + $0x46e0] sm:$0xff]
                %1665 = vst [vmem:[%s151 + $0x17a0] sm:$0xff] %v1664
                %v1666 = vld [vmem:[%s150 + $0x46e8] sm:$0xff]
                %1667 = vst [vmem:[%s151 + $0x17a8] sm:$0xff] %v1666
                %v1668 = vld [vmem:[%s150 + $0x46f0] sm:$0xff]
                %1669 = vst [vmem:[%s151 + $0x17b0] sm:$0xff] %v1668
                %v1670 = vld [vmem:[%s150 + $0x46f8] sm:$0xff]
                %1671 = vst [vmem:[%s151 + $0x17b8] sm:$0xff] %v1670
                %v1672 = vld [vmem:[%s150 + $0x4740] sm:$0xff]
                %1673 = vst [vmem:[%s151 + $0x17c0] sm:$0xff] %v1672
                %v1674 = vld [vmem:[%s150 + $0x4748] sm:$0xff]
                %1675 = vst [vmem:[%s151 + $0x17c8] sm:$0xff] %v1674
                %v1676 = vld [vmem:[%s150 + $0x4750] sm:$0xff]
                %1677 = vst [vmem:[%s151 + $0x17d0] sm:$0xff] %v1676
                %v1678 = vld [vmem:[%s150 + $0x4758] sm:$0xff]
                %1679 = vst [vmem:[%s151 + $0x17d8] sm:$0xff] %v1678
                %v1680 = vld [vmem:[%s150 + $0x47a0] sm:$0xff]
                %1681 = vst [vmem:[%s151 + $0x17e0] sm:$0xff] %v1680
                %v1682 = vld [vmem:[%s150 + $0x47a8] sm:$0xff]
                %1683 = vst [vmem:[%s151 + $0x17e8] sm:$0xff] %v1682
                %v1684 = vld [vmem:[%s150 + $0x47b0] sm:$0xff]
                %1685 = vst [vmem:[%s151 + $0x17f0] sm:$0xff] %v1684
                %v1686 = vld [vmem:[%s150 + $0x47b8] sm:$0xff]
                %1687 = vst [vmem:[%s151 + $0x17f8] sm:$0xff] %v1686
                %v1688 = vld [vmem:[%s150 + $0x4800] sm:$0xff]
                %1689 = vst [vmem:[%s151 + $0x1800] sm:$0xff] %v1688
                %v1690 = vld [vmem:[%s150 + $0x4808] sm:$0xff]
                %1691 = vst [vmem:[%s151 + $0x1808] sm:$0xff] %v1690
                %v1692 = vld [vmem:[%s150 + $0x4810] sm:$0xff]
                %1693 = vst [vmem:[%s151 + $0x1810] sm:$0xff] %v1692
                %v1694 = vld [vmem:[%s150 + $0x4818] sm:$0xff]
                %1695 = vst [vmem:[%s151 + $0x1818] sm:$0xff] %v1694
                %v1696 = vld [vmem:[%s150 + $0x4860] sm:$0xff]
                %1697 = vst [vmem:[%s151 + $0x1820] sm:$0xff] %v1696
                %v1698 = vld [vmem:[%s150 + $0x4868] sm:$0xff]
                %1699 = vst [vmem:[%s151 + $0x1828] sm:$0xff] %v1698
                %v1700 = vld [vmem:[%s150 + $0x4870] sm:$0xff]
                %1701 = vst [vmem:[%s151 + $0x1830] sm:$0xff] %v1700
                %v1702 = vld [vmem:[%s150 + $0x4878] sm:$0xff]
                %1703 = vst [vmem:[%s151 + $0x1838] sm:$0xff] %v1702
                %v1704 = vld [vmem:[%s150 + $0x48c0] sm:$0xff]
                %1705 = vst [vmem:[%s151 + $0x1840] sm:$0xff] %v1704
                %v1706 = vld [vmem:[%s150 + $0x48c8] sm:$0xff]
                %1707 = vst [vmem:[%s151 + $0x1848] sm:$0xff] %v1706
                %v1708 = vld [vmem:[%s150 + $0x48d0] sm:$0xff]
                %1709 = vst [vmem:[%s151 + $0x1850] sm:$0xff] %v1708
                %v1710 = vld [vmem:[%s150 + $0x48d8] sm:$0xff]
                %1711 = vst [vmem:[%s151 + $0x1858] sm:$0xff] %v1710
                %v1712 = vld [vmem:[%s150 + $0x4920] sm:$0xff]
                %1713 = vst [vmem:[%s151 + $0x1860] sm:$0xff] %v1712
                %v1714 = vld [vmem:[%s150 + $0x4928] sm:$0xff]
                %1715 = vst [vmem:[%s151 + $0x1868] sm:$0xff] %v1714
                %v1716 = vld [vmem:[%s150 + $0x4930] sm:$0xff]
                %1717 = vst [vmem:[%s151 + $0x1870] sm:$0xff] %v1716
                %v1718 = vld [vmem:[%s150 + $0x4938] sm:$0xff]
                %1719 = vst [vmem:[%s151 + $0x1878] sm:$0xff] %v1718
                %v1720 = vld [vmem:[%s150 + $0x4980] sm:$0xff]
                %1721 = vst [vmem:[%s151 + $0x1880] sm:$0xff] %v1720
                %v1722 = vld [vmem:[%s150 + $0x4988] sm:$0xff]
                %1723 = vst [vmem:[%s151 + $0x1888] sm:$0xff] %v1722
                %v1724 = vld [vmem:[%s150 + $0x4990] sm:$0xff]
                %1725 = vst [vmem:[%s151 + $0x1890] sm:$0xff] %v1724
                %v1726 = vld [vmem:[%s150 + $0x4998] sm:$0xff]
                %1727 = vst [vmem:[%s151 + $0x1898] sm:$0xff] %v1726
                %v1728 = vld [vmem:[%s150 + $0x49e0] sm:$0xff]
                %1729 = vst [vmem:[%s151 + $0x18a0] sm:$0xff] %v1728
                %v1730 = vld [vmem:[%s150 + $0x49e8] sm:$0xff]
                %1731 = vst [vmem:[%s151 + $0x18a8] sm:$0xff] %v1730
                %v1732 = vld [vmem:[%s150 + $0x49f0] sm:$0xff]
                %1733 = vst [vmem:[%s151 + $0x18b0] sm:$0xff] %v1732
                %v1734 = vld [vmem:[%s150 + $0x49f8] sm:$0xff]
                %1735 = vst [vmem:[%s151 + $0x18b8] sm:$0xff] %v1734
                %v1736 = vld [vmem:[%s150 + $0x4a40] sm:$0xff]
                %1737 = vst [vmem:[%s151 + $0x18c0] sm:$0xff] %v1736
                %v1738 = vld [vmem:[%s150 + $0x4a48] sm:$0xff]
                %1739 = vst [vmem:[%s151 + $0x18c8] sm:$0xff] %v1738
                %v1740 = vld [vmem:[%s150 + $0x4a50] sm:$0xff]
                %1741 = vst [vmem:[%s151 + $0x18d0] sm:$0xff] %v1740
                %v1742 = vld [vmem:[%s150 + $0x4a58] sm:$0xff]
                %1743 = vst [vmem:[%s151 + $0x18d8] sm:$0xff] %v1742
                %v1744 = vld [vmem:[%s150 + $0x4aa0] sm:$0xff]
                %1745 = vst [vmem:[%s151 + $0x18e0] sm:$0xff] %v1744
                %v1746 = vld [vmem:[%s150 + $0x4aa8] sm:$0xff]
                %1747 = vst [vmem:[%s151 + $0x18e8] sm:$0xff] %v1746
                %v1748 = vld [vmem:[%s150 + $0x4ab0] sm:$0xff]
                %1749 = vst [vmem:[%s151 + $0x18f0] sm:$0xff] %v1748
                %v1750 = vld [vmem:[%s150 + $0x4ab8] sm:$0xff]
                %1751 = vst [vmem:[%s151 + $0x18f8] sm:$0xff] %v1750
                %v1752 = vld [vmem:[%s150 + $0x4b00] sm:$0xff]
                %1753 = vst [vmem:[%s151 + $0x1900] sm:$0xff] %v1752
                %v1754 = vld [vmem:[%s150 + $0x4b08] sm:$0xff]
                %1755 = vst [vmem:[%s151 + $0x1908] sm:$0xff] %v1754
                %v1756 = vld [vmem:[%s150 + $0x4b10] sm:$0xff]
                %1757 = vst [vmem:[%s151 + $0x1910] sm:$0xff] %v1756
                %v1758 = vld [vmem:[%s150 + $0x4b18] sm:$0xff]
                %1759 = vst [vmem:[%s151 + $0x1918] sm:$0xff] %v1758
                %v1760 = vld [vmem:[%s150 + $0x4b60] sm:$0xff]
                %1761 = vst [vmem:[%s151 + $0x1920] sm:$0xff] %v1760
                %v1762 = vld [vmem:[%s150 + $0x4b68] sm:$0xff]
                %1763 = vst [vmem:[%s151 + $0x1928] sm:$0xff] %v1762
                %v1764 = vld [vmem:[%s150 + $0x4b70] sm:$0xff]
                %1765 = vst [vmem:[%s151 + $0x1930] sm:$0xff] %v1764
                %v1766 = vld [vmem:[%s150 + $0x4b78] sm:$0xff]
                %1767 = vst [vmem:[%s151 + $0x1938] sm:$0xff] %v1766
                %v1768 = vld [vmem:[%s150 + $0x4bc0] sm:$0xff]
                %1769 = vst [vmem:[%s151 + $0x1940] sm:$0xff] %v1768
                %v1770 = vld [vmem:[%s150 + $0x4bc8] sm:$0xff]
                %1771 = vst [vmem:[%s151 + $0x1948] sm:$0xff] %v1770
                %v1772 = vld [vmem:[%s150 + $0x4bd0] sm:$0xff]
                %1773 = vst [vmem:[%s151 + $0x1950] sm:$0xff] %v1772
                %v1774 = vld [vmem:[%s150 + $0x4bd8] sm:$0xff]
                %1775 = vst [vmem:[%s151 + $0x1958] sm:$0xff] %v1774
                %v1776 = vld [vmem:[%s150 + $0x4c20] sm:$0xff]
                %1777 = vst [vmem:[%s151 + $0x1960] sm:$0xff] %v1776
                %v1778 = vld [vmem:[%s150 + $0x4c28] sm:$0xff]
                %1779 = vst [vmem:[%s151 + $0x1968] sm:$0xff] %v1778
                %v1780 = vld [vmem:[%s150 + $0x4c30] sm:$0xff]
                %1781 = vst [vmem:[%s151 + $0x1970] sm:$0xff] %v1780
                %v1782 = vld [vmem:[%s150 + $0x4c38] sm:$0xff]
                %1783 = vst [vmem:[%s151 + $0x1978] sm:$0xff] %v1782
                %v1784 = vld [vmem:[%s150 + $0x4c80] sm:$0xff]
                %1785 = vst [vmem:[%s151 + $0x1980] sm:$0xff] %v1784
                %v1786 = vld [vmem:[%s150 + $0x4c88] sm:$0xff]
                %1787 = vst [vmem:[%s151 + $0x1988] sm:$0xff] %v1786
                %v1788 = vld [vmem:[%s150 + $0x4c90] sm:$0xff]
                %1789 = vst [vmem:[%s151 + $0x1990] sm:$0xff] %v1788
                %v1790 = vld [vmem:[%s150 + $0x4c98] sm:$0xff]
                %1791 = vst [vmem:[%s151 + $0x1998] sm:$0xff] %v1790
                %v1792 = vld [vmem:[%s150 + $0x4ce0] sm:$0xff]
                %1793 = vst [vmem:[%s151 + $0x19a0] sm:$0xff] %v1792
                %v1794 = vld [vmem:[%s150 + $0x4ce8] sm:$0xff]
                %1795 = vst [vmem:[%s151 + $0x19a8] sm:$0xff] %v1794
                %v1796 = vld [vmem:[%s150 + $0x4cf0] sm:$0xff]
                %1797 = vst [vmem:[%s151 + $0x19b0] sm:$0xff] %v1796
                %v1798 = vld [vmem:[%s150 + $0x4cf8] sm:$0xff]
                %1799 = vst [vmem:[%s151 + $0x19b8] sm:$0xff] %v1798
                %v1800 = vld [vmem:[%s150 + $0x4d40] sm:$0xff]
                %1801 = vst [vmem:[%s151 + $0x19c0] sm:$0xff] %v1800
                %v1802 = vld [vmem:[%s150 + $0x4d48] sm:$0xff]
                %1803 = vst [vmem:[%s151 + $0x19c8] sm:$0xff] %v1802
                %v1804 = vld [vmem:[%s150 + $0x4d50] sm:$0xff]
                %1805 = vst [vmem:[%s151 + $0x19d0] sm:$0xff] %v1804
                %v1806 = vld [vmem:[%s150 + $0x4d58] sm:$0xff]
                %1807 = vst [vmem:[%s151 + $0x19d8] sm:$0xff] %v1806
                %v1808 = vld [vmem:[%s150 + $0x4da0] sm:$0xff]
                %1809 = vst [vmem:[%s151 + $0x19e0] sm:$0xff] %v1808
                %v1810 = vld [vmem:[%s150 + $0x4da8] sm:$0xff]
                %1811 = vst [vmem:[%s151 + $0x19e8] sm:$0xff] %v1810
                %v1812 = vld [vmem:[%s150 + $0x4db0] sm:$0xff]
                %1813 = vst [vmem:[%s151 + $0x19f0] sm:$0xff] %v1812
                %v1814 = vld [vmem:[%s150 + $0x4db8] sm:$0xff]
                %1815 = vst [vmem:[%s151 + $0x19f8] sm:$0xff] %v1814
                %v1816 = vld [vmem:[%s150 + $0x4e00] sm:$0xff]
                %1817 = vst [vmem:[%s151 + $0x1a00] sm:$0xff] %v1816
                %v1818 = vld [vmem:[%s150 + $0x4e08] sm:$0xff]
                %1819 = vst [vmem:[%s151 + $0x1a08] sm:$0xff] %v1818
                %v1820 = vld [vmem:[%s150 + $0x4e10] sm:$0xff]
                %1821 = vst [vmem:[%s151 + $0x1a10] sm:$0xff] %v1820
                %v1822 = vld [vmem:[%s150 + $0x4e18] sm:$0xff]
                %1823 = vst [vmem:[%s151 + $0x1a18] sm:$0xff] %v1822
                %v1824 = vld [vmem:[%s150 + $0x4e60] sm:$0xff]
                %1825 = vst [vmem:[%s151 + $0x1a20] sm:$0xff] %v1824
                %v1826 = vld [vmem:[%s150 + $0x4e68] sm:$0xff]
                %1827 = vst [vmem:[%s151 + $0x1a28] sm:$0xff] %v1826
                %v1828 = vld [vmem:[%s150 + $0x4e70] sm:$0xff]
                %1829 = vst [vmem:[%s151 + $0x1a30] sm:$0xff] %v1828
                %v1830 = vld [vmem:[%s150 + $0x4e78] sm:$0xff]
                %1831 = vst [vmem:[%s151 + $0x1a38] sm:$0xff] %v1830
                %v1832 = vld [vmem:[%s150 + $0x4ec0] sm:$0xff]
                %1833 = vst [vmem:[%s151 + $0x1a40] sm:$0xff] %v1832
                %v1834 = vld [vmem:[%s150 + $0x4ec8] sm:$0xff]
                %1835 = vst [vmem:[%s151 + $0x1a48] sm:$0xff] %v1834
                %v1836 = vld [vmem:[%s150 + $0x4ed0] sm:$0xff]
                %1837 = vst [vmem:[%s151 + $0x1a50] sm:$0xff] %v1836
                %v1838 = vld [vmem:[%s150 + $0x4ed8] sm:$0xff]
                %1839 = vst [vmem:[%s151 + $0x1a58] sm:$0xff] %v1838
                %v1840 = vld [vmem:[%s150 + $0x4f20] sm:$0xff]
                %1841 = vst [vmem:[%s151 + $0x1a60] sm:$0xff] %v1840
                %v1842 = vld [vmem:[%s150 + $0x4f28] sm:$0xff]
                %1843 = vst [vmem:[%s151 + $0x1a68] sm:$0xff] %v1842
                %v1844 = vld [vmem:[%s150 + $0x4f30] sm:$0xff]
                %1845 = vst [vmem:[%s151 + $0x1a70] sm:$0xff] %v1844
                %v1846 = vld [vmem:[%s150 + $0x4f38] sm:$0xff]
                %1847 = vst [vmem:[%s151 + $0x1a78] sm:$0xff] %v1846
                %v1848 = vld [vmem:[%s150 + $0x4f80] sm:$0xff]
                %1849 = vst [vmem:[%s151 + $0x1a80] sm:$0xff] %v1848
                %v1850 = vld [vmem:[%s150 + $0x4f88] sm:$0xff]
                %1851 = vst [vmem:[%s151 + $0x1a88] sm:$0xff] %v1850
                %v1852 = vld [vmem:[%s150 + $0x4f90] sm:$0xff]
                %1853 = vst [vmem:[%s151 + $0x1a90] sm:$0xff] %v1852
                %v1854 = vld [vmem:[%s150 + $0x4f98] sm:$0xff]
                %1855 = vst [vmem:[%s151 + $0x1a98] sm:$0xff] %v1854
                %v1856 = vld [vmem:[%s150 + $0x4fe0] sm:$0xff]
                %1857 = vst [vmem:[%s151 + $0x1aa0] sm:$0xff] %v1856
                %v1858 = vld [vmem:[%s150 + $0x4fe8] sm:$0xff]
                %1859 = vst [vmem:[%s151 + $0x1aa8] sm:$0xff] %v1858
                %v1860 = vld [vmem:[%s150 + $0x4ff0] sm:$0xff]
                %1861 = vst [vmem:[%s151 + $0x1ab0] sm:$0xff] %v1860
                %v1862 = vld [vmem:[%s150 + $0x4ff8] sm:$0xff]
                %1863 = vst [vmem:[%s151 + $0x1ab8] sm:$0xff] %v1862
                %v1864 = vld [vmem:[%s150 + $0x5040] sm:$0xff]
                %1865 = vst [vmem:[%s151 + $0x1ac0] sm:$0xff] %v1864
                %v1866 = vld [vmem:[%s150 + $0x5048] sm:$0xff]
                %1867 = vst [vmem:[%s151 + $0x1ac8] sm:$0xff] %v1866
                %v1868 = vld [vmem:[%s150 + $0x5050] sm:$0xff]
                %1869 = vst [vmem:[%s151 + $0x1ad0] sm:$0xff] %v1868
                %v1870 = vld [vmem:[%s150 + $0x5058] sm:$0xff]
                %1871 = vst [vmem:[%s151 + $0x1ad8] sm:$0xff] %v1870
                %v1872 = vld [vmem:[%s150 + $0x50a0] sm:$0xff]
                %1873 = vst [vmem:[%s151 + $0x1ae0] sm:$0xff] %v1872
                %v1874 = vld [vmem:[%s150 + $0x50a8] sm:$0xff]
                %1875 = vst [vmem:[%s151 + $0x1ae8] sm:$0xff] %v1874
                %v1876 = vld [vmem:[%s150 + $0x50b0] sm:$0xff]
                %1877 = vst [vmem:[%s151 + $0x1af0] sm:$0xff] %v1876
                %v1878 = vld [vmem:[%s150 + $0x50b8] sm:$0xff]
                %1879 = vst [vmem:[%s151 + $0x1af8] sm:$0xff] %v1878
                %v1880 = vld [vmem:[%s150 + $0x5100] sm:$0xff]
                %1881 = vst [vmem:[%s151 + $0x1b00] sm:$0xff] %v1880
                %v1882 = vld [vmem:[%s150 + $0x5108] sm:$0xff]
                %1883 = vst [vmem:[%s151 + $0x1b08] sm:$0xff] %v1882
                %v1884 = vld [vmem:[%s150 + $0x5110] sm:$0xff]
                %1885 = vst [vmem:[%s151 + $0x1b10] sm:$0xff] %v1884
                %v1886 = vld [vmem:[%s150 + $0x5118] sm:$0xff]
                %1887 = vst [vmem:[%s151 + $0x1b18] sm:$0xff] %v1886
                %v1888 = vld [vmem:[%s150 + $0x5160] sm:$0xff]
                %1889 = vst [vmem:[%s151 + $0x1b20] sm:$0xff] %v1888
                %v1890 = vld [vmem:[%s150 + $0x5168] sm:$0xff]
                %1891 = vst [vmem:[%s151 + $0x1b28] sm:$0xff] %v1890
                %v1892 = vld [vmem:[%s150 + $0x5170] sm:$0xff]
                %1893 = vst [vmem:[%s151 + $0x1b30] sm:$0xff] %v1892
                %v1894 = vld [vmem:[%s150 + $0x5178] sm:$0xff]
                %1895 = vst [vmem:[%s151 + $0x1b38] sm:$0xff] %v1894
                %v1896 = vld [vmem:[%s150 + $0x51c0] sm:$0xff]
                %1897 = vst [vmem:[%s151 + $0x1b40] sm:$0xff] %v1896
                %v1898 = vld [vmem:[%s150 + $0x51c8] sm:$0xff]
                %1899 = vst [vmem:[%s151 + $0x1b48] sm:$0xff] %v1898
                %v1900 = vld [vmem:[%s150 + $0x51d0] sm:$0xff]
                %1901 = vst [vmem:[%s151 + $0x1b50] sm:$0xff] %v1900
                %v1902 = vld [vmem:[%s150 + $0x51d8] sm:$0xff]
                %1903 = vst [vmem:[%s151 + $0x1b58] sm:$0xff] %v1902
                %v1904 = vld [vmem:[%s150 + $0x5220] sm:$0xff]
                %1905 = vst [vmem:[%s151 + $0x1b60] sm:$0xff] %v1904
                %v1906 = vld [vmem:[%s150 + $0x5228] sm:$0xff]
                %1907 = vst [vmem:[%s151 + $0x1b68] sm:$0xff] %v1906
                %v1908 = vld [vmem:[%s150 + $0x5230] sm:$0xff]
                %1909 = vst [vmem:[%s151 + $0x1b70] sm:$0xff] %v1908
                %v1910 = vld [vmem:[%s150 + $0x5238] sm:$0xff]
                %1911 = vst [vmem:[%s151 + $0x1b78] sm:$0xff] %v1910
                %v1912 = vld [vmem:[%s150 + $0x5280] sm:$0xff]
                %1913 = vst [vmem:[%s151 + $0x1b80] sm:$0xff] %v1912
                %v1914 = vld [vmem:[%s150 + $0x5288] sm:$0xff]
                %1915 = vst [vmem:[%s151 + $0x1b88] sm:$0xff] %v1914
                %v1916 = vld [vmem:[%s150 + $0x5290] sm:$0xff]
                %1917 = vst [vmem:[%s151 + $0x1b90] sm:$0xff] %v1916
                %v1918 = vld [vmem:[%s150 + $0x5298] sm:$0xff]
                %1919 = vst [vmem:[%s151 + $0x1b98] sm:$0xff] %v1918
                %v1920 = vld [vmem:[%s150 + $0x52e0] sm:$0xff]
                %1921 = vst [vmem:[%s151 + $0x1ba0] sm:$0xff] %v1920
                %v1922 = vld [vmem:[%s150 + $0x52e8] sm:$0xff]
                %1923 = vst [vmem:[%s151 + $0x1ba8] sm:$0xff] %v1922
                %v1924 = vld [vmem:[%s150 + $0x52f0] sm:$0xff]
                %1925 = vst [vmem:[%s151 + $0x1bb0] sm:$0xff] %v1924
                %v1926 = vld [vmem:[%s150 + $0x52f8] sm:$0xff]
                %1927 = vst [vmem:[%s151 + $0x1bb8] sm:$0xff] %v1926
                %v1928 = vld [vmem:[%s150 + $0x5340] sm:$0xff]
                %1929 = vst [vmem:[%s151 + $0x1bc0] sm:$0xff] %v1928
                %v1930 = vld [vmem:[%s150 + $0x5348] sm:$0xff]
                %1931 = vst [vmem:[%s151 + $0x1bc8] sm:$0xff] %v1930
                %v1932 = vld [vmem:[%s150 + $0x5350] sm:$0xff]
                %1933 = vst [vmem:[%s151 + $0x1bd0] sm:$0xff] %v1932
                %v1934 = vld [vmem:[%s150 + $0x5358] sm:$0xff]
                %1935 = vst [vmem:[%s151 + $0x1bd8] sm:$0xff] %v1934
                %v1936 = vld [vmem:[%s150 + $0x53a0] sm:$0xff]
                %1937 = vst [vmem:[%s151 + $0x1be0] sm:$0xff] %v1936
                %v1938 = vld [vmem:[%s150 + $0x53a8] sm:$0xff]
                %1939 = vst [vmem:[%s151 + $0x1be8] sm:$0xff] %v1938
                %v1940 = vld [vmem:[%s150 + $0x53b0] sm:$0xff]
                %1941 = vst [vmem:[%s151 + $0x1bf0] sm:$0xff] %v1940
                %v1942 = vld [vmem:[%s150 + $0x53b8] sm:$0xff]
                %1943 = vst [vmem:[%s151 + $0x1bf8] sm:$0xff] %v1942
                %v1944 = vld [vmem:[%s150 + $0x5400] sm:$0xff]
                %1945 = vst [vmem:[%s151 + $0x1c00] sm:$0xff] %v1944
                %v1946 = vld [vmem:[%s150 + $0x5408] sm:$0xff]
                %1947 = vst [vmem:[%s151 + $0x1c08] sm:$0xff] %v1946
                %v1948 = vld [vmem:[%s150 + $0x5410] sm:$0xff]
                %1949 = vst [vmem:[%s151 + $0x1c10] sm:$0xff] %v1948
                %v1950 = vld [vmem:[%s150 + $0x5418] sm:$0xff]
                %1951 = vst [vmem:[%s151 + $0x1c18] sm:$0xff] %v1950
                %v1952 = vld [vmem:[%s150 + $0x5460] sm:$0xff]
                %1953 = vst [vmem:[%s151 + $0x1c20] sm:$0xff] %v1952
                %v1954 = vld [vmem:[%s150 + $0x5468] sm:$0xff]
                %1955 = vst [vmem:[%s151 + $0x1c28] sm:$0xff] %v1954
                %v1956 = vld [vmem:[%s150 + $0x5470] sm:$0xff]
                %1957 = vst [vmem:[%s151 + $0x1c30] sm:$0xff] %v1956
                %v1958 = vld [vmem:[%s150 + $0x5478] sm:$0xff]
                %1959 = vst [vmem:[%s151 + $0x1c38] sm:$0xff] %v1958
                %v1960 = vld [vmem:[%s150 + $0x54c0] sm:$0xff]
                %1961 = vst [vmem:[%s151 + $0x1c40] sm:$0xff] %v1960
                %v1962 = vld [vmem:[%s150 + $0x54c8] sm:$0xff]
                %1963 = vst [vmem:[%s151 + $0x1c48] sm:$0xff] %v1962
                %v1964 = vld [vmem:[%s150 + $0x54d0] sm:$0xff]
                %1965 = vst [vmem:[%s151 + $0x1c50] sm:$0xff] %v1964
                %v1966 = vld [vmem:[%s150 + $0x54d8] sm:$0xff]
                %1967 = vst [vmem:[%s151 + $0x1c58] sm:$0xff] %v1966
                %v1968 = vld [vmem:[%s150 + $0x5520] sm:$0xff]
                %1969 = vst [vmem:[%s151 + $0x1c60] sm:$0xff] %v1968
                %v1970 = vld [vmem:[%s150 + $0x5528] sm:$0xff]
                %1971 = vst [vmem:[%s151 + $0x1c68] sm:$0xff] %v1970
                %v1972 = vld [vmem:[%s150 + $0x5530] sm:$0xff]
                %1973 = vst [vmem:[%s151 + $0x1c70] sm:$0xff] %v1972
                %v1974 = vld [vmem:[%s150 + $0x5538] sm:$0xff]
                %1975 = vst [vmem:[%s151 + $0x1c78] sm:$0xff] %v1974
                %v1976 = vld [vmem:[%s150 + $0x5580] sm:$0xff]
                %1977 = vst [vmem:[%s151 + $0x1c80] sm:$0xff] %v1976
                %v1978 = vld [vmem:[%s150 + $0x5588] sm:$0xff]
                %1979 = vst [vmem:[%s151 + $0x1c88] sm:$0xff] %v1978
                %v1980 = vld [vmem:[%s150 + $0x5590] sm:$0xff]
                %1981 = vst [vmem:[%s151 + $0x1c90] sm:$0xff] %v1980
                %v1982 = vld [vmem:[%s150 + $0x5598] sm:$0xff]
                %1983 = vst [vmem:[%s151 + $0x1c98] sm:$0xff] %v1982
                %v1984 = vld [vmem:[%s150 + $0x55e0] sm:$0xff]
                %1985 = vst [vmem:[%s151 + $0x1ca0] sm:$0xff] %v1984
                %v1986 = vld [vmem:[%s150 + $0x55e8] sm:$0xff]
                %1987 = vst [vmem:[%s151 + $0x1ca8] sm:$0xff] %v1986
                %v1988 = vld [vmem:[%s150 + $0x55f0] sm:$0xff]
                %1989 = vst [vmem:[%s151 + $0x1cb0] sm:$0xff] %v1988
                %v1990 = vld [vmem:[%s150 + $0x55f8] sm:$0xff]
                %1991 = vst [vmem:[%s151 + $0x1cb8] sm:$0xff] %v1990
                %v1992 = vld [vmem:[%s150 + $0x5640] sm:$0xff]
                %1993 = vst [vmem:[%s151 + $0x1cc0] sm:$0xff] %v1992
                %v1994 = vld [vmem:[%s150 + $0x5648] sm:$0xff]
                %1995 = vst [vmem:[%s151 + $0x1cc8] sm:$0xff] %v1994
                %v1996 = vld [vmem:[%s150 + $0x5650] sm:$0xff]
                %1997 = vst [vmem:[%s151 + $0x1cd0] sm:$0xff] %v1996
                %v1998 = vld [vmem:[%s150 + $0x5658] sm:$0xff]
                %1999 = vst [vmem:[%s151 + $0x1cd8] sm:$0xff] %v1998
                %v2000 = vld [vmem:[%s150 + $0x56a0] sm:$0xff]
                %2001 = vst [vmem:[%s151 + $0x1ce0] sm:$0xff] %v2000
                %v2002 = vld [vmem:[%s150 + $0x56a8] sm:$0xff]
                %2003 = vst [vmem:[%s151 + $0x1ce8] sm:$0xff] %v2002
                %v2004 = vld [vmem:[%s150 + $0x56b0] sm:$0xff]
                %2005 = vst [vmem:[%s151 + $0x1cf0] sm:$0xff] %v2004
                %v2006 = vld [vmem:[%s150 + $0x56b8] sm:$0xff]
                %2007 = vst [vmem:[%s151 + $0x1cf8] sm:$0xff] %v2006
                %v2008 = vld [vmem:[%s150 + $0x5700] sm:$0xff]
                %2009 = vst [vmem:[%s151 + $0x1d00] sm:$0xff] %v2008
                %v2010 = vld [vmem:[%s150 + $0x5708] sm:$0xff]
                %2011 = vst [vmem:[%s151 + $0x1d08] sm:$0xff] %v2010
                %v2012 = vld [vmem:[%s150 + $0x5710] sm:$0xff]
                %2013 = vst [vmem:[%s151 + $0x1d10] sm:$0xff] %v2012
                %v2014 = vld [vmem:[%s150 + $0x5718] sm:$0xff]
                %2015 = vst [vmem:[%s151 + $0x1d18] sm:$0xff] %v2014
                %v2016 = vld [vmem:[%s150 + $0x5760] sm:$0xff]
                %2017 = vst [vmem:[%s151 + $0x1d20] sm:$0xff] %v2016
                %v2018 = vld [vmem:[%s150 + $0x5768] sm:$0xff]
                %2019 = vst [vmem:[%s151 + $0x1d28] sm:$0xff] %v2018
                %v2020 = vld [vmem:[%s150 + $0x5770] sm:$0xff]
                %2021 = vst [vmem:[%s151 + $0x1d30] sm:$0xff] %v2020
                %v2022 = vld [vmem:[%s150 + $0x5778] sm:$0xff]
                %2023 = vst [vmem:[%s151 + $0x1d38] sm:$0xff] %v2022
                %v2024 = vld [vmem:[%s150 + $0x57c0] sm:$0xff]
                %2025 = vst [vmem:[%s151 + $0x1d40] sm:$0xff] %v2024
                %v2026 = vld [vmem:[%s150 + $0x57c8] sm:$0xff]
                %2027 = vst [vmem:[%s151 + $0x1d48] sm:$0xff] %v2026
                %v2028 = vld [vmem:[%s150 + $0x57d0] sm:$0xff]
                %2029 = vst [vmem:[%s151 + $0x1d50] sm:$0xff] %v2028
                %v2030 = vld [vmem:[%s150 + $0x57d8] sm:$0xff]
                %2031 = vst [vmem:[%s151 + $0x1d58] sm:$0xff] %v2030
                %v2032 = vld [vmem:[%s150 + $0x5820] sm:$0xff]
                %2033 = vst [vmem:[%s151 + $0x1d60] sm:$0xff] %v2032
                %v2034 = vld [vmem:[%s150 + $0x5828] sm:$0xff]
                %2035 = vst [vmem:[%s151 + $0x1d68] sm:$0xff] %v2034
                %v2036 = vld [vmem:[%s150 + $0x5830] sm:$0xff]
                %2037 = vst [vmem:[%s151 + $0x1d70] sm:$0xff] %v2036
                %v2038 = vld [vmem:[%s150 + $0x5838] sm:$0xff]
                %2039 = vst [vmem:[%s151 + $0x1d78] sm:$0xff] %v2038
                %v2040 = vld [vmem:[%s150 + $0x5880] sm:$0xff]
                %2041 = vst [vmem:[%s151 + $0x1d80] sm:$0xff] %v2040
                %v2042 = vld [vmem:[%s150 + $0x5888] sm:$0xff]
                %2043 = vst [vmem:[%s151 + $0x1d88] sm:$0xff] %v2042
                %v2044 = vld [vmem:[%s150 + $0x5890] sm:$0xff]
                %2045 = vst [vmem:[%s151 + $0x1d90] sm:$0xff] %v2044
                %v2046 = vld [vmem:[%s150 + $0x5898] sm:$0xff]
                %2047 = vst [vmem:[%s151 + $0x1d98] sm:$0xff] %v2046
                %v2048 = vld [vmem:[%s150 + $0x58e0] sm:$0xff]
                %2049 = vst [vmem:[%s151 + $0x1da0] sm:$0xff] %v2048
                %v2050 = vld [vmem:[%s150 + $0x58e8] sm:$0xff]
                %2051 = vst [vmem:[%s151 + $0x1da8] sm:$0xff] %v2050
                %v2052 = vld [vmem:[%s150 + $0x58f0] sm:$0xff]
                %2053 = vst [vmem:[%s151 + $0x1db0] sm:$0xff] %v2052
                %v2054 = vld [vmem:[%s150 + $0x58f8] sm:$0xff]
                %2055 = vst [vmem:[%s151 + $0x1db8] sm:$0xff] %v2054
                %v2056 = vld [vmem:[%s150 + $0x5940] sm:$0xff]
                %2057 = vst [vmem:[%s151 + $0x1dc0] sm:$0xff] %v2056
                %v2058 = vld [vmem:[%s150 + $0x5948] sm:$0xff]
                %2059 = vst [vmem:[%s151 + $0x1dc8] sm:$0xff] %v2058
                %v2060 = vld [vmem:[%s150 + $0x5950] sm:$0xff]
                %2061 = vst [vmem:[%s151 + $0x1dd0] sm:$0xff] %v2060
                %v2062 = vld [vmem:[%s150 + $0x5958] sm:$0xff]
                %2063 = vst [vmem:[%s151 + $0x1dd8] sm:$0xff] %v2062
                %v2064 = vld [vmem:[%s150 + $0x59a0] sm:$0xff]
                %2065 = vst [vmem:[%s151 + $0x1de0] sm:$0xff] %v2064
                %v2066 = vld [vmem:[%s150 + $0x59a8] sm:$0xff]
                %2067 = vst [vmem:[%s151 + $0x1de8] sm:$0xff] %v2066
                %v2068 = vld [vmem:[%s150 + $0x59b0] sm:$0xff]
                %2069 = vst [vmem:[%s151 + $0x1df0] sm:$0xff] %v2068
                %v2070 = vld [vmem:[%s150 + $0x59b8] sm:$0xff]
                %2071 = vst [vmem:[%s151 + $0x1df8] sm:$0xff] %v2070
                %v2072 = vld [vmem:[%s150 + $0x5a00] sm:$0xff]
                %2073 = vst [vmem:[%s151 + $0x1e00] sm:$0xff] %v2072
                %v2074 = vld [vmem:[%s150 + $0x5a08] sm:$0xff]
                %2075 = vst [vmem:[%s151 + $0x1e08] sm:$0xff] %v2074
                %v2076 = vld [vmem:[%s150 + $0x5a10] sm:$0xff]
                %2077 = vst [vmem:[%s151 + $0x1e10] sm:$0xff] %v2076
                %v2078 = vld [vmem:[%s150 + $0x5a18] sm:$0xff]
                %2079 = vst [vmem:[%s151 + $0x1e18] sm:$0xff] %v2078
                %v2080 = vld [vmem:[%s150 + $0x5a60] sm:$0xff]
                %2081 = vst [vmem:[%s151 + $0x1e20] sm:$0xff] %v2080
                %v2082 = vld [vmem:[%s150 + $0x5a68] sm:$0xff]
                %2083 = vst [vmem:[%s151 + $0x1e28] sm:$0xff] %v2082
                %v2084 = vld [vmem:[%s150 + $0x5a70] sm:$0xff]
                %2085 = vst [vmem:[%s151 + $0x1e30] sm:$0xff] %v2084
                %v2086 = vld [vmem:[%s150 + $0x5a78] sm:$0xff]
                %2087 = vst [vmem:[%s151 + $0x1e38] sm:$0xff] %v2086
                %v2088 = vld [vmem:[%s150 + $0x5ac0] sm:$0xff]
                %2089 = vst [vmem:[%s151 + $0x1e40] sm:$0xff] %v2088
                %v2090 = vld [vmem:[%s150 + $0x5ac8] sm:$0xff]
                %2091 = vst [vmem:[%s151 + $0x1e48] sm:$0xff] %v2090
                %v2092 = vld [vmem:[%s150 + $0x5ad0] sm:$0xff]
                %2093 = vst [vmem:[%s151 + $0x1e50] sm:$0xff] %v2092
                %v2094 = vld [vmem:[%s150 + $0x5ad8] sm:$0xff]
                %2095 = vst [vmem:[%s151 + $0x1e58] sm:$0xff] %v2094
                %v2096 = vld [vmem:[%s150 + $0x5b20] sm:$0xff]
                %2097 = vst [vmem:[%s151 + $0x1e60] sm:$0xff] %v2096
                %v2098 = vld [vmem:[%s150 + $0x5b28] sm:$0xff]
                %2099 = vst [vmem:[%s151 + $0x1e68] sm:$0xff] %v2098
                %v2100 = vld [vmem:[%s150 + $0x5b30] sm:$0xff]
                %2101 = vst [vmem:[%s151 + $0x1e70] sm:$0xff] %v2100
                %v2102 = vld [vmem:[%s150 + $0x5b38] sm:$0xff]
                %2103 = vst [vmem:[%s151 + $0x1e78] sm:$0xff] %v2102
                %v2104 = vld [vmem:[%s150 + $0x5b80] sm:$0xff]
                %2105 = vst [vmem:[%s151 + $0x1e80] sm:$0xff] %v2104
                %v2106 = vld [vmem:[%s150 + $0x5b88] sm:$0xff]
                %2107 = vst [vmem:[%s151 + $0x1e88] sm:$0xff] %v2106
                %v2108 = vld [vmem:[%s150 + $0x5b90] sm:$0xff]
                %2109 = vst [vmem:[%s151 + $0x1e90] sm:$0xff] %v2108
                %v2110 = vld [vmem:[%s150 + $0x5b98] sm:$0xff]
                %2111 = vst [vmem:[%s151 + $0x1e98] sm:$0xff] %v2110
                %v2112 = vld [vmem:[%s150 + $0x5be0] sm:$0xff]
                %2113 = vst [vmem:[%s151 + $0x1ea0] sm:$0xff] %v2112
                %v2114 = vld [vmem:[%s150 + $0x5be8] sm:$0xff]
                %2115 = vst [vmem:[%s151 + $0x1ea8] sm:$0xff] %v2114
                %v2116 = vld [vmem:[%s150 + $0x5bf0] sm:$0xff]
                %2117 = vst [vmem:[%s151 + $0x1eb0] sm:$0xff] %v2116
                %v2118 = vld [vmem:[%s150 + $0x5bf8] sm:$0xff]
                %2119 = vst [vmem:[%s151 + $0x1eb8] sm:$0xff] %v2118
                %v2120 = vld [vmem:[%s150 + $0x5c40] sm:$0xff]
                %2121 = vst [vmem:[%s151 + $0x1ec0] sm:$0xff] %v2120
                %v2122 = vld [vmem:[%s150 + $0x5c48] sm:$0xff]
                %2123 = vst [vmem:[%s151 + $0x1ec8] sm:$0xff] %v2122
                %v2124 = vld [vmem:[%s150 + $0x5c50] sm:$0xff]
                %2125 = vst [vmem:[%s151 + $0x1ed0] sm:$0xff] %v2124
                %v2126 = vld [vmem:[%s150 + $0x5c58] sm:$0xff]
                %2127 = vst [vmem:[%s151 + $0x1ed8] sm:$0xff] %v2126
                %v2128 = vld [vmem:[%s150 + $0x5ca0] sm:$0xff]
                %2129 = vst [vmem:[%s151 + $0x1ee0] sm:$0xff] %v2128
                %v2130 = vld [vmem:[%s150 + $0x5ca8] sm:$0xff]
                %2131 = vst [vmem:[%s151 + $0x1ee8] sm:$0xff] %v2130
                %v2132 = vld [vmem:[%s150 + $0x5cb0] sm:$0xff]
                %2133 = vst [vmem:[%s151 + $0x1ef0] sm:$0xff] %v2132
                %v2134 = vld [vmem:[%s150 + $0x5cb8] sm:$0xff]
                %2135 = vst [vmem:[%s151 + $0x1ef8] sm:$0xff] %v2134
                %v2136 = vld [vmem:[%s150 + $0x5d00] sm:$0xff]
                %2137 = vst [vmem:[%s151 + $0x1f00] sm:$0xff] %v2136
                %v2138 = vld [vmem:[%s150 + $0x5d08] sm:$0xff]
                %2139 = vst [vmem:[%s151 + $0x1f08] sm:$0xff] %v2138
                %v2140 = vld [vmem:[%s150 + $0x5d10] sm:$0xff]
                %2141 = vst [vmem:[%s151 + $0x1f10] sm:$0xff] %v2140
                %v2142 = vld [vmem:[%s150 + $0x5d18] sm:$0xff]
                %2143 = vst [vmem:[%s151 + $0x1f18] sm:$0xff] %v2142
                %v2144 = vld [vmem:[%s150 + $0x5d60] sm:$0xff]
                %2145 = vst [vmem:[%s151 + $0x1f20] sm:$0xff] %v2144
                %v2146 = vld [vmem:[%s150 + $0x5d68] sm:$0xff]
                %2147 = vst [vmem:[%s151 + $0x1f28] sm:$0xff] %v2146
                %v2148 = vld [vmem:[%s150 + $0x5d70] sm:$0xff]
                %2149 = vst [vmem:[%s151 + $0x1f30] sm:$0xff] %v2148
                %v2150 = vld [vmem:[%s150 + $0x5d78] sm:$0xff]
                %2151 = vst [vmem:[%s151 + $0x1f38] sm:$0xff] %v2150
                %v2152 = vld [vmem:[%s150 + $0x5dc0] sm:$0xff]
                %2153 = vst [vmem:[%s151 + $0x1f40] sm:$0xff] %v2152
                %v2154 = vld [vmem:[%s150 + $0x5dc8] sm:$0xff]
                %2155 = vst [vmem:[%s151 + $0x1f48] sm:$0xff] %v2154
                %v2156 = vld [vmem:[%s150 + $0x5dd0] sm:$0xff]
                %2157 = vst [vmem:[%s151 + $0x1f50] sm:$0xff] %v2156
                %v2158 = vld [vmem:[%s150 + $0x5dd8] sm:$0xff]
                %2159 = vst [vmem:[%s151 + $0x1f58] sm:$0xff] %v2158
                %v2160 = vld [vmem:[%s150 + $0x5e20] sm:$0xff]
                %2161 = vst [vmem:[%s151 + $0x1f60] sm:$0xff] %v2160
                %v2162 = vld [vmem:[%s150 + $0x5e28] sm:$0xff]
                %2163 = vst [vmem:[%s151 + $0x1f68] sm:$0xff] %v2162
                %v2164 = vld [vmem:[%s150 + $0x5e30] sm:$0xff]
                %2165 = vst [vmem:[%s151 + $0x1f70] sm:$0xff] %v2164
                %v2166 = vld [vmem:[%s150 + $0x5e38] sm:$0xff]
                %2167 = vst [vmem:[%s151 + $0x1f78] sm:$0xff] %v2166
                %v2168 = vld [vmem:[%s150 + $0x5e80] sm:$0xff]
                %2169 = vst [vmem:[%s151 + $0x1f80] sm:$0xff] %v2168
                %v2170 = vld [vmem:[%s150 + $0x5e88] sm:$0xff]
                %2171 = vst [vmem:[%s151 + $0x1f88] sm:$0xff] %v2170
                %v2172 = vld [vmem:[%s150 + $0x5e90] sm:$0xff]
                %2173 = vst [vmem:[%s151 + $0x1f90] sm:$0xff] %v2172
                %v2174 = vld [vmem:[%s150 + $0x5e98] sm:$0xff]
                %2175 = vst [vmem:[%s151 + $0x1f98] sm:$0xff] %v2174
                %v2176 = vld [vmem:[%s150 + $0x5ee0] sm:$0xff]
                %2177 = vst [vmem:[%s151 + $0x1fa0] sm:$0xff] %v2176
                %v2178 = vld [vmem:[%s150 + $0x5ee8] sm:$0xff]
                %2179 = vst [vmem:[%s151 + $0x1fa8] sm:$0xff] %v2178
                %v2180 = vld [vmem:[%s150 + $0x5ef0] sm:$0xff]
                %2181 = vst [vmem:[%s151 + $0x1fb0] sm:$0xff] %v2180
                %v2182 = vld [vmem:[%s150 + $0x5ef8] sm:$0xff]
                %2183 = vst [vmem:[%s151 + $0x1fb8] sm:$0xff] %v2182
                %v2184 = vld [vmem:[%s150 + $0x5f40] sm:$0xff]
                %2185 = vst [vmem:[%s151 + $0x1fc0] sm:$0xff] %v2184
                %v2186 = vld [vmem:[%s150 + $0x5f48] sm:$0xff]
                %2187 = vst [vmem:[%s151 + $0x1fc8] sm:$0xff] %v2186
                %v2188 = vld [vmem:[%s150 + $0x5f50] sm:$0xff]
                %2189 = vst [vmem:[%s151 + $0x1fd0] sm:$0xff] %v2188
                %v2190 = vld [vmem:[%s150 + $0x5f58] sm:$0xff]
                %2191 = vst [vmem:[%s151 + $0x1fd8] sm:$0xff] %v2190
                %v2192 = vld [vmem:[%s150 + $0x5fa0] sm:$0xff]
                %2193 = vst [vmem:[%s151 + $0x1fe0] sm:$0xff] %v2192
                %v2194 = vld [vmem:[%s150 + $0x5fa8] sm:$0xff]
                %2195 = vst [vmem:[%s151 + $0x1fe8] sm:$0xff] %v2194
                %v2196 = vld [vmem:[%s150 + $0x5fb0] sm:$0xff]
                %2197 = vst [vmem:[%s151 + $0x1ff0] sm:$0xff] %v2196
                %v2198 = vld [vmem:[%s150 + $0x5fb8] sm:$0xff]
                %2199 = vst [vmem:[%s151 + $0x1ff8] sm:$0xff] %v2198
              $region37: #{cnn_forward.5} parent=31 // loop_footer
                %s149 = sadd.s32 1, %s145
              $region38: #{cnn_forward.5} parent=31 // loop_footer_branch
                %144 = sbr.rel target = $region34
              $region39: #{cnn_forward.5} parent=31 // loop_exit
                _
            $region32: #{cnn_forward.5} parent=27 // pred_fallthru
              _
            // Predicated region
            $region40: #{cnn_forward.5} parent=27 // pred_check
              _
            $region41: #{cnn_forward.5} parent=27 // pred_check_branch
              %2201 = sbr.rel target = $region43
            $region42: #{cnn_forward.5} parent=27 // pred_region
              _
            $region43: #{cnn_forward.5} parent=27 // pred_fallthru
              _
          $region28: #{cnn_forward.5} parent=23 // pred_fallthru
            _
          %2202 = vnop
        $region24: #{cnn_forward.5} parent=19 // pred_fallthru
          _
        // Predicated region
        $region44: #{cnn_forward.5} parent=19 // pred_check
          %p2203 = pneg %p76
        $region45: #{cnn_forward.5} parent=19 // pred_check_branch
          %2205 = sbr.rel (%p2203) target = $region47
        $region46: #{cnn_forward.5} parent=19 // pred_region
          %s2206 = smul.u32 4, %s9
          %p2207 = scmp.lt.s32.totalorder %s2206, 11
          %s2208 = scalar_select %p2207, %s2206, 11
          %s2209 = scalar_lea.vmem %s2, %s2208
          %s2210 = smul.u32 4, %s9
        $region47: #{cnn_forward.5} parent=19 // pred_fallthru
          _
      $region20: #{cnn_forward.5} parent=5 // pred_fallthru
        _
      %p2211 = scmp.le.s32.totalorder 1, %s9
      %p2212 = scmp.lt.s32.totalorder %s9, 4
      %p2213 = pnand %p2211, %p2212
      %p2214 = pneg %p2213
      // Predicated region
      $region48: #{cnn_forward.5} parent=5 // pred_check
        _
      $region49: #{cnn_forward.5} parent=5 // pred_check_branch
        %2216 = sbr.rel (%p2213) target = $region51
      $region50: #{cnn_forward.5} parent=5 // pred_region
        %s2217 = ssub.s32 %s9, 1
        %s2218 = sand.u32 %s43, 1
        %s2219 = sand.u32 %s43, 1
        %s2220 = smul.addr %s2219, 8192
        %s2221 = scalar_lea.vmem [#allocation2], %s2220
        // Predicated region
        $region52: #{cnn_forward.5} parent=50 // pred_check
          %p2222 = pneg %p56
        $region53: #{cnn_forward.5} parent=50 // pred_check_branch
          %2224 = sbr.rel (%p2222) target = $region55
        $region54: #{cnn_forward.5} parent=50 // pred_region
          _
        $region55: #{cnn_forward.5} parent=50 // pred_fallthru
          _
        %p2225 = pneg %p30
        %p2226 = pneg %p27
        %s2227 = sand.u32 %s43, 1
        %s2228 = sand.u32 %s43, 1
        %s2229 = smul.addr %s2228, 8192
        %s2230 = scalar_lea.vmem [#allocation2], %s2229
        %p2231 = pneg %p56
        %p2232 = pneg %p53
        %s2233 = smul.u32 4, %s14
        %p2234 = scmp.lt.s32.totalorder %s2233, 11
        %s2235 = scalar_select %p2234, %s2233, 11
        %s2236 = scalar_lea.vmem %s2, %s2235
        %p2237 = pneg %p82
        %p2238 = pneg %p79
        %p2239 = pneg %p108
        %p2240 = pneg %p105
        %s2241 = smul.u32 4, %s14
        %p2242 = scmp.lt.s32.totalorder %s2241, 11
        %s2243 = scalar_select %p2242, %s2241, 11
        %s2244 = smul.addr %s2243, 2
        %s2245 = scalar_lea.vmem %s3, %s2244
        %s2246 = smul.u32 4, %s14
        %s2247 = smul.u32 4, %s14
        %p2248 = scmp.lt.s32.totalorder %s2247, 11
        %s2249 = scalar_select %p2248, %s2247, 11
        %s2250 = scalar_lea.vmem %s2, %s2249
        %s2251 = smul.u32 4, %s14
        %s2252 = smul.u32 4, %s14
        %p2253 = scmp.lt.s32.totalorder %s2252, 11
        %s2254 = scalar_select %p2253, %s2252, 11
        %s2255 = smul.addr %s2254, 2
        %s2256 = scalar_lea.vmem %s3, %s2255
        %s2257 = smul.u32 4, %s14
        %v2258 = vld [vmem:[%s0] sm:$0xff]
        %v2259 = vld [vmem:[%s0 + $0x8] sm:$0xff]
        %v2260 = vld [vmem:[%s0 + $0x10] sm:$0xff]
        %v2261 = vld [vmem:[%s0 + $0x18] sm:$0xff]
        %v2262 = vld [vmem:[%s2221] sm:$0xff]
        %v2263 = vld [vmem:[%s2221 + $0x8] sm:$0xff]
        %v2264 = vld [vmem:[%s2221 + $0x10] sm:$0xff]
        %v2265 = vld [vmem:[%s2221 + $0x18] sm:$0xff]
        %v2266 = vld [vmem:[%s2221 + $0x20] sm:$0xff]
        %v2267 = vld [vmem:[%s2221 + $0x28] sm:$0xff]
        %v2268 = vld [vmem:[%s2221 + $0x30] sm:$0xff]
        %v2269 = vld [vmem:[%s2221 + $0x38] sm:$0xff]
        %v2270 = vld [vmem:[%s2221 + $0x40] sm:$0xff]
        %v2271 = vld [vmem:[%s2221 + $0x48] sm:$0xff]
        %v2272 = vld [vmem:[%s2221 + $0x50] sm:$0xff]
        %v2273 = vld [vmem:[%s2221 + $0x58] sm:$0xff]
        %v2274 = vld [vmem:[%s2221 + $0x60] sm:$0xff]
        %v2275 = vld [vmem:[%s2221 + $0x68] sm:$0xff]
        %v2276 = vld [vmem:[%s2221 + $0x70] sm:$0xff]
        %v2277 = vld [vmem:[%s2221 + $0x78] sm:$0xff]
        %v2278 = vld [vmem:[%s2221 + $0x80] sm:$0xff]
        %v2279 = vld [vmem:[%s2221 + $0x88] sm:$0xff]
        %v2280 = vld [vmem:[%s2221 + $0x90] sm:$0xff]
        %v2281 = vld [vmem:[%s2221 + $0x98] sm:$0xff]
        %v2282 = vld [vmem:[%s2221 + $0xa0] sm:$0xff]
        %v2283 = vld [vmem:[%s2221 + $0xa8] sm:$0xff]
        %v2284 = vld [vmem:[%s2221 + $0xb0] sm:$0xff]
        %v2285 = vld [vmem:[%s2221 + $0xb8] sm:$0xff]
        %v2286 = vld [vmem:[%s2221 + $0xc0] sm:$0xff]
        %v2287 = vld [vmem:[%s2221 + $0xc8] sm:$0xff]
        %v2288 = vld [vmem:[%s2221 + $0xd0] sm:$0xff]
        %v2289 = vld [vmem:[%s2221 + $0xd8] sm:$0xff]
        %v2290 = vld [vmem:[%s2221 + $0xe0] sm:$0xff]
        %v2291 = vld [vmem:[%s2221 + $0xe8] sm:$0xff]
        %v2292 = vld [vmem:[%s2221 + $0xf0] sm:$0xff]
        %v2293 = vld [vmem:[%s2221 + $0xf8] sm:$0xff]
        %v2294 = vld [vmem:[%s2221 + $0x100] sm:$0xff]
        %v2295 = vld [vmem:[%s2221 + $0x108] sm:$0xff]
        %v2296 = vld [vmem:[%s2221 + $0x110] sm:$0xff]
        %v2297 = vld [vmem:[%s2221 + $0x118] sm:$0xff]
        %v2298 = vld [vmem:[%s2221 + $0x120] sm:$0xff]
        %v2299 = vld [vmem:[%s2221 + $0x128] sm:$0xff]
        %v2300 = vld [vmem:[%s2221 + $0x130] sm:$0xff]
        %v2301 = vld [vmem:[%s2221 + $0x138] sm:$0xff]
        %v2302 = vld [vmem:[%s2221 + $0x140] sm:$0xff]
        %v2303 = vld [vmem:[%s2221 + $0x148] sm:$0xff]
        %v2304 = vld [vmem:[%s2221 + $0x150] sm:$0xff]
        %v2305 = vld [vmem:[%s2221 + $0x158] sm:$0xff]
        %v2306 = vld [vmem:[%s2221 + $0x160] sm:$0xff]
        %v2307 = vld [vmem:[%s2221 + $0x168] sm:$0xff]
        %v2308 = vld [vmem:[%s2221 + $0x170] sm:$0xff]
        %v2309 = vld [vmem:[%s2221 + $0x178] sm:$0xff]
        %v2310 = vld [vmem:[%s2221 + $0x180] sm:$0xff]
        %v2311 = vld [vmem:[%s2221 + $0x188] sm:$0xff]
        %v2312 = vld [vmem:[%s2221 + $0x190] sm:$0xff]
        %v2313 = vld [vmem:[%s2221 + $0x198] sm:$0xff]
        %v2314 = vld [vmem:[%s2221 + $0x1a0] sm:$0xff]
        %v2315 = vld [vmem:[%s2221 + $0x1a8] sm:$0xff]
        %v2316 = vld [vmem:[%s2221 + $0x1b0] sm:$0xff]
        %v2317 = vld [vmem:[%s2221 + $0x1b8] sm:$0xff]
        %v2318 = vld [vmem:[%s2221 + $0x1c0] sm:$0xff]
        %v2319 = vld [vmem:[%s2221 + $0x1c8] sm:$0xff]
        %v2320 = vld [vmem:[%s2221 + $0x1d0] sm:$0xff]
        %v2321 = vld [vmem:[%s2221 + $0x1d8] sm:$0xff]
        %v2322 = vld [vmem:[%s2221 + $0x1e0] sm:$0xff]
        %v2323 = vld [vmem:[%s2221 + $0x1e8] sm:$0xff]
        %v2324 = vld [vmem:[%s2221 + $0x1f0] sm:$0xff]
        %v2325 = vld [vmem:[%s2221 + $0x1f8] sm:$0xff]
        %v2326 = vld [vmem:[%s2221 + $0x200] sm:$0xff]
        %v2327 = vld [vmem:[%s2221 + $0x208] sm:$0xff]
        %v2328 = vld [vmem:[%s2221 + $0x210] sm:$0xff]
        %v2329 = vld [vmem:[%s2221 + $0x218] sm:$0xff]
        %v2330 = vld [vmem:[%s2221 + $0x220] sm:$0xff]
        %v2331 = vld [vmem:[%s2221 + $0x228] sm:$0xff]
        %v2332 = vld [vmem:[%s2221 + $0x230] sm:$0xff]
        %v2333 = vld [vmem:[%s2221 + $0x238] sm:$0xff]
        %v2334 = vld [vmem:[%s2221 + $0x240] sm:$0xff]
        %v2335 = vld [vmem:[%s2221 + $0x248] sm:$0xff]
        %v2336 = vld [vmem:[%s2221 + $0x250] sm:$0xff]
        %v2337 = vld [vmem:[%s2221 + $0x258] sm:$0xff]
        %v2338 = vld [vmem:[%s2221 + $0x260] sm:$0xff]
        %v2339 = vld [vmem:[%s2221 + $0x268] sm:$0xff]
        %v2340 = vld [vmem:[%s2221 + $0x270] sm:$0xff]
        %v2341 = vld [vmem:[%s2221 + $0x278] sm:$0xff]
        %v2342 = vld [vmem:[%s2221 + $0x280] sm:$0xff]
        %v2343 = vld [vmem:[%s2221 + $0x288] sm:$0xff]
        %v2344 = vld [vmem:[%s2221 + $0x290] sm:$0xff]
        %v2345 = vld [vmem:[%s2221 + $0x298] sm:$0xff]
        %v2346 = vld [vmem:[%s2221 + $0x2a0] sm:$0xff]
        %v2347 = vld [vmem:[%s2221 + $0x2a8] sm:$0xff]
        %v2348 = vld [vmem:[%s2221 + $0x2b0] sm:$0xff]
        %v2349 = vld [vmem:[%s2221 + $0x2b8] sm:$0xff]
        %v2350 = vld [vmem:[%s2221 + $0x2c0] sm:$0xff]
        %v2351 = vld [vmem:[%s2221 + $0x2c8] sm:$0xff]
        %v2352 = vld [vmem:[%s2221 + $0x2d0] sm:$0xff]
        %v2353 = vld [vmem:[%s2221 + $0x2d8] sm:$0xff]
        %v2354 = vld [vmem:[%s2221 + $0x2e0] sm:$0xff]
        %v2355 = vld [vmem:[%s2221 + $0x2e8] sm:$0xff]
        %v2356 = vld [vmem:[%s2221 + $0x2f0] sm:$0xff]
        %v2357 = vld [vmem:[%s2221 + $0x2f8] sm:$0xff]
        %v2358 = vld [vmem:[%s2221 + $0x300] sm:$0xff]
        %v2359 = vld [vmem:[%s2221 + $0x308] sm:$0xff]
        %v2360 = vld [vmem:[%s2221 + $0x310] sm:$0xff]
        %v2361 = vld [vmem:[%s2221 + $0x318] sm:$0xff]
        %v2362 = vld [vmem:[%s2221 + $0x320] sm:$0xff]
        %v2363 = vld [vmem:[%s2221 + $0x328] sm:$0xff]
        %v2364 = vld [vmem:[%s2221 + $0x330] sm:$0xff]
        %v2365 = vld [vmem:[%s2221 + $0x338] sm:$0xff]
        %v2366 = vld [vmem:[%s2221 + $0x340] sm:$0xff]
        %v2367 = vld [vmem:[%s2221 + $0x348] sm:$0xff]
        %v2368 = vld [vmem:[%s2221 + $0x350] sm:$0xff]
        %v2369 = vld [vmem:[%s2221 + $0x358] sm:$0xff]
        %v2370 = vld [vmem:[%s2221 + $0x360] sm:$0xff]
        %v2371 = vld [vmem:[%s2221 + $0x368] sm:$0xff]
        %v2372 = vld [vmem:[%s2221 + $0x370] sm:$0xff]
        %v2373 = vld [vmem:[%s2221 + $0x378] sm:$0xff]
        %v2374 = vld [vmem:[%s2221 + $0x380] sm:$0xff]
        %v2375 = vld [vmem:[%s2221 + $0x388] sm:$0xff]
        %v2376 = vld [vmem:[%s2221 + $0x390] sm:$0xff]
        %v2377 = vld [vmem:[%s2221 + $0x398] sm:$0xff]
        %v2378 = vld [vmem:[%s2221 + $0x3a0] sm:$0xff]
        %v2379 = vld [vmem:[%s2221 + $0x3a8] sm:$0xff]
        %v2380 = vld [vmem:[%s2221 + $0x3b0] sm:$0xff]
        %v2381 = vld [vmem:[%s2221 + $0x3b8] sm:$0xff]
        %v2382 = vld [vmem:[%s2221 + $0x3c0] sm:$0xff]
        %v2383 = vld [vmem:[%s2221 + $0x3c8] sm:$0xff]
        %v2384 = vld [vmem:[%s2221 + $0x3d0] sm:$0xff]
        %v2385 = vld [vmem:[%s2221 + $0x3d8] sm:$0xff]
        %v2386 = vld [vmem:[%s2221 + $0x3e0] sm:$0xff]
        %v2387 = vld [vmem:[%s2221 + $0x3e8] sm:$0xff]
        %v2388 = vld [vmem:[%s2221 + $0x3f0] sm:$0xff]
        %v2389 = vld [vmem:[%s2221 + $0x3f8] sm:$0xff]
        %v2390 = vld [vmem:[%s2221 + $0x400] sm:$0xff]
        %v2391 = vld [vmem:[%s2221 + $0x408] sm:$0xff]
        %v2392 = vld [vmem:[%s2221 + $0x410] sm:$0xff]
        %v2393 = vld [vmem:[%s2221 + $0x418] sm:$0xff]
        %v2394 = vld [vmem:[%s2221 + $0x420] sm:$0xff]
        %v2395 = vld [vmem:[%s2221 + $0x428] sm:$0xff]
        %v2396 = vld [vmem:[%s2221 + $0x430] sm:$0xff]
        %v2397 = vld [vmem:[%s2221 + $0x438] sm:$0xff]
        %v2398 = vld [vmem:[%s2221 + $0x440] sm:$0xff]
        %v2399 = vld [vmem:[%s2221 + $0x448] sm:$0xff]
        %v2400 = vld [vmem:[%s2221 + $0x450] sm:$0xff]
        %v2401 = vld [vmem:[%s2221 + $0x458] sm:$0xff]
        %v2402 = vld [vmem:[%s2221 + $0x460] sm:$0xff]
        %v2403 = vld [vmem:[%s2221 + $0x468] sm:$0xff]
        %v2404 = vld [vmem:[%s2221 + $0x470] sm:$0xff]
        %v2405 = vld [vmem:[%s2221 + $0x478] sm:$0xff]
        %v2406 = vld [vmem:[%s2221 + $0x480] sm:$0xff]
        %v2407 = vld [vmem:[%s2221 + $0x488] sm:$0xff]
        %v2408 = vld [vmem:[%s2221 + $0x490] sm:$0xff]
        %v2409 = vld [vmem:[%s2221 + $0x498] sm:$0xff]
        %v2410 = vld [vmem:[%s2221 + $0x4a0] sm:$0xff]
        %v2411 = vld [vmem:[%s2221 + $0x4a8] sm:$0xff]
        %v2412 = vld [vmem:[%s2221 + $0x4b0] sm:$0xff]
        %v2413 = vld [vmem:[%s2221 + $0x4b8] sm:$0xff]
        %v2414 = vld [vmem:[%s2221 + $0x4c0] sm:$0xff]
        %v2415 = vld [vmem:[%s2221 + $0x4c8] sm:$0xff]
        %v2416 = vld [vmem:[%s2221 + $0x4d0] sm:$0xff]
        %v2417 = vld [vmem:[%s2221 + $0x4d8] sm:$0xff]
        %v2418 = vld [vmem:[%s2221 + $0x4e0] sm:$0xff]
        %v2419 = vld [vmem:[%s2221 + $0x4e8] sm:$0xff]
        %v2420 = vld [vmem:[%s2221 + $0x4f0] sm:$0xff]
        %v2421 = vld [vmem:[%s2221 + $0x4f8] sm:$0xff]
        %v2422 = vld [vmem:[%s2221 + $0x500] sm:$0xff]
        %v2423 = vld [vmem:[%s2221 + $0x508] sm:$0xff]
        %v2424 = vld [vmem:[%s2221 + $0x510] sm:$0xff]
        %v2425 = vld [vmem:[%s2221 + $0x518] sm:$0xff]
        %v2426 = vld [vmem:[%s2221 + $0x520] sm:$0xff]
        %v2427 = vld [vmem:[%s2221 + $0x528] sm:$0xff]
        %v2428 = vld [vmem:[%s2221 + $0x530] sm:$0xff]
        %v2429 = vld [vmem:[%s2221 + $0x538] sm:$0xff]
        %v2430 = vld [vmem:[%s2221 + $0x540] sm:$0xff]
        %v2431 = vld [vmem:[%s2221 + $0x548] sm:$0xff]
        %v2432 = vld [vmem:[%s2221 + $0x550] sm:$0xff]
        %v2433 = vld [vmem:[%s2221 + $0x558] sm:$0xff]
        %v2434 = vld [vmem:[%s2221 + $0x560] sm:$0xff]
        %v2435 = vld [vmem:[%s2221 + $0x568] sm:$0xff]
        %v2436 = vld [vmem:[%s2221 + $0x570] sm:$0xff]
        %v2437 = vld [vmem:[%s2221 + $0x578] sm:$0xff]
        %v2438 = vld [vmem:[%s2221 + $0x580] sm:$0xff]
        %v2439 = vld [vmem:[%s2221 + $0x588] sm:$0xff]
        %v2440 = vld [vmem:[%s2221 + $0x590] sm:$0xff]
        %v2441 = vld [vmem:[%s2221 + $0x598] sm:$0xff]
        %v2442 = vld [vmem:[%s2221 + $0x5a0] sm:$0xff]
        %v2443 = vld [vmem:[%s2221 + $0x5a8] sm:$0xff]
        %v2444 = vld [vmem:[%s2221 + $0x5b0] sm:$0xff]
        %v2445 = vld [vmem:[%s2221 + $0x5b8] sm:$0xff]
        %v2446 = vld [vmem:[%s2221 + $0x5c0] sm:$0xff]
        %v2447 = vld [vmem:[%s2221 + $0x5c8] sm:$0xff]
        %v2448 = vld [vmem:[%s2221 + $0x5d0] sm:$0xff]
        %v2449 = vld [vmem:[%s2221 + $0x5d8] sm:$0xff]
        %v2450 = vld [vmem:[%s2221 + $0x5e0] sm:$0xff]
        %v2451 = vld [vmem:[%s2221 + $0x5e8] sm:$0xff]
        %v2452 = vld [vmem:[%s2221 + $0x5f0] sm:$0xff]
        %v2453 = vld [vmem:[%s2221 + $0x5f8] sm:$0xff]
        %v2454 = vld [vmem:[%s2221 + $0x600] sm:$0xff]
        %v2455 = vld [vmem:[%s2221 + $0x608] sm:$0xff]
        %v2456 = vld [vmem:[%s2221 + $0x610] sm:$0xff]
        %v2457 = vld [vmem:[%s2221 + $0x618] sm:$0xff]
        %v2458 = vld [vmem:[%s2221 + $0x620] sm:$0xff]
        %v2459 = vld [vmem:[%s2221 + $0x628] sm:$0xff]
        %v2460 = vld [vmem:[%s2221 + $0x630] sm:$0xff]
        %v2461 = vld [vmem:[%s2221 + $0x638] sm:$0xff]
        %v2462 = vld [vmem:[%s2221 + $0x640] sm:$0xff]
        %v2463 = vld [vmem:[%s2221 + $0x648] sm:$0xff]
        %v2464 = vld [vmem:[%s2221 + $0x650] sm:$0xff]
        %v2465 = vld [vmem:[%s2221 + $0x658] sm:$0xff]
        %v2466 = vld [vmem:[%s2221 + $0x660] sm:$0xff]
        %v2467 = vld [vmem:[%s2221 + $0x668] sm:$0xff]
        %v2468 = vld [vmem:[%s2221 + $0x670] sm:$0xff]
        %v2469 = vld [vmem:[%s2221 + $0x678] sm:$0xff]
        %v2470 = vld [vmem:[%s2221 + $0x680] sm:$0xff]
        %v2471 = vld [vmem:[%s2221 + $0x688] sm:$0xff]
        %v2472 = vld [vmem:[%s2221 + $0x690] sm:$0xff]
        %v2473 = vld [vmem:[%s2221 + $0x698] sm:$0xff]
        %v2474 = vld [vmem:[%s2221 + $0x6a0] sm:$0xff]
        %v2475 = vld [vmem:[%s2221 + $0x6a8] sm:$0xff]
        %v2476 = vld [vmem:[%s2221 + $0x6b0] sm:$0xff]
        %v2477 = vld [vmem:[%s2221 + $0x6b8] sm:$0xff]
        %v2478 = vld [vmem:[%s2221 + $0x6c0] sm:$0xff]
        %v2479 = vld [vmem:[%s2221 + $0x6c8] sm:$0xff]
        %v2480 = vld [vmem:[%s2221 + $0x6d0] sm:$0xff]
        %v2481 = vld [vmem:[%s2221 + $0x6d8] sm:$0xff]
        %v2482 = vld [vmem:[%s2221 + $0x6e0] sm:$0xff]
        %v2483 = vld [vmem:[%s2221 + $0x6e8] sm:$0xff]
        %v2484 = vld [vmem:[%s2221 + $0x6f0] sm:$0xff]
        %v2485 = vld [vmem:[%s2221 + $0x6f8] sm:$0xff]
        %v2486 = vld [vmem:[%s2221 + $0x700] sm:$0xff]
        %v2487 = vld [vmem:[%s2221 + $0x708] sm:$0xff]
        %v2488 = vld [vmem:[%s2221 + $0x710] sm:$0xff]
        %v2489 = vld [vmem:[%s2221 + $0x718] sm:$0xff]
        %v2490 = vld [vmem:[%s2221 + $0x720] sm:$0xff]
        %v2491 = vld [vmem:[%s2221 + $0x728] sm:$0xff]
        %v2492 = vld [vmem:[%s2221 + $0x730] sm:$0xff]
        %v2493 = vld [vmem:[%s2221 + $0x738] sm:$0xff]
        %v2494 = vld [vmem:[%s2221 + $0x740] sm:$0xff]
        %v2495 = vld [vmem:[%s2221 + $0x748] sm:$0xff]
        %v2496 = vld [vmem:[%s2221 + $0x750] sm:$0xff]
        %v2497 = vld [vmem:[%s2221 + $0x758] sm:$0xff]
        %v2498 = vld [vmem:[%s2221 + $0x760] sm:$0xff]
        %v2499 = vld [vmem:[%s2221 + $0x768] sm:$0xff]
        %v2500 = vld [vmem:[%s2221 + $0x770] sm:$0xff]
        %v2501 = vld [vmem:[%s2221 + $0x778] sm:$0xff]
        %v2502 = vld [vmem:[%s2221 + $0x780] sm:$0xff]
        %v2503 = vld [vmem:[%s2221 + $0x788] sm:$0xff]
        %v2504 = vld [vmem:[%s2221 + $0x790] sm:$0xff]
        %v2505 = vld [vmem:[%s2221 + $0x798] sm:$0xff]
        %v2506 = vld [vmem:[%s2221 + $0x7a0] sm:$0xff]
        %v2507 = vld [vmem:[%s2221 + $0x7a8] sm:$0xff]
        %v2508 = vld [vmem:[%s2221 + $0x7b0] sm:$0xff]
        %v2509 = vld [vmem:[%s2221 + $0x7b8] sm:$0xff]
        %v2510 = vld [vmem:[%s2221 + $0x7c0] sm:$0xff]
        %v2511 = vld [vmem:[%s2221 + $0x7c8] sm:$0xff]
        %v2512 = vld [vmem:[%s2221 + $0x7d0] sm:$0xff]
        %v2513 = vld [vmem:[%s2221 + $0x7d8] sm:$0xff]
        %v2514 = vld [vmem:[%s2221 + $0x7e0] sm:$0xff]
        %v2515 = vld [vmem:[%s2221 + $0x7e8] sm:$0xff]
        %v2516 = vld [vmem:[%s2221 + $0x7f0] sm:$0xff]
        %v2517 = vld [vmem:[%s2221 + $0x7f8] sm:$0xff]
        %v2518 = vld [vmem:[%s2221 + $0x800] sm:$0xff]
        %v2519 = vld [vmem:[%s2221 + $0x808] sm:$0xff]
        %v2520 = vld [vmem:[%s2221 + $0x810] sm:$0xff]
        %v2521 = vld [vmem:[%s2221 + $0x818] sm:$0xff]
        %v2522 = vld [vmem:[%s2221 + $0x820] sm:$0xff]
        %v2523 = vld [vmem:[%s2221 + $0x828] sm:$0xff]
        %v2524 = vld [vmem:[%s2221 + $0x830] sm:$0xff]
        %v2525 = vld [vmem:[%s2221 + $0x838] sm:$0xff]
        %v2526 = vld [vmem:[%s2221 + $0x840] sm:$0xff]
        %v2527 = vld [vmem:[%s2221 + $0x848] sm:$0xff]
        %v2528 = vld [vmem:[%s2221 + $0x850] sm:$0xff]
        %v2529 = vld [vmem:[%s2221 + $0x858] sm:$0xff]
        %v2530 = vld [vmem:[%s2221 + $0x860] sm:$0xff]
        %v2531 = vld [vmem:[%s2221 + $0x868] sm:$0xff]
        %v2532 = vld [vmem:[%s2221 + $0x870] sm:$0xff]
        %v2533 = vld [vmem:[%s2221 + $0x878] sm:$0xff]
        %v2534 = vld [vmem:[%s2221 + $0x880] sm:$0xff]
        %v2535 = vld [vmem:[%s2221 + $0x888] sm:$0xff]
        %v2536 = vld [vmem:[%s2221 + $0x890] sm:$0xff]
        %v2537 = vld [vmem:[%s2221 + $0x898] sm:$0xff]
        %v2538 = vld [vmem:[%s2221 + $0x8a0] sm:$0xff]
        %v2539 = vld [vmem:[%s2221 + $0x8a8] sm:$0xff]
        %v2540 = vld [vmem:[%s2221 + $0x8b0] sm:$0xff]
        %v2541 = vld [vmem:[%s2221 + $0x8b8] sm:$0xff]
        %v2542 = vld [vmem:[%s2221 + $0x8c0] sm:$0xff]
        %v2543 = vld [vmem:[%s2221 + $0x8c8] sm:$0xff]
        %v2544 = vld [vmem:[%s2221 + $0x8d0] sm:$0xff]
        %v2545 = vld [vmem:[%s2221 + $0x8d8] sm:$0xff]
        %v2546 = vld [vmem:[%s2221 + $0x8e0] sm:$0xff]
        %v2547 = vld [vmem:[%s2221 + $0x8e8] sm:$0xff]
        %v2548 = vld [vmem:[%s2221 + $0x8f0] sm:$0xff]
        %v2549 = vld [vmem:[%s2221 + $0x8f8] sm:$0xff]
        %v2550 = vld [vmem:[%s2221 + $0x900] sm:$0xff]
        %v2551 = vld [vmem:[%s2221 + $0x908] sm:$0xff]
        %v2552 = vld [vmem:[%s2221 + $0x910] sm:$0xff]
        %v2553 = vld [vmem:[%s2221 + $0x918] sm:$0xff]
        %v2554 = vld [vmem:[%s2221 + $0x920] sm:$0xff]
        %v2555 = vld [vmem:[%s2221 + $0x928] sm:$0xff]
        %v2556 = vld [vmem:[%s2221 + $0x930] sm:$0xff]
        %v2557 = vld [vmem:[%s2221 + $0x938] sm:$0xff]
        %v2558 = vld [vmem:[%s2221 + $0x940] sm:$0xff]
        %v2559 = vld [vmem:[%s2221 + $0x948] sm:$0xff]
        %v2560 = vld [vmem:[%s2221 + $0x950] sm:$0xff]
        %v2561 = vld [vmem:[%s2221 + $0x958] sm:$0xff]
        %v2562 = vld [vmem:[%s2221 + $0x960] sm:$0xff]
        %v2563 = vld [vmem:[%s2221 + $0x968] sm:$0xff]
        %v2564 = vld [vmem:[%s2221 + $0x970] sm:$0xff]
        %v2565 = vld [vmem:[%s2221 + $0x978] sm:$0xff]
        %v2566 = vld [vmem:[%s2221 + $0x980] sm:$0xff]
        %v2567 = vld [vmem:[%s2221 + $0x988] sm:$0xff]
        %v2568 = vld [vmem:[%s2221 + $0x990] sm:$0xff]
        %v2569 = vld [vmem:[%s2221 + $0x998] sm:$0xff]
        %v2570 = vld [vmem:[%s2221 + $0x9a0] sm:$0xff]
        %v2571 = vld [vmem:[%s2221 + $0x9a8] sm:$0xff]
        %v2572 = vld [vmem:[%s2221 + $0x9b0] sm:$0xff]
        %v2573 = vld [vmem:[%s2221 + $0x9b8] sm:$0xff]
        %v2574 = vld [vmem:[%s2221 + $0x9c0] sm:$0xff]
        %v2575 = vld [vmem:[%s2221 + $0x9c8] sm:$0xff]
        %v2576 = vld [vmem:[%s2221 + $0x9d0] sm:$0xff]
        %v2577 = vld [vmem:[%s2221 + $0x9d8] sm:$0xff]
        %v2578 = vld [vmem:[%s2221 + $0x9e0] sm:$0xff]
        %v2579 = vld [vmem:[%s2221 + $0x9e8] sm:$0xff]
        %v2580 = vld [vmem:[%s2221 + $0x9f0] sm:$0xff]
        %v2581 = vld [vmem:[%s2221 + $0x9f8] sm:$0xff]
        %v2582 = vld [vmem:[%s2221 + $0xa00] sm:$0xff]
        %v2583 = vld [vmem:[%s2221 + $0xa08] sm:$0xff]
        %v2584 = vld [vmem:[%s2221 + $0xa10] sm:$0xff]
        %v2585 = vld [vmem:[%s2221 + $0xa18] sm:$0xff]
        %v2586 = vld [vmem:[%s2221 + $0xa20] sm:$0xff]
        %v2587 = vld [vmem:[%s2221 + $0xa28] sm:$0xff]
        %v2588 = vld [vmem:[%s2221 + $0xa30] sm:$0xff]
        %v2589 = vld [vmem:[%s2221 + $0xa38] sm:$0xff]
        %v2590 = vld [vmem:[%s2221 + $0xa40] sm:$0xff]
        %v2591 = vld [vmem:[%s2221 + $0xa48] sm:$0xff]
        %v2592 = vld [vmem:[%s2221 + $0xa50] sm:$0xff]
        %v2593 = vld [vmem:[%s2221 + $0xa58] sm:$0xff]
        %v2594 = vld [vmem:[%s2221 + $0xa60] sm:$0xff]
        %v2595 = vld [vmem:[%s2221 + $0xa68] sm:$0xff]
        %v2596 = vld [vmem:[%s2221 + $0xa70] sm:$0xff]
        %v2597 = vld [vmem:[%s2221 + $0xa78] sm:$0xff]
        %v2598 = vld [vmem:[%s2221 + $0xa80] sm:$0xff]
        %v2599 = vld [vmem:[%s2221 + $0xa88] sm:$0xff]
        %v2600 = vld [vmem:[%s2221 + $0xa90] sm:$0xff]
        %v2601 = vld [vmem:[%s2221 + $0xa98] sm:$0xff]
        %v2602 = vld [vmem:[%s2221 + $0xaa0] sm:$0xff]
        %v2603 = vld [vmem:[%s2221 + $0xaa8] sm:$0xff]
        %v2604 = vld [vmem:[%s2221 + $0xab0] sm:$0xff]
        %v2605 = vld [vmem:[%s2221 + $0xab8] sm:$0xff]
        %v2606 = vld [vmem:[%s2221 + $0xac0] sm:$0xff]
        %v2607 = vld [vmem:[%s2221 + $0xac8] sm:$0xff]
        %v2608 = vld [vmem:[%s2221 + $0xad0] sm:$0xff]
        %v2609 = vld [vmem:[%s2221 + $0xad8] sm:$0xff]
        %v2610 = vld [vmem:[%s2221 + $0xae0] sm:$0xff]
        %v2611 = vld [vmem:[%s2221 + $0xae8] sm:$0xff]
        %v2612 = vld [vmem:[%s2221 + $0xaf0] sm:$0xff]
        %v2613 = vld [vmem:[%s2221 + $0xaf8] sm:$0xff]
        %v2614 = vld [vmem:[%s2221 + $0xb00] sm:$0xff]
        %v2615 = vld [vmem:[%s2221 + $0xb08] sm:$0xff]
        %v2616 = vld [vmem:[%s2221 + $0xb10] sm:$0xff]
        %v2617 = vld [vmem:[%s2221 + $0xb18] sm:$0xff]
        %v2618 = vld [vmem:[%s2221 + $0xb20] sm:$0xff]
        %v2619 = vld [vmem:[%s2221 + $0xb28] sm:$0xff]
        %v2620 = vld [vmem:[%s2221 + $0xb30] sm:$0xff]
        %v2621 = vld [vmem:[%s2221 + $0xb38] sm:$0xff]
        %v2622 = vld [vmem:[%s2221 + $0xb40] sm:$0xff]
        %v2623 = vld [vmem:[%s2221 + $0xb48] sm:$0xff]
        %v2624 = vld [vmem:[%s2221 + $0xb50] sm:$0xff]
        %v2625 = vld [vmem:[%s2221 + $0xb58] sm:$0xff]
        %v2626 = vld [vmem:[%s2221 + $0xb60] sm:$0xff]
        %v2627 = vld [vmem:[%s2221 + $0xb68] sm:$0xff]
        %v2628 = vld [vmem:[%s2221 + $0xb70] sm:$0xff]
        %v2629 = vld [vmem:[%s2221 + $0xb78] sm:$0xff]
        %v2630 = vld [vmem:[%s2221 + $0xb80] sm:$0xff]
        %v2631 = vld [vmem:[%s2221 + $0xb88] sm:$0xff]
        %v2632 = vld [vmem:[%s2221 + $0xb90] sm:$0xff]
        %v2633 = vld [vmem:[%s2221 + $0xb98] sm:$0xff]
        %v2634 = vld [vmem:[%s2221 + $0xba0] sm:$0xff]
        %v2635 = vld [vmem:[%s2221 + $0xba8] sm:$0xff]
        %v2636 = vld [vmem:[%s2221 + $0xbb0] sm:$0xff]
        %v2637 = vld [vmem:[%s2221 + $0xbb8] sm:$0xff]
        %v2638 = vld [vmem:[%s2221 + $0xbc0] sm:$0xff]
        %v2639 = vld [vmem:[%s2221 + $0xbc8] sm:$0xff]
        %v2640 = vld [vmem:[%s2221 + $0xbd0] sm:$0xff]
        %v2641 = vld [vmem:[%s2221 + $0xbd8] sm:$0xff]
        %v2642 = vld [vmem:[%s2221 + $0xbe0] sm:$0xff]
        %v2643 = vld [vmem:[%s2221 + $0xbe8] sm:$0xff]
        %v2644 = vld [vmem:[%s2221 + $0xbf0] sm:$0xff]
        %v2645 = vld [vmem:[%s2221 + $0xbf8] sm:$0xff]
        %v2646 = vld [vmem:[%s2221 + $0xc00] sm:$0xff]
        %v2647 = vld [vmem:[%s2221 + $0xc08] sm:$0xff]
        %v2648 = vld [vmem:[%s2221 + $0xc10] sm:$0xff]
        %v2649 = vld [vmem:[%s2221 + $0xc18] sm:$0xff]
        %v2650 = vld [vmem:[%s2221 + $0xc20] sm:$0xff]
        %v2651 = vld [vmem:[%s2221 + $0xc28] sm:$0xff]
        %v2652 = vld [vmem:[%s2221 + $0xc30] sm:$0xff]
        %v2653 = vld [vmem:[%s2221 + $0xc38] sm:$0xff]
        %v2654 = vld [vmem:[%s2221 + $0xc40] sm:$0xff]
        %v2655 = vld [vmem:[%s2221 + $0xc48] sm:$0xff]
        %v2656 = vld [vmem:[%s2221 + $0xc50] sm:$0xff]
        %v2657 = vld [vmem:[%s2221 + $0xc58] sm:$0xff]
        %v2658 = vld [vmem:[%s2221 + $0xc60] sm:$0xff]
        %v2659 = vld [vmem:[%s2221 + $0xc68] sm:$0xff]
        %v2660 = vld [vmem:[%s2221 + $0xc70] sm:$0xff]
        %v2661 = vld [vmem:[%s2221 + $0xc78] sm:$0xff]
        %v2662 = vld [vmem:[%s2221 + $0xc80] sm:$0xff]
        %v2663 = vld [vmem:[%s2221 + $0xc88] sm:$0xff]
        %v2664 = vld [vmem:[%s2221 + $0xc90] sm:$0xff]
        %v2665 = vld [vmem:[%s2221 + $0xc98] sm:$0xff]
        %v2666 = vld [vmem:[%s2221 + $0xca0] sm:$0xff]
        %v2667 = vld [vmem:[%s2221 + $0xca8] sm:$0xff]
        %v2668 = vld [vmem:[%s2221 + $0xcb0] sm:$0xff]
        %v2669 = vld [vmem:[%s2221 + $0xcb8] sm:$0xff]
        %v2670 = vld [vmem:[%s2221 + $0xcc0] sm:$0xff]
        %v2671 = vld [vmem:[%s2221 + $0xcc8] sm:$0xff]
        %v2672 = vld [vmem:[%s2221 + $0xcd0] sm:$0xff]
        %v2673 = vld [vmem:[%s2221 + $0xcd8] sm:$0xff]
        %v2674 = vld [vmem:[%s2221 + $0xce0] sm:$0xff]
        %v2675 = vld [vmem:[%s2221 + $0xce8] sm:$0xff]
        %v2676 = vld [vmem:[%s2221 + $0xcf0] sm:$0xff]
        %v2677 = vld [vmem:[%s2221 + $0xcf8] sm:$0xff]
        %v2678 = vld [vmem:[%s2221 + $0xd00] sm:$0xff]
        %v2679 = vld [vmem:[%s2221 + $0xd08] sm:$0xff]
        %v2680 = vld [vmem:[%s2221 + $0xd10] sm:$0xff]
        %v2681 = vld [vmem:[%s2221 + $0xd18] sm:$0xff]
        %v2682 = vld [vmem:[%s2221 + $0xd20] sm:$0xff]
        %v2683 = vld [vmem:[%s2221 + $0xd28] sm:$0xff]
        %v2684 = vld [vmem:[%s2221 + $0xd30] sm:$0xff]
        %v2685 = vld [vmem:[%s2221 + $0xd38] sm:$0xff]
        %v2686 = vld [vmem:[%s2221 + $0xd40] sm:$0xff]
        %v2687 = vld [vmem:[%s2221 + $0xd48] sm:$0xff]
        %v2688 = vld [vmem:[%s2221 + $0xd50] sm:$0xff]
        %v2689 = vld [vmem:[%s2221 + $0xd58] sm:$0xff]
        %v2690 = vld [vmem:[%s2221 + $0xd60] sm:$0xff]
        %v2691 = vld [vmem:[%s2221 + $0xd68] sm:$0xff]
        %v2692 = vld [vmem:[%s2221 + $0xd70] sm:$0xff]
        %v2693 = vld [vmem:[%s2221 + $0xd78] sm:$0xff]
        %v2694 = vld [vmem:[%s2221 + $0xd80] sm:$0xff]
        %v2695 = vld [vmem:[%s2221 + $0xd88] sm:$0xff]
        %v2696 = vld [vmem:[%s2221 + $0xd90] sm:$0xff]
        %v2697 = vld [vmem:[%s2221 + $0xd98] sm:$0xff]
        %v2698 = vld [vmem:[%s2221 + $0xda0] sm:$0xff]
        %v2699 = vld [vmem:[%s2221 + $0xda8] sm:$0xff]
        %v2700 = vld [vmem:[%s2221 + $0xdb0] sm:$0xff]
        %v2701 = vld [vmem:[%s2221 + $0xdb8] sm:$0xff]
        %v2702 = vld [vmem:[%s2221 + $0xdc0] sm:$0xff]
        %v2703 = vld [vmem:[%s2221 + $0xdc8] sm:$0xff]
        %v2704 = vld [vmem:[%s2221 + $0xdd0] sm:$0xff]
        %v2705 = vld [vmem:[%s2221 + $0xdd8] sm:$0xff]
        %v2706 = vld [vmem:[%s2221 + $0xde0] sm:$0xff]
        %v2707 = vld [vmem:[%s2221 + $0xde8] sm:$0xff]
        %v2708 = vld [vmem:[%s2221 + $0xdf0] sm:$0xff]
        %v2709 = vld [vmem:[%s2221 + $0xdf8] sm:$0xff]
        %v2710 = vld [vmem:[%s2221 + $0xe00] sm:$0xff]
        %v2711 = vld [vmem:[%s2221 + $0xe08] sm:$0xff]
        %v2712 = vld [vmem:[%s2221 + $0xe10] sm:$0xff]
        %v2713 = vld [vmem:[%s2221 + $0xe18] sm:$0xff]
        %v2714 = vld [vmem:[%s2221 + $0xe20] sm:$0xff]
        %v2715 = vld [vmem:[%s2221 + $0xe28] sm:$0xff]
        %v2716 = vld [vmem:[%s2221 + $0xe30] sm:$0xff]
        %v2717 = vld [vmem:[%s2221 + $0xe38] sm:$0xff]
        %v2718 = vld [vmem:[%s2221 + $0xe40] sm:$0xff]
        %v2719 = vld [vmem:[%s2221 + $0xe48] sm:$0xff]
        %v2720 = vld [vmem:[%s2221 + $0xe50] sm:$0xff]
        %v2721 = vld [vmem:[%s2221 + $0xe58] sm:$0xff]
        %v2722 = vld [vmem:[%s2221 + $0xe60] sm:$0xff]
        %v2723 = vld [vmem:[%s2221 + $0xe68] sm:$0xff]
        %v2724 = vld [vmem:[%s2221 + $0xe70] sm:$0xff]
        %v2725 = vld [vmem:[%s2221 + $0xe78] sm:$0xff]
        %v2726 = vld [vmem:[%s2221 + $0xe80] sm:$0xff]
        %v2727 = vld [vmem:[%s2221 + $0xe88] sm:$0xff]
        %v2728 = vld [vmem:[%s2221 + $0xe90] sm:$0xff]
        %v2729 = vld [vmem:[%s2221 + $0xe98] sm:$0xff]
        %v2730 = vld [vmem:[%s2221 + $0xea0] sm:$0xff]
        %v2731 = vld [vmem:[%s2221 + $0xea8] sm:$0xff]
        %v2732 = vld [vmem:[%s2221 + $0xeb0] sm:$0xff]
        %v2733 = vld [vmem:[%s2221 + $0xeb8] sm:$0xff]
        %v2734 = vld [vmem:[%s2221 + $0xec0] sm:$0xff]
        %v2735 = vld [vmem:[%s2221 + $0xec8] sm:$0xff]
        %v2736 = vld [vmem:[%s2221 + $0xed0] sm:$0xff]
        %v2737 = vld [vmem:[%s2221 + $0xed8] sm:$0xff]
        %v2738 = vld [vmem:[%s2221 + $0xee0] sm:$0xff]
        %v2739 = vld [vmem:[%s2221 + $0xee8] sm:$0xff]
        %v2740 = vld [vmem:[%s2221 + $0xef0] sm:$0xff]
        %v2741 = vld [vmem:[%s2221 + $0xef8] sm:$0xff]
        %v2742 = vld [vmem:[%s2221 + $0xf00] sm:$0xff]
        %v2743 = vld [vmem:[%s2221 + $0xf08] sm:$0xff]
        %v2744 = vld [vmem:[%s2221 + $0xf10] sm:$0xff]
        %v2745 = vld [vmem:[%s2221 + $0xf18] sm:$0xff]
        %v2746 = vld [vmem:[%s2221 + $0xf20] sm:$0xff]
        %v2747 = vld [vmem:[%s2221 + $0xf28] sm:$0xff]
        %v2748 = vld [vmem:[%s2221 + $0xf30] sm:$0xff]
        %v2749 = vld [vmem:[%s2221 + $0xf38] sm:$0xff]
        %v2750 = vld [vmem:[%s2221 + $0xf40] sm:$0xff]
        %v2751 = vld [vmem:[%s2221 + $0xf48] sm:$0xff]
        %v2752 = vld [vmem:[%s2221 + $0xf50] sm:$0xff]
        %v2753 = vld [vmem:[%s2221 + $0xf58] sm:$0xff]
        %v2754 = vld [vmem:[%s2221 + $0xf60] sm:$0xff]
        %v2755 = vld [vmem:[%s2221 + $0xf68] sm:$0xff]
        %v2756 = vld [vmem:[%s2221 + $0xf70] sm:$0xff]
        %v2757 = vld [vmem:[%s2221 + $0xf78] sm:$0xff]
        %v2758 = vld [vmem:[%s2221 + $0xf80] sm:$0xff]
        %v2759 = vld [vmem:[%s2221 + $0xf88] sm:$0xff]
        %v2760 = vld [vmem:[%s2221 + $0xf90] sm:$0xff]
        %v2761 = vld [vmem:[%s2221 + $0xf98] sm:$0xff]
        %v2762 = vld [vmem:[%s2221 + $0xfa0] sm:$0xff]
        %v2763 = vld [vmem:[%s2221 + $0xfa8] sm:$0xff]
        %v2764 = vld [vmem:[%s2221 + $0xfb0] sm:$0xff]
        %v2765 = vld [vmem:[%s2221 + $0xfb8] sm:$0xff]
        %v2766 = vld [vmem:[%s2221 + $0xfc0] sm:$0xff]
        %v2767 = vld [vmem:[%s2221 + $0xfc8] sm:$0xff]
        %v2768 = vld [vmem:[%s2221 + $0xfd0] sm:$0xff]
        %v2769 = vld [vmem:[%s2221 + $0xfd8] sm:$0xff]
        %v2770 = vld [vmem:[%s2221 + $0xfe0] sm:$0xff]
        %v2771 = vld [vmem:[%s2221 + $0xfe8] sm:$0xff]
        %v2772 = vld [vmem:[%s2221 + $0xff0] sm:$0xff]
        %v2773 = vld [vmem:[%s2221 + $0xff8] sm:$0xff]
        %v2774 = vld [vmem:[%s2221 + $0x1000] sm:$0xff]
        %v2775 = vld [vmem:[%s2221 + $0x1008] sm:$0xff]
        %v2776 = vld [vmem:[%s2221 + $0x1010] sm:$0xff]
        %v2777 = vld [vmem:[%s2221 + $0x1018] sm:$0xff]
        %v2778 = vld [vmem:[%s2221 + $0x1020] sm:$0xff]
        %v2779 = vld [vmem:[%s2221 + $0x1028] sm:$0xff]
        %v2780 = vld [vmem:[%s2221 + $0x1030] sm:$0xff]
        %v2781 = vld [vmem:[%s2221 + $0x1038] sm:$0xff]
        %v2782 = vld [vmem:[%s2221 + $0x1040] sm:$0xff]
        %v2783 = vld [vmem:[%s2221 + $0x1048] sm:$0xff]
        %v2784 = vld [vmem:[%s2221 + $0x1050] sm:$0xff]
        %v2785 = vld [vmem:[%s2221 + $0x1058] sm:$0xff]
        %v2786 = vld [vmem:[%s2221 + $0x1060] sm:$0xff]
        %v2787 = vld [vmem:[%s2221 + $0x1068] sm:$0xff]
        %v2788 = vld [vmem:[%s2221 + $0x1070] sm:$0xff]
        %v2789 = vld [vmem:[%s2221 + $0x1078] sm:$0xff]
        %v2790 = vld [vmem:[%s2221 + $0x1080] sm:$0xff]
        %v2791 = vld [vmem:[%s2221 + $0x1088] sm:$0xff]
        %v2792 = vld [vmem:[%s2221 + $0x1090] sm:$0xff]
        %v2793 = vld [vmem:[%s2221 + $0x1098] sm:$0xff]
        %v2794 = vld [vmem:[%s2221 + $0x10a0] sm:$0xff]
        %v2795 = vld [vmem:[%s2221 + $0x10a8] sm:$0xff]
        %v2796 = vld [vmem:[%s2221 + $0x10b0] sm:$0xff]
        %v2797 = vld [vmem:[%s2221 + $0x10b8] sm:$0xff]
        %v2798 = vld [vmem:[%s2221 + $0x10c0] sm:$0xff]
        %v2799 = vld [vmem:[%s2221 + $0x10c8] sm:$0xff]
        %v2800 = vld [vmem:[%s2221 + $0x10d0] sm:$0xff]
        %v2801 = vld [vmem:[%s2221 + $0x10d8] sm:$0xff]
        %v2802 = vld [vmem:[%s2221 + $0x10e0] sm:$0xff]
        %v2803 = vld [vmem:[%s2221 + $0x10e8] sm:$0xff]
        %v2804 = vld [vmem:[%s2221 + $0x10f0] sm:$0xff]
        %v2805 = vld [vmem:[%s2221 + $0x10f8] sm:$0xff]
        %v2806 = vld [vmem:[%s2221 + $0x1100] sm:$0xff]
        %v2807 = vld [vmem:[%s2221 + $0x1108] sm:$0xff]
        %v2808 = vld [vmem:[%s2221 + $0x1110] sm:$0xff]
        %v2809 = vld [vmem:[%s2221 + $0x1118] sm:$0xff]
        %v2810 = vld [vmem:[%s2221 + $0x1120] sm:$0xff]
        %v2811 = vld [vmem:[%s2221 + $0x1128] sm:$0xff]
        %v2812 = vld [vmem:[%s2221 + $0x1130] sm:$0xff]
        %v2813 = vld [vmem:[%s2221 + $0x1138] sm:$0xff]
        %v2814 = vld [vmem:[%s2221 + $0x1140] sm:$0xff]
        %v2815 = vld [vmem:[%s2221 + $0x1148] sm:$0xff]
        %v2816 = vld [vmem:[%s2221 + $0x1150] sm:$0xff]
        %v2817 = vld [vmem:[%s2221 + $0x1158] sm:$0xff]
        %v2818 = vld [vmem:[%s2221 + $0x1160] sm:$0xff]
        %v2819 = vld [vmem:[%s2221 + $0x1168] sm:$0xff]
        %v2820 = vld [vmem:[%s2221 + $0x1170] sm:$0xff]
        %v2821 = vld [vmem:[%s2221 + $0x1178] sm:$0xff]
        %v2822 = vld [vmem:[%s2221 + $0x1180] sm:$0xff]
        %v2823 = vld [vmem:[%s2221 + $0x1188] sm:$0xff]
        %v2824 = vld [vmem:[%s2221 + $0x1190] sm:$0xff]
        %v2825 = vld [vmem:[%s2221 + $0x1198] sm:$0xff]
        %v2826 = vld [vmem:[%s2221 + $0x11a0] sm:$0xff]
        %v2827 = vld [vmem:[%s2221 + $0x11a8] sm:$0xff]
        %v2828 = vld [vmem:[%s2221 + $0x11b0] sm:$0xff]
        %v2829 = vld [vmem:[%s2221 + $0x11b8] sm:$0xff]
        %v2830 = vld [vmem:[%s2221 + $0x11c0] sm:$0xff]
        %v2831 = vld [vmem:[%s2221 + $0x11c8] sm:$0xff]
        %v2832 = vld [vmem:[%s2221 + $0x11d0] sm:$0xff]
        %v2833 = vld [vmem:[%s2221 + $0x11d8] sm:$0xff]
        %v2834 = vld [vmem:[%s2221 + $0x11e0] sm:$0xff]
        %v2835 = vld [vmem:[%s2221 + $0x11e8] sm:$0xff]
        %v2836 = vld [vmem:[%s2221 + $0x11f0] sm:$0xff]
        %v2837 = vld [vmem:[%s2221 + $0x11f8] sm:$0xff]
        %v2838 = vld [vmem:[%s2221 + $0x1200] sm:$0xff]
        %v2839 = vld [vmem:[%s2221 + $0x1208] sm:$0xff]
        %v2840 = vld [vmem:[%s2221 + $0x1210] sm:$0xff]
        %v2841 = vld [vmem:[%s2221 + $0x1218] sm:$0xff]
        %v2842 = vld [vmem:[%s2221 + $0x1220] sm:$0xff]
        %v2843 = vld [vmem:[%s2221 + $0x1228] sm:$0xff]
        %v2844 = vld [vmem:[%s2221 + $0x1230] sm:$0xff]
        %v2845 = vld [vmem:[%s2221 + $0x1238] sm:$0xff]
        %v2846 = vld [vmem:[%s2221 + $0x1240] sm:$0xff]
        %v2847 = vld [vmem:[%s2221 + $0x1248] sm:$0xff]
        %v2848 = vld [vmem:[%s2221 + $0x1250] sm:$0xff]
        %v2849 = vld [vmem:[%s2221 + $0x1258] sm:$0xff]
        %v2850 = vld [vmem:[%s2221 + $0x1260] sm:$0xff]
        %v2851 = vld [vmem:[%s2221 + $0x1268] sm:$0xff]
        %v2852 = vld [vmem:[%s2221 + $0x1270] sm:$0xff]
        %v2853 = vld [vmem:[%s2221 + $0x1278] sm:$0xff]
        %v2854 = vld [vmem:[%s2221 + $0x1280] sm:$0xff]
        %v2855 = vld [vmem:[%s2221 + $0x1288] sm:$0xff]
        %v2856 = vld [vmem:[%s2221 + $0x1290] sm:$0xff]
        %v2857 = vld [vmem:[%s2221 + $0x1298] sm:$0xff]
        %v2858 = vld [vmem:[%s2221 + $0x12a0] sm:$0xff]
        %v2859 = vld [vmem:[%s2221 + $0x12a8] sm:$0xff]
        %v2860 = vld [vmem:[%s2221 + $0x12b0] sm:$0xff]
        %v2861 = vld [vmem:[%s2221 + $0x12b8] sm:$0xff]
        %v2862 = vld [vmem:[%s2221 + $0x12c0] sm:$0xff]
        %v2863 = vld [vmem:[%s2221 + $0x12c8] sm:$0xff]
        %v2864 = vld [vmem:[%s2221 + $0x12d0] sm:$0xff]
        %v2865 = vld [vmem:[%s2221 + $0x12d8] sm:$0xff]
        %v2866 = vld [vmem:[%s2221 + $0x12e0] sm:$0xff]
        %v2867 = vld [vmem:[%s2221 + $0x12e8] sm:$0xff]
        %v2868 = vld [vmem:[%s2221 + $0x12f0] sm:$0xff]
        %v2869 = vld [vmem:[%s2221 + $0x12f8] sm:$0xff]
        %v2870 = vld [vmem:[%s2221 + $0x1300] sm:$0xff]
        %v2871 = vld [vmem:[%s2221 + $0x1308] sm:$0xff]
        %v2872 = vld [vmem:[%s2221 + $0x1310] sm:$0xff]
        %v2873 = vld [vmem:[%s2221 + $0x1318] sm:$0xff]
        %v2874 = vld [vmem:[%s2221 + $0x1320] sm:$0xff]
        %v2875 = vld [vmem:[%s2221 + $0x1328] sm:$0xff]
        %v2876 = vld [vmem:[%s2221 + $0x1330] sm:$0xff]
        %v2877 = vld [vmem:[%s2221 + $0x1338] sm:$0xff]
        %v2878 = vld [vmem:[%s2221 + $0x1340] sm:$0xff]
        %v2879 = vld [vmem:[%s2221 + $0x1348] sm:$0xff]
        %v2880 = vld [vmem:[%s2221 + $0x1350] sm:$0xff]
        %v2881 = vld [vmem:[%s2221 + $0x1358] sm:$0xff]
        %v2882 = vld [vmem:[%s2221 + $0x1360] sm:$0xff]
        %v2883 = vld [vmem:[%s2221 + $0x1368] sm:$0xff]
        %v2884 = vld [vmem:[%s2221 + $0x1370] sm:$0xff]
        %v2885 = vld [vmem:[%s2221 + $0x1378] sm:$0xff]
        %v2886 = vld [vmem:[%s2221 + $0x1380] sm:$0xff]
        %v2887 = vld [vmem:[%s2221 + $0x1388] sm:$0xff]
        %v2888 = vld [vmem:[%s2221 + $0x1390] sm:$0xff]
        %v2889 = vld [vmem:[%s2221 + $0x1398] sm:$0xff]
        %v2890 = vld [vmem:[%s2221 + $0x13a0] sm:$0xff]
        %v2891 = vld [vmem:[%s2221 + $0x13a8] sm:$0xff]
        %v2892 = vld [vmem:[%s2221 + $0x13b0] sm:$0xff]
        %v2893 = vld [vmem:[%s2221 + $0x13b8] sm:$0xff]
        %v2894 = vld [vmem:[%s2221 + $0x13c0] sm:$0xff]
        %v2895 = vld [vmem:[%s2221 + $0x13c8] sm:$0xff]
        %v2896 = vld [vmem:[%s2221 + $0x13d0] sm:$0xff]
        %v2897 = vld [vmem:[%s2221 + $0x13d8] sm:$0xff]
        %v2898 = vld [vmem:[%s2221 + $0x13e0] sm:$0xff]
        %v2899 = vld [vmem:[%s2221 + $0x13e8] sm:$0xff]
        %v2900 = vld [vmem:[%s2221 + $0x13f0] sm:$0xff]
        %v2901 = vld [vmem:[%s2221 + $0x13f8] sm:$0xff]
        %v2902 = vld [vmem:[%s2221 + $0x1400] sm:$0xff]
        %v2903 = vld [vmem:[%s2221 + $0x1408] sm:$0xff]
        %v2904 = vld [vmem:[%s2221 + $0x1410] sm:$0xff]
        %v2905 = vld [vmem:[%s2221 + $0x1418] sm:$0xff]
        %v2906 = vld [vmem:[%s2221 + $0x1420] sm:$0xff]
        %v2907 = vld [vmem:[%s2221 + $0x1428] sm:$0xff]
        %v2908 = vld [vmem:[%s2221 + $0x1430] sm:$0xff]
        %v2909 = vld [vmem:[%s2221 + $0x1438] sm:$0xff]
        %v2910 = vld [vmem:[%s2221 + $0x1440] sm:$0xff]
        %v2911 = vld [vmem:[%s2221 + $0x1448] sm:$0xff]
        %v2912 = vld [vmem:[%s2221 + $0x1450] sm:$0xff]
        %v2913 = vld [vmem:[%s2221 + $0x1458] sm:$0xff]
        %v2914 = vld [vmem:[%s2221 + $0x1460] sm:$0xff]
        %v2915 = vld [vmem:[%s2221 + $0x1468] sm:$0xff]
        %v2916 = vld [vmem:[%s2221 + $0x1470] sm:$0xff]
        %v2917 = vld [vmem:[%s2221 + $0x1478] sm:$0xff]
        %v2918 = vld [vmem:[%s2221 + $0x1480] sm:$0xff]
        %v2919 = vld [vmem:[%s2221 + $0x1488] sm:$0xff]
        %v2920 = vld [vmem:[%s2221 + $0x1490] sm:$0xff]
        %v2921 = vld [vmem:[%s2221 + $0x1498] sm:$0xff]
        %v2922 = vld [vmem:[%s2221 + $0x14a0] sm:$0xff]
        %v2923 = vld [vmem:[%s2221 + $0x14a8] sm:$0xff]
        %v2924 = vld [vmem:[%s2221 + $0x14b0] sm:$0xff]
        %v2925 = vld [vmem:[%s2221 + $0x14b8] sm:$0xff]
        %v2926 = vld [vmem:[%s2221 + $0x14c0] sm:$0xff]
        %v2927 = vld [vmem:[%s2221 + $0x14c8] sm:$0xff]
        %v2928 = vld [vmem:[%s2221 + $0x14d0] sm:$0xff]
        %v2929 = vld [vmem:[%s2221 + $0x14d8] sm:$0xff]
        %v2930 = vld [vmem:[%s2221 + $0x14e0] sm:$0xff]
        %v2931 = vld [vmem:[%s2221 + $0x14e8] sm:$0xff]
        %v2932 = vld [vmem:[%s2221 + $0x14f0] sm:$0xff]
        %v2933 = vld [vmem:[%s2221 + $0x14f8] sm:$0xff]
        %v2934 = vld [vmem:[%s2221 + $0x1500] sm:$0xff]
        %v2935 = vld [vmem:[%s2221 + $0x1508] sm:$0xff]
        %v2936 = vld [vmem:[%s2221 + $0x1510] sm:$0xff]
        %v2937 = vld [vmem:[%s2221 + $0x1518] sm:$0xff]
        %v2938 = vld [vmem:[%s2221 + $0x1520] sm:$0xff]
        %v2939 = vld [vmem:[%s2221 + $0x1528] sm:$0xff]
        %v2940 = vld [vmem:[%s2221 + $0x1530] sm:$0xff]
        %v2941 = vld [vmem:[%s2221 + $0x1538] sm:$0xff]
        %v2942 = vld [vmem:[%s2221 + $0x1540] sm:$0xff]
        %v2943 = vld [vmem:[%s2221 + $0x1548] sm:$0xff]
        %v2944 = vld [vmem:[%s2221 + $0x1550] sm:$0xff]
        %v2945 = vld [vmem:[%s2221 + $0x1558] sm:$0xff]
        %v2946 = vld [vmem:[%s2221 + $0x1560] sm:$0xff]
        %v2947 = vld [vmem:[%s2221 + $0x1568] sm:$0xff]
        %v2948 = vld [vmem:[%s2221 + $0x1570] sm:$0xff]
        %v2949 = vld [vmem:[%s2221 + $0x1578] sm:$0xff]
        %v2950 = vld [vmem:[%s2221 + $0x1580] sm:$0xff]
        %v2951 = vld [vmem:[%s2221 + $0x1588] sm:$0xff]
        %v2952 = vld [vmem:[%s2221 + $0x1590] sm:$0xff]
        %v2953 = vld [vmem:[%s2221 + $0x1598] sm:$0xff]
        %v2954 = vld [vmem:[%s2221 + $0x15a0] sm:$0xff]
        %v2955 = vld [vmem:[%s2221 + $0x15a8] sm:$0xff]
        %v2956 = vld [vmem:[%s2221 + $0x15b0] sm:$0xff]
        %v2957 = vld [vmem:[%s2221 + $0x15b8] sm:$0xff]
        %v2958 = vld [vmem:[%s2221 + $0x15c0] sm:$0xff]
        %v2959 = vld [vmem:[%s2221 + $0x15c8] sm:$0xff]
        %v2960 = vld [vmem:[%s2221 + $0x15d0] sm:$0xff]
        %v2961 = vld [vmem:[%s2221 + $0x15d8] sm:$0xff]
        %v2962 = vld [vmem:[%s2221 + $0x15e0] sm:$0xff]
        %v2963 = vld [vmem:[%s2221 + $0x15e8] sm:$0xff]
        %v2964 = vld [vmem:[%s2221 + $0x15f0] sm:$0xff]
        %v2965 = vld [vmem:[%s2221 + $0x15f8] sm:$0xff]
        %v2966 = vld [vmem:[%s2221 + $0x1600] sm:$0xff]
        %v2967 = vld [vmem:[%s2221 + $0x1608] sm:$0xff]
        %v2968 = vld [vmem:[%s2221 + $0x1610] sm:$0xff]
        %v2969 = vld [vmem:[%s2221 + $0x1618] sm:$0xff]
        %v2970 = vld [vmem:[%s2221 + $0x1620] sm:$0xff]
        %v2971 = vld [vmem:[%s2221 + $0x1628] sm:$0xff]
        %v2972 = vld [vmem:[%s2221 + $0x1630] sm:$0xff]
        %v2973 = vld [vmem:[%s2221 + $0x1638] sm:$0xff]
        %v2974 = vld [vmem:[%s2221 + $0x1640] sm:$0xff]
        %v2975 = vld [vmem:[%s2221 + $0x1648] sm:$0xff]
        %v2976 = vld [vmem:[%s2221 + $0x1650] sm:$0xff]
        %v2977 = vld [vmem:[%s2221 + $0x1658] sm:$0xff]
        %v2978 = vld [vmem:[%s2221 + $0x1660] sm:$0xff]
        %v2979 = vld [vmem:[%s2221 + $0x1668] sm:$0xff]
        %v2980 = vld [vmem:[%s2221 + $0x1670] sm:$0xff]
        %v2981 = vld [vmem:[%s2221 + $0x1678] sm:$0xff]
        %v2982 = vld [vmem:[%s2221 + $0x1680] sm:$0xff]
        %v2983 = vld [vmem:[%s2221 + $0x1688] sm:$0xff]
        %v2984 = vld [vmem:[%s2221 + $0x1690] sm:$0xff]
        %v2985 = vld [vmem:[%s2221 + $0x1698] sm:$0xff]
        %v2986 = vld [vmem:[%s2221 + $0x16a0] sm:$0xff]
        %v2987 = vld [vmem:[%s2221 + $0x16a8] sm:$0xff]
        %v2988 = vld [vmem:[%s2221 + $0x16b0] sm:$0xff]
        %v2989 = vld [vmem:[%s2221 + $0x16b8] sm:$0xff]
        %v2990 = vld [vmem:[%s2221 + $0x16c0] sm:$0xff]
        %v2991 = vld [vmem:[%s2221 + $0x16c8] sm:$0xff]
        %v2992 = vld [vmem:[%s2221 + $0x16d0] sm:$0xff]
        %v2993 = vld [vmem:[%s2221 + $0x16d8] sm:$0xff]
        %v2994 = vld [vmem:[%s2221 + $0x16e0] sm:$0xff]
        %v2995 = vld [vmem:[%s2221 + $0x16e8] sm:$0xff]
        %v2996 = vld [vmem:[%s2221 + $0x16f0] sm:$0xff]
        %v2997 = vld [vmem:[%s2221 + $0x16f8] sm:$0xff]
        %v2998 = vld [vmem:[%s2221 + $0x1700] sm:$0xff]
        %v2999 = vld [vmem:[%s2221 + $0x1708] sm:$0xff]
        %v3000 = vld [vmem:[%s2221 + $0x1710] sm:$0xff]
        %v3001 = vld [vmem:[%s2221 + $0x1718] sm:$0xff]
        %v3002 = vld [vmem:[%s2221 + $0x1720] sm:$0xff]
        %v3003 = vld [vmem:[%s2221 + $0x1728] sm:$0xff]
        %v3004 = vld [vmem:[%s2221 + $0x1730] sm:$0xff]
        %v3005 = vld [vmem:[%s2221 + $0x1738] sm:$0xff]
        %v3006 = vld [vmem:[%s2221 + $0x1740] sm:$0xff]
        %v3007 = vld [vmem:[%s2221 + $0x1748] sm:$0xff]
        %v3008 = vld [vmem:[%s2221 + $0x1750] sm:$0xff]
        %v3009 = vld [vmem:[%s2221 + $0x1758] sm:$0xff]
        %v3010 = vld [vmem:[%s2221 + $0x1760] sm:$0xff]
        %v3011 = vld [vmem:[%s2221 + $0x1768] sm:$0xff]
        %v3012 = vld [vmem:[%s2221 + $0x1770] sm:$0xff]
        %v3013 = vld [vmem:[%s2221 + $0x1778] sm:$0xff]
        %v3014 = vld [vmem:[%s2221 + $0x1780] sm:$0xff]
        %v3015 = vld [vmem:[%s2221 + $0x1788] sm:$0xff]
        %v3016 = vld [vmem:[%s2221 + $0x1790] sm:$0xff]
        %v3017 = vld [vmem:[%s2221 + $0x1798] sm:$0xff]
        %v3018 = vld [vmem:[%s2221 + $0x17a0] sm:$0xff]
        %v3019 = vld [vmem:[%s2221 + $0x17a8] sm:$0xff]
        %v3020 = vld [vmem:[%s2221 + $0x17b0] sm:$0xff]
        %v3021 = vld [vmem:[%s2221 + $0x17b8] sm:$0xff]
        %v3022 = vld [vmem:[%s2221 + $0x17c0] sm:$0xff]
        %v3023 = vld [vmem:[%s2221 + $0x17c8] sm:$0xff]
        %v3024 = vld [vmem:[%s2221 + $0x17d0] sm:$0xff]
        %v3025 = vld [vmem:[%s2221 + $0x17d8] sm:$0xff]
        %v3026 = vld [vmem:[%s2221 + $0x17e0] sm:$0xff]
        %v3027 = vld [vmem:[%s2221 + $0x17e8] sm:$0xff]
        %v3028 = vld [vmem:[%s2221 + $0x17f0] sm:$0xff]
        %v3029 = vld [vmem:[%s2221 + $0x17f8] sm:$0xff]
        %v3030 = vld [vmem:[%s2221 + $0x1800] sm:$0xff]
        %v3031 = vld [vmem:[%s2221 + $0x1808] sm:$0xff]
        %v3032 = vld [vmem:[%s2221 + $0x1810] sm:$0xff]
        %v3033 = vld [vmem:[%s2221 + $0x1818] sm:$0xff]
        %v3034 = vld [vmem:[%s2221 + $0x1820] sm:$0xff]
        %v3035 = vld [vmem:[%s2221 + $0x1828] sm:$0xff]
        %v3036 = vld [vmem:[%s2221 + $0x1830] sm:$0xff]
        %v3037 = vld [vmem:[%s2221 + $0x1838] sm:$0xff]
        %v3038 = vld [vmem:[%s2221 + $0x1840] sm:$0xff]
        %v3039 = vld [vmem:[%s2221 + $0x1848] sm:$0xff]
        %v3040 = vld [vmem:[%s2221 + $0x1850] sm:$0xff]
        %v3041 = vld [vmem:[%s2221 + $0x1858] sm:$0xff]
        %v3042 = vld [vmem:[%s2221 + $0x1860] sm:$0xff]
        %v3043 = vld [vmem:[%s2221 + $0x1868] sm:$0xff]
        %v3044 = vld [vmem:[%s2221 + $0x1870] sm:$0xff]
        %v3045 = vld [vmem:[%s2221 + $0x1878] sm:$0xff]
        %v3046 = vld [vmem:[%s2221 + $0x1880] sm:$0xff]
        %v3047 = vld [vmem:[%s2221 + $0x1888] sm:$0xff]
        %v3048 = vld [vmem:[%s2221 + $0x1890] sm:$0xff]
        %v3049 = vld [vmem:[%s2221 + $0x1898] sm:$0xff]
        %v3050 = vld [vmem:[%s2221 + $0x18a0] sm:$0xff]
        %v3051 = vld [vmem:[%s2221 + $0x18a8] sm:$0xff]
        %v3052 = vld [vmem:[%s2221 + $0x18b0] sm:$0xff]
        %v3053 = vld [vmem:[%s2221 + $0x18b8] sm:$0xff]
        %v3054 = vld [vmem:[%s2221 + $0x18c0] sm:$0xff]
        %v3055 = vld [vmem:[%s2221 + $0x18c8] sm:$0xff]
        %v3056 = vld [vmem:[%s2221 + $0x18d0] sm:$0xff]
        %v3057 = vld [vmem:[%s2221 + $0x18d8] sm:$0xff]
        %v3058 = vld [vmem:[%s2221 + $0x18e0] sm:$0xff]
        %v3059 = vld [vmem:[%s2221 + $0x18e8] sm:$0xff]
        %v3060 = vld [vmem:[%s2221 + $0x18f0] sm:$0xff]
        %v3061 = vld [vmem:[%s2221 + $0x18f8] sm:$0xff]
        %v3062 = vld [vmem:[%s2221 + $0x1900] sm:$0xff]
        %v3063 = vld [vmem:[%s2221 + $0x1908] sm:$0xff]
        %v3064 = vld [vmem:[%s2221 + $0x1910] sm:$0xff]
        %v3065 = vld [vmem:[%s2221 + $0x1918] sm:$0xff]
        %v3066 = vld [vmem:[%s2221 + $0x1920] sm:$0xff]
        %v3067 = vld [vmem:[%s2221 + $0x1928] sm:$0xff]
        %v3068 = vld [vmem:[%s2221 + $0x1930] sm:$0xff]
        %v3069 = vld [vmem:[%s2221 + $0x1938] sm:$0xff]
        %v3070 = vld [vmem:[%s2221 + $0x1940] sm:$0xff]
        %v3071 = vld [vmem:[%s2221 + $0x1948] sm:$0xff]
        %v3072 = vld [vmem:[%s2221 + $0x1950] sm:$0xff]
        %v3073 = vld [vmem:[%s2221 + $0x1958] sm:$0xff]
        %v3074 = vld [vmem:[%s2221 + $0x1960] sm:$0xff]
        %v3075 = vld [vmem:[%s2221 + $0x1968] sm:$0xff]
        %v3076 = vld [vmem:[%s2221 + $0x1970] sm:$0xff]
        %v3077 = vld [vmem:[%s2221 + $0x1978] sm:$0xff]
        %v3078 = vld [vmem:[%s2221 + $0x1980] sm:$0xff]
        %v3079 = vld [vmem:[%s2221 + $0x1988] sm:$0xff]
        %v3080 = vld [vmem:[%s2221 + $0x1990] sm:$0xff]
        %v3081 = vld [vmem:[%s2221 + $0x1998] sm:$0xff]
        %v3082 = vld [vmem:[%s2221 + $0x19a0] sm:$0xff]
        %v3083 = vld [vmem:[%s2221 + $0x19a8] sm:$0xff]
        %v3084 = vld [vmem:[%s2221 + $0x19b0] sm:$0xff]
        %v3085 = vld [vmem:[%s2221 + $0x19b8] sm:$0xff]
        %v3086 = vld [vmem:[%s2221 + $0x19c0] sm:$0xff]
        %v3087 = vld [vmem:[%s2221 + $0x19c8] sm:$0xff]
        %v3088 = vld [vmem:[%s2221 + $0x19d0] sm:$0xff]
        %v3089 = vld [vmem:[%s2221 + $0x19d8] sm:$0xff]
        %v3090 = vld [vmem:[%s2221 + $0x19e0] sm:$0xff]
        %v3091 = vld [vmem:[%s2221 + $0x19e8] sm:$0xff]
        %v3092 = vld [vmem:[%s2221 + $0x19f0] sm:$0xff]
        %v3093 = vld [vmem:[%s2221 + $0x19f8] sm:$0xff]
        %v3094 = vld [vmem:[%s2221 + $0x1a00] sm:$0xff]
        %v3095 = vld [vmem:[%s2221 + $0x1a08] sm:$0xff]
        %v3096 = vld [vmem:[%s2221 + $0x1a10] sm:$0xff]
        %v3097 = vld [vmem:[%s2221 + $0x1a18] sm:$0xff]
        %v3098 = vld [vmem:[%s2221 + $0x1a20] sm:$0xff]
        %v3099 = vld [vmem:[%s2221 + $0x1a28] sm:$0xff]
        %v3100 = vld [vmem:[%s2221 + $0x1a30] sm:$0xff]
        %v3101 = vld [vmem:[%s2221 + $0x1a38] sm:$0xff]
        %v3102 = vld [vmem:[%s2221 + $0x1a40] sm:$0xff]
        %v3103 = vld [vmem:[%s2221 + $0x1a48] sm:$0xff]
        %v3104 = vld [vmem:[%s2221 + $0x1a50] sm:$0xff]
        %v3105 = vld [vmem:[%s2221 + $0x1a58] sm:$0xff]
        %v3106 = vld [vmem:[%s2221 + $0x1a60] sm:$0xff]
        %v3107 = vld [vmem:[%s2221 + $0x1a68] sm:$0xff]
        %v3108 = vld [vmem:[%s2221 + $0x1a70] sm:$0xff]
        %v3109 = vld [vmem:[%s2221 + $0x1a78] sm:$0xff]
        %v3110 = vld [vmem:[%s2221 + $0x1a80] sm:$0xff]
        %v3111 = vld [vmem:[%s2221 + $0x1a88] sm:$0xff]
        %v3112 = vld [vmem:[%s2221 + $0x1a90] sm:$0xff]
        %v3113 = vld [vmem:[%s2221 + $0x1a98] sm:$0xff]
        %v3114 = vld [vmem:[%s2221 + $0x1aa0] sm:$0xff]
        %v3115 = vld [vmem:[%s2221 + $0x1aa8] sm:$0xff]
        %v3116 = vld [vmem:[%s2221 + $0x1ab0] sm:$0xff]
        %v3117 = vld [vmem:[%s2221 + $0x1ab8] sm:$0xff]
        %v3118 = vld [vmem:[%s2221 + $0x1ac0] sm:$0xff]
        %v3119 = vld [vmem:[%s2221 + $0x1ac8] sm:$0xff]
        %v3120 = vld [vmem:[%s2221 + $0x1ad0] sm:$0xff]
        %v3121 = vld [vmem:[%s2221 + $0x1ad8] sm:$0xff]
        %v3122 = vld [vmem:[%s2221 + $0x1ae0] sm:$0xff]
        %v3123 = vld [vmem:[%s2221 + $0x1ae8] sm:$0xff]
        %v3124 = vld [vmem:[%s2221 + $0x1af0] sm:$0xff]
        %v3125 = vld [vmem:[%s2221 + $0x1af8] sm:$0xff]
        %v3126 = vld [vmem:[%s2221 + $0x1b00] sm:$0xff]
        %v3127 = vld [vmem:[%s2221 + $0x1b08] sm:$0xff]
        %v3128 = vld [vmem:[%s2221 + $0x1b10] sm:$0xff]
        %v3129 = vld [vmem:[%s2221 + $0x1b18] sm:$0xff]
        %v3130 = vld [vmem:[%s2221 + $0x1b20] sm:$0xff]
        %v3131 = vld [vmem:[%s2221 + $0x1b28] sm:$0xff]
        %v3132 = vld [vmem:[%s2221 + $0x1b30] sm:$0xff]
        %v3133 = vld [vmem:[%s2221 + $0x1b38] sm:$0xff]
        %v3134 = vld [vmem:[%s2221 + $0x1b40] sm:$0xff]
        %v3135 = vld [vmem:[%s2221 + $0x1b48] sm:$0xff]
        %v3136 = vld [vmem:[%s2221 + $0x1b50] sm:$0xff]
        %v3137 = vld [vmem:[%s2221 + $0x1b58] sm:$0xff]
        %v3138 = vld [vmem:[%s2221 + $0x1b60] sm:$0xff]
        %v3139 = vld [vmem:[%s2221 + $0x1b68] sm:$0xff]
        %v3140 = vld [vmem:[%s2221 + $0x1b70] sm:$0xff]
        %v3141 = vld [vmem:[%s2221 + $0x1b78] sm:$0xff]
        %v3142 = vld [vmem:[%s2221 + $0x1b80] sm:$0xff]
        %v3143 = vld [vmem:[%s2221 + $0x1b88] sm:$0xff]
        %v3144 = vld [vmem:[%s2221 + $0x1b90] sm:$0xff]
        %v3145 = vld [vmem:[%s2221 + $0x1b98] sm:$0xff]
        %v3146 = vld [vmem:[%s2221 + $0x1ba0] sm:$0xff]
        %v3147 = vld [vmem:[%s2221 + $0x1ba8] sm:$0xff]
        %v3148 = vld [vmem:[%s2221 + $0x1bb0] sm:$0xff]
        %v3149 = vld [vmem:[%s2221 + $0x1bb8] sm:$0xff]
        %v3150 = vld [vmem:[%s2221 + $0x1bc0] sm:$0xff]
        %v3151 = vld [vmem:[%s2221 + $0x1bc8] sm:$0xff]
        %v3152 = vld [vmem:[%s2221 + $0x1bd0] sm:$0xff]
        %v3153 = vld [vmem:[%s2221 + $0x1bd8] sm:$0xff]
        %v3154 = vld [vmem:[%s2221 + $0x1be0] sm:$0xff]
        %v3155 = vld [vmem:[%s2221 + $0x1be8] sm:$0xff]
        %v3156 = vld [vmem:[%s2221 + $0x1bf0] sm:$0xff]
        %v3157 = vld [vmem:[%s2221 + $0x1bf8] sm:$0xff]
        %v3158 = vld [vmem:[%s2221 + $0x1c00] sm:$0xff]
        %v3159 = vld [vmem:[%s2221 + $0x1c08] sm:$0xff]
        %v3160 = vld [vmem:[%s2221 + $0x1c10] sm:$0xff]
        %v3161 = vld [vmem:[%s2221 + $0x1c18] sm:$0xff]
        %v3162 = vld [vmem:[%s2221 + $0x1c20] sm:$0xff]
        %v3163 = vld [vmem:[%s2221 + $0x1c28] sm:$0xff]
        %v3164 = vld [vmem:[%s2221 + $0x1c30] sm:$0xff]
        %v3165 = vld [vmem:[%s2221 + $0x1c38] sm:$0xff]
        %v3166 = vld [vmem:[%s2221 + $0x1c40] sm:$0xff]
        %v3167 = vld [vmem:[%s2221 + $0x1c48] sm:$0xff]
        %v3168 = vld [vmem:[%s2221 + $0x1c50] sm:$0xff]
        %v3169 = vld [vmem:[%s2221 + $0x1c58] sm:$0xff]
        %v3170 = vld [vmem:[%s2221 + $0x1c60] sm:$0xff]
        %v3171 = vld [vmem:[%s2221 + $0x1c68] sm:$0xff]
        %v3172 = vld [vmem:[%s2221 + $0x1c70] sm:$0xff]
        %v3173 = vld [vmem:[%s2221 + $0x1c78] sm:$0xff]
        %v3174 = vld [vmem:[%s2221 + $0x1c80] sm:$0xff]
        %v3175 = vld [vmem:[%s2221 + $0x1c88] sm:$0xff]
        %v3176 = vld [vmem:[%s2221 + $0x1c90] sm:$0xff]
        %v3177 = vld [vmem:[%s2221 + $0x1c98] sm:$0xff]
        %v3178 = vld [vmem:[%s2221 + $0x1ca0] sm:$0xff]
        %v3179 = vld [vmem:[%s2221 + $0x1ca8] sm:$0xff]
        %v3180 = vld [vmem:[%s2221 + $0x1cb0] sm:$0xff]
        %v3181 = vld [vmem:[%s2221 + $0x1cb8] sm:$0xff]
        %v3182 = vld [vmem:[%s2221 + $0x1cc0] sm:$0xff]
        %v3183 = vld [vmem:[%s2221 + $0x1cc8] sm:$0xff]
        %v3184 = vld [vmem:[%s2221 + $0x1cd0] sm:$0xff]
        %v3185 = vld [vmem:[%s2221 + $0x1cd8] sm:$0xff]
        %v3186 = vld [vmem:[%s2221 + $0x1ce0] sm:$0xff]
        %v3187 = vld [vmem:[%s2221 + $0x1ce8] sm:$0xff]
        %v3188 = vld [vmem:[%s2221 + $0x1cf0] sm:$0xff]
        %v3189 = vld [vmem:[%s2221 + $0x1cf8] sm:$0xff]
        %v3190 = vld [vmem:[%s2221 + $0x1d00] sm:$0xff]
        %v3191 = vld [vmem:[%s2221 + $0x1d08] sm:$0xff]
        %v3192 = vld [vmem:[%s2221 + $0x1d10] sm:$0xff]
        %v3193 = vld [vmem:[%s2221 + $0x1d18] sm:$0xff]
        %v3194 = vld [vmem:[%s2221 + $0x1d20] sm:$0xff]
        %v3195 = vld [vmem:[%s2221 + $0x1d28] sm:$0xff]
        %v3196 = vld [vmem:[%s2221 + $0x1d30] sm:$0xff]
        %v3197 = vld [vmem:[%s2221 + $0x1d38] sm:$0xff]
        %v3198 = vld [vmem:[%s2221 + $0x1d40] sm:$0xff]
        %v3199 = vld [vmem:[%s2221 + $0x1d48] sm:$0xff]
        %v3200 = vld [vmem:[%s2221 + $0x1d50] sm:$0xff]
        %v3201 = vld [vmem:[%s2221 + $0x1d58] sm:$0xff]
        %v3202 = vld [vmem:[%s2221 + $0x1d60] sm:$0xff]
        %v3203 = vld [vmem:[%s2221 + $0x1d68] sm:$0xff]
        %v3204 = vld [vmem:[%s2221 + $0x1d70] sm:$0xff]
        %v3205 = vld [vmem:[%s2221 + $0x1d78] sm:$0xff]
        %v3206 = vld [vmem:[%s2221 + $0x1d80] sm:$0xff]
        %v3207 = vld [vmem:[%s2221 + $0x1d88] sm:$0xff]
        %v3208 = vld [vmem:[%s2221 + $0x1d90] sm:$0xff]
        %v3209 = vld [vmem:[%s2221 + $0x1d98] sm:$0xff]
        %v3210 = vld [vmem:[%s2221 + $0x1da0] sm:$0xff]
        %v3211 = vld [vmem:[%s2221 + $0x1da8] sm:$0xff]
        %v3212 = vld [vmem:[%s2221 + $0x1db0] sm:$0xff]
        %v3213 = vld [vmem:[%s2221 + $0x1db8] sm:$0xff]
        %v3214 = vld [vmem:[%s2221 + $0x1dc0] sm:$0xff]
        %v3215 = vld [vmem:[%s2221 + $0x1dc8] sm:$0xff]
        %v3216 = vld [vmem:[%s2221 + $0x1dd0] sm:$0xff]
        %v3217 = vld [vmem:[%s2221 + $0x1dd8] sm:$0xff]
        %v3218 = vld [vmem:[%s2221 + $0x1de0] sm:$0xff]
        %v3219 = vld [vmem:[%s2221 + $0x1de8] sm:$0xff]
        %v3220 = vld [vmem:[%s2221 + $0x1df0] sm:$0xff]
        %v3221 = vld [vmem:[%s2221 + $0x1df8] sm:$0xff]
        %v3222 = vld [vmem:[%s2221 + $0x1e00] sm:$0xff]
        %v3223 = vld [vmem:[%s2221 + $0x1e08] sm:$0xff]
        %v3224 = vld [vmem:[%s2221 + $0x1e10] sm:$0xff]
        %v3225 = vld [vmem:[%s2221 + $0x1e18] sm:$0xff]
        %v3226 = vld [vmem:[%s2221 + $0x1e20] sm:$0xff]
        %v3227 = vld [vmem:[%s2221 + $0x1e28] sm:$0xff]
        %v3228 = vld [vmem:[%s2221 + $0x1e30] sm:$0xff]
        %v3229 = vld [vmem:[%s2221 + $0x1e38] sm:$0xff]
        %v3230 = vld [vmem:[%s2221 + $0x1e40] sm:$0xff]
        %v3231 = vld [vmem:[%s2221 + $0x1e48] sm:$0xff]
        %v3232 = vld [vmem:[%s2221 + $0x1e50] sm:$0xff]
        %v3233 = vld [vmem:[%s2221 + $0x1e58] sm:$0xff]
        %v3234 = vld [vmem:[%s2221 + $0x1e60] sm:$0xff]
        %v3235 = vld [vmem:[%s2221 + $0x1e68] sm:$0xff]
        %v3236 = vld [vmem:[%s2221 + $0x1e70] sm:$0xff]
        %v3237 = vld [vmem:[%s2221 + $0x1e78] sm:$0xff]
        %v3238 = vld [vmem:[%s2221 + $0x1e80] sm:$0xff]
        %v3239 = vld [vmem:[%s2221 + $0x1e88] sm:$0xff]
        %v3240 = vld [vmem:[%s2221 + $0x1e90] sm:$0xff]
        %v3241 = vld [vmem:[%s2221 + $0x1e98] sm:$0xff]
        %v3242 = vld [vmem:[%s2221 + $0x1ea0] sm:$0xff]
        %v3243 = vld [vmem:[%s2221 + $0x1ea8] sm:$0xff]
        %v3244 = vld [vmem:[%s2221 + $0x1eb0] sm:$0xff]
        %v3245 = vld [vmem:[%s2221 + $0x1eb8] sm:$0xff]
        %v3246 = vld [vmem:[%s2221 + $0x1ec0] sm:$0xff]
        %v3247 = vld [vmem:[%s2221 + $0x1ec8] sm:$0xff]
        %v3248 = vld [vmem:[%s2221 + $0x1ed0] sm:$0xff]
        %v3249 = vld [vmem:[%s2221 + $0x1ed8] sm:$0xff]
        %v3250 = vld [vmem:[%s2221 + $0x1ee0] sm:$0xff]
        %v3251 = vld [vmem:[%s2221 + $0x1ee8] sm:$0xff]
        %v3252 = vld [vmem:[%s2221 + $0x1ef0] sm:$0xff]
        %v3253 = vld [vmem:[%s2221 + $0x1ef8] sm:$0xff]
        %v3254 = vld [vmem:[%s2221 + $0x1f00] sm:$0xff]
        %v3255 = vld [vmem:[%s2221 + $0x1f08] sm:$0xff]
        %v3256 = vld [vmem:[%s2221 + $0x1f10] sm:$0xff]
        %v3257 = vld [vmem:[%s2221 + $0x1f18] sm:$0xff]
        %v3258 = vld [vmem:[%s2221 + $0x1f20] sm:$0xff]
        %v3259 = vld [vmem:[%s2221 + $0x1f28] sm:$0xff]
        %v3260 = vld [vmem:[%s2221 + $0x1f30] sm:$0xff]
        %v3261 = vld [vmem:[%s2221 + $0x1f38] sm:$0xff]
        %v3262 = vld [vmem:[%s2221 + $0x1f40] sm:$0xff]
        %v3263 = vld [vmem:[%s2221 + $0x1f48] sm:$0xff]
        %v3264 = vld [vmem:[%s2221 + $0x1f50] sm:$0xff]
        %v3265 = vld [vmem:[%s2221 + $0x1f58] sm:$0xff]
        %v3266 = vld [vmem:[%s2221 + $0x1f60] sm:$0xff]
        %v3267 = vld [vmem:[%s2221 + $0x1f68] sm:$0xff]
        %v3268 = vld [vmem:[%s2221 + $0x1f70] sm:$0xff]
        %v3269 = vld [vmem:[%s2221 + $0x1f78] sm:$0xff]
        %v3270 = vld [vmem:[%s2221 + $0x1f80] sm:$0xff]
        %v3271 = vld [vmem:[%s2221 + $0x1f88] sm:$0xff]
        %v3272 = vld [vmem:[%s2221 + $0x1f90] sm:$0xff]
        %v3273 = vld [vmem:[%s2221 + $0x1f98] sm:$0xff]
        %v3274 = vld [vmem:[%s2221 + $0x1fa0] sm:$0xff]
        %v3275 = vld [vmem:[%s2221 + $0x1fa8] sm:$0xff]
        %v3276 = vld [vmem:[%s2221 + $0x1fb0] sm:$0xff]
        %v3277 = vld [vmem:[%s2221 + $0x1fb8] sm:$0xff]
        %v3278 = vld [vmem:[%s2221 + $0x1fc0] sm:$0xff]
        %v3279 = vld [vmem:[%s2221 + $0x1fc8] sm:$0xff]
        %v3280 = vld [vmem:[%s2221 + $0x1fd0] sm:$0xff]
        %v3281 = vld [vmem:[%s2221 + $0x1fd8] sm:$0xff]
        %v3282 = vld [vmem:[%s2221 + $0x1fe0] sm:$0xff]
        %v3283 = vld [vmem:[%s2221 + $0x1fe8] sm:$0xff]
        %v3284 = vld [vmem:[%s2221 + $0x1ff0] sm:$0xff]
        %v3285 = vld [vmem:[%s2221 + $0x1ff8] sm:$0xff]
        %v3286 = vld [vmem:[%s2250] sm:$0xf]
        %v3288 = vlaneseq
        %v3289 = vshrl.u32 %v3288, 7
        %v3290 = vsub.s32 0, %v3289
        %v3291 = vrot.slane %v3286, %v3290
        %v3292 = vlaneseq
        %v3293 = vshrl.u32 %v3292, 7
        %v3294 = vsub.s32 1, %v3293
        %v3295 = vrot.slane %v3286, %v3294
        %v3296 = vlaneseq
        %v3297 = vshrl.u32 %v3296, 7
        %v3298 = vsub.s32 2, %v3297
        %v3299 = vrot.slane %v3286, %v3298
        %v3300 = vlaneseq
        %v3301 = vshrl.u32 %v3300, 7
        %v3302 = vsub.s32 3, %v3301
        %v3303 = vrot.slane %v3286, %v3302
        %v3312 = vcombine.high %v2258, %v2258
        %v3314 = vunpack.c.l.s4 1983009808
        %v3315 = vunpack.c.0.s8 %v3314
        %v3316 = vlaneseq
        %v3317 = vshrl.u32 %v3316, 7
        %v3318 = vsub.s32 %v3315, %v3317
        %v3319 = vrot.slane %v2258, %v3318
        %v3321 = vunpack.c.l.s4 1983009808
        %v3322 = vunpack.c.0.s8 %v3321
        %v3323 = vlaneseq
        %v3324 = vshrl.u32 %v3323, 7
        %v3325 = vsub.s32 %v3322, %v3324
        %v3326 = vrot.slane %v3312, %v3325
        %v3327 = vcombine.high %v3319, %v3319
        %v3328 = vcombine.high %v3326, %v3326
        %v3329 = vcombine.high %v2259, %v2259
        %v3331 = vunpack.c.l.s4 1983009808
        %v3332 = vunpack.c.0.s8 %v3331
        %v3333 = vlaneseq
        %v3334 = vshrl.u32 %v3333, 7
        %v3335 = vsub.s32 %v3332, %v3334
        %v3336 = vrot.slane %v2259, %v3335
        %v3338 = vunpack.c.l.s4 1983009808
        %v3339 = vunpack.c.0.s8 %v3338
        %v3340 = vlaneseq
        %v3341 = vshrl.u32 %v3340, 7
        %v3342 = vsub.s32 %v3339, %v3341
        %v3343 = vrot.slane %v3329, %v3342
        %v3344 = vcombine.high %v3336, %v3336
        %v3345 = vcombine.high %v3343, %v3343
        %v3346 = vcombine.high %v2260, %v2260
        %v3348 = vunpack.c.l.s4 1983009808
        %v3349 = vunpack.c.0.s8 %v3348
        %v3350 = vlaneseq
        %v3351 = vshrl.u32 %v3350, 7
        %v3352 = vsub.s32 %v3349, %v3351
        %v3353 = vrot.slane %v2260, %v3352
        %v3355 = vunpack.c.l.s4 1983009808
        %v3356 = vunpack.c.0.s8 %v3355
        %v3357 = vlaneseq
        %v3358 = vshrl.u32 %v3357, 7
        %v3359 = vsub.s32 %v3356, %v3358
        %v3360 = vrot.slane %v3346, %v3359
        %v3361 = vcombine.high %v3353, %v3353
        %v3362 = vcombine.high %v3360, %v3360
        %v3363 = vcombine.high %v2261, %v2261
        %v3365 = vunpack.c.l.s4 1983009808
        %v3366 = vunpack.c.0.s8 %v3365
        %v3367 = vlaneseq
        %v3368 = vshrl.u32 %v3367, 7
        %v3369 = vsub.s32 %v3366, %v3368
        %v3370 = vrot.slane %v2261, %v3369
        %v3372 = vunpack.c.l.s4 1983009808
        %v3373 = vunpack.c.0.s8 %v3372
        %v3374 = vlaneseq
        %v3375 = vshrl.u32 %v3374, 7
        %v3376 = vsub.s32 %v3373, %v3375
        %v3377 = vrot.slane %v3363, %v3376
        %v3378 = vcombine.high %v3370, %v3370
        %v3379 = vcombine.high %v3377, %v3377
        %3396 = vmatprep.subr.mxu0 %v2263
        %3397 = vmatpush1.msra.mxu0 %v2262
        %3398 = vmatprep.subr.mxu0 %v2267
        %3399 = vmatpush1.msra.mxu0 %v2266
        %3400 = vmatprep.subr.mxu0 %v2271
        %3401 = vmatpush1.msra.mxu0 %v2270
        %3402 = vmatprep.subr.mxu0 %v2275
        %3403 = vmatpush1.msra.mxu0 %v2274
        %3404 = vmatprep.subr.mxu0 %v2279
        %3405 = vmatpush1.msra.mxu0 %v2278
        %3406 = vmatprep.subr.mxu0 %v2283
        %3407 = vmatpush1.msra.mxu0 %v2282
        %3408 = vmatprep.subr.mxu0 %v2287
        %3409 = vmatpush1.msra.mxu0 %v2286
        %3410 = vmatprep.subr.mxu0 %v2291
        %3411 = vmatpush1.msra.mxu0 %v2290
        %3412 = vmatprep.subr.mxu0 %v2295
        %3413 = vmatpush1.msra.mxu0 %v2294
        %3414 = vmatprep.subr.mxu0 %v2299
        %3415 = vmatpush1.msra.mxu0 %v2298
        %3416 = vmatprep.subr.mxu0 %v2303
        %3417 = vmatpush1.msra.mxu0 %v2302
        %3418 = vmatprep.subr.mxu0 %v2307
        %3419 = vmatpush1.msra.mxu0 %v2306
        %3420 = vmatprep.subr.mxu0 %v2311
        %3421 = vmatpush1.msra.mxu0 %v2310
        %3422 = vmatprep.subr.mxu0 %v2315
        %3423 = vmatpush1.msra.mxu0 %v2314
        %3424 = vmatprep.subr.mxu0 %v2319
        %3425 = vmatpush1.msra.mxu0 %v2318
        %3426 = vmatprep.subr.mxu0 %v2323
        %3427 = vmatpush1.msra.mxu0 %v2322
        %3428 = vmatprep.subr.mxu0 %v2327
        %3429 = vmatpush1.msra.mxu0 %v2326
        %3430 = vmatprep.subr.mxu0 %v2331
        %3431 = vmatpush1.msra.mxu0 %v2330
        %3432 = vmatprep.subr.mxu0 %v2335
        %3433 = vmatpush1.msra.mxu0 %v2334
        %3434 = vmatprep.subr.mxu0 %v2339
        %3435 = vmatpush1.msra.mxu0 %v2338
        %3436 = vmatprep.subr.mxu0 %v2343
        %3437 = vmatpush1.msra.mxu0 %v2342
        %3438 = vmatprep.subr.mxu0 %v2347
        %3439 = vmatpush1.msra.mxu0 %v2346
        %3440 = vmatprep.subr.mxu0 %v2351
        %3441 = vmatpush1.msra.mxu0 %v2350
        %3442 = vmatprep.subr.mxu0 %v2355
        %3443 = vmatpush1.msra.mxu0 %v2354
        %3444 = vmatprep.subr.mxu0 %v2359
        %3445 = vmatpush1.msra.mxu0 %v2358
        %3446 = vmatprep.subr.mxu0 %v2363
        %3447 = vmatpush1.msra.mxu0 %v2362
        %3448 = vmatprep.subr.mxu0 %v2367
        %3449 = vmatpush1.msra.mxu0 %v2366
        %3450 = vmatprep.subr.mxu0 %v2371
        %3451 = vmatpush1.msra.mxu0 %v2370
        %3452 = vmatprep.subr.mxu0 %v2375
        %3453 = vmatpush1.msra.mxu0 %v2374
        %3454 = vmatprep.subr.mxu0 %v2379
        %3455 = vmatpush1.msra.mxu0 %v2378
        %3456 = vmatprep.subr.mxu0 %v2383
        %3457 = vmatpush1.msra.mxu0 %v2382
        %3458 = vmatprep.subr.mxu0 %v2387
        %3459 = vmatpush1.msra.mxu0 %v2386
        %3460 = vmatprep.mubr.f32.mxu0 %v3327
        %3461 = vmatmul.mubr.f32.gmra.mrb[0].mxu0 %v3319
        %v3462 = vpop.f32.mrb[0].mxu0
        %v3463 = vadd.f32 %v3291, %v3462
        %v3464 = vpop.f32.mrb[0].mxu0
        %v3465 = vadd.f32 %v3295, %v3464
        %3466 = vdwg.mxu0
        %3467 = vmatprep.subr.mxu0 %v2391
        %3468 = vmatpush1.msra.mxu0 %v2390
        %3469 = vmatprep.subr.mxu0 %v2395
        %3470 = vmatpush1.msra.mxu0 %v2394
        %3471 = vmatprep.subr.mxu0 %v2399
        %3472 = vmatpush1.msra.mxu0 %v2398
        %3473 = vmatprep.subr.mxu0 %v2403
        %3474 = vmatpush1.msra.mxu0 %v2402
        %3475 = vmatprep.subr.mxu0 %v2407
        %3476 = vmatpush1.msra.mxu0 %v2406
        %3477 = vmatprep.subr.mxu0 %v2411
        %3478 = vmatpush1.msra.mxu0 %v2410
        %3479 = vmatprep.subr.mxu0 %v2415
        %3480 = vmatpush1.msra.mxu0 %v2414
        %3481 = vmatprep.subr.mxu0 %v2419
        %3482 = vmatpush1.msra.mxu0 %v2418
        %3483 = vmatprep.subr.mxu0 %v2423
        %3484 = vmatpush1.msra.mxu0 %v2422
        %3485 = vmatprep.subr.mxu0 %v2427
        %3486 = vmatpush1.msra.mxu0 %v2426
        %3487 = vmatprep.subr.mxu0 %v2431
        %3488 = vmatpush1.msra.mxu0 %v2430
        %3489 = vmatprep.subr.mxu0 %v2435
        %3490 = vmatpush1.msra.mxu0 %v2434
        %3491 = vmatprep.subr.mxu0 %v2439
        %3492 = vmatpush1.msra.mxu0 %v2438
        %3493 = vmatprep.subr.mxu0 %v2443
        %3494 = vmatpush1.msra.mxu0 %v2442
        %3495 = vmatprep.subr.mxu0 %v2447
        %3496 = vmatpush1.msra.mxu0 %v2446
        %3497 = vmatprep.subr.mxu0 %v2451
        %3498 = vmatpush1.msra.mxu0 %v2450
        %3499 = vmatprep.subr.mxu0 %v2455
        %3500 = vmatpush1.msra.mxu0 %v2454
        %3501 = vmatprep.subr.mxu0 %v2459
        %3502 = vmatpush1.msra.mxu0 %v2458
        %3503 = vmatprep.subr.mxu0 %v2463
        %3504 = vmatpush1.msra.mxu0 %v2462
        %3505 = vmatprep.subr.mxu0 %v2467
        %3506 = vmatpush1.msra.mxu0 %v2466
        %3507 = vmatprep.subr.mxu0 %v2471
        %3508 = vmatpush1.msra.mxu0 %v2470
        %3509 = vmatprep.subr.mxu0 %v2475
        %3510 = vmatpush1.msra.mxu0 %v2474
        %3511 = vmatprep.subr.mxu0 %v2479
        %3512 = vmatpush1.msra.mxu0 %v2478
        %3513 = vmatprep.subr.mxu0 %v2483
        %3514 = vmatpush1.msra.mxu0 %v2482
        %3515 = vmatprep.subr.mxu0 %v2487
        %3516 = vmatpush1.msra.mxu0 %v2486
        %3517 = vmatprep.subr.mxu0 %v2491
        %3518 = vmatpush1.msra.mxu0 %v2490
        %3519 = vmatprep.subr.mxu0 %v2495
        %3520 = vmatpush1.msra.mxu0 %v2494
        %3521 = vmatprep.subr.mxu0 %v2499
        %3522 = vmatpush1.msra.mxu0 %v2498
        %3523 = vmatprep.subr.mxu0 %v2503
        %3524 = vmatpush1.msra.mxu0 %v2502
        %3525 = vmatprep.subr.mxu0 %v2507
        %3526 = vmatpush1.msra.mxu0 %v2506
        %3527 = vmatprep.subr.mxu0 %v2511
        %3528 = vmatpush1.msra.mxu0 %v2510
        %3529 = vmatprep.subr.mxu0 %v2515
        %3530 = vmatpush1.msra.mxu0 %v2514
        %3531 = vmatprep.mubr.f32.mxu0 %v3328
        %3532 = vmatmul.mubr.f32.gmra.mrb[0].mxu0 %v3326
        %v3533 = vpop.f32.mrb[0].mxu0
        %v3534 = vadd.f32 %v3463, %v3533
        %v3535 = vpop.f32.mrb[0].mxu0
        %v3536 = vadd.f32 %v3465, %v3535
        %3537 = vdwg.mxu0
        %3538 = vmatprep.subr.mxu0 %v2519
        %3539 = vmatpush1.msra.mxu0 %v2518
        %3540 = vmatprep.subr.mxu0 %v2523
        %3541 = vmatpush1.msra.mxu0 %v2522
        %3542 = vmatprep.subr.mxu0 %v2527
        %3543 = vmatpush1.msra.mxu0 %v2526
        %3544 = vmatprep.subr.mxu0 %v2531
        %3545 = vmatpush1.msra.mxu0 %v2530
        %3546 = vmatprep.subr.mxu0 %v2535
        %3547 = vmatpush1.msra.mxu0 %v2534
        %3548 = vmatprep.subr.mxu0 %v2539
        %3549 = vmatpush1.msra.mxu0 %v2538
        %3550 = vmatprep.subr.mxu0 %v2543
        %3551 = vmatpush1.msra.mxu0 %v2542
        %3552 = vmatprep.subr.mxu0 %v2547
        %3553 = vmatpush1.msra.mxu0 %v2546
        %3554 = vmatprep.subr.mxu0 %v2551
        %3555 = vmatpush1.msra.mxu0 %v2550
        %3556 = vmatprep.subr.mxu0 %v2555
        %3557 = vmatpush1.msra.mxu0 %v2554
        %3558 = vmatprep.subr.mxu0 %v2559
        %3559 = vmatpush1.msra.mxu0 %v2558
        %3560 = vmatprep.subr.mxu0 %v2563
        %3561 = vmatpush1.msra.mxu0 %v2562
        %3562 = vmatprep.subr.mxu0 %v2567
        %3563 = vmatpush1.msra.mxu0 %v2566
        %3564 = vmatprep.subr.mxu0 %v2571
        %3565 = vmatpush1.msra.mxu0 %v2570
        %3566 = vmatprep.subr.mxu0 %v2575
        %3567 = vmatpush1.msra.mxu0 %v2574
        %3568 = vmatprep.subr.mxu0 %v2579
        %3569 = vmatpush1.msra.mxu0 %v2578
        %3570 = vmatprep.subr.mxu0 %v2583
        %3571 = vmatpush1.msra.mxu0 %v2582
        %3572 = vmatprep.subr.mxu0 %v2587
        %3573 = vmatpush1.msra.mxu0 %v2586
        %3574 = vmatprep.subr.mxu0 %v2591
        %3575 = vmatpush1.msra.mxu0 %v2590
        %3576 = vmatprep.subr.mxu0 %v2595
        %3577 = vmatpush1.msra.mxu0 %v2594
        %3578 = vmatprep.subr.mxu0 %v2599
        %3579 = vmatpush1.msra.mxu0 %v2598
        %3580 = vmatprep.subr.mxu0 %v2603
        %3581 = vmatpush1.msra.mxu0 %v2602
        %3582 = vmatprep.subr.mxu0 %v2607
        %3583 = vmatpush1.msra.mxu0 %v2606
        %3584 = vmatprep.subr.mxu0 %v2611
        %3585 = vmatpush1.msra.mxu0 %v2610
        %3586 = vmatprep.subr.mxu0 %v2615
        %3587 = vmatpush1.msra.mxu0 %v2614
        %3588 = vmatprep.subr.mxu0 %v2619
        %3589 = vmatpush1.msra.mxu0 %v2618
        %3590 = vmatprep.subr.mxu0 %v2623
        %3591 = vmatpush1.msra.mxu0 %v2622
        %3592 = vmatprep.subr.mxu0 %v2627
        %3593 = vmatpush1.msra.mxu0 %v2626
        %3594 = vmatprep.subr.mxu0 %v2631
        %3595 = vmatpush1.msra.mxu0 %v2630
        %3596 = vmatprep.subr.mxu0 %v2635
        %3597 = vmatpush1.msra.mxu0 %v2634
        %3598 = vmatprep.subr.mxu0 %v2639
        %3599 = vmatpush1.msra.mxu0 %v2638
        %3600 = vmatprep.subr.mxu0 %v2643
        %3601 = vmatpush1.msra.mxu0 %v2642
        %3602 = vmatprep.mubr.f32.mxu0 %v3344
        %3603 = vmatmul.mubr.f32.gmra.mrb[0].mxu0 %v3336
        %v3604 = vpop.f32.mrb[0].mxu0
        %v3605 = vadd.f32 %v3534, %v3604
        %v3606 = vpop.f32.mrb[0].mxu0
        %v3607 = vadd.f32 %v3536, %v3606
        %3608 = vdwg.mxu0
        %3609 = vmatprep.subr.mxu0 %v2647
        %3610 = vmatpush1.msra.mxu0 %v2646
        %3611 = vmatprep.subr.mxu0 %v2651
        %3612 = vmatpush1.msra.mxu0 %v2650
        %3613 = vmatprep.subr.mxu0 %v2655
        %3614 = vmatpush1.msra.mxu0 %v2654
        %3615 = vmatprep.subr.mxu0 %v2659
        %3616 = vmatpush1.msra.mxu0 %v2658
        %3617 = vmatprep.subr.mxu0 %v2663
        %3618 = vmatpush1.msra.mxu0 %v2662
        %3619 = vmatprep.subr.mxu0 %v2667
        %3620 = vmatpush1.msra.mxu0 %v2666
        %3621 = vmatprep.subr.mxu0 %v2671
        %3622 = vmatpush1.msra.mxu0 %v2670
        %3623 = vmatprep.subr.mxu0 %v2675
        %3624 = vmatpush1.msra.mxu0 %v2674
        %3625 = vmatprep.subr.mxu0 %v2679
        %3626 = vmatpush1.msra.mxu0 %v2678
        %3627 = vmatprep.subr.mxu0 %v2683
        %3628 = vmatpush1.msra.mxu0 %v2682
        %3629 = vmatprep.subr.mxu0 %v2687
        %3630 = vmatpush1.msra.mxu0 %v2686
        %3631 = vmatprep.subr.mxu0 %v2691
        %3632 = vmatpush1.msra.mxu0 %v2690
        %3633 = vmatprep.subr.mxu0 %v2695
        %3634 = vmatpush1.msra.mxu0 %v2694
        %3635 = vmatprep.subr.mxu0 %v2699
        %3636 = vmatpush1.msra.mxu0 %v2698
        %3637 = vmatprep.subr.mxu0 %v2703
        %3638 = vmatpush1.msra.mxu0 %v2702
        %3639 = vmatprep.subr.mxu0 %v2707
        %3640 = vmatpush1.msra.mxu0 %v2706
        %3641 = vmatprep.subr.mxu0 %v2711
        %3642 = vmatpush1.msra.mxu0 %v2710
        %3643 = vmatprep.subr.mxu0 %v2715
        %3644 = vmatpush1.msra.mxu0 %v2714
        %3645 = vmatprep.subr.mxu0 %v2719
        %3646 = vmatpush1.msra.mxu0 %v2718
        %3647 = vmatprep.subr.mxu0 %v2723
        %3648 = vmatpush1.msra.mxu0 %v2722
        %3649 = vmatprep.subr.mxu0 %v2727
        %3650 = vmatpush1.msra.mxu0 %v2726
        %3651 = vmatprep.subr.mxu0 %v2731
        %3652 = vmatpush1.msra.mxu0 %v2730
        %3653 = vmatprep.subr.mxu0 %v2735
        %3654 = vmatpush1.msra.mxu0 %v2734
        %3655 = vmatprep.subr.mxu0 %v2739
        %3656 = vmatpush1.msra.mxu0 %v2738
        %3657 = vmatprep.subr.mxu0 %v2743
        %3658 = vmatpush1.msra.mxu0 %v2742
        %3659 = vmatprep.subr.mxu0 %v2747
        %3660 = vmatpush1.msra.mxu0 %v2746
        %3661 = vmatprep.subr.mxu0 %v2751
        %3662 = vmatpush1.msra.mxu0 %v2750
        %3663 = vmatprep.subr.mxu0 %v2755
        %3664 = vmatpush1.msra.mxu0 %v2754
        %3665 = vmatprep.subr.mxu0 %v2759
        %3666 = vmatpush1.msra.mxu0 %v2758
        %3667 = vmatprep.subr.mxu0 %v2763
        %3668 = vmatpush1.msra.mxu0 %v2762
        %3669 = vmatprep.subr.mxu0 %v2767
        %3670 = vmatpush1.msra.mxu0 %v2766
        %3671 = vmatprep.subr.mxu0 %v2771
        %3672 = vmatpush1.msra.mxu0 %v2770
        %3673 = vmatprep.mubr.f32.mxu0 %v3345
        %3674 = vmatmul.mubr.f32.gmra.mrb[0].mxu0 %v3343
        %v3675 = vpop.f32.mrb[0].mxu0
        %v3676 = vadd.f32 %v3605, %v3675
        %v3677 = vpop.f32.mrb[0].mxu0
        %v3678 = vadd.f32 %v3607, %v3677
        %3679 = vdwg.mxu0
        %3680 = vmatprep.subr.mxu0 %v2775
        %3681 = vmatpush1.msra.mxu0 %v2774
        %3682 = vmatprep.subr.mxu0 %v2779
        %3683 = vmatpush1.msra.mxu0 %v2778
        %3684 = vmatprep.subr.mxu0 %v2783
        %3685 = vmatpush1.msra.mxu0 %v2782
        %3686 = vmatprep.subr.mxu0 %v2787
        %3687 = vmatpush1.msra.mxu0 %v2786
        %3688 = vmatprep.subr.mxu0 %v2791
        %3689 = vmatpush1.msra.mxu0 %v2790
        %3690 = vmatprep.subr.mxu0 %v2795
        %3691 = vmatpush1.msra.mxu0 %v2794
        %3692 = vmatprep.subr.mxu0 %v2799
        %3693 = vmatpush1.msra.mxu0 %v2798
        %3694 = vmatprep.subr.mxu0 %v2803
        %3695 = vmatpush1.msra.mxu0 %v2802
        %3696 = vmatprep.subr.mxu0 %v2807
        %3697 = vmatpush1.msra.mxu0 %v2806
        %3698 = vmatprep.subr.mxu0 %v2811
        %3699 = vmatpush1.msra.mxu0 %v2810
        %3700 = vmatprep.subr.mxu0 %v2815
        %3701 = vmatpush1.msra.mxu0 %v2814
        %3702 = vmatprep.subr.mxu0 %v2819
        %3703 = vmatpush1.msra.mxu0 %v2818
        %3704 = vmatprep.subr.mxu0 %v2823
        %3705 = vmatpush1.msra.mxu0 %v2822
        %3706 = vmatprep.subr.mxu0 %v2827
        %3707 = vmatpush1.msra.mxu0 %v2826
        %3708 = vmatprep.subr.mxu0 %v2831
        %3709 = vmatpush1.msra.mxu0 %v2830
        %3710 = vmatprep.subr.mxu0 %v2835
        %3711 = vmatpush1.msra.mxu0 %v2834
        %3712 = vmatprep.subr.mxu0 %v2839
        %3713 = vmatpush1.msra.mxu0 %v2838
        %3714 = vmatprep.subr.mxu0 %v2843
        %3715 = vmatpush1.msra.mxu0 %v2842
        %3716 = vmatprep.subr.mxu0 %v2847
        %3717 = vmatpush1.msra.mxu0 %v2846
        %3718 = vmatprep.subr.mxu0 %v2851
        %3719 = vmatpush1.msra.mxu0 %v2850
        %3720 = vmatprep.subr.mxu0 %v2855
        %3721 = vmatpush1.msra.mxu0 %v2854
        %3722 = vmatprep.subr.mxu0 %v2859
        %3723 = vmatpush1.msra.mxu0 %v2858
        %3724 = vmatprep.subr.mxu0 %v2863
        %3725 = vmatpush1.msra.mxu0 %v2862
        %3726 = vmatprep.subr.mxu0 %v2867
        %3727 = vmatpush1.msra.mxu0 %v2866
        %3728 = vmatprep.subr.mxu0 %v2871
        %3729 = vmatpush1.msra.mxu0 %v2870
        %3730 = vmatprep.subr.mxu0 %v2875
        %3731 = vmatpush1.msra.mxu0 %v2874
        %3732 = vmatprep.subr.mxu0 %v2879
        %3733 = vmatpush1.msra.mxu0 %v2878
        %3734 = vmatprep.subr.mxu0 %v2883
        %3735 = vmatpush1.msra.mxu0 %v2882
        %3736 = vmatprep.subr.mxu0 %v2887
        %3737 = vmatpush1.msra.mxu0 %v2886
        %3738 = vmatprep.subr.mxu0 %v2891
        %3739 = vmatpush1.msra.mxu0 %v2890
        %3740 = vmatprep.subr.mxu0 %v2895
        %3741 = vmatpush1.msra.mxu0 %v2894
        %3742 = vmatprep.subr.mxu0 %v2899
        %3743 = vmatpush1.msra.mxu0 %v2898
        %3744 = vmatprep.mubr.f32.mxu0 %v3361
        %3745 = vmatmul.mubr.f32.gmra.mrb[0].mxu0 %v3353
        %v3746 = vpop.f32.mrb[0].mxu0
        %v3747 = vadd.f32 %v3676, %v3746
        %v3748 = vpop.f32.mrb[0].mxu0
        %v3749 = vadd.f32 %v3678, %v3748
        %3750 = vdwg.mxu0
        %3751 = vmatprep.subr.mxu0 %v2903
        %3752 = vmatpush1.msra.mxu0 %v2902
        %3753 = vmatprep.subr.mxu0 %v2907
        %3754 = vmatpush1.msra.mxu0 %v2906
        %3755 = vmatprep.subr.mxu0 %v2911
        %3756 = vmatpush1.msra.mxu0 %v2910
        %3757 = vmatprep.subr.mxu0 %v2915
        %3758 = vmatpush1.msra.mxu0 %v2914
        %3759 = vmatprep.subr.mxu0 %v2919
        %3760 = vmatpush1.msra.mxu0 %v2918
        %3761 = vmatprep.subr.mxu0 %v2923
        %3762 = vmatpush1.msra.mxu0 %v2922
        %3763 = vmatprep.subr.mxu0 %v2927
        %3764 = vmatpush1.msra.mxu0 %v2926
        %3765 = vmatprep.subr.mxu0 %v2931
        %3766 = vmatpush1.msra.mxu0 %v2930
        %3767 = vmatprep.subr.mxu0 %v2935
        %3768 = vmatpush1.msra.mxu0 %v2934
        %3769 = vmatprep.subr.mxu0 %v2939
        %3770 = vmatpush1.msra.mxu0 %v2938
        %3771 = vmatprep.subr.mxu0 %v2943
        %3772 = vmatpush1.msra.mxu0 %v2942
        %3773 = vmatprep.subr.mxu0 %v2947
        %3774 = vmatpush1.msra.mxu0 %v2946
        %3775 = vmatprep.subr.mxu0 %v2951
        %3776 = vmatpush1.msra.mxu0 %v2950
        %3777 = vmatprep.subr.mxu0 %v2955
        %3778 = vmatpush1.msra.mxu0 %v2954
        %3779 = vmatprep.subr.mxu0 %v2959
        %3780 = vmatpush1.msra.mxu0 %v2958
        %3781 = vmatprep.subr.mxu0 %v2963
        %3782 = vmatpush1.msra.mxu0 %v2962
        %3783 = vmatprep.subr.mxu0 %v2967
        %3784 = vmatpush1.msra.mxu0 %v2966
        %3785 = vmatprep.subr.mxu0 %v2971
        %3786 = vmatpush1.msra.mxu0 %v2970
        %3787 = vmatprep.subr.mxu0 %v2975
        %3788 = vmatpush1.msra.mxu0 %v2974
        %3789 = vmatprep.subr.mxu0 %v2979
        %3790 = vmatpush1.msra.mxu0 %v2978
        %3791 = vmatprep.subr.mxu0 %v2983
        %3792 = vmatpush1.msra.mxu0 %v2982
        %3793 = vmatprep.subr.mxu0 %v2987
        %3794 = vmatpush1.msra.mxu0 %v2986
        %3795 = vmatprep.subr.mxu0 %v2991
        %3796 = vmatpush1.msra.mxu0 %v2990
        %3797 = vmatprep.subr.mxu0 %v2995
        %3798 = vmatpush1.msra.mxu0 %v2994
        %3799 = vmatprep.subr.mxu0 %v2999
        %3800 = vmatpush1.msra.mxu0 %v2998
        %3801 = vmatprep.subr.mxu0 %v3003
        %3802 = vmatpush1.msra.mxu0 %v3002
        %3803 = vmatprep.subr.mxu0 %v3007
        %3804 = vmatpush1.msra.mxu0 %v3006
        %3805 = vmatprep.subr.mxu0 %v3011
        %3806 = vmatpush1.msra.mxu0 %v3010
        %3807 = vmatprep.subr.mxu0 %v3015
        %3808 = vmatpush1.msra.mxu0 %v3014
        %3809 = vmatprep.subr.mxu0 %v3019
        %3810 = vmatpush1.msra.mxu0 %v3018
        %3811 = vmatprep.subr.mxu0 %v3023
        %3812 = vmatpush1.msra.mxu0 %v3022
        %3813 = vmatprep.subr.mxu0 %v3027
        %3814 = vmatpush1.msra.mxu0 %v3026
        %3815 = vmatprep.mubr.f32.mxu0 %v3362
        %3816 = vmatmul.mubr.f32.gmra.mrb[0].mxu0 %v3360
        %v3817 = vpop.f32.mrb[0].mxu0
        %v3818 = vadd.f32 %v3747, %v3817
        %v3819 = vpop.f32.mrb[0].mxu0
        %v3820 = vadd.f32 %v3749, %v3819
        %3821 = vdwg.mxu0
        %3822 = vmatprep.subr.mxu0 %v3031
        %3823 = vmatpush1.msra.mxu0 %v3030
        %3824 = vmatprep.subr.mxu0 %v3035
        %3825 = vmatpush1.msra.mxu0 %v3034
        %3826 = vmatprep.subr.mxu0 %v3039
        %3827 = vmatpush1.msra.mxu0 %v3038
        %3828 = vmatprep.subr.mxu0 %v3043
        %3829 = vmatpush1.msra.mxu0 %v3042
        %3830 = vmatprep.subr.mxu0 %v3047
        %3831 = vmatpush1.msra.mxu0 %v3046
        %3832 = vmatprep.subr.mxu0 %v3051
        %3833 = vmatpush1.msra.mxu0 %v3050
        %3834 = vmatprep.subr.mxu0 %v3055
        %3835 = vmatpush1.msra.mxu0 %v3054
        %3836 = vmatprep.subr.mxu0 %v3059
        %3837 = vmatpush1.msra.mxu0 %v3058
        %3838 = vmatprep.subr.mxu0 %v3063
        %3839 = vmatpush1.msra.mxu0 %v3062
        %3840 = vmatprep.subr.mxu0 %v3067
        %3841 = vmatpush1.msra.mxu0 %v3066
        %3842 = vmatprep.subr.mxu0 %v3071
        %3843 = vmatpush1.msra.mxu0 %v3070
        %3844 = vmatprep.subr.mxu0 %v3075
        %3845 = vmatpush1.msra.mxu0 %v3074
        %3846 = vmatprep.subr.mxu0 %v3079
        %3847 = vmatpush1.msra.mxu0 %v3078
        %3848 = vmatprep.subr.mxu0 %v3083
        %3849 = vmatpush1.msra.mxu0 %v3082
        %3850 = vmatprep.subr.mxu0 %v3087
        %3851 = vmatpush1.msra.mxu0 %v3086
        %3852 = vmatprep.subr.mxu0 %v3091
        %3853 = vmatpush1.msra.mxu0 %v3090
        %3854 = vmatprep.subr.mxu0 %v3095
        %3855 = vmatpush1.msra.mxu0 %v3094
        %3856 = vmatprep.subr.mxu0 %v3099
        %3857 = vmatpush1.msra.mxu0 %v3098
        %3858 = vmatprep.subr.mxu0 %v3103
        %3859 = vmatpush1.msra.mxu0 %v3102
        %3860 = vmatprep.subr.mxu0 %v3107
        %3861 = vmatpush1.msra.mxu0 %v3106
        %3862 = vmatprep.subr.mxu0 %v3111
        %3863 = vmatpush1.msra.mxu0 %v3110
        %3864 = vmatprep.subr.mxu0 %v3115
        %3865 = vmatpush1.msra.mxu0 %v3114
        %3866 = vmatprep.subr.mxu0 %v3119
        %3867 = vmatpush1.msra.mxu0 %v3118
        %3868 = vmatprep.subr.mxu0 %v3123
        %3869 = vmatpush1.msra.mxu0 %v3122
        %3870 = vmatprep.subr.mxu0 %v3127
        %3871 = vmatpush1.msra.mxu0 %v3126
        %3872 = vmatprep.subr.mxu0 %v3131
        %3873 = vmatpush1.msra.mxu0 %v3130
        %3874 = vmatprep.subr.mxu0 %v3135
        %3875 = vmatpush1.msra.mxu0 %v3134
        %3876 = vmatprep.subr.mxu0 %v3139
        %3877 = vmatpush1.msra.mxu0 %v3138
        %3878 = vmatprep.subr.mxu0 %v3143
        %3879 = vmatpush1.msra.mxu0 %v3142
        %3880 = vmatprep.subr.mxu0 %v3147
        %3881 = vmatpush1.msra.mxu0 %v3146
        %3882 = vmatprep.subr.mxu0 %v3151
        %3883 = vmatpush1.msra.mxu0 %v3150
        %3884 = vmatprep.subr.mxu0 %v3155
        %3885 = vmatpush1.msra.mxu0 %v3154
        %3886 = vmatprep.mubr.f32.mxu0 %v3378
        %3887 = vmatmul.mubr.f32.gmra.mrb[0].mxu0 %v3370
        %v3888 = vpop.f32.mrb[0].mxu0
        %v3889 = vadd.f32 %v3818, %v3888
        %v3890 = vpop.f32.mrb[0].mxu0
        %v3891 = vadd.f32 %v3820, %v3890
        %3892 = vdwg.mxu0
        %3893 = vmatprep.subr.mxu0 %v3159
        %3894 = vmatpush1.msra.mxu0 %v3158
        %3895 = vmatprep.subr.mxu0 %v3163
        %3896 = vmatpush1.msra.mxu0 %v3162
        %3897 = vmatprep.subr.mxu0 %v3167
        %3898 = vmatpush1.msra.mxu0 %v3166
        %3899 = vmatprep.subr.mxu0 %v3171
        %3900 = vmatpush1.msra.mxu0 %v3170
        %3901 = vmatprep.subr.mxu0 %v3175
        %3902 = vmatpush1.msra.mxu0 %v3174
        %3903 = vmatprep.subr.mxu0 %v3179
        %3904 = vmatpush1.msra.mxu0 %v3178
        %3905 = vmatprep.subr.mxu0 %v3183
        %3906 = vmatpush1.msra.mxu0 %v3182
        %3907 = vmatprep.subr.mxu0 %v3187
        %3908 = vmatpush1.msra.mxu0 %v3186
        %3909 = vmatprep.subr.mxu0 %v3191
        %3910 = vmatpush1.msra.mxu0 %v3190
        %3911 = vmatprep.subr.mxu0 %v3195
        %3912 = vmatpush1.msra.mxu0 %v3194
        %3913 = vmatprep.subr.mxu0 %v3199
        %3914 = vmatpush1.msra.mxu0 %v3198
        %3915 = vmatprep.subr.mxu0 %v3203
        %3916 = vmatpush1.msra.mxu0 %v3202
        %3917 = vmatprep.subr.mxu0 %v3207
        %3918 = vmatpush1.msra.mxu0 %v3206
        %3919 = vmatprep.subr.mxu0 %v3211
        %3920 = vmatpush1.msra.mxu0 %v3210
        %3921 = vmatprep.subr.mxu0 %v3215
        %3922 = vmatpush1.msra.mxu0 %v3214
        %3923 = vmatprep.subr.mxu0 %v3219
        %3924 = vmatpush1.msra.mxu0 %v3218
        %3925 = vmatprep.subr.mxu0 %v3223
        %3926 = vmatpush1.msra.mxu0 %v3222
        %3927 = vmatprep.subr.mxu0 %v3227
        %3928 = vmatpush1.msra.mxu0 %v3226
        %3929 = vmatprep.subr.mxu0 %v3231
        %3930 = vmatpush1.msra.mxu0 %v3230
        %3931 = vmatprep.subr.mxu0 %v3235
        %3932 = vmatpush1.msra.mxu0 %v3234
        %3933 = vmatprep.subr.mxu0 %v3239
        %3934 = vmatpush1.msra.mxu0 %v3238
        %3935 = vmatprep.subr.mxu0 %v3243
        %3936 = vmatpush1.msra.mxu0 %v3242
        %3937 = vmatprep.subr.mxu0 %v3247
        %3938 = vmatpush1.msra.mxu0 %v3246
        %3939 = vmatprep.subr.mxu0 %v3251
        %3940 = vmatpush1.msra.mxu0 %v3250
        %3941 = vmatprep.subr.mxu0 %v3255
        %3942 = vmatpush1.msra.mxu0 %v3254
        %3943 = vmatprep.subr.mxu0 %v3259
        %3944 = vmatpush1.msra.mxu0 %v3258
        %3945 = vmatprep.subr.mxu0 %v3263
        %3946 = vmatpush1.msra.mxu0 %v3262
        %3947 = vmatprep.subr.mxu0 %v3267
        %3948 = vmatpush1.msra.mxu0 %v3266
        %3949 = vmatprep.subr.mxu0 %v3271
        %3950 = vmatpush1.msra.mxu0 %v3270
        %3951 = vmatprep.subr.mxu0 %v3275
        %3952 = vmatpush1.msra.mxu0 %v3274
        %3953 = vmatprep.subr.mxu0 %v3279
        %3954 = vmatpush1.msra.mxu0 %v3278
        %3955 = vmatprep.subr.mxu0 %v3283
        %3956 = vmatpush1.msra.mxu0 %v3282
        %3957 = vmatprep.mubr.f32.mxu0 %v3379
        %3958 = vmatmul.mubr.f32.gmra.mrb[0].mxu0 %v3377
        %v3959 = vpop.f32.mrb[0].mxu0
        %v3960 = vadd.f32 %v3889, %v3959
        %v3961 = vpop.f32.mrb[0].mxu0
        %v3962 = vadd.f32 %v3891, %v3961
        %3963 = vdwg.mxu0
        %3964 = vmatprep.subr.mxu0 %v2265
        %3965 = vmatpush1.msra.mxu0 %v2264
        %3966 = vmatprep.subr.mxu0 %v2269
        %3967 = vmatpush1.msra.mxu0 %v2268
        %3968 = vmatprep.subr.mxu0 %v2273
        %3969 = vmatpush1.msra.mxu0 %v2272
        %3970 = vmatprep.subr.mxu0 %v2277
        %3971 = vmatpush1.msra.mxu0 %v2276
        %3972 = vmatprep.subr.mxu0 %v2281
        %3973 = vmatpush1.msra.mxu0 %v2280
        %3974 = vmatprep.subr.mxu0 %v2285
        %3975 = vmatpush1.msra.mxu0 %v2284
        %3976 = vmatprep.subr.mxu0 %v2289
        %3977 = vmatpush1.msra.mxu0 %v2288
        %3978 = vmatprep.subr.mxu0 %v2293
        %3979 = vmatpush1.msra.mxu0 %v2292
        %3980 = vmatprep.subr.mxu0 %v2297
        %3981 = vmatpush1.msra.mxu0 %v2296
        %3982 = vmatprep.subr.mxu0 %v2301
        %3983 = vmatpush1.msra.mxu0 %v2300
        %3984 = vmatprep.subr.mxu0 %v2305
        %3985 = vmatpush1.msra.mxu0 %v2304
        %3986 = vmatprep.subr.mxu0 %v2309
        %3987 = vmatpush1.msra.mxu0 %v2308
        %3988 = vmatprep.subr.mxu0 %v2313
        %3989 = vmatpush1.msra.mxu0 %v2312
        %3990 = vmatprep.subr.mxu0 %v2317
        %3991 = vmatpush1.msra.mxu0 %v2316
        %3992 = vmatprep.subr.mxu0 %v2321
        %3993 = vmatpush1.msra.mxu0 %v2320
        %3994 = vmatprep.subr.mxu0 %v2325
        %3995 = vmatpush1.msra.mxu0 %v2324
        %3996 = vmatprep.subr.mxu0 %v2329
        %3997 = vmatpush1.msra.mxu0 %v2328
        %3998 = vmatprep.subr.mxu0 %v2333
        %3999 = vmatpush1.msra.mxu0 %v2332
        %4000 = vmatprep.subr.mxu0 %v2337
        %4001 = vmatpush1.msra.mxu0 %v2336
        %4002 = vmatprep.subr.mxu0 %v2341
        %4003 = vmatpush1.msra.mxu0 %v2340
        %4004 = vmatprep.subr.mxu0 %v2345
        %4005 = vmatpush1.msra.mxu0 %v2344
        %4006 = vmatprep.subr.mxu0 %v2349
        %4007 = vmatpush1.msra.mxu0 %v2348
        %4008 = vmatprep.subr.mxu0 %v2353
        %4009 = vmatpush1.msra.mxu0 %v2352
        %4010 = vmatprep.subr.mxu0 %v2357
        %4011 = vmatpush1.msra.mxu0 %v2356
        %4012 = vmatprep.subr.mxu0 %v2361
        %4013 = vmatpush1.msra.mxu0 %v2360
        %4014 = vmatprep.subr.mxu0 %v2365
        %4015 = vmatpush1.msra.mxu0 %v2364
        %4016 = vmatprep.subr.mxu0 %v2369
        %4017 = vmatpush1.msra.mxu0 %v2368
        %4018 = vmatprep.subr.mxu0 %v2373
        %4019 = vmatpush1.msra.mxu0 %v2372
        %4020 = vmatprep.subr.mxu0 %v2377
        %4021 = vmatpush1.msra.mxu0 %v2376
        %4022 = vmatprep.subr.mxu0 %v2381
        %4023 = vmatpush1.msra.mxu0 %v2380
        %4024 = vmatprep.subr.mxu0 %v2385
        %4025 = vmatpush1.msra.mxu0 %v2384
        %4026 = vmatprep.subr.mxu0 %v2389
        %4027 = vmatpush1.msra.mxu0 %v2388
        %4028 = vmatprep.mubr.f32.mxu0 %v3327
        %4029 = vmatmul.mubr.f32.gmra.mrb[0].mxu0 %v3319
        %v4030 = vpop.f32.mrb[0].mxu0
        %v4031 = vadd.f32 %v3299, %v4030
        %v4032 = vpop.f32.mrb[0].mxu0
        %v4033 = vadd.f32 %v3303, %v4032
        %4034 = vdwg.mxu0
        %4035 = vmatprep.subr.mxu0 %v2393
        %4036 = vmatpush1.msra.mxu0 %v2392
        %4037 = vmatprep.subr.mxu0 %v2397
        %4038 = vmatpush1.msra.mxu0 %v2396
        %4039 = vmatprep.subr.mxu0 %v2401
        %4040 = vmatpush1.msra.mxu0 %v2400
        %4041 = vmatprep.subr.mxu0 %v2405
        %4042 = vmatpush1.msra.mxu0 %v2404
        %4043 = vmatprep.subr.mxu0 %v2409
        %4044 = vmatpush1.msra.mxu0 %v2408
        %4045 = vmatprep.subr.mxu0 %v2413
        %4046 = vmatpush1.msra.mxu0 %v2412
        %4047 = vmatprep.subr.mxu0 %v2417
        %4048 = vmatpush1.msra.mxu0 %v2416
        %4049 = vmatprep.subr.mxu0 %v2421
        %4050 = vmatpush1.msra.mxu0 %v2420
        %4051 = vmatprep.subr.mxu0 %v2425
        %4052 = vmatpush1.msra.mxu0 %v2424
        %4053 = vmatprep.subr.mxu0 %v2429
        %4054 = vmatpush1.msra.mxu0 %v2428
        %4055 = vmatprep.subr.mxu0 %v2433
        %4056 = vmatpush1.msra.mxu0 %v2432
        %4057 = vmatprep.subr.mxu0 %v2437
        %4058 = vmatpush1.msra.mxu0 %v2436
        %4059 = vmatprep.subr.mxu0 %v2441
        %4060 = vmatpush1.msra.mxu0 %v2440
        %4061 = vmatprep.subr.mxu0 %v2445
        %4062 = vmatpush1.msra.mxu0 %v2444
        %4063 = vmatprep.subr.mxu0 %v2449
        %4064 = vmatpush1.msra.mxu0 %v2448
        %4065 = vmatprep.subr.mxu0 %v2453
        %4066 = vmatpush1.msra.mxu0 %v2452
        %4067 = vmatprep.subr.mxu0 %v2457
        %4068 = vmatpush1.msra.mxu0 %v2456
        %4069 = vmatprep.subr.mxu0 %v2461
        %4070 = vmatpush1.msra.mxu0 %v2460
        %4071 = vmatprep.subr.mxu0 %v2465
        %4072 = vmatpush1.msra.mxu0 %v2464
        %4073 = vmatprep.subr.mxu0 %v2469
        %4074 = vmatpush1.msra.mxu0 %v2468
        %4075 = vmatprep.subr.mxu0 %v2473
        %4076 = vmatpush1.msra.mxu0 %v2472
        %4077 = vmatprep.subr.mxu0 %v2477
        %4078 = vmatpush1.msra.mxu0 %v2476
        %4079 = vmatprep.subr.mxu0 %v2481
        %4080 = vmatpush1.msra.mxu0 %v2480
        %4081 = vmatprep.subr.mxu0 %v2485
        %4082 = vmatpush1.msra.mxu0 %v2484
        %4083 = vmatprep.subr.mxu0 %v2489
        %4084 = vmatpush1.msra.mxu0 %v2488
        %4085 = vmatprep.subr.mxu0 %v2493
        %4086 = vmatpush1.msra.mxu0 %v2492
        %4087 = vmatprep.subr.mxu0 %v2497
        %4088 = vmatpush1.msra.mxu0 %v2496
        %4089 = vmatprep.subr.mxu0 %v2501
        %4090 = vmatpush1.msra.mxu0 %v2500
        %4091 = vmatprep.subr.mxu0 %v2505
        %4092 = vmatpush1.msra.mxu0 %v2504
        %4093 = vmatprep.subr.mxu0 %v2509
        %4094 = vmatpush1.msra.mxu0 %v2508
        %4095 = vmatprep.subr.mxu0 %v2513
        %4096 = vmatpush1.msra.mxu0 %v2512
        %4097 = vmatprep.subr.mxu0 %v2517
        %4098 = vmatpush1.msra.mxu0 %v2516
        %4099 = vmatprep.mubr.f32.mxu0 %v3328
        %4100 = vmatmul.mubr.f32.gmra.mrb[0].mxu0 %v3326
        %v4101 = vpop.f32.mrb[0].mxu0
        %v4102 = vadd.f32 %v4031, %v4101
        %v4103 = vpop.f32.mrb[0].mxu0
        %v4104 = vadd.f32 %v4033, %v4103
        %4105 = vdwg.mxu0
        %4106 = vmatprep.subr.mxu0 %v2521
        %4107 = vmatpush1.msra.mxu0 %v2520
        %4108 = vmatprep.subr.mxu0 %v2525
        %4109 = vmatpush1.msra.mxu0 %v2524
        %4110 = vmatprep.subr.mxu0 %v2529
        %4111 = vmatpush1.msra.mxu0 %v2528
        %4112 = vmatprep.subr.mxu0 %v2533
        %4113 = vmatpush1.msra.mxu0 %v2532
        %4114 = vmatprep.subr.mxu0 %v2537
        %4115 = vmatpush1.msra.mxu0 %v2536
        %4116 = vmatprep.subr.mxu0 %v2541
        %4117 = vmatpush1.msra.mxu0 %v2540
        %4118 = vmatprep.subr.mxu0 %v2545
        %4119 = vmatpush1.msra.mxu0 %v2544
        %4120 = vmatprep.subr.mxu0 %v2549
        %4121 = vmatpush1.msra.mxu0 %v2548
        %4122 = vmatprep.subr.mxu0 %v2553
        %4123 = vmatpush1.msra.mxu0 %v2552
        %4124 = vmatprep.subr.mxu0 %v2557
        %4125 = vmatpush1.msra.mxu0 %v2556
        %4126 = vmatprep.subr.mxu0 %v2561
        %4127 = vmatpush1.msra.mxu0 %v2560
        %4128 = vmatprep.subr.mxu0 %v2565
        %4129 = vmatpush1.msra.mxu0 %v2564
        %4130 = vmatprep.subr.mxu0 %v2569
        %4131 = vmatpush1.msra.mxu0 %v2568
        %4132 = vmatprep.subr.mxu0 %v2573
        %4133 = vmatpush1.msra.mxu0 %v2572
        %4134 = vmatprep.subr.mxu0 %v2577
        %4135 = vmatpush1.msra.mxu0 %v2576
        %4136 = vmatprep.subr.mxu0 %v2581
        %4137 = vmatpush1.msra.mxu0 %v2580
        %4138 = vmatprep.subr.mxu0 %v2585
        %4139 = vmatpush1.msra.mxu0 %v2584
        %4140 = vmatprep.subr.mxu0 %v2589
        %4141 = vmatpush1.msra.mxu0 %v2588
        %4142 = vmatprep.subr.mxu0 %v2593
        %4143 = vmatpush1.msra.mxu0 %v2592
        %4144 = vmatprep.subr.mxu0 %v2597
        %4145 = vmatpush1.msra.mxu0 %v2596
        %4146 = vmatprep.subr.mxu0 %v2601
        %4147 = vmatpush1.msra.mxu0 %v2600
        %4148 = vmatprep.subr.mxu0 %v2605
        %4149 = vmatpush1.msra.mxu0 %v2604
        %4150 = vmatprep.subr.mxu0 %v2609
        %4151 = vmatpush1.msra.mxu0 %v2608
        %4152 = vmatprep.subr.mxu0 %v2613
        %4153 = vmatpush1.msra.mxu0 %v2612
        %4154 = vmatprep.subr.mxu0 %v2617
        %4155 = vmatpush1.msra.mxu0 %v2616
        %4156 = vmatprep.subr.mxu0 %v2621
        %4157 = vmatpush1.msra.mxu0 %v2620
        %4158 = vmatprep.subr.mxu0 %v2625
        %4159 = vmatpush1.msra.mxu0 %v2624
        %4160 = vmatprep.subr.mxu0 %v2629
        %4161 = vmatpush1.msra.mxu0 %v2628
        %4162 = vmatprep.subr.mxu0 %v2633
        %4163 = vmatpush1.msra.mxu0 %v2632
        %4164 = vmatprep.subr.mxu0 %v2637
        %4165 = vmatpush1.msra.mxu0 %v2636
        %4166 = vmatprep.subr.mxu0 %v2641
        %4167 = vmatpush1.msra.mxu0 %v2640
        %4168 = vmatprep.subr.mxu0 %v2645
        %4169 = vmatpush1.msra.mxu0 %v2644
        %4170 = vmatprep.mubr.f32.mxu0 %v3344
        %4171 = vmatmul.mubr.f32.gmra.mrb[0].mxu0 %v3336
        %v4172 = vpop.f32.mrb[0].mxu0
        %v4173 = vadd.f32 %v4102, %v4172
        %v4174 = vpop.f32.mrb[0].mxu0
        %v4175 = vadd.f32 %v4104, %v4174
        %4176 = vdwg.mxu0
        %4177 = vmatprep.subr.mxu0 %v2649
        %4178 = vmatpush1.msra.mxu0 %v2648
        %4179 = vmatprep.subr.mxu0 %v2653
        %4180 = vmatpush1.msra.mxu0 %v2652
        %4181 = vmatprep.subr.mxu0 %v2657
        %4182 = vmatpush1.msra.mxu0 %v2656
        %4183 = vmatprep.subr.mxu0 %v2661
        %4184 = vmatpush1.msra.mxu0 %v2660
        %4185 = vmatprep.subr.mxu0 %v2665
        %4186 = vmatpush1.msra.mxu0 %v2664
        %4187 = vmatprep.subr.mxu0 %v2669
        %4188 = vmatpush1.msra.mxu0 %v2668
        %4189 = vmatprep.subr.mxu0 %v2673
        %4190 = vmatpush1.msra.mxu0 %v2672
        %4191 = vmatprep.subr.mxu0 %v2677
        %4192 = vmatpush1.msra.mxu0 %v2676
        %4193 = vmatprep.subr.mxu0 %v2681
        %4194 = vmatpush1.msra.mxu0 %v2680
        %4195 = vmatprep.subr.mxu0 %v2685
        %4196 = vmatpush1.msra.mxu0 %v2684
        %4197 = vmatprep.subr.mxu0 %v2689
        %4198 = vmatpush1.msra.mxu0 %v2688
        %4199 = vmatprep.subr.mxu0 %v2693
        %4200 = vmatpush1.msra.mxu0 %v2692
        %4201 = vmatprep.subr.mxu0 %v2697
        %4202 = vmatpush1.msra.mxu0 %v2696
        %4203 = vmatprep.subr.mxu0 %v2701
        %4204 = vmatpush1.msra.mxu0 %v2700
        %4205 = vmatprep.subr.mxu0 %v2705
        %4206 = vmatpush1.msra.mxu0 %v2704
        %4207 = vmatprep.subr.mxu0 %v2709
        %4208 = vmatpush1.msra.mxu0 %v2708
        %4209 = vmatprep.subr.mxu0 %v2713
        %4210 = vmatpush1.msra.mxu0 %v2712
        %4211 = vmatprep.subr.mxu0 %v2717
        %4212 = vmatpush1.msra.mxu0 %v2716
        %4213 = vmatprep.subr.mxu0 %v2721
        %4214 = vmatpush1.msra.mxu0 %v2720
        %4215 = vmatprep.subr.mxu0 %v2725
        %4216 = vmatpush1.msra.mxu0 %v2724
        %4217 = vmatprep.subr.mxu0 %v2729
        %4218 = vmatpush1.msra.mxu0 %v2728
        %4219 = vmatprep.subr.mxu0 %v2733
        %4220 = vmatpush1.msra.mxu0 %v2732
        %4221 = vmatprep.subr.mxu0 %v2737
        %4222 = vmatpush1.msra.mxu0 %v2736
        %4223 = vmatprep.subr.mxu0 %v2741
        %4224 = vmatpush1.msra.mxu0 %v2740
        %4225 = vmatprep.subr.mxu0 %v2745
        %4226 = vmatpush1.msra.mxu0 %v2744
        %4227 = vmatprep.subr.mxu0 %v2749
        %4228 = vmatpush1.msra.mxu0 %v2748
        %4229 = vmatprep.subr.mxu0 %v2753
        %4230 = vmatpush1.msra.mxu0 %v2752
        %4231 = vmatprep.subr.mxu0 %v2757
        %4232 = vmatpush1.msra.mxu0 %v2756
        %4233 = vmatprep.subr.mxu0 %v2761
        %4234 = vmatpush1.msra.mxu0 %v2760
        %4235 = vmatprep.subr.mxu0 %v2765
        %4236 = vmatpush1.msra.mxu0 %v2764
        %4237 = vmatprep.subr.mxu0 %v2769
        %4238 = vmatpush1.msra.mxu0 %v2768
        %4239 = vmatprep.subr.mxu0 %v2773
        %4240 = vmatpush1.msra.mxu0 %v2772
        %4241 = vmatprep.mubr.f32.mxu0 %v3345
        %4242 = vmatmul.mubr.f32.gmra.mrb[0].mxu0 %v3343
        %v4243 = vpop.f32.mrb[0].mxu0
        %v4244 = vadd.f32 %v4173, %v4243
        %v4245 = vpop.f32.mrb[0].mxu0
        %v4246 = vadd.f32 %v4175, %v4245
        %4247 = vdwg.mxu0
        %4248 = vmatprep.subr.mxu0 %v2777
        %4249 = vmatpush1.msra.mxu0 %v2776
        %4250 = vmatprep.subr.mxu0 %v2781
        %4251 = vmatpush1.msra.mxu0 %v2780
        %4252 = vmatprep.subr.mxu0 %v2785
        %4253 = vmatpush1.msra.mxu0 %v2784
        %4254 = vmatprep.subr.mxu0 %v2789
        %4255 = vmatpush1.msra.mxu0 %v2788
        %4256 = vmatprep.subr.mxu0 %v2793
        %4257 = vmatpush1.msra.mxu0 %v2792
        %4258 = vmatprep.subr.mxu0 %v2797
        %4259 = vmatpush1.msra.mxu0 %v2796
        %4260 = vmatprep.subr.mxu0 %v2801
        %4261 = vmatpush1.msra.mxu0 %v2800
        %4262 = vmatprep.subr.mxu0 %v2805
        %4263 = vmatpush1.msra.mxu0 %v2804
        %4264 = vmatprep.subr.mxu0 %v2809
        %4265 = vmatpush1.msra.mxu0 %v2808
        %4266 = vmatprep.subr.mxu0 %v2813
        %4267 = vmatpush1.msra.mxu0 %v2812
        %4268 = vmatprep.subr.mxu0 %v2817
        %4269 = vmatpush1.msra.mxu0 %v2816
        %4270 = vmatprep.subr.mxu0 %v2821
        %4271 = vmatpush1.msra.mxu0 %v2820
        %4272 = vmatprep.subr.mxu0 %v2825
        %4273 = vmatpush1.msra.mxu0 %v2824
        %4274 = vmatprep.subr.mxu0 %v2829
        %4275 = vmatpush1.msra.mxu0 %v2828
        %4276 = vmatprep.subr.mxu0 %v2833
        %4277 = vmatpush1.msra.mxu0 %v2832
        %4278 = vmatprep.subr.mxu0 %v2837
        %4279 = vmatpush1.msra.mxu0 %v2836
        %4280 = vmatprep.subr.mxu0 %v2841
        %4281 = vmatpush1.msra.mxu0 %v2840
        %4282 = vmatprep.subr.mxu0 %v2845
        %4283 = vmatpush1.msra.mxu0 %v2844
        %4284 = vmatprep.subr.mxu0 %v2849
        %4285 = vmatpush1.msra.mxu0 %v2848
        %4286 = vmatprep.subr.mxu0 %v2853
        %4287 = vmatpush1.msra.mxu0 %v2852
        %4288 = vmatprep.subr.mxu0 %v2857
        %4289 = vmatpush1.msra.mxu0 %v2856
        %4290 = vmatprep.subr.mxu0 %v2861
        %4291 = vmatpush1.msra.mxu0 %v2860
        %4292 = vmatprep.subr.mxu0 %v2865
        %4293 = vmatpush1.msra.mxu0 %v2864
        %4294 = vmatprep.subr.mxu0 %v2869
        %4295 = vmatpush1.msra.mxu0 %v2868
        %4296 = vmatprep.subr.mxu0 %v2873
        %4297 = vmatpush1.msra.mxu0 %v2872
        %4298 = vmatprep.subr.mxu0 %v2877
        %4299 = vmatpush1.msra.mxu0 %v2876
        %4300 = vmatprep.subr.mxu0 %v2881
        %4301 = vmatpush1.msra.mxu0 %v2880
        %4302 = vmatprep.subr.mxu0 %v2885
        %4303 = vmatpush1.msra.mxu0 %v2884
        %4304 = vmatprep.subr.mxu0 %v2889
        %4305 = vmatpush1.msra.mxu0 %v2888
        %4306 = vmatprep.subr.mxu0 %v2893
        %4307 = vmatpush1.msra.mxu0 %v2892
        %4308 = vmatprep.subr.mxu0 %v2897
        %4309 = vmatpush1.msra.mxu0 %v2896
        %4310 = vmatprep.subr.mxu0 %v2901
        %4311 = vmatpush1.msra.mxu0 %v2900
        %4312 = vmatprep.mubr.f32.mxu0 %v3361
        %4313 = vmatmul.mubr.f32.gmra.mrb[0].mxu0 %v3353
        %v4314 = vpop.f32.mrb[0].mxu0
        %v4315 = vadd.f32 %v4244, %v4314
        %v4316 = vpop.f32.mrb[0].mxu0
        %v4317 = vadd.f32 %v4246, %v4316
        %4318 = vdwg.mxu0
        %4319 = vmatprep.subr.mxu0 %v2905
        %4320 = vmatpush1.msra.mxu0 %v2904
        %4321 = vmatprep.subr.mxu0 %v2909
        %4322 = vmatpush1.msra.mxu0 %v2908
        %4323 = vmatprep.subr.mxu0 %v2913
        %4324 = vmatpush1.msra.mxu0 %v2912
        %4325 = vmatprep.subr.mxu0 %v2917
        %4326 = vmatpush1.msra.mxu0 %v2916
        %4327 = vmatprep.subr.mxu0 %v2921
        %4328 = vmatpush1.msra.mxu0 %v2920
        %4329 = vmatprep.subr.mxu0 %v2925
        %4330 = vmatpush1.msra.mxu0 %v2924
        %4331 = vmatprep.subr.mxu0 %v2929
        %4332 = vmatpush1.msra.mxu0 %v2928
        %4333 = vmatprep.subr.mxu0 %v2933
        %4334 = vmatpush1.msra.mxu0 %v2932
        %4335 = vmatprep.subr.mxu0 %v2937
        %4336 = vmatpush1.msra.mxu0 %v2936
        %4337 = vmatprep.subr.mxu0 %v2941
        %4338 = vmatpush1.msra.mxu0 %v2940
        %4339 = vmatprep.subr.mxu0 %v2945
        %4340 = vmatpush1.msra.mxu0 %v2944
        %4341 = vmatprep.subr.mxu0 %v2949
        %4342 = vmatpush1.msra.mxu0 %v2948
        %4343 = vmatprep.subr.mxu0 %v2953
        %4344 = vmatpush1.msra.mxu0 %v2952
        %4345 = vmatprep.subr.mxu0 %v2957
        %4346 = vmatpush1.msra.mxu0 %v2956
        %4347 = vmatprep.subr.mxu0 %v2961
        %4348 = vmatpush1.msra.mxu0 %v2960
        %4349 = vmatprep.subr.mxu0 %v2965
        %4350 = vmatpush1.msra.mxu0 %v2964
        %4351 = vmatprep.subr.mxu0 %v2969
        %4352 = vmatpush1.msra.mxu0 %v2968
        %4353 = vmatprep.subr.mxu0 %v2973
        %4354 = vmatpush1.msra.mxu0 %v2972
        %4355 = vmatprep.subr.mxu0 %v2977
        %4356 = vmatpush1.msra.mxu0 %v2976
        %4357 = vmatprep.subr.mxu0 %v2981
        %4358 = vmatpush1.msra.mxu0 %v2980
        %4359 = vmatprep.subr.mxu0 %v2985
        %4360 = vmatpush1.msra.mxu0 %v2984
        %4361 = vmatprep.subr.mxu0 %v2989
        %4362 = vmatpush1.msra.mxu0 %v2988
        %4363 = vmatprep.subr.mxu0 %v2993
        %4364 = vmatpush1.msra.mxu0 %v2992
        %4365 = vmatprep.subr.mxu0 %v2997
        %4366 = vmatpush1.msra.mxu0 %v2996
        %4367 = vmatprep.subr.mxu0 %v3001
        %4368 = vmatpush1.msra.mxu0 %v3000
        %4369 = vmatprep.subr.mxu0 %v3005
        %4370 = vmatpush1.msra.mxu0 %v3004
        %4371 = vmatprep.subr.mxu0 %v3009
        %4372 = vmatpush1.msra.mxu0 %v3008
        %4373 = vmatprep.subr.mxu0 %v3013
        %4374 = vmatpush1.msra.mxu0 %v3012
        %4375 = vmatprep.subr.mxu0 %v3017
        %4376 = vmatpush1.msra.mxu0 %v3016
        %4377 = vmatprep.subr.mxu0 %v3021
        %4378 = vmatpush1.msra.mxu0 %v3020
        %4379 = vmatprep.subr.mxu0 %v3025
        %4380 = vmatpush1.msra.mxu0 %v3024
        %4381 = vmatprep.subr.mxu0 %v3029
        %4382 = vmatpush1.msra.mxu0 %v3028
        %4383 = vmatprep.mubr.f32.mxu0 %v3362
        %4384 = vmatmul.mubr.f32.gmra.mrb[0].mxu0 %v3360
        %v4385 = vpop.f32.mrb[0].mxu0
        %v4386 = vadd.f32 %v4315, %v4385
        %v4387 = vpop.f32.mrb[0].mxu0
        %v4388 = vadd.f32 %v4317, %v4387
        %4389 = vdwg.mxu0
        %4390 = vmatprep.subr.mxu0 %v3033
        %4391 = vmatpush1.msra.mxu0 %v3032
        %4392 = vmatprep.subr.mxu0 %v3037
        %4393 = vmatpush1.msra.mxu0 %v3036
        %4394 = vmatprep.subr.mxu0 %v3041
        %4395 = vmatpush1.msra.mxu0 %v3040
        %4396 = vmatprep.subr.mxu0 %v3045
        %4397 = vmatpush1.msra.mxu0 %v3044
        %4398 = vmatprep.subr.mxu0 %v3049
        %4399 = vmatpush1.msra.mxu0 %v3048
        %4400 = vmatprep.subr.mxu0 %v3053
        %4401 = vmatpush1.msra.mxu0 %v3052
        %4402 = vmatprep.subr.mxu0 %v3057
        %4403 = vmatpush1.msra.mxu0 %v3056
        %4404 = vmatprep.subr.mxu0 %v3061
        %4405 = vmatpush1.msra.mxu0 %v3060
        %4406 = vmatprep.subr.mxu0 %v3065
        %4407 = vmatpush1.msra.mxu0 %v3064
        %4408 = vmatprep.subr.mxu0 %v3069
        %4409 = vmatpush1.msra.mxu0 %v3068
        %4410 = vmatprep.subr.mxu0 %v3073
        %4411 = vmatpush1.msra.mxu0 %v3072
        %4412 = vmatprep.subr.mxu0 %v3077
        %4413 = vmatpush1.msra.mxu0 %v3076
        %4414 = vmatprep.subr.mxu0 %v3081
        %4415 = vmatpush1.msra.mxu0 %v3080
        %4416 = vmatprep.subr.mxu0 %v3085
        %4417 = vmatpush1.msra.mxu0 %v3084
        %4418 = vmatprep.subr.mxu0 %v3089
        %4419 = vmatpush1.msra.mxu0 %v3088
        %4420 = vmatprep.subr.mxu0 %v3093
        %4421 = vmatpush1.msra.mxu0 %v3092
        %4422 = vmatprep.subr.mxu0 %v3097
        %4423 = vmatpush1.msra.mxu0 %v3096
        %4424 = vmatprep.subr.mxu0 %v3101
        %4425 = vmatpush1.msra.mxu0 %v3100
        %4426 = vmatprep.subr.mxu0 %v3105
        %4427 = vmatpush1.msra.mxu0 %v3104
        %4428 = vmatprep.subr.mxu0 %v3109
        %4429 = vmatpush1.msra.mxu0 %v3108
        %4430 = vmatprep.subr.mxu0 %v3113
        %4431 = vmatpush1.msra.mxu0 %v3112
        %4432 = vmatprep.subr.mxu0 %v3117
        %4433 = vmatpush1.msra.mxu0 %v3116
        %4434 = vmatprep.subr.mxu0 %v3121
        %4435 = vmatpush1.msra.mxu0 %v3120
        %4436 = vmatprep.subr.mxu0 %v3125
        %4437 = vmatpush1.msra.mxu0 %v3124
        %4438 = vmatprep.subr.mxu0 %v3129
        %4439 = vmatpush1.msra.mxu0 %v3128
        %4440 = vmatprep.subr.mxu0 %v3133
        %4441 = vmatpush1.msra.mxu0 %v3132
        %4442 = vmatprep.subr.mxu0 %v3137
        %4443 = vmatpush1.msra.mxu0 %v3136
        %4444 = vmatprep.subr.mxu0 %v3141
        %4445 = vmatpush1.msra.mxu0 %v3140
        %4446 = vmatprep.subr.mxu0 %v3145
        %4447 = vmatpush1.msra.mxu0 %v3144
        %4448 = vmatprep.subr.mxu0 %v3149
        %4449 = vmatpush1.msra.mxu0 %v3148
        %4450 = vmatprep.subr.mxu0 %v3153
        %4451 = vmatpush1.msra.mxu0 %v3152
        %4452 = vmatprep.subr.mxu0 %v3157
        %4453 = vmatpush1.msra.mxu0 %v3156
        %4454 = vmatprep.mubr.f32.mxu0 %v3378
        %4455 = vmatmul.mubr.f32.gmra.mrb[0].mxu0 %v3370
        %v4456 = vpop.f32.mrb[0].mxu0
        %v4457 = vadd.f32 %v4386, %v4456
        %v4458 = vpop.f32.mrb[0].mxu0
        %v4459 = vadd.f32 %v4388, %v4458
        %4460 = vdwg.mxu0
        %4461 = vmatprep.subr.mxu0 %v3161
        %4462 = vmatpush1.msra.mxu0 %v3160
        %4463 = vmatprep.subr.mxu0 %v3165
        %4464 = vmatpush1.msra.mxu0 %v3164
        %4465 = vmatprep.subr.mxu0 %v3169
        %4466 = vmatpush1.msra.mxu0 %v3168
        %4467 = vmatprep.subr.mxu0 %v3173
        %4468 = vmatpush1.msra.mxu0 %v3172
        %4469 = vmatprep.subr.mxu0 %v3177
        %4470 = vmatpush1.msra.mxu0 %v3176
        %4471 = vmatprep.subr.mxu0 %v3181
        %4472 = vmatpush1.msra.mxu0 %v3180
        %4473 = vmatprep.subr.mxu0 %v3185
        %4474 = vmatpush1.msra.mxu0 %v3184
        %4475 = vmatprep.subr.mxu0 %v3189
        %4476 = vmatpush1.msra.mxu0 %v3188
        %4477 = vmatprep.subr.mxu0 %v3193
        %4478 = vmatpush1.msra.mxu0 %v3192
        %4479 = vmatprep.subr.mxu0 %v3197
        %4480 = vmatpush1.msra.mxu0 %v3196
        %4481 = vmatprep.subr.mxu0 %v3201
        %4482 = vmatpush1.msra.mxu0 %v3200
        %4483 = vmatprep.subr.mxu0 %v3205
        %4484 = vmatpush1.msra.mxu0 %v3204
        %4485 = vmatprep.subr.mxu0 %v3209
        %4486 = vmatpush1.msra.mxu0 %v3208
        %4487 = vmatprep.subr.mxu0 %v3213
        %4488 = vmatpush1.msra.mxu0 %v3212
        %4489 = vmatprep.subr.mxu0 %v3217
        %4490 = vmatpush1.msra.mxu0 %v3216
        %4491 = vmatprep.subr.mxu0 %v3221
        %4492 = vmatpush1.msra.mxu0 %v3220
        %4493 = vmatprep.subr.mxu0 %v3225
        %4494 = vmatpush1.msra.mxu0 %v3224
        %4495 = vmatprep.subr.mxu0 %v3229
        %4496 = vmatpush1.msra.mxu0 %v3228
        %4497 = vmatprep.subr.mxu0 %v3233
        %4498 = vmatpush1.msra.mxu0 %v3232
        %4499 = vmatprep.subr.mxu0 %v3237
        %4500 = vmatpush1.msra.mxu0 %v3236
        %4501 = vmatprep.subr.mxu0 %v3241
        %4502 = vmatpush1.msra.mxu0 %v3240
        %4503 = vmatprep.subr.mxu0 %v3245
        %4504 = vmatpush1.msra.mxu0 %v3244
        %4505 = vmatprep.subr.mxu0 %v3249
        %4506 = vmatpush1.msra.mxu0 %v3248
        %4507 = vmatprep.subr.mxu0 %v3253
        %4508 = vmatpush1.msra.mxu0 %v3252
        %4509 = vmatprep.subr.mxu0 %v3257
        %4510 = vmatpush1.msra.mxu0 %v3256
        %4511 = vmatprep.subr.mxu0 %v3261
        %4512 = vmatpush1.msra.mxu0 %v3260
        %4513 = vmatprep.subr.mxu0 %v3265
        %4514 = vmatpush1.msra.mxu0 %v3264
        %4515 = vmatprep.subr.mxu0 %v3269
        %4516 = vmatpush1.msra.mxu0 %v3268
        %4517 = vmatprep.subr.mxu0 %v3273
        %4518 = vmatpush1.msra.mxu0 %v3272
        %4519 = vmatprep.subr.mxu0 %v3277
        %4520 = vmatpush1.msra.mxu0 %v3276
        %4521 = vmatprep.subr.mxu0 %v3281
        %4522 = vmatpush1.msra.mxu0 %v3280
        %4523 = vmatprep.subr.mxu0 %v3285
        %4524 = vmatpush1.msra.mxu0 %v3284
        %4525 = vmatprep.mubr.f32.mxu0 %v3379
        %4526 = vmatmul.mubr.f32.gmra.mrb[0].mxu0 %v3377
        %v4527 = vpop.f32.mrb[0].mxu0
        %v4528 = vadd.f32 %v4457, %v4527
        %v4529 = vpop.f32.mrb[0].mxu0
        %v4530 = vadd.f32 %v4459, %v4529
        %4531 = vdwg.mxu0
        %v4536 = vcombine.low %v3960, %v3962
        %v4537 = vcombine.low %v4528, %v4530
        %v4539 = vunpack.c.l.s4 1983009808
        %v4540 = vunpack.c.0.s8 %v4539
        %v4541 = vlaneseq
        %v4542 = vshrl.u32 %v4541, 7
        %v4543 = vsub.s32 %v4540, %v4542
        %v4544 = vrot.slane %v4536, %v4543
        %v4546 = vunpack.c.l.s4 1983009808
        %v4547 = vunpack.c.0.s8 %v4546
        %v4548 = vlaneseq
        %v4549 = vshrl.u32 %v4548, 7
        %v4550 = vsub.s32 %v4547, %v4549
        %v4551 = vrot.slane %v4537, %v4550
        %v4552 = vcombine.low %v4544, %v4551
        %4554 = vst [vmem:[%s2256] sm:$0xff] %v4552
        %s4555 = smul.u32 4, %s14
        %p4556 = scmp.lt.s32.totalorder %s4555, 11
        %s4557 = scalar_select %p4556, %s4555, 11
        %s4558 = smul.addr %s4557, 2
        %s4559 = scalar_lea.vmem %s3, %s4558
        // Predicated region
        $region56: #{cnn_forward.5} parent=50 // pred_check
          %p4560 = pneg %p105
        $region57: #{cnn_forward.5} parent=50 // pred_check_branch
          %4562 = sbr.rel (%p4560) target = $region59
        $region58: #{cnn_forward.5} parent=50 // pred_region
          %s4563 = smul.u32 4, %s14
        $region59: #{cnn_forward.5} parent=50 // pred_fallthru
          _
      $region51: #{cnn_forward.5} parent=5 // pred_fallthru
        _
      %p4564 = scmp.le.s32.totalorder 2, %s9
      // Predicated region
      $region60: #{cnn_forward.5} parent=5 // pred_check
        %p4565 = pneg %p4564
      $region61: #{cnn_forward.5} parent=5 // pred_check_branch
        %4567 = sbr.rel (%p4565) target = $region63
      $region62: #{cnn_forward.5} parent=5 // pred_region
        %s4568 = ssub.s32 %s9, 2
        // Predicated region
        $region64: #{cnn_forward.5} parent=62 // pred_check
          %p4569 = pneg %p111
        $region65: #{cnn_forward.5} parent=62 // pred_check_branch
          %4571 = sbr.rel (%p4569) target = $region67
        $region66: #{cnn_forward.5} parent=62 // pred_region
          %s4572 = smul.u32 4, %s15
          %p4573 = scmp.lt.s32.totalorder %s4572, 11
          %s4574 = scalar_select %p4573, %s4572, 11
          %s4575 = smul.addr %s4574, 2
          %s4576 = scalar_lea.vmem %s3, %s4575
        $region67: #{cnn_forward.5} parent=62 // pred_fallthru
          _
      $region63: #{cnn_forward.5} parent=5 // pred_fallthru
        _
    $region6: #{cnn_forward.5} parent=1 // loop_footer
      %s13 = sadd.s32 1, %s9
    $region7: #{cnn_forward.5} parent=1 // loop_footer_branch
      %8 = sbr.rel target = $region3
    $region8: #{cnn_forward.5} parent=1 // loop_exit
      _

</llo_original>
